<compile_context>
chip_gen: v7x
topology: tpu7x:2x2x1
jax: 0.10.0
libtpu: 0.0.40
codegen_flags: <defaults>
</compile_context>

<pallas_src>
import jax
import jax.numpy as jnp
from jax import lax
from jax.experimental import pallas as pl
from jax.experimental.pallas import tpu as pltpu  # noqa: F401  (not required)

# ----------------------------- config --------------------------------------
B        = 2     # batch
T_IN     = 8     # encoder time steps
T_MEL    = 6     # decoder (mel) time steps
E        = 32    # encoder_embedding_dim
H        = 32    # attention_rnn_dim
DDEC     = 32    # decoder_rnn_dim
P        = 32    # prenet_dim
A        = 32    # attention_dim
NMEL     = 8     # n_mel_channels
NFRAMES  = 1     # n_frames_per_step
M        = NMEL * NFRAMES
NFILT    = 4     # attention_location_n_filters
KSIZE    = 3     # attention_location_kernel_size
PAD      = (KSIZE - 1) // 2
P_ATT_DROP = 0.1
P_DEC_DROP = 0.1
NEG_INF  = -1e30
F32 = jnp.float32


# ------------------------- the single decoder kernel ------------------------
def _decoder_kernel(
        # per-step inputs (indexed by t inside the kernel, fully resident)
        x_pre_ref, dm_att_ref, dm_dec_ref,
        # constants
        mem2d_ref, pm_ref, maskb_ref,
        w_att_ref, b_att_ref, w_qt_ref, wa_ref, wc_ref, vsel_ref,
        w_dec_ref, b_dec_ref, w_proj_ref, b_proj_ref,
        # outputs (fully resident, written per step, single writeback)
        mel_ref, gate_ref, align_ref):

    # one-hot batch-row selectors used to pick each batch's own E-wide block
    # out of the single "bmm" matmul result (avoids per-row scratch stores).
    brow = lax.broadcasted_iota(jnp.int32, (B, 1), 0)          # (B, 1)
    onehot = [(brow == b).astype(F32) for b in range(B)]

    def step(t, carry):
        att_h, att_c, dec_h, dec_c, ctx, aw, cum = carry
        x    = x_pre_ref[t]          # (B, P)  prenet output for step t
        dm_a = dm_att_ref[t]         # (B, H)  attention-dropout mask
        dm_d = dm_dec_ref[t]         # (B, D)  decoder-dropout mask

        # ------------- attention LSTMCell, input = [x, ctx] ------------------
        gates = (jnp.dot(x,     w_att_ref[0:P, :],         preferred_element_type=F32)
                 + jnp.dot(ctx,   w_att_ref[P:P + E, :],     preferred_element_type=F32)
                 + jnp.dot(att_h, w_att_ref[P + E:P + E + H, :],
                           preferred_element_type=F32)
                 + b_att_ref[...])                                      # (B, 4H)
        sg = jax.nn.sigmoid(gates)          # one EUP pass over the whole slab
        att_c = sg[:, H:2 * H] * att_c + sg[:, 0:H] * jnp.tanh(gates[:, 2 * H:3 * H])
        att_h = sg[:, 3 * H:4 * H] * jnp.tanh(att_c) * dm_a     # p_attention_dropout

        # ------------- attention energies -----------------------------------
        # location conv+dense folded (host side) into Toeplitz matrices, the
        # whole energy pre-activation is a lane-dense (B, T_IN*A) slab.
        lin = (jnp.dot(att_h, w_qt_ref[...], preferred_element_type=F32)   # query
               + jnp.dot(aw,  wa_ref[...],  preferred_element_type=F32)    # prev weights
               + jnp.dot(cum, wc_ref[...],  preferred_element_type=F32)    # cumulative
               + pm_ref[...])                                              # processed mem
        energies = (jnp.dot(jnp.tanh(lin), vsel_ref[...],
                            preferred_element_type=F32)
                    + maskb_ref[...])                                      # (B, T_IN)

        e = jnp.exp(energies - jnp.max(energies, axis=-1, keepdims=True))
        aw_new = e / jnp.sum(e, axis=-1, keepdims=True)                    # softmax
        cum = cum + aw_new            # reference adds the NEW weights

        # ------------- attention context (bmm) -------------------------------
        z = jnp.dot(aw_new, mem2d_ref[...], preferred_element_type=F32)    # (B, B*E)
        ctx = z[:, 0:E] * onehot[0]
        for b in range(1, B):
            ctx = ctx + z[:, b * E:(b + 1) * E] * onehot[b]                # (B, E)

        # ------------- decoder LSTMCell, input = [att_h, ctx] ----------------
        gates2 = (jnp.dot(att_h, w_dec_ref[0:H, :],     preferred_element_type=F32)
                  + jnp.dot(ctx,   w_dec_ref[H:H + E, :], preferred_element_type=F32)
                  + jnp.dot(dec_h, w_dec_ref[H + E:H + E + DDEC, :],
                            preferred_element_type=F32)
                  + b_dec_ref[...])
        sg2 = jax.nn.sigmoid(gates2)
        dec_c = sg2[:, DDEC:2 * DDEC] * dec_c + sg2[:, 0:DDEC] * jnp.tanh(
            gates2[:, 2 * DDEC:3 * DDEC])
        dec_h = sg2[:, 3 * DDEC:4 * DDEC] * jnp.tanh(dec_c) * dm_d   # p_decoder_dropout

        # ------------- fused mel + gate projection ---------------------------
        proj = (jnp.dot(dec_h, w_proj_ref[0:DDEC, :], preferred_element_type=F32)
                + jnp.dot(ctx, w_proj_ref[DDEC:DDEC + E, :],
                          preferred_element_type=F32)
                + b_proj_ref[...])                                     # (B, M+1)

        mel_ref[t]   = proj[:, 0:M]
        gate_ref[t]  = proj[:, M:M + 1]
        align_ref[t] = aw_new
        return (att_h, att_c, dec_h, dec_c, ctx, aw_new, cum)

    z = lambda *s: jnp.zeros(s, F32)
    init = (z(B, H), z(B, H), z(B, DDEC), z(B, DDEC),
            z(B, E), z(B, T_IN), z(B, T_IN))
    lax.fori_loop(0, T_MEL, step, init, unroll=True)
    # TODO(synk): on v7x the B=2 independent recurrences could be sharded over
    # the 2 TensorCores with a parallel batch grid axis; omitted to avoid
    # per-step grid overhead on single-TC chips (v5e/v6e).


def run_decoder(x_pre, dm_att, dm_dec, mem2d, pm_flat, mask_bias,
                w_att, b_att, w_qt, wa_flat, wc_flat, v_sel,
                w_dec, b_dec, w_proj, b_proj):
    return pl.pallas_call(
        _decoder_kernel,
        out_shape=(
            jax.ShapeDtypeStruct((T_MEL, B, M), F32),
            jax.ShapeDtypeStruct((T_MEL, B, 1), F32),
            jax.ShapeDtypeStruct((T_MEL, B, T_IN), F32),
        ),
    )(x_pre, dm_att, dm_dec, mem2d, pm_flat, mask_bias,
      w_att, b_att, w_qt, wa_flat, wc_flat, v_sel,
      w_dec, b_dec, w_proj, b_proj)


# ------------------------------- parameters ---------------------------------
def init_params(key):
    ks = iter(jax.random.split(key, 32))
    s = 0.1

    def w(shape):
        return jax.random.normal(next(ks), shape, F32) * s

    return dict(
        # Prenet (bias=False): n_mel*frames -> P -> P, weights pre-transposed
        w_pre1=w((M, P)), w_pre2=w((P, P)),
        # attention LSTMCell: input = [prenet(P), ctx(E)]
        w_ax=w((P, 4 * H)), w_ac=w((E, 4 * H)), w_ah=w((H, 4 * H)),
        b_a=w((1, 4 * H)),
        # Attention linears (bias=False)
        w_q=w((H, A)), w_mem=w((E, A)), w_v=w((1, A)),
        # LocationLayer: conv weight stored as (2*K, NFILT): row = c*K + k
        w_conv=w((2 * KSIZE, NFILT)), w_dense=w((NFILT, A)),
        # decoder LSTMCell: input = [att_h(H), ctx(E)]
        w_dh=w((H, 4 * DDEC)), w_dc=w((E, 4 * DDEC)), w_dhh=w((DDEC, 4 * DDEC)),
        b_d=w((1, 4 * DDEC)),
        # linear projection + gate (inputs = [dec_h(D), ctx(E)])
        w_ph=w((DDEC, M)), w_pc=w((E, M)), b_p=w((1, M)),
        w_gh=w((DDEC, 1)), w_gc=w((E, 1)), b_g=w((1, 1)),
    )


# ------------------------------ forward pass --------------------------------
@jax.jit
def decoder_forward(params, memory, decoder_inputs, memory_lengths, drop_key):
    # parse_decoder_inputs: (B, n_mel, T_mel) -> (T_mel, B, n_mel*frames)
    di = jnp.transpose(decoder_inputs, (0, 2, 1))
    di = di.reshape(B, T_MEL // NFRAMES, M)
    di = jnp.transpose(di, (1, 0, 2))
    go = jnp.zeros((1, B, M), F32)                       # get_go_frame
    dec_in = jnp.concatenate([go, di], axis=0)[:T_MEL]   # last frame unused

    k1, k2, k3, k4 = jax.random.split(drop_key, 4)

    # prenet (dropout p=0.5, training=True in reference) -- tiny, plain XLA
    flat = dec_in.reshape(T_MEL * B, M)
    m1 = jax.random.bernoulli(k1, 0.5, (T_MEL * B, P)).astype(F32) * 2.0
    m2 = jax.random.bernoulli(k2, 0.5, (T_MEL * B, P)).astype(F32) * 2.0
    h1 = jnp.maximum(flat @ params["w_pre1"], 0.0) * m1
    x_pre = (jnp.maximum(h1 @ params["w_pre2"], 0.0) * m2).reshape(T_MEL, B, P)

    # processed memory (inputs_layer), stored lane-dense as (B, T_IN*A)
    pm = (memory.reshape(B * T_IN, E) @ params["w_mem"]).reshape(B, T_IN * A)

    # memory laid out for the bmm-as-matmul: mem2d[t, b*E + e] = memory[b, t, e]
    mem2d = jnp.transpose(memory, (1, 0, 2)).reshape(T_IN, B * E)

    # additive padding mask (large finite negative; avoids exp(-inf) NaNs)
    pad = jnp.arange(T_IN)[None, :] >= memory_lengths[:, None]
    mask_bias = jnp.where(pad, NEG_INF, 0.0).astype(F32)

    # dropout masks for attention / decoder hidden states (inverted dropout)
    dm_att = (jax.random.bernoulli(k3, 1.0 - P_ATT_DROP, (T_MEL, B, H))
              .astype(F32) / (1.0 - P_ATT_DROP))
    dm_dec = (jax.random.bernoulli(k4, 1.0 - P_DEC_DROP, (T_MEL, B, DDEC))
              .astype(F32) / (1.0 - P_DEC_DROP))

    # ---------------- weight packing / fusion (host side) --------------------
    # LSTM cells: one (in_dim_total, 4H) slab each.
    w_att = jnp.concatenate([params["w_ax"], params["w_ac"], params["w_ah"]], axis=0)
    b_att = params["b_a"]
    w_dec = jnp.concatenate([params["w_dh"], params["w_dc"], params["w_dhh"]], axis=0)
    b_dec = params["b_d"]

    # location conv + dense composed (purely linear): (2K, A)
    w_loc = params["w_conv"] @ params["w_dense"]
    # unrolled Toeplitz forms: pa[b,t,:] = sum_s aw[b,s]*wa[s,t,:] + cum[...]*wc[...]
    s_idx = jnp.arange(T_IN)[:, None]
    t_idx = jnp.arange(T_IN)[None, :]
    k_idx = s_idx - t_idx + PAD
    valid = (k_idx >= 0) & (k_idx < KSIZE)
    k_safe = jnp.clip(k_idx, 0, KSIZE - 1)
    wa_flat = jnp.where(valid[:, :, None], w_loc[k_safe, :], 0.0).reshape(T_IN, T_IN * A)
    wc_flat = jnp.where(valid[:, :, None], w_loc[KSIZE + k_safe, :], 0.0
                        ).reshape(T_IN, T_IN * A)

    # query weight tiled over T_IN (broadcast folded into the matmul)
    w_qt = jnp.tile(params["w_q"], (1, T_IN))                     # (H, T_IN*A)
    # v applied per-time-step: (T_IN*A, T_IN) block-diagonal selector
    v = params["w_v"][0]
    v_sel = (jnp.eye(T_IN, dtype=F32)[:, None, :] * v[None, :, None]
             ).reshape(T_IN * A, T_IN)

    # fused mel projection + gate layer: (DDEC+E, M+1)
    w_proj = jnp.concatenate([
        jnp.concatenate([params["w_ph"], params["w_gh"]], axis=1),
        jnp.concatenate([params["w_pc"], params["w_gc"]], axis=1)], axis=0)
    b_proj = jnp.concatenate([params["b_p"], params["b_g"]], axis=1)

    mel_seq, gate_seq, align_seq = run_decoder(
        x_pre, dm_att, dm_dec, mem2d, pm, mask_bias,
        w_att, b_att, w_qt, wa_flat, wc_flat, v_sel,
        w_dec, b_dec, w_proj, b_proj)

    # parse_decoder_outputs
    mel_outputs = jnp.transpose(mel_seq, (1, 0, 2))               # (B, T_mel, M)
    mel_outputs = mel_outputs.reshape(B, T_MEL * NFRAMES, NMEL)
    mel_outputs = jnp.transpose(mel_outputs, (0, 2, 1))           # (B, n_mel, T)
    gate_outputs = jnp.transpose(gate_seq[:, :, 0], (1, 0))       # (B, T_mel)
    alignments = jnp.transpose(align_seq, (1, 0, 2))              # (B, T_mel, T_in)
    return mel_outputs, gate_outputs, alignments


# TODO(synk): Decoder.inference() (data-dependent stopping on the gate output)
# is not implemented; only the teacher-forced forward() path is kernelized.

if __name__ == "__main__":
    key = jax.random.PRNGKey(0)
    k_param, k_mem, k_dec, k_drop = jax.random.split(key, 4)

    params = init_params(k_param)
    memory = jax.random.normal(k_mem, (B, T_IN, E), F32)
    decoder_inputs = jax.random.normal(k_dec, (B, NMEL, T_MEL), F32)
    memory_lengths = jnp.array([T_IN, 5], dtype=jnp.int32)

    mel, gate, align = decoder_forward(params, memory, decoder_inputs,
                                       memory_lengths, k_drop)
    jax.block_until_ready((mel, gate, align))

    assert mel.shape == (B, NMEL, T_MEL)
    assert gate.shape == (B, T_MEL)
    assert align.shape == (B, T_MEL, T_IN)
    assert bool(jnp.all(jnp.isfinite(mel)))
    assert bool(jnp.all(jnp.isfinite(gate)))
    # attention rows sum to one
    assert bool(jnp.allclose(jnp.sum(align, axis=-1), 1.0, atol=1e-5))
    # padded encoder positions get (numerically) zero attention
    assert bool(jnp.all(align[1, :, 5:] < 1e-6))
    print("KERNEL_OK")
</pallas_src>

<mosaic_0001>
module attributes {stable_mosaic.version = 11 : i64} {
  func.func @_decoder_kernel(%arg0: memref<6x2x32xf32, #tpu.memory_space<vmem>>, %arg1: memref<6x2x32xf32, #tpu.memory_space<vmem>>, %arg2: memref<6x2x32xf32, #tpu.memory_space<vmem>>, %arg3: memref<8x64xf32, #tpu.memory_space<vmem>>, %arg4: memref<2x256xf32, #tpu.memory_space<vmem>>, %arg5: memref<2x8xf32, #tpu.memory_space<vmem>>, %arg6: memref<96x128xf32, #tpu.memory_space<vmem>>, %arg7: memref<1x128xf32, #tpu.memory_space<vmem>>, %arg8: memref<32x256xf32, #tpu.memory_space<vmem>>, %arg9: memref<8x256xf32, #tpu.memory_space<vmem>>, %arg10: memref<8x256xf32, #tpu.memory_space<vmem>>, %arg11: memref<256x8xf32, #tpu.memory_space<vmem>>, %arg12: memref<96x128xf32, #tpu.memory_space<vmem>>, %arg13: memref<1x128xf32, #tpu.memory_space<vmem>>, %arg14: memref<64x9xf32, #tpu.memory_space<vmem>>, %arg15: memref<1x9xf32, #tpu.memory_space<vmem>>, %arg16: memref<6x2x8xf32, #tpu.memory_space<vmem>>, %arg17: memref<6x2x1xf32, #tpu.memory_space<vmem>>, %arg18: memref<6x2x8xf32, #tpu.memory_space<vmem>>) attributes {dimension_semantics = [], scalar_prefetch = 0 : i64, scratch_operands = 0 : i64, tpu.core_type = #tpu.core_type<tc>} {
    %0 = tpu.iota {dimensions = array<i32: 0>} : vector<2x1xi32>
    %c0_i32 = arith.constant 0 : i32
    %1 = vector.broadcast %c0_i32 : i32 to vector<2x1xi32>
    %2 = arith.cmpi eq, %0, %1 : vector<2x1xi32>
    %3 = arith.extui %2 : vector<2x1xi1> to vector<2x1xi32>
    %4 = arith.sitofp %3 : vector<2x1xi32> to vector<2x1xf32>
    %c1_i32 = arith.constant 1 : i32
    %5 = vector.broadcast %c1_i32 : i32 to vector<2x1xi32>
    %6 = arith.cmpi eq, %0, %5 : vector<2x1xi32>
    %7 = arith.extui %6 : vector<2x1xi1> to vector<2x1xi32>
    %8 = arith.sitofp %7 : vector<2x1xi32> to vector<2x1xf32>
    %cst = arith.constant 0.000000e+00 : f32
    %9 = vector.broadcast %cst : f32 to vector<2x32xf32>
    %cst_0 = arith.constant 0.000000e+00 : f32
    %10 = vector.broadcast %cst_0 : f32 to vector<2x32xf32>
    %cst_1 = arith.constant 0.000000e+00 : f32
    %11 = vector.broadcast %cst_1 : f32 to vector<2x32xf32>
    %cst_2 = arith.constant 0.000000e+00 : f32
    %12 = vector.broadcast %cst_2 : f32 to vector<2x32xf32>
    %cst_3 = arith.constant 0.000000e+00 : f32
    %13 = vector.broadcast %cst_3 : f32 to vector<2x32xf32>
    %cst_4 = arith.constant 0.000000e+00 : f32
    %14 = vector.broadcast %cst_4 : f32 to vector<2x8xf32>
    %cst_5 = arith.constant 0.000000e+00 : f32
    %15 = vector.broadcast %cst_5 : f32 to vector<2x8xf32>
    %c0_i32_6 = arith.constant 0 : i32
    %16 = arith.index_cast %c0_i32_6 : i32 to index
    %c0 = arith.constant 0 : index
    %c0_7 = arith.constant 0 : index
    %17 = vector.load %arg0[%16, %c0, %c0_7] : memref<6x2x32xf32, #tpu.memory_space<vmem>>, vector<1x2x32xf32>
    %18 = vector.shape_cast %17 : vector<1x2x32xf32> to vector<2x32xf32>
    %19 = arith.index_cast %c0_i32_6 : i32 to index
    %c0_8 = arith.constant 0 : index
    %c0_9 = arith.constant 0 : index
    %20 = vector.load %arg1[%19, %c0_8, %c0_9] : memref<6x2x32xf32, #tpu.memory_space<vmem>>, vector<1x2x32xf32>
    %21 = vector.shape_cast %20 : vector<1x2x32xf32> to vector<2x32xf32>
    %22 = arith.index_cast %c0_i32_6 : i32 to index
    %c0_10 = arith.constant 0 : index
    %c0_11 = arith.constant 0 : index
    %23 = vector.load %arg2[%22, %c0_10, %c0_11] : memref<6x2x32xf32, #tpu.memory_space<vmem>>, vector<1x2x32xf32>
    %24 = vector.shape_cast %23 : vector<1x2x32xf32> to vector<2x32xf32>
    %c0_12 = arith.constant 0 : index
    %c0_13 = arith.constant 0 : index
    %25 = vector.load %arg6[%c0_12, %c0_13] : memref<96x128xf32, #tpu.memory_space<vmem>>, vector<32x128xf32>
    %cst_14 = arith.constant dense<0.000000e+00> : vector<2x128xf32>
    %26 = tpu.matmul %18, %25, %cst_14 {dimension_numbers = #tpu.dot_dimension_numbers<[1], [0], [0], [1], [0, 0, 1, 1], [], []>} : vector<2x32xf32>, vector<32x128xf32>, vector<2x128xf32> -> vector<2x128xf32>
    %c32 = arith.constant 32 : index
    %c0_15 = arith.constant 0 : index
    %27 = vector.load %arg6[%c32, %c0_15] : memref<96x128xf32, #tpu.memory_space<vmem>>, vector<32x128xf32>
    %cst_16 = arith.constant dense<0.000000e+00> : vector<2x128xf32>
    %28 = tpu.matmul %13, %27, %cst_16 {dimension_numbers = #tpu.dot_dimension_numbers<[1], [0], [0], [1], [0, 0, 1, 1], [], []>} : vector<2x32xf32>, vector<32x128xf32>, vector<2x128xf32> -> vector<2x128xf32>
    %29 = arith.addf %26, %28 : vector<2x128xf32>
    %c64 = arith.constant 64 : index
    %c0_17 = arith.constant 0 : index
    %30 = vector.load %arg6[%c64, %c0_17] : memref<96x128xf32, #tpu.memory_space<vmem>>, vector<32x128xf32>
    %cst_18 = arith.constant dense<0.000000e+00> : vector<2x128xf32>
    %31 = tpu.matmul %9, %30, %cst_18 {dimension_numbers = #tpu.dot_dimension_numbers<[1], [0], [0], [1], [0, 0, 1, 1], [], []>} : vector<2x32xf32>, vector<32x128xf32>, vector<2x128xf32> -> vector<2x128xf32>
    %32 = arith.addf %29, %31 : vector<2x128xf32>
    %c0_19 = arith.constant 0 : index
    %c0_20 = arith.constant 0 : index
    %33 = vector.load %arg7[%c0_19, %c0_20] : memref<1x128xf32, #tpu.memory_space<vmem>>, vector<1x128xf32>
    %34 = vector.broadcast %33 : vector<1x128xf32> to vector<2x128xf32>
    %35 = arith.addf %32, %34 : vector<2x128xf32>
    %36 = arith.negf %35 : vector<2x128xf32>
    %37 = math.exp %36 : vector<2x128xf32>
    %cst_21 = arith.constant 1.000000e+00 : f32
    %38 = vector.broadcast %cst_21 : f32 to vector<2x128xf32>
    %39 = arith.addf %38, %37 : vector<2x128xf32>
    %40 = arith.divf %38, %39 : vector<2x128xf32>
    %41 = vector.extract_strided_slice %40 {offsets = [0, 32], sizes = [2, 32], strides = [1, 1]} : vector<2x128xf32> to vector<2x32xf32>
    %42 = arith.mulf %41, %10 : vector<2x32xf32>
    %43 = vector.extract_strided_slice %40 {offsets = [0, 0], sizes = [2, 32], strides = [1, 1]} : vector<2x128xf32> to vector<2x32xf32>
    %44 = vector.extract_strided_slice %35 {offsets = [0, 64], sizes = [2, 32], strides = [1, 1]} : vector<2x128xf32> to vector<2x32xf32>
    %45 = math.tanh %44 : vector<2x32xf32>
    %46 = arith.mulf %43, %45 : vector<2x32xf32>
    %47 = arith.addf %42, %46 : vector<2x32xf32>
    %48 = vector.extract_strided_slice %40 {offsets = [0, 96], sizes = [2, 32], strides = [1, 1]} : vector<2x128xf32> to vector<2x32xf32>
    %49 = math.tanh %47 : vector<2x32xf32>
    %50 = arith.mulf %48, %49 : vector<2x32xf32>
    %51 = arith.mulf %50, %21 : vector<2x32xf32>
    %c0_22 = arith.constant 0 : index
    %c0_23 = arith.constant 0 : index
    %52 = vector.load %arg8[%c0_22, %c0_23] : memref<32x256xf32, #tpu.memory_space<vmem>>, vector<32x256xf32>
    %cst_24 = arith.constant dense<0.000000e+00> : vector<2x256xf32>
    %53 = tpu.matmul %51, %52, %cst_24 {dimension_numbers = #tpu.dot_dimension_numbers<[1], [0], [0], [1], [0, 0, 1, 1], [], []>} : vector<2x32xf32>, vector<32x256xf32>, vector<2x256xf32> -> vector<2x256xf32>
    %c0_25 = arith.constant 0 : index
    %c0_26 = arith.constant 0 : index
    %54 = vector.load %arg9[%c0_25, %c0_26] : memref<8x256xf32, #tpu.memory_space<vmem>>, vector<8x256xf32>
    %cst_27 = arith.constant dense<0.000000e+00> : vector<2x256xf32>
    %55 = tpu.matmul %14, %54, %cst_27 {dimension_numbers = #tpu.dot_dimension_numbers<[1], [0], [0], [1], [0, 0, 1, 1], [], []>} : vector<2x8xf32>, vector<8x256xf32>, vector<2x256xf32> -> vector<2x256xf32>
    %56 = arith.addf %53, %55 : vector<2x256xf32>
    %c0_28 = arith.constant 0 : index
    %c0_29 = arith.constant 0 : index
    %57 = vector.load %arg10[%c0_28, %c0_29] : memref<8x256xf32, #tpu.memory_space<vmem>>, vector<8x256xf32>
    %cst_30 = arith.constant dense<0.000000e+00> : vector<2x256xf32>
    %58 = tpu.matmul %15, %57, %cst_30 {dimension_numbers = #tpu.dot_dimension_numbers<[1], [0], [0], [1], [0, 0, 1, 1], [], []>} : vector<2x8xf32>, vector<8x256xf32>, vector<2x256xf32> -> vector<2x256xf32>
    %59 = arith.addf %56, %58 : vector<2x256xf32>
    %c0_31 = arith.constant 0 : index
    %c0_32 = arith.constant 0 : index
    %60 = vector.load %arg4[%c0_31, %c0_32] : memref<2x256xf32, #tpu.memory_space<vmem>>, vector<2x256xf32>
    %61 = arith.addf %59, %60 : vector<2x256xf32>
    %62 = math.tanh %61 : vector<2x256xf32>
    %c0_33 = arith.constant 0 : index
    %c0_34 = arith.constant 0 : index
    %63 = vector.load %arg11[%c0_33, %c0_34] : memref<256x8xf32, #tpu.memory_space<vmem>>, vector<256x8xf32>
    %cst_35 = arith.constant dense<0.000000e+00> : vector<2x8xf32>
    %64 = tpu.matmul %62, %63, %cst_35 {dimension_numbers = #tpu.dot_dimension_numbers<[1], [0], [0], [1], [0, 0, 1, 1], [], []>} : vector<2x256xf32>, vector<256x8xf32>, vector<2x8xf32> -> vector<2x8xf32>
    %c0_36 = arith.constant 0 : index
    %c0_37 = arith.constant 0 : index
    %65 = vector.load %arg5[%c0_36, %c0_37] : memref<2x8xf32, #tpu.memory_space<vmem>>, vector<2x8xf32>
    %66 = arith.addf %64, %65 : vector<2x8xf32>
    %cst_38 = arith.constant dense<0xFF800000> : vector<2xf32>
    %67 = vector.multi_reduction <maximumf>, %66, %cst_38 [1] : vector<2x8xf32> to vector<2xf32>
    %68 = vector.shape_cast %67 : vector<2xf32> to vector<2x1xf32>
    %69 = vector.broadcast %68 : vector<2x1xf32> to vector<2x8xf32>
    %70 = arith.subf %66, %69 : vector<2x8xf32>
    %71 = math.exp %70 : vector<2x8xf32>
    %cst_39 = arith.constant dense<0.000000e+00> : vector<2xf32>
    %72 = vector.multi_reduction <add>, %71, %cst_39 [1] : vector<2x8xf32> to vector<2xf32>
    %73 = vector.shape_cast %72 : vector<2xf32> to vector<2x1xf32>
    %74 = vector.broadcast %73 : vector<2x1xf32> to vector<2x8xf32>
    %75 = arith.divf %71, %74 : vector<2x8xf32>
    %76 = arith.addf %15, %75 : vector<2x8xf32>
    %c0_40 = arith.constant 0 : index
    %c0_41 = arith.constant 0 : index
    %77 = vector.load %arg3[%c0_40, %c0_41] : memref<8x64xf32, #tpu.memory_space<vmem>>, vector<8x64xf32>
    %cst_42 = arith.constant dense<0.000000e+00> : vector<2x64xf32>
    %78 = tpu.matmul %75, %77, %cst_42 {dimension_numbers = #tpu.dot_dimension_numbers<[1], [0], [0], [1], [0, 0, 1, 1], [], []>} : vector<2x8xf32>, vector<8x64xf32>, vector<2x64xf32> -> vector<2x64xf32>
    %79 = vector.extract_strided_slice %78 {offsets = [0, 0], sizes = [2, 32], strides = [1, 1]} : vector<2x64xf32> to vector<2x32xf32>
    %80 = vector.broadcast %4 : vector<2x1xf32> to vector<2x32xf32>
    %81 = arith.mulf %79, %80 : vector<2x32xf32>
    %82 = vector.extract_strided_slice %78 {offsets = [0, 32], sizes = [2, 32], strides = [1, 1]} : vector<2x64xf32> to vector<2x32xf32>
    %83 = vector.broadcast %8 : vector<2x1xf32> to vector<2x32xf32>
    %84 = arith.mulf %82, %83 : vector<2x32xf32>
    %85 = arith.addf %81, %84 : vector<2x32xf32>
    %c0_43 = arith.constant 0 : index
    %c0_44 = arith.constant 0 : index
    %86 = vector.load %arg12[%c0_43, %c0_44] : memref<96x128xf32, #tpu.memory_space<vmem>>, vector<32x128xf32>
    %cst_45 = arith.constant dense<0.000000e+00> : vector<2x128xf32>
    %87 = tpu.matmul %51, %86, %cst_45 {dimension_numbers = #tpu.dot_dimension_numbers<[1], [0], [0], [1], [0, 0, 1, 1], [], []>} : vector<2x32xf32>, vector<32x128xf32>, vector<2x128xf32> -> vector<2x128xf32>
    %c32_46 = arith.constant 32 : index
    %c0_47 = arith.constant 0 : index
    %88 = vector.load %arg12[%c32_46, %c0_47] : memref<96x128xf32, #tpu.memory_space<vmem>>, vector<32x128xf32>
    %cst_48 = arith.constant dense<0.000000e+00> : vector<2x128xf32>
    %89 = tpu.matmul %85, %88, %cst_48 {dimension_numbers = #tpu.dot_dimension_numbers<[1], [0], [0], [1], [0, 0, 1, 1], [], []>} : vector<2x32xf32>, vector<32x128xf32>, vector<2x128xf32> -> vector<2x128xf32>
    %90 = arith.addf %87, %89 : vector<2x128xf32>
    %c64_49 = arith.constant 64 : index
    %c0_50 = arith.constant 0 : index
    %91 = vector.load %arg12[%c64_49, %c0_50] : memref<96x128xf32, #tpu.memory_space<vmem>>, vector<32x128xf32>
    %cst_51 = arith.constant dense<0.000000e+00> : vector<2x128xf32>
    %92 = tpu.matmul %11, %91, %cst_51 {dimension_numbers = #tpu.dot_dimension_numbers<[1], [0], [0], [1], [0, 0, 1, 1], [], []>} : vector<2x32xf32>, vector<32x128xf32>, vector<2x128xf32> -> vector<2x128xf32>
    %93 = arith.addf %90, %92 : vector<2x128xf32>
    %c0_52 = arith.constant 0 : index
    %c0_53 = arith.constant 0 : index
    %94 = vector.load %arg13[%c0_52, %c0_53] : memref<1x128xf32, #tpu.memory_space<vmem>>, vector<1x128xf32>
    %95 = vector.broadcast %94 : vector<1x128xf32> to vector<2x128xf32>
    %96 = arith.addf %93, %95 : vector<2x128xf32>
    %97 = arith.negf %96 : vector<2x128xf32>
    %98 = math.exp %97 : vector<2x128xf32>
    %cst_54 = arith.constant 1.000000e+00 : f32
    %99 = vector.broadcast %cst_54 : f32 to vector<2x128xf32>
    %100 = arith.addf %99, %98 : vector<2x128xf32>
    %101 = arith.divf %99, %100 : vector<2x128xf32>
    %102 = vector.extract_strided_slice %101 {offsets = [0, 32], sizes = [2, 32], strides = [1, 1]} : vector<2x128xf32> to vector<2x32xf32>
    %103 = arith.mulf %102, %12 : vector<2x32xf32>
    %104 = vector.extract_strided_slice %101 {offsets = [0, 0], sizes = [2, 32], strides = [1, 1]} : vector<2x128xf32> to vector<2x32xf32>
    %105 = vector.extract_strided_slice %96 {offsets = [0, 64], sizes = [2, 32], strides = [1, 1]} : vector<2x128xf32> to vector<2x32xf32>
    %106 = math.tanh %105 : vector<2x32xf32>
    %107 = arith.mulf %104, %106 : vector<2x32xf32>
    %108 = arith.addf %103, %107 : vector<2x32xf32>
    %109 = vector.extract_strided_slice %101 {offsets = [0, 96], sizes = [2, 32], strides = [1, 1]} : vector<2x128xf32> to vector<2x32xf32>
    %110 = math.tanh %108 : vector<2x32xf32>
    %111 = arith.mulf %109, %110 : vector<2x32xf32>
    %112 = arith.mulf %111, %24 : vector<2x32xf32>
    %c0_55 = arith.constant 0 : index
    %c0_56 = arith.constant 0 : index
    %113 = vector.load %arg14[%c0_55, %c0_56] : memref<64x9xf32, #tpu.memory_space<vmem>>, vector<32x9xf32>
    %cst_57 = arith.constant dense<0.000000e+00> : vector<2x9xf32>
    %114 = tpu.matmul %112, %113, %cst_57 {dimension_numbers = #tpu.dot_dimension_numbers<[1], [0], [0], [1], [0, 0, 1, 1], [], []>} : vector<2x32xf32>, vector<32x9xf32>, vector<2x9xf32> -> vector<2x9xf32>
    %c32_58 = arith.constant 32 : index
    %c0_59 = arith.constant 0 : index
    %115 = vector.load %arg14[%c32_58, %c0_59] : memref<64x9xf32, #tpu.memory_space<vmem>>, vector<32x9xf32>
    %cst_60 = arith.constant dense<0.000000e+00> : vector<2x9xf32>
    %116 = tpu.matmul %85, %115, %cst_60 {dimension_numbers = #tpu.dot_dimension_numbers<[1], [0], [0], [1], [0, 0, 1, 1], [], []>} : vector<2x32xf32>, vector<32x9xf32>, vector<2x9xf32> -> vector<2x9xf32>
    %117 = arith.addf %114, %116 : vector<2x9xf32>
    %c0_61 = arith.constant 0 : index
    %c0_62 = arith.constant 0 : index
    %118 = vector.load %arg15[%c0_61, %c0_62] : memref<1x9xf32, #tpu.memory_space<vmem>>, vector<1x9xf32>
    %119 = vector.broadcast %118 : vector<1x9xf32> to vector<2x9xf32>
    %120 = arith.addf %117, %119 : vector<2x9xf32>
    %121 = vector.extract_strided_slice %120 {offsets = [0, 0], sizes = [2, 8], strides = [1, 1]} : vector<2x9xf32> to vector<2x8xf32>
    %122 = arith.index_cast %c0_i32_6 : i32 to index
    %c0_63 = arith.constant 0 : index
    %c0_64 = arith.constant 0 : index
    %123 = vector.load %arg16[%122, %c0_63, %c0_64] : memref<6x2x8xf32, #tpu.memory_space<vmem>>, vector<1x2x8xf32>
    %124 = vector.shape_cast %123 : vector<1x2x8xf32> to vector<2x8xf32>
    %125 = vector.shape_cast %121 : vector<2x8xf32> to vector<1x2x8xf32>
    tpu.vector_store %arg16[%122, %c0_63, %c0_64], %125 {strides = array<i32>} : memref<6x2x8xf32, #tpu.memory_space<vmem>>, vector<1x2x8xf32>,
    %126 = vector.extract_strided_slice %120 {offsets = [0, 8], sizes = [2, 1], strides = [1, 1]} : vector<2x9xf32> to vector<2x1xf32>
    %127 = arith.index_cast %c0_i32_6 : i32 to index
    %c0_65 = arith.constant 0 : index
    %c0_66 = arith.constant 0 : index
    %128 = vector.load %arg17[%127, %c0_65, %c0_66] : memref<6x2x1xf32, #tpu.memory_space<vmem>>, vector<1x2x1xf32>
    %129 = vector.shape_cast %128 : vector<1x2x1xf32> to vector<2x1xf32>
    %130 = vector.shape_cast %126 : vector<2x1xf32> to vector<1x2x1xf32>
    tpu.vector_store %arg17[%127, %c0_65, %c0_66], %130 {strides = array<i32>} : memref<6x2x1xf32, #tpu.memory_space<vmem>>, vector<1x2x1xf32>,
    %131 = arith.index_cast %c0_i32_6 : i32 to index
    %c0_67 = arith.constant 0 : index
    %c0_68 = arith.constant 0 : index
    %132 = vector.load %arg18[%131, %c0_67, %c0_68] : memref<6x2x8xf32, #tpu.memory_space<vmem>>, vector<1x2x8xf32>
    %133 = vector.shape_cast %132 : vector<1x2x8xf32> to vector<2x8xf32>
    %134 = vector.shape_cast %75 : vector<2x8xf32> to vector<1x2x8xf32>
    tpu.vector_store %arg18[%131, %c0_67, %c0_68], %134 {strides = array<i32>} : memref<6x2x8xf32, #tpu.memory_space<vmem>>, vector<1x2x8xf32>,
    %c1_i32_69 = arith.constant 1 : i32
    %135 = arith.index_cast %c1_i32_69 : i32 to index
    %c0_70 = arith.constant 0 : index
    %c0_71 = arith.constant 0 : index
    %136 = vector.load %arg0[%135, %c0_70, %c0_71] : memref<6x2x32xf32, #tpu.memory_space<vmem>>, vector<1x2x32xf32>
    %137 = vector.shape_cast %136 : vector<1x2x32xf32> to vector<2x32xf32>
    %138 = arith.index_cast %c1_i32_69 : i32 to index
    %c0_72 = arith.constant 0 : index
    %c0_73 = arith.constant 0 : index
    %139 = vector.load %arg1[%138, %c0_72, %c0_73] : memref<6x2x32xf32, #tpu.memory_space<vmem>>, vector<1x2x32xf32>
    %140 = vector.shape_cast %139 : vector<1x2x32xf32> to vector<2x32xf32>
    %141 = arith.index_cast %c1_i32_69 : i32 to index
    %c0_74 = arith.constant 0 : index
    %c0_75 = arith.constant 0 : index
    %142 = vector.load %arg2[%141, %c0_74, %c0_75] : memref<6x2x32xf32, #tpu.memory_space<vmem>>, vector<1x2x32xf32>
    %143 = vector.shape_cast %142 : vector<1x2x32xf32> to vector<2x32xf32>
    %c0_76 = arith.constant 0 : index
    %c0_77 = arith.constant 0 : index
    %144 = vector.load %arg6[%c0_76, %c0_77] : memref<96x128xf32, #tpu.memory_space<vmem>>, vector<32x128xf32>
    %cst_78 = arith.constant dense<0.000000e+00> : vector<2x128xf32>
    %145 = tpu.matmul %137, %144, %cst_78 {dimension_numbers = #tpu.dot_dimension_numbers<[1], [0], [0], [1], [0, 0, 1, 1], [], []>} : vector<2x32xf32>, vector<32x128xf32>, vector<2x128xf32> -> vector<2x128xf32>
    %c32_79 = arith.constant 32 : index
    %c0_80 = arith.constant 0 : index
    %146 = vector.load %arg6[%c32_79, %c0_80] : memref<96x128xf32, #tpu.memory_space<vmem>>, vector<32x128xf32>
    %cst_81 = arith.constant dense<0.000000e+00> : vector<2x128xf32>
    %147 = tpu.matmul %85, %146, %cst_81 {dimension_numbers = #tpu.dot_dimension_numbers<[1], [0], [0], [1], [0, 0, 1, 1], [], []>} : vector<2x32xf32>, vector<32x128xf32>, vector<2x128xf32> -> vector<2x128xf32>
    %148 = arith.addf %145, %147 : vector<2x128xf32>
    %c64_82 = arith.constant 64 : index
    %c0_83 = arith.constant 0 : index
    %149 = vector.load %arg6[%c64_82, %c0_83] : memref<96x128xf32, #tpu.memory_space<vmem>>, vector<32x128xf32>
    %cst_84 = arith.constant dense<0.000000e+00> : vector<2x128xf32>
    %150 = tpu.matmul %51, %149, %cst_84 {dimension_numbers = #tpu.dot_dimension_numbers<[1], [0], [0], [1], [0, 0, 1, 1], [], []>} : vector<2x32xf32>, vector<32x128xf32>, vector<2x128xf32> -> vector<2x128xf32>
    %151 = arith.addf %148, %150 : vector<2x128xf32>
    %c0_85 = arith.constant 0 : index
    %c0_86 = arith.constant 0 : index
    %152 = vector.load %arg7[%c0_85, %c0_86] : memref<1x128xf32, #tpu.memory_space<vmem>>, vector<1x128xf32>
    %153 = vector.broadcast %152 : vector<1x128xf32> to vector<2x128xf32>
    %154 = arith.addf %151, %153 : vector<2x128xf32>
    %155 = arith.negf %154 : vector<2x128xf32>
    %156 = math.exp %155 : vector<2x128xf32>
    %cst_87 = arith.constant 1.000000e+00 : f32
    %157 = vector.broadcast %cst_87 : f32 to vector<2x128xf32>
    %158 = arith.addf %157, %156 : vector<2x128xf32>
    %159 = arith.divf %157, %158 : vector<2x128xf32>
    %160 = vector.extract_strided_slice %159 {offsets = [0, 32], sizes = [2, 32], strides = [1, 1]} : vector<2x128xf32> to vector<2x32xf32>
    %161 = arith.mulf %160, %47 : vector<2x32xf32>
    %162 = vector.extract_strided_slice %159 {offsets = [0, 0], sizes = [2, 32], strides = [1, 1]} : vector<2x128xf32> to vector<2x32xf32>
    %163 = vector.extract_strided_slice %154 {offsets = [0, 64], sizes = [2, 32], strides = [1, 1]} : vector<2x128xf32> to vector<2x32xf32>
    %164 = math.tanh %163 : vector<2x32xf32>
    %165 = arith.mulf %162, %164 : vector<2x32xf32>
    %166 = arith.addf %161, %165 : vector<2x32xf32>
    %167 = vector.extract_strided_slice %159 {offsets = [0, 96], sizes = [2, 32], strides = [1, 1]} : vector<2x128xf32> to vector<2x32xf32>
    %168 = math.tanh %166 : vector<2x32xf32>
    %169 = arith.mulf %167, %168 : vector<2x32xf32>
    %170 = arith.mulf %169, %140 : vector<2x32xf32>
    %c0_88 = arith.constant 0 : index
    %c0_89 = arith.constant 0 : index
    %171 = vector.load %arg8[%c0_88, %c0_89] : memref<32x256xf32, #tpu.memory_space<vmem>>, vector<32x256xf32>
    %cst_90 = arith.constant dense<0.000000e+00> : vector<2x256xf32>
    %172 = tpu.matmul %170, %171, %cst_90 {dimension_numbers = #tpu.dot_dimension_numbers<[1], [0], [0], [1], [0, 0, 1, 1], [], []>} : vector<2x32xf32>, vector<32x256xf32>, vector<2x256xf32> -> vector<2x256xf32>
    %c0_91 = arith.constant 0 : index
    %c0_92 = arith.constant 0 : index
    %173 = vector.load %arg9[%c0_91, %c0_92] : memref<8x256xf32, #tpu.memory_space<vmem>>, vector<8x256xf32>
    %cst_93 = arith.constant dense<0.000000e+00> : vector<2x256xf32>
    %174 = tpu.matmul %75, %173, %cst_93 {dimension_numbers = #tpu.dot_dimension_numbers<[1], [0], [0], [1], [0, 0, 1, 1], [], []>} : vector<2x8xf32>, vector<8x256xf32>, vector<2x256xf32> -> vector<2x256xf32>
    %175 = arith.addf %172, %174 : vector<2x256xf32>
    %c0_94 = arith.constant 0 : index
    %c0_95 = arith.constant 0 : index
    %176 = vector.load %arg10[%c0_94, %c0_95] : memref<8x256xf32, #tpu.memory_space<vmem>>, vector<8x256xf32>
    %cst_96 = arith.constant dense<0.000000e+00> : vector<2x256xf32>
    %177 = tpu.matmul %76, %176, %cst_96 {dimension_numbers = #tpu.dot_dimension_numbers<[1], [0], [0], [1], [0, 0, 1, 1], [], []>} : vector<2x8xf32>, vector<8x256xf32>, vector<2x256xf32> -> vector<2x256xf32>
    %178 = arith.addf %175, %177 : vector<2x256xf32>
    %c0_97 = arith.constant 0 : index
    %c0_98 = arith.constant 0 : index
    %179 = vector.load %arg4[%c0_97, %c0_98] : memref<2x256xf32, #tpu.memory_space<vmem>>, vector<2x256xf32>
    %180 = arith.addf %178, %179 : vector<2x256xf32>
    %181 = math.tanh %180 : vector<2x256xf32>
    %c0_99 = arith.constant 0 : index
    %c0_100 = arith.constant 0 : index
    %182 = vector.load %arg11[%c0_99, %c0_100] : memref<256x8xf32, #tpu.memory_space<vmem>>, vector<256x8xf32>
    %cst_101 = arith.constant dense<0.000000e+00> : vector<2x8xf32>
    %183 = tpu.matmul %181, %182, %cst_101 {dimension_numbers = #tpu.dot_dimension_numbers<[1], [0], [0], [1], [0, 0, 1, 1], [], []>} : vector<2x256xf32>, vector<256x8xf32>, vector<2x8xf32> -> vector<2x8xf32>
    %c0_102 = arith.constant 0 : index
    %c0_103 = arith.constant 0 : index
    %184 = vector.load %arg5[%c0_102, %c0_103] : memref<2x8xf32, #tpu.memory_space<vmem>>, vector<2x8xf32>
    %185 = arith.addf %183, %184 : vector<2x8xf32>
    %cst_104 = arith.constant dense<0xFF800000> : vector<2xf32>
    %186 = vector.multi_reduction <maximumf>, %185, %cst_104 [1] : vector<2x8xf32> to vector<2xf32>
    %187 = vector.shape_cast %186 : vector<2xf32> to vector<2x1xf32>
    %188 = vector.broadcast %187 : vector<2x1xf32> to vector<2x8xf32>
    %189 = arith.subf %185, %188 : vector<2x8xf32>
    %190 = math.exp %189 : vector<2x8xf32>
    %cst_105 = arith.constant dense<0.000000e+00> : vector<2xf32>
    %191 = vector.multi_reduction <add>, %190, %cst_105 [1] : vector<2x8xf32> to vector<2xf32>
    %192 = vector.shape_cast %191 : vector<2xf32> to vector<2x1xf32>
    %193 = vector.broadcast %192 : vector<2x1xf32> to vector<2x8xf32>
    %194 = arith.divf %190, %193 : vector<2x8xf32>
    %195 = arith.addf %76, %194 : vector<2x8xf32>
    %c0_106 = arith.constant 0 : index
    %c0_107 = arith.constant 0 : index
    %196 = vector.load %arg3[%c0_106, %c0_107] : memref<8x64xf32, #tpu.memory_space<vmem>>, vector<8x64xf32>
    %cst_108 = arith.constant dense<0.000000e+00> : vector<2x64xf32>
    %197 = tpu.matmul %194, %196, %cst_108 {dimension_numbers = #tpu.dot_dimension_numbers<[1], [0], [0], [1], [0, 0, 1, 1], [], []>} : vector<2x8xf32>, vector<8x64xf32>, vector<2x64xf32> -> vector<2x64xf32>
    %198 = vector.extract_strided_slice %197 {offsets = [0, 0], sizes = [2, 32], strides = [1, 1]} : vector<2x64xf32> to vector<2x32xf32>
    %199 = vector.broadcast %4 : vector<2x1xf32> to vector<2x32xf32>
    %200 = arith.mulf %198, %199 : vector<2x32xf32>
    %201 = vector.extract_strided_slice %197 {offsets = [0, 32], sizes = [2, 32], strides = [1, 1]} : vector<2x64xf32> to vector<2x32xf32>
    %202 = vector.broadcast %8 : vector<2x1xf32> to vector<2x32xf32>
    %203 = arith.mulf %201, %202 : vector<2x32xf32>
    %204 = arith.addf %200, %203 : vector<2x32xf32>
    %c0_109 = arith.constant 0 : index
    %c0_110 = arith.constant 0 : index
    %205 = vector.load %arg12[%c0_109, %c0_110] : memref<96x128xf32, #tpu.memory_space<vmem>>, vector<32x128xf32>
    %cst_111 = arith.constant dense<0.000000e+00> : vector<2x128xf32>
    %206 = tpu.matmul %170, %205, %cst_111 {dimension_numbers = #tpu.dot_dimension_numbers<[1], [0], [0], [1], [0, 0, 1, 1], [], []>} : vector<2x32xf32>, vector<32x128xf32>, vector<2x128xf32> -> vector<2x128xf32>
    %c32_112 = arith.constant 32 : index
    %c0_113 = arith.constant 0 : index
    %207 = vector.load %arg12[%c32_112, %c0_113] : memref<96x128xf32, #tpu.memory_space<vmem>>, vector<32x128xf32>
    %cst_114 = arith.constant dense<0.000000e+00> : vector<2x128xf32>
    %208 = tpu.matmul %204, %207, %cst_114 {dimension_numbers = #tpu.dot_dimension_numbers<[1], [0], [0], [1], [0, 0, 1, 1], [], []>} : vector<2x32xf32>, vector<32x128xf32>, vector<2x128xf32> -> vector<2x128xf32>
    %209 = arith.addf %206, %208 : vector<2x128xf32>
    %c64_115 = arith.constant 64 : index
    %c0_116 = arith.constant 0 : index
    %210 = vector.load %arg12[%c64_115, %c0_116] : memref<96x128xf32, #tpu.memory_space<vmem>>, vector<32x128xf32>
    %cst_117 = arith.constant dense<0.000000e+00> : vector<2x128xf32>
    %211 = tpu.matmul %112, %210, %cst_117 {dimension_numbers = #tpu.dot_dimension_numbers<[1], [0], [0], [1], [0, 0, 1, 1], [], []>} : vector<2x32xf32>, vector<32x128xf32>, vector<2x128xf32> -> vector<2x128xf32>
    %212 = arith.addf %209, %211 : vector<2x128xf32>
    %c0_118 = arith.constant 0 : index
    %c0_119 = arith.constant 0 : index
    %213 = vector.load %arg13[%c0_118, %c0_119] : memref<1x128xf32, #tpu.memory_space<vmem>>, vector<1x128xf32>
    %214 = vector.broadcast %213 : vector<1x128xf32> to vector<2x128xf32>
    %215 = arith.addf %212, %214 : vector<2x128xf32>
    %216 = arith.negf %215 : vector<2x128xf32>
    %217 = math.exp %216 : vector<2x128xf32>
    %cst_120 = arith.constant 1.000000e+00 : f32
    %218 = vector.broadcast %cst_120 : f32 to vector<2x128xf32>
    %219 = arith.addf %218, %217 : vector<2x128xf32>
    %220 = arith.divf %218, %219 : vector<2x128xf32>
    %221 = vector.extract_strided_slice %220 {offsets = [0, 32], sizes = [2, 32], strides = [1, 1]} : vector<2x128xf32> to vector<2x32xf32>
    %222 = arith.mulf %221, %108 : vector<2x32xf32>
    %223 = vector.extract_strided_slice %220 {offsets = [0, 0], sizes = [2, 32], strides = [1, 1]} : vector<2x128xf32> to vector<2x32xf32>
    %224 = vector.extract_strided_slice %215 {offsets = [0, 64], sizes = [2, 32], strides = [1, 1]} : vector<2x128xf32> to vector<2x32xf32>
    %225 = math.tanh %224 : vector<2x32xf32>
    %226 = arith.mulf %223, %225 : vector<2x32xf32>
    %227 = arith.addf %222, %226 : vector<2x32xf32>
    %228 = vector.extract_strided_slice %220 {offsets = [0, 96], sizes = [2, 32], strides = [1, 1]} : vector<2x128xf32> to vector<2x32xf32>
    %229 = math.tanh %227 : vector<2x32xf32>
    %230 = arith.mulf %228, %229 : vector<2x32xf32>
    %231 = arith.mulf %230, %143 : vector<2x32xf32>
    %c0_121 = arith.constant 0 : index
    %c0_122 = arith.constant 0 : index
    %232 = vector.load %arg14[%c0_121, %c0_122] : memref<64x9xf32, #tpu.memory_space<vmem>>, vector<32x9xf32>
    %cst_123 = arith.constant dense<0.000000e+00> : vector<2x9xf32>
    %233 = tpu.matmul %231, %232, %cst_123 {dimension_numbers = #tpu.dot_dimension_numbers<[1], [0], [0], [1], [0, 0, 1, 1], [], []>} : vector<2x32xf32>, vector<32x9xf32>, vector<2x9xf32> -> vector<2x9xf32>
    %c32_124 = arith.constant 32 : index
    %c0_125 = arith.constant 0 : index
    %234 = vector.load %arg14[%c32_124, %c0_125] : memref<64x9xf32, #tpu.memory_space<vmem>>, vector<32x9xf32>
    %cst_126 = arith.constant dense<0.000000e+00> : vector<2x9xf32>
    %235 = tpu.matmul %204, %234, %cst_126 {dimension_numbers = #tpu.dot_dimension_numbers<[1], [0], [0], [1], [0, 0, 1, 1], [], []>} : vector<2x32xf32>, vector<32x9xf32>, vector<2x9xf32> -> vector<2x9xf32>
    %236 = arith.addf %233, %235 : vector<2x9xf32>
    %c0_127 = arith.constant 0 : index
    %c0_128 = arith.constant 0 : index
    %237 = vector.load %arg15[%c0_127, %c0_128] : memref<1x9xf32, #tpu.memory_space<vmem>>, vector<1x9xf32>
    %238 = vector.broadcast %237 : vector<1x9xf32> to vector<2x9xf32>
    %239 = arith.addf %236, %238 : vector<2x9xf32>
    %240 = vector.extract_strided_slice %239 {offsets = [0, 0], sizes = [2, 8], strides = [1, 1]} : vector<2x9xf32> to vector<2x8xf32>
    %241 = arith.index_cast %c1_i32_69 : i32 to index
    %c0_129 = arith.constant 0 : index
    %c0_130 = arith.constant 0 : index
    %242 = vector.load %arg16[%241, %c0_129, %c0_130] : memref<6x2x8xf32, #tpu.memory_space<vmem>>, vector<1x2x8xf32>
    %243 = vector.shape_cast %242 : vector<1x2x8xf32> to vector<2x8xf32>
    %244 = vector.shape_cast %240 : vector<2x8xf32> to vector<1x2x8xf32>
    tpu.vector_store %arg16[%241, %c0_129, %c0_130], %244 {strides = array<i32>} : memref<6x2x8xf32, #tpu.memory_space<vmem>>, vector<1x2x8xf32>,
    %245 = vector.extract_strided_slice %239 {offsets = [0, 8], sizes = [2, 1], strides = [1, 1]} : vector<2x9xf32> to vector<2x1xf32>
    %246 = arith.index_cast %c1_i32_69 : i32 to index
    %c0_131 = arith.constant 0 : index
    %c0_132 = arith.constant 0 : index
    %247 = vector.load %arg17[%246, %c0_131, %c0_132] : memref<6x2x1xf32, #tpu.memory_space<vmem>>, vector<1x2x1xf32>
    %248 = vector.shape_cast %247 : vector<1x2x1xf32> to vector<2x1xf32>
    %249 = vector.shape_cast %245 : vector<2x1xf32> to vector<1x2x1xf32>
    tpu.vector_store %arg17[%246, %c0_131, %c0_132], %249 {strides = array<i32>} : memref<6x2x1xf32, #tpu.memory_space<vmem>>, vector<1x2x1xf32>,
    %250 = arith.index_cast %c1_i32_69 : i32 to index
    %c0_133 = arith.constant 0 : index
    %c0_134 = arith.constant 0 : index
    %251 = vector.load %arg18[%250, %c0_133, %c0_134] : memref<6x2x8xf32, #tpu.memory_space<vmem>>, vector<1x2x8xf32>
    %252 = vector.shape_cast %251 : vector<1x2x8xf32> to vector<2x8xf32>
    %253 = vector.shape_cast %194 : vector<2x8xf32> to vector<1x2x8xf32>
    tpu.vector_store %arg18[%250, %c0_133, %c0_134], %253 {strides = array<i32>} : memref<6x2x8xf32, #tpu.memory_space<vmem>>, vector<1x2x8xf32>,
    %c2_i32 = arith.constant 2 : i32
    %254 = arith.index_cast %c2_i32 : i32 to index
    %c0_135 = arith.constant 0 : index
    %c0_136 = arith.constant 0 : index
    %255 = vector.load %arg0[%254, %c0_135, %c0_136] : memref<6x2x32xf32, #tpu.memory_space<vmem>>, vector<1x2x32xf32>
    %256 = vector.shape_cast %255 : vector<1x2x32xf32> to vector<2x32xf32>
    %257 = arith.index_cast %c2_i32 : i32 to index
    %c0_137 = arith.constant 0 : index
    %c0_138 = arith.constant 0 : index
    %258 = vector.load %arg1[%257, %c0_137, %c0_138] : memref<6x2x32xf32, #tpu.memory_space<vmem>>, vector<1x2x32xf32>
    %259 = vector.shape_cast %258 : vector<1x2x32xf32> to vector<2x32xf32>
    %260 = arith.index_cast %c2_i32 : i32 to index
    %c0_139 = arith.constant 0 : index
    %c0_140 = arith.constant 0 : index
    %261 = vector.load %arg2[%260, %c0_139, %c0_140] : memref<6x2x32xf32, #tpu.memory_space<vmem>>, vector<1x2x32xf32>
    %262 = vector.shape_cast %261 : vector<1x2x32xf32> to vector<2x32xf32>
    %c0_141 = arith.constant 0 : index
    %c0_142 = arith.constant 0 : index
    %263 = vector.load %arg6[%c0_141, %c0_142] : memref<96x128xf32, #tpu.memory_space<vmem>>, vector<32x128xf32>
    %cst_143 = arith.constant dense<0.000000e+00> : vector<2x128xf32>
    %264 = tpu.matmul %256, %263, %cst_143 {dimension_numbers = #tpu.dot_dimension_numbers<[1], [0], [0], [1], [0, 0, 1, 1], [], []>} : vector<2x32xf32>, vector<32x128xf32>, vector<2x128xf32> -> vector<2x128xf32>
    %c32_144 = arith.constant 32 : index
    %c0_145 = arith.constant 0 : index
    %265 = vector.load %arg6[%c32_144, %c0_145] : memref<96x128xf32, #tpu.memory_space<vmem>>, vector<32x128xf32>
    %cst_146 = arith.constant dense<0.000000e+00> : vector<2x128xf32>
    %266 = tpu.matmul %204, %265, %cst_146 {dimension_numbers = #tpu.dot_dimension_numbers<[1], [0], [0], [1], [0, 0, 1, 1], [], []>} : vector<2x32xf32>, vector<32x128xf32>, vector<2x128xf32> -> vector<2x128xf32>
    %267 = arith.addf %264, %266 : vector<2x128xf32>
    %c64_147 = arith.constant 64 : index
    %c0_148 = arith.constant 0 : index
    %268 = vector.load %arg6[%c64_147, %c0_148] : memref<96x128xf32, #tpu.memory_space<vmem>>, vector<32x128xf32>
    %cst_149 = arith.constant dense<0.000000e+00> : vector<2x128xf32>
    %269 = tpu.matmul %170, %268, %cst_149 {dimension_numbers = #tpu.dot_dimension_numbers<[1], [0], [0], [1], [0, 0, 1, 1], [], []>} : vector<2x32xf32>, vector<32x128xf32>, vector<2x128xf32> -> vector<2x128xf32>
    %270 = arith.addf %267, %269 : vector<2x128xf32>
    %c0_150 = arith.constant 0 : index
    %c0_151 = arith.constant 0 : index
    %271 = vector.load %arg7[%c0_150, %c0_151] : memref<1x128xf32, #tpu.memory_space<vmem>>, vector<1x128xf32>
    %272 = vector.broadcast %271 : vector<1x128xf32> to vector<2x128xf32>
    %273 = arith.addf %270, %272 : vector<2x128xf32>
    %274 = arith.negf %273 : vector<2x128xf32>
    %275 = math.exp %274 : vector<2x128xf32>
    %cst_152 = arith.constant 1.000000e+00 : f32
    %276 = vector.broadcast %cst_152 : f32 to vector<2x128xf32>
    %277 = arith.addf %276, %275 : vector<2x128xf32>
    %278 = arith.divf %276, %277 : vector<2x128xf32>
    %279 = vector.extract_strided_slice %278 {offsets = [0, 32], sizes = [2, 32], strides = [1, 1]} : vector<2x128xf32> to vector<2x32xf32>
    %280 = arith.mulf %279, %166 : vector<2x32xf32>
    %281 = vector.extract_strided_slice %278 {offsets = [0, 0], sizes = [2, 32], strides = [1, 1]} : vector<2x128xf32> to vector<2x32xf32>
    %282 = vector.extract_strided_slice %273 {offsets = [0, 64], sizes = [2, 32], strides = [1, 1]} : vector<2x128xf32> to vector<2x32xf32>
    %283 = math.tanh %282 : vector<2x32xf32>
    %284 = arith.mulf %281, %283 : vector<2x32xf32>
    %285 = arith.addf %280, %284 : vector<2x32xf32>
    %286 = vector.extract_strided_slice %278 {offsets = [0, 96], sizes = [2, 32], strides = [1, 1]} : vector<2x128xf32> to vector<2x32xf32>
    %287 = math.tanh %285 : vector<2x32xf32>
    %288 = arith.mulf %286, %287 : vector<2x32xf32>
    %289 = arith.mulf %288, %259 : vector<2x32xf32>
    %c0_153 = arith.constant 0 : index
    %c0_154 = arith.constant 0 : index
    %290 = vector.load %arg8[%c0_153, %c0_154] : memref<32x256xf32, #tpu.memory_space<vmem>>, vector<32x256xf32>
    %cst_155 = arith.constant dense<0.000000e+00> : vector<2x256xf32>
    %291 = tpu.matmul %289, %290, %cst_155 {dimension_numbers = #tpu.dot_dimension_numbers<[1], [0], [0], [1], [0, 0, 1, 1], [], []>} : vector<2x32xf32>, vector<32x256xf32>, vector<2x256xf32> -> vector<2x256xf32>
    %c0_156 = arith.constant 0 : index
    %c0_157 = arith.constant 0 : index
    %292 = vector.load %arg9[%c0_156, %c0_157] : memref<8x256xf32, #tpu.memory_space<vmem>>, vector<8x256xf32>
    %cst_158 = arith.constant dense<0.000000e+00> : vector<2x256xf32>
    %293 = tpu.matmul %194, %292, %cst_158 {dimension_numbers = #tpu.dot_dimension_numbers<[1], [0], [0], [1], [0, 0, 1, 1], [], []>} : vector<2x8xf32>, vector<8x256xf32>, vector<2x256xf32> -> vector<2x256xf32>
    %294 = arith.addf %291, %293 : vector<2x256xf32>
    %c0_159 = arith.constant 0 : index
    %c0_160 = arith.constant 0 : index
    %295 = vector.load %arg10[%c0_159, %c0_160] : memref<8x256xf32, #tpu.memory_space<vmem>>, vector<8x256xf32>
    %cst_161 = arith.constant dense<0.000000e+00> : vector<2x256xf32>
    %296 = tpu.matmul %195, %295, %cst_161 {dimension_numbers = #tpu.dot_dimension_numbers<[1], [0], [0], [1], [0, 0, 1, 1], [], []>} : vector<2x8xf32>, vector<8x256xf32>, vector<2x256xf32> -> vector<2x256xf32>
    %297 = arith.addf %294, %296 : vector<2x256xf32>
    %c0_162 = arith.constant 0 : index
    %c0_163 = arith.constant 0 : index
    %298 = vector.load %arg4[%c0_162, %c0_163] : memref<2x256xf32, #tpu.memory_space<vmem>>, vector<2x256xf32>
    %299 = arith.addf %297, %298 : vector<2x256xf32>
    %300 = math.tanh %299 : vector<2x256xf32>
    %c0_164 = arith.constant 0 : index
    %c0_165 = arith.constant 0 : index
    %301 = vector.load %arg11[%c0_164, %c0_165] : memref<256x8xf32, #tpu.memory_space<vmem>>, vector<256x8xf32>
    %cst_166 = arith.constant dense<0.000000e+00> : vector<2x8xf32>
    %302 = tpu.matmul %300, %301, %cst_166 {dimension_numbers = #tpu.dot_dimension_numbers<[1], [0], [0], [1], [0, 0, 1, 1], [], []>} : vector<2x256xf32>, vector<256x8xf32>, vector<2x8xf32> -> vector<2x8xf32>
    %c0_167 = arith.constant 0 : index
    %c0_168 = arith.constant 0 : index
    %303 = vector.load %arg5[%c0_167, %c0_168] : memref<2x8xf32, #tpu.memory_space<vmem>>, vector<2x8xf32>
    %304 = arith.addf %302, %303 : vector<2x8xf32>
    %cst_169 = arith.constant dense<0xFF800000> : vector<2xf32>
    %305 = vector.multi_reduction <maximumf>, %304, %cst_169 [1] : vector<2x8xf32> to vector<2xf32>
    %306 = vector.shape_cast %305 : vector<2xf32> to vector<2x1xf32>
    %307 = vector.broadcast %306 : vector<2x1xf32> to vector<2x8xf32>
    %308 = arith.subf %304, %307 : vector<2x8xf32>
    %309 = math.exp %308 : vector<2x8xf32>
    %cst_170 = arith.constant dense<0.000000e+00> : vector<2xf32>
    %310 = vector.multi_reduction <add>, %309, %cst_170 [1] : vector<2x8xf32> to vector<2xf32>
    %311 = vector.shape_cast %310 : vector<2xf32> to vector<2x1xf32>
    %312 = vector.broadcast %311 : vector<2x1xf32> to vector<2x8xf32>
    %313 = arith.divf %309, %312 : vector<2x8xf32>
    %314 = arith.addf %195, %313 : vector<2x8xf32>
    %c0_171 = arith.constant 0 : index
    %c0_172 = arith.constant 0 : index
    %315 = vector.load %arg3[%c0_171, %c0_172] : memref<8x64xf32, #tpu.memory_space<vmem>>, vector<8x64xf32>
    %cst_173 = arith.constant dense<0.000000e+00> : vector<2x64xf32>
    %316 = tpu.matmul %313, %315, %cst_173 {dimension_numbers = #tpu.dot_dimension_numbers<[1], [0], [0], [1], [0, 0, 1, 1], [], []>} : vector<2x8xf32>, vector<8x64xf32>, vector<2x64xf32> -> vector<2x64xf32>
    %317 = vector.extract_strided_slice %316 {offsets = [0, 0], sizes = [2, 32], strides = [1, 1]} : vector<2x64xf32> to vector<2x32xf32>
    %318 = vector.broadcast %4 : vector<2x1xf32> to vector<2x32xf32>
    %319 = arith.mulf %317, %318 : vector<2x32xf32>
    %320 = vector.extract_strided_slice %316 {offsets = [0, 32], sizes = [2, 32], strides = [1, 1]} : vector<2x64xf32> to vector<2x32xf32>
    %321 = vector.broadcast %8 : vector<2x1xf32> to vector<2x32xf32>
    %322 = arith.mulf %320, %321 : vector<2x32xf32>
    %323 = arith.addf %319, %322 : vector<2x32xf32>
    %c0_174 = arith.constant 0 : index
    %c0_175 = arith.constant 0 : index
    %324 = vector.load %arg12[%c0_174, %c0_175] : memref<96x128xf32, #tpu.memory_space<vmem>>, vector<32x128xf32>
    %cst_176 = arith.constant dense<0.000000e+00> : vector<2x128xf32>
    %325 = tpu.matmul %289, %324, %cst_176 {dimension_numbers = #tpu.dot_dimension_numbers<[1], [0], [0], [1], [0, 0, 1, 1], [], []>} : vector<2x32xf32>, vector<32x128xf32>, vector<2x128xf32> -> vector<2x128xf32>
    %c32_177 = arith.constant 32 : index
    %c0_178 = arith.constant 0 : index
    %326 = vector.load %arg12[%c32_177, %c0_178] : memref<96x128xf32, #tpu.memory_space<vmem>>, vector<32x128xf32>
    %cst_179 = arith.constant dense<0.000000e+00> : vector<2x128xf32>
    %327 = tpu.matmul %323, %326, %cst_179 {dimension_numbers = #tpu.dot_dimension_numbers<[1], [0], [0], [1], [0, 0, 1, 1], [], []>} : vector<2x32xf32>, vector<32x128xf32>, vector<2x128xf32> -> vector<2x128xf32>
    %328 = arith.addf %325, %327 : vector<2x128xf32>
    %c64_180 = arith.constant 64 : index
    %c0_181 = arith.constant 0 : index
    %329 = vector.load %arg12[%c64_180, %c0_181] : memref<96x128xf32, #tpu.memory_space<vmem>>, vector<32x128xf32>
    %cst_182 = arith.constant dense<0.000000e+00> : vector<2x128xf32>
    %330 = tpu.matmul %231, %329, %cst_182 {dimension_numbers = #tpu.dot_dimension_numbers<[1], [0], [0], [1], [0, 0, 1, 1], [], []>} : vector<2x32xf32>, vector<32x128xf32>, vector<2x128xf32> -> vector<2x128xf32>
    %331 = arith.addf %328, %330 : vector<2x128xf32>
    %c0_183 = arith.constant 0 : index
    %c0_184 = arith.constant 0 : index
    %332 = vector.load %arg13[%c0_183, %c0_184] : memref<1x128xf32, #tpu.memory_space<vmem>>, vector<1x128xf32>
    %333 = vector.broadcast %332 : vector<1x128xf32> to vector<2x128xf32>
    %334 = arith.addf %331, %333 : vector<2x128xf32>
    %335 = arith.negf %334 : vector<2x128xf32>
    %336 = math.exp %335 : vector<2x128xf32>
    %cst_185 = arith.constant 1.000000e+00 : f32
    %337 = vector.broadcast %cst_185 : f32 to vector<2x128xf32>
    %338 = arith.addf %337, %336 : vector<2x128xf32>
    %339 = arith.divf %337, %338 : vector<2x128xf32>
    %340 = vector.extract_strided_slice %339 {offsets = [0, 32], sizes = [2, 32], strides = [1, 1]} : vector<2x128xf32> to vector<2x32xf32>
    %341 = arith.mulf %340, %227 : vector<2x32xf32>
    %342 = vector.extract_strided_slice %339 {offsets = [0, 0], sizes = [2, 32], strides = [1, 1]} : vector<2x128xf32> to vector<2x32xf32>
    %343 = vector.extract_strided_slice %334 {offsets = [0, 64], sizes = [2, 32], strides = [1, 1]} : vector<2x128xf32> to vector<2x32xf32>
    %344 = math.tanh %343 : vector<2x32xf32>
    %345 = arith.mulf %342, %344 : vector<2x32xf32>
    %346 = arith.addf %341, %345 : vector<2x32xf32>
    %347 = vector.extract_strided_slice %339 {offsets = [0, 96], sizes = [2, 32], strides = [1, 1]} : vector<2x128xf32> to vector<2x32xf32>
    %348 = math.tanh %346 : vector<2x32xf32>
    %349 = arith.mulf %347, %348 : vector<2x32xf32>
    %350 = arith.mulf %349, %262 : vector<2x32xf32>
    %c0_186 = arith.constant 0 : index
    %c0_187 = arith.constant 0 : index
    %351 = vector.load %arg14[%c0_186, %c0_187] : memref<64x9xf32, #tpu.memory_space<vmem>>, vector<32x9xf32>
    %cst_188 = arith.constant dense<0.000000e+00> : vector<2x9xf32>
    %352 = tpu.matmul %350, %351, %cst_188 {dimension_numbers = #tpu.dot_dimension_numbers<[1], [0], [0], [1], [0, 0, 1, 1], [], []>} : vector<2x32xf32>, vector<32x9xf32>, vector<2x9xf32> -> vector<2x9xf32>
    %c32_189 = arith.constant 32 : index
    %c0_190 = arith.constant 0 : index
    %353 = vector.load %arg14[%c32_189, %c0_190] : memref<64x9xf32, #tpu.memory_space<vmem>>, vector<32x9xf32>
    %cst_191 = arith.constant dense<0.000000e+00> : vector<2x9xf32>
    %354 = tpu.matmul %323, %353, %cst_191 {dimension_numbers = #tpu.dot_dimension_numbers<[1], [0], [0], [1], [0, 0, 1, 1], [], []>} : vector<2x32xf32>, vector<32x9xf32>, vector<2x9xf32> -> vector<2x9xf32>
    %355 = arith.addf %352, %354 : vector<2x9xf32>
    %c0_192 = arith.constant 0 : index
    %c0_193 = arith.constant 0 : index
    %356 = vector.load %arg15[%c0_192, %c0_193] : memref<1x9xf32, #tpu.memory_space<vmem>>, vector<1x9xf32>
    %357 = vector.broadcast %356 : vector<1x9xf32> to vector<2x9xf32>
    %358 = arith.addf %355, %357 : vector<2x9xf32>
    %359 = vector.extract_strided_slice %358 {offsets = [0, 0], sizes = [2, 8], strides = [1, 1]} : vector<2x9xf32> to vector<2x8xf32>
    %360 = arith.index_cast %c2_i32 : i32 to index
    %c0_194 = arith.constant 0 : index
    %c0_195 = arith.constant 0 : index
    %361 = vector.load %arg16[%360, %c0_194, %c0_195] : memref<6x2x8xf32, #tpu.memory_space<vmem>>, vector<1x2x8xf32>
    %362 = vector.shape_cast %361 : vector<1x2x8xf32> to vector<2x8xf32>
    %363 = vector.shape_cast %359 : vector<2x8xf32> to vector<1x2x8xf32>
    tpu.vector_store %arg16[%360, %c0_194, %c0_195], %363 {strides = array<i32>} : memref<6x2x8xf32, #tpu.memory_space<vmem>>, vector<1x2x8xf32>,
    %364 = vector.extract_strided_slice %358 {offsets = [0, 8], sizes = [2, 1], strides = [1, 1]} : vector<2x9xf32> to vector<2x1xf32>
    %365 = arith.index_cast %c2_i32 : i32 to index
    %c0_196 = arith.constant 0 : index
    %c0_197 = arith.constant 0 : index
    %366 = vector.load %arg17[%365, %c0_196, %c0_197] : memref<6x2x1xf32, #tpu.memory_space<vmem>>, vector<1x2x1xf32>
    %367 = vector.shape_cast %366 : vector<1x2x1xf32> to vector<2x1xf32>
    %368 = vector.shape_cast %364 : vector<2x1xf32> to vector<1x2x1xf32>
    tpu.vector_store %arg17[%365, %c0_196, %c0_197], %368 {strides = array<i32>} : memref<6x2x1xf32, #tpu.memory_space<vmem>>, vector<1x2x1xf32>,
    %369 = arith.index_cast %c2_i32 : i32 to index
    %c0_198 = arith.constant 0 : index
    %c0_199 = arith.constant 0 : index
    %370 = vector.load %arg18[%369, %c0_198, %c0_199] : memref<6x2x8xf32, #tpu.memory_space<vmem>>, vector<1x2x8xf32>
    %371 = vector.shape_cast %370 : vector<1x2x8xf32> to vector<2x8xf32>
    %372 = vector.shape_cast %313 : vector<2x8xf32> to vector<1x2x8xf32>
    tpu.vector_store %arg18[%369, %c0_198, %c0_199], %372 {strides = array<i32>} : memref<6x2x8xf32, #tpu.memory_space<vmem>>, vector<1x2x8xf32>,
    %c3_i32 = arith.constant 3 : i32
    %373 = arith.index_cast %c3_i32 : i32 to index
    %c0_200 = arith.constant 0 : index
    %c0_201 = arith.constant 0 : index
    %374 = vector.load %arg0[%373, %c0_200, %c0_201] : memref<6x2x32xf32, #tpu.memory_space<vmem>>, vector<1x2x32xf32>
    %375 = vector.shape_cast %374 : vector<1x2x32xf32> to vector<2x32xf32>
    %376 = arith.index_cast %c3_i32 : i32 to index
    %c0_202 = arith.constant 0 : index
    %c0_203 = arith.constant 0 : index
    %377 = vector.load %arg1[%376, %c0_202, %c0_203] : memref<6x2x32xf32, #tpu.memory_space<vmem>>, vector<1x2x32xf32>
    %378 = vector.shape_cast %377 : vector<1x2x32xf32> to vector<2x32xf32>
    %379 = arith.index_cast %c3_i32 : i32 to index
    %c0_204 = arith.constant 0 : index
    %c0_205 = arith.constant 0 : index
    %380 = vector.load %arg2[%379, %c0_204, %c0_205] : memref<6x2x32xf32, #tpu.memory_space<vmem>>, vector<1x2x32xf32>
    %381 = vector.shape_cast %380 : vector<1x2x32xf32> to vector<2x32xf32>
    %c0_206 = arith.constant 0 : index
    %c0_207 = arith.constant 0 : index
    %382 = vector.load %arg6[%c0_206, %c0_207] : memref<96x128xf32, #tpu.memory_space<vmem>>, vector<32x128xf32>
    %cst_208 = arith.constant dense<0.000000e+00> : vector<2x128xf32>
    %383 = tpu.matmul %375, %382, %cst_208 {dimension_numbers = #tpu.dot_dimension_numbers<[1], [0], [0], [1], [0, 0, 1, 1], [], []>} : vector<2x32xf32>, vector<32x128xf32>, vector<2x128xf32> -> vector<2x128xf32>
    %c32_209 = arith.constant 32 : index
    %c0_210 = arith.constant 0 : index
    %384 = vector.load %arg6[%c32_209, %c0_210] : memref<96x128xf32, #tpu.memory_space<vmem>>, vector<32x128xf32>
    %cst_211 = arith.constant dense<0.000000e+00> : vector<2x128xf32>
    %385 = tpu.matmul %323, %384, %cst_211 {dimension_numbers = #tpu.dot_dimension_numbers<[1], [0], [0], [1], [0, 0, 1, 1], [], []>} : vector<2x32xf32>, vector<32x128xf32>, vector<2x128xf32> -> vector<2x128xf32>
    %386 = arith.addf %383, %385 : vector<2x128xf32>
    %c64_212 = arith.constant 64 : index
    %c0_213 = arith.constant 0 : index
    %387 = vector.load %arg6[%c64_212, %c0_213] : memref<96x128xf32, #tpu.memory_space<vmem>>, vector<32x128xf32>
    %cst_214 = arith.constant dense<0.000000e+00> : vector<2x128xf32>
    %388 = tpu.matmul %289, %387, %cst_214 {dimension_numbers = #tpu.dot_dimension_numbers<[1], [0], [0], [1], [0, 0, 1, 1], [], []>} : vector<2x32xf32>, vector<32x128xf32>, vector<2x128xf32> -> vector<2x128xf32>
    %389 = arith.addf %386, %388 : vector<2x128xf32>
    %c0_215 = arith.constant 0 : index
    %c0_216 = arith.constant 0 : index
    %390 = vector.load %arg7[%c0_215, %c0_216] : memref<1x128xf32, #tpu.memory_space<vmem>>, vector<1x128xf32>
    %391 = vector.broadcast %390 : vector<1x128xf32> to vector<2x128xf32>
    %392 = arith.addf %389, %391 : vector<2x128xf32>
    %393 = arith.negf %392 : vector<2x128xf32>
    %394 = math.exp %393 : vector<2x128xf32>
    %cst_217 = arith.constant 1.000000e+00 : f32
    %395 = vector.broadcast %cst_217 : f32 to vector<2x128xf32>
    %396 = arith.addf %395, %394 : vector<2x128xf32>
    %397 = arith.divf %395, %396 : vector<2x128xf32>
    %398 = vector.extract_strided_slice %397 {offsets = [0, 32], sizes = [2, 32], strides = [1, 1]} : vector<2x128xf32> to vector<2x32xf32>
    %399 = arith.mulf %398, %285 : vector<2x32xf32>
    %400 = vector.extract_strided_slice %397 {offsets = [0, 0], sizes = [2, 32], strides = [1, 1]} : vector<2x128xf32> to vector<2x32xf32>
    %401 = vector.extract_strided_slice %392 {offsets = [0, 64], sizes = [2, 32], strides = [1, 1]} : vector<2x128xf32> to vector<2x32xf32>
    %402 = math.tanh %401 : vector<2x32xf32>
    %403 = arith.mulf %400, %402 : vector<2x32xf32>
    %404 = arith.addf %399, %403 : vector<2x32xf32>
    %405 = vector.extract_strided_slice %397 {offsets = [0, 96], sizes = [2, 32], strides = [1, 1]} : vector<2x128xf32> to vector<2x32xf32>
    %406 = math.tanh %404 : vector<2x32xf32>
    %407 = arith.mulf %405, %406 : vector<2x32xf32>
    %408 = arith.mulf %407, %378 : vector<2x32xf32>
    %c0_218 = arith.constant 0 : index
    %c0_219 = arith.constant 0 : index
    %409 = vector.load %arg8[%c0_218, %c0_219] : memref<32x256xf32, #tpu.memory_space<vmem>>, vector<32x256xf32>
    %cst_220 = arith.constant dense<0.000000e+00> : vector<2x256xf32>
    %410 = tpu.matmul %408, %409, %cst_220 {dimension_numbers = #tpu.dot_dimension_numbers<[1], [0], [0], [1], [0, 0, 1, 1], [], []>} : vector<2x32xf32>, vector<32x256xf32>, vector<2x256xf32> -> vector<2x256xf32>
    %c0_221 = arith.constant 0 : index
    %c0_222 = arith.constant 0 : index
    %411 = vector.load %arg9[%c0_221, %c0_222] : memref<8x256xf32, #tpu.memory_space<vmem>>, vector<8x256xf32>
    %cst_223 = arith.constant dense<0.000000e+00> : vector<2x256xf32>
    %412 = tpu.matmul %313, %411, %cst_223 {dimension_numbers = #tpu.dot_dimension_numbers<[1], [0], [0], [1], [0, 0, 1, 1], [], []>} : vector<2x8xf32>, vector<8x256xf32>, vector<2x256xf32> -> vector<2x256xf32>
    %413 = arith.addf %410, %412 : vector<2x256xf32>
    %c0_224 = arith.constant 0 : index
    %c0_225 = arith.constant 0 : index
    %414 = vector.load %arg10[%c0_224, %c0_225] : memref<8x256xf32, #tpu.memory_space<vmem>>, vector<8x256xf32>
    %cst_226 = arith.constant dense<0.000000e+00> : vector<2x256xf32>
    %415 = tpu.matmul %314, %414, %cst_226 {dimension_numbers = #tpu.dot_dimension_numbers<[1], [0], [0], [1], [0, 0, 1, 1], [], []>} : vector<2x8xf32>, vector<8x256xf32>, vector<2x256xf32> -> vector<2x256xf32>
    %416 = arith.addf %413, %415 : vector<2x256xf32>
    %c0_227 = arith.constant 0 : index
    %c0_228 = arith.constant 0 : index
    %417 = vector.load %arg4[%c0_227, %c0_228] : memref<2x256xf32, #tpu.memory_space<vmem>>, vector<2x256xf32>
    %418 = arith.addf %416, %417 : vector<2x256xf32>
    %419 = math.tanh %418 : vector<2x256xf32>
    %c0_229 = arith.constant 0 : index
    %c0_230 = arith.constant 0 : index
    %420 = vector.load %arg11[%c0_229, %c0_230] : memref<256x8xf32, #tpu.memory_space<vmem>>, vector<256x8xf32>
    %cst_231 = arith.constant dense<0.000000e+00> : vector<2x8xf32>
    %421 = tpu.matmul %419, %420, %cst_231 {dimension_numbers = #tpu.dot_dimension_numbers<[1], [0], [0], [1], [0, 0, 1, 1], [], []>} : vector<2x256xf32>, vector<256x8xf32>, vector<2x8xf32> -> vector<2x8xf32>
    %c0_232 = arith.constant 0 : index
    %c0_233 = arith.constant 0 : index
    %422 = vector.load %arg5[%c0_232, %c0_233] : memref<2x8xf32, #tpu.memory_space<vmem>>, vector<2x8xf32>
    %423 = arith.addf %421, %422 : vector<2x8xf32>
    %cst_234 = arith.constant dense<0xFF800000> : vector<2xf32>
    %424 = vector.multi_reduction <maximumf>, %423, %cst_234 [1] : vector<2x8xf32> to vector<2xf32>
    %425 = vector.shape_cast %424 : vector<2xf32> to vector<2x1xf32>
    %426 = vector.broadcast %425 : vector<2x1xf32> to vector<2x8xf32>
    %427 = arith.subf %423, %426 : vector<2x8xf32>
    %428 = math.exp %427 : vector<2x8xf32>
    %cst_235 = arith.constant dense<0.000000e+00> : vector<2xf32>
    %429 = vector.multi_reduction <add>, %428, %cst_235 [1] : vector<2x8xf32> to vector<2xf32>
    %430 = vector.shape_cast %429 : vector<2xf32> to vector<2x1xf32>
    %431 = vector.broadcast %430 : vector<2x1xf32> to vector<2x8xf32>
    %432 = arith.divf %428, %431 : vector<2x8xf32>
    %433 = arith.addf %314, %432 : vector<2x8xf32>
    %c0_236 = arith.constant 0 : index
    %c0_237 = arith.constant 0 : index
    %434 = vector.load %arg3[%c0_236, %c0_237] : memref<8x64xf32, #tpu.memory_space<vmem>>, vector<8x64xf32>
    %cst_238 = arith.constant dense<0.000000e+00> : vector<2x64xf32>
    %435 = tpu.matmul %432, %434, %cst_238 {dimension_numbers = #tpu.dot_dimension_numbers<[1], [0], [0], [1], [0, 0, 1, 1], [], []>} : vector<2x8xf32>, vector<8x64xf32>, vector<2x64xf32> -> vector<2x64xf32>
    %436 = vector.extract_strided_slice %435 {offsets = [0, 0], sizes = [2, 32], strides = [1, 1]} : vector<2x64xf32> to vector<2x32xf32>
    %437 = vector.broadcast %4 : vector<2x1xf32> to vector<2x32xf32>
    %438 = arith.mulf %436, %437 : vector<2x32xf32>
    %439 = vector.extract_strided_slice %435 {offsets = [0, 32], sizes = [2, 32], strides = [1, 1]} : vector<2x64xf32> to vector<2x32xf32>
    %440 = vector.broadcast %8 : vector<2x1xf32> to vector<2x32xf32>
    %441 = arith.mulf %439, %440 : vector<2x32xf32>
    %442 = arith.addf %438, %441 : vector<2x32xf32>
    %c0_239 = arith.constant 0 : index
    %c0_240 = arith.constant 0 : index
    %443 = vector.load %arg12[%c0_239, %c0_240] : memref<96x128xf32, #tpu.memory_space<vmem>>, vector<32x128xf32>
    %cst_241 = arith.constant dense<0.000000e+00> : vector<2x128xf32>
    %444 = tpu.matmul %408, %443, %cst_241 {dimension_numbers = #tpu.dot_dimension_numbers<[1], [0], [0], [1], [0, 0, 1, 1], [], []>} : vector<2x32xf32>, vector<32x128xf32>, vector<2x128xf32> -> vector<2x128xf32>
    %c32_242 = arith.constant 32 : index
    %c0_243 = arith.constant 0 : index
    %445 = vector.load %arg12[%c32_242, %c0_243] : memref<96x128xf32, #tpu.memory_space<vmem>>, vector<32x128xf32>
    %cst_244 = arith.constant dense<0.000000e+00> : vector<2x128xf32>
    %446 = tpu.matmul %442, %445, %cst_244 {dimension_numbers = #tpu.dot_dimension_numbers<[1], [0], [0], [1], [0, 0, 1, 1], [], []>} : vector<2x32xf32>, vector<32x128xf32>, vector<2x128xf32> -> vector<2x128xf32>
    %447 = arith.addf %444, %446 : vector<2x128xf32>
    %c64_245 = arith.constant 64 : index
    %c0_246 = arith.constant 0 : index
    %448 = vector.load %arg12[%c64_245, %c0_246] : memref<96x128xf32, #tpu.memory_space<vmem>>, vector<32x128xf32>
    %cst_247 = arith.constant dense<0.000000e+00> : vector<2x128xf32>
    %449 = tpu.matmul %350, %448, %cst_247 {dimension_numbers = #tpu.dot_dimension_numbers<[1], [0], [0], [1], [0, 0, 1, 1], [], []>} : vector<2x32xf32>, vector<32x128xf32>, vector<2x128xf32> -> vector<2x128xf32>
    %450 = arith.addf %447, %449 : vector<2x128xf32>
    %c0_248 = arith.constant 0 : index
    %c0_249 = arith.constant 0 : index
    %451 = vector.load %arg13[%c0_248, %c0_249] : memref<1x128xf32, #tpu.memory_space<vmem>>, vector<1x128xf32>
    %452 = vector.broadcast %451 : vector<1x128xf32> to vector<2x128xf32>
    %453 = arith.addf %450, %452 : vector<2x128xf32>
    %454 = arith.negf %453 : vector<2x128xf32>
    %455 = math.exp %454 : vector<2x128xf32>
    %cst_250 = arith.constant 1.000000e+00 : f32
    %456 = vector.broadcast %cst_250 : f32 to vector<2x128xf32>
    %457 = arith.addf %456, %455 : vector<2x128xf32>
    %458 = arith.divf %456, %457 : vector<2x128xf32>
    %459 = vector.extract_strided_slice %458 {offsets = [0, 32], sizes = [2, 32], strides = [1, 1]} : vector<2x128xf32> to vector<2x32xf32>
    %460 = arith.mulf %459, %346 : vector<2x32xf32>
    %461 = vector.extract_strided_slice %458 {offsets = [0, 0], sizes = [2, 32], strides = [1, 1]} : vector<2x128xf32> to vector<2x32xf32>
    %462 = vector.extract_strided_slice %453 {offsets = [0, 64], sizes = [2, 32], strides = [1, 1]} : vector<2x128xf32> to vector<2x32xf32>
    %463 = math.tanh %462 : vector<2x32xf32>
    %464 = arith.mulf %461, %463 : vector<2x32xf32>
    %465 = arith.addf %460, %464 : vector<2x32xf32>
    %466 = vector.extract_strided_slice %458 {offsets = [0, 96], sizes = [2, 32], strides = [1, 1]} : vector<2x128xf32> to vector<2x32xf32>
    %467 = math.tanh %465 : vector<2x32xf32>
    %468 = arith.mulf %466, %467 : vector<2x32xf32>
    %469 = arith.mulf %468, %381 : vector<2x32xf32>
    %c0_251 = arith.constant 0 : index
    %c0_252 = arith.constant 0 : index
    %470 = vector.load %arg14[%c0_251, %c0_252] : memref<64x9xf32, #tpu.memory_space<vmem>>, vector<32x9xf32>
    %cst_253 = arith.constant dense<0.000000e+00> : vector<2x9xf32>
    %471 = tpu.matmul %469, %470, %cst_253 {dimension_numbers = #tpu.dot_dimension_numbers<[1], [0], [0], [1], [0, 0, 1, 1], [], []>} : vector<2x32xf32>, vector<32x9xf32>, vector<2x9xf32> -> vector<2x9xf32>
    %c32_254 = arith.constant 32 : index
    %c0_255 = arith.constant 0 : index
    %472 = vector.load %arg14[%c32_254, %c0_255] : memref<64x9xf32, #tpu.memory_space<vmem>>, vector<32x9xf32>
    %cst_256 = arith.constant dense<0.000000e+00> : vector<2x9xf32>
    %473 = tpu.matmul %442, %472, %cst_256 {dimension_numbers = #tpu.dot_dimension_numbers<[1], [0], [0], [1], [0, 0, 1, 1], [], []>} : vector<2x32xf32>, vector<32x9xf32>, vector<2x9xf32> -> vector<2x9xf32>
    %474 = arith.addf %471, %473 : vector<2x9xf32>
    %c0_257 = arith.constant 0 : index
    %c0_258 = arith.constant 0 : index
    %475 = vector.load %arg15[%c0_257, %c0_258] : memref<1x9xf32, #tpu.memory_space<vmem>>, vector<1x9xf32>
    %476 = vector.broadcast %475 : vector<1x9xf32> to vector<2x9xf32>
    %477 = arith.addf %474, %476 : vector<2x9xf32>
    %478 = vector.extract_strided_slice %477 {offsets = [0, 0], sizes = [2, 8], strides = [1, 1]} : vector<2x9xf32> to vector<2x8xf32>
    %479 = arith.index_cast %c3_i32 : i32 to index
    %c0_259 = arith.constant 0 : index
    %c0_260 = arith.constant 0 : index
    %480 = vector.load %arg16[%479, %c0_259, %c0_260] : memref<6x2x8xf32, #tpu.memory_space<vmem>>, vector<1x2x8xf32>
    %481 = vector.shape_cast %480 : vector<1x2x8xf32> to vector<2x8xf32>
    %482 = vector.shape_cast %478 : vector<2x8xf32> to vector<1x2x8xf32>
    tpu.vector_store %arg16[%479, %c0_259, %c0_260], %482 {strides = array<i32>} : memref<6x2x8xf32, #tpu.memory_space<vmem>>, vector<1x2x8xf32>,
    %483 = vector.extract_strided_slice %477 {offsets = [0, 8], sizes = [2, 1], strides = [1, 1]} : vector<2x9xf32> to vector<2x1xf32>
    %484 = arith.index_cast %c3_i32 : i32 to index
    %c0_261 = arith.constant 0 : index
    %c0_262 = arith.constant 0 : index
    %485 = vector.load %arg17[%484, %c0_261, %c0_262] : memref<6x2x1xf32, #tpu.memory_space<vmem>>, vector<1x2x1xf32>
    %486 = vector.shape_cast %485 : vector<1x2x1xf32> to vector<2x1xf32>
    %487 = vector.shape_cast %483 : vector<2x1xf32> to vector<1x2x1xf32>
    tpu.vector_store %arg17[%484, %c0_261, %c0_262], %487 {strides = array<i32>} : memref<6x2x1xf32, #tpu.memory_space<vmem>>, vector<1x2x1xf32>,
    %488 = arith.index_cast %c3_i32 : i32 to index
    %c0_263 = arith.constant 0 : index
    %c0_264 = arith.constant 0 : index
    %489 = vector.load %arg18[%488, %c0_263, %c0_264] : memref<6x2x8xf32, #tpu.memory_space<vmem>>, vector<1x2x8xf32>
    %490 = vector.shape_cast %489 : vector<1x2x8xf32> to vector<2x8xf32>
    %491 = vector.shape_cast %432 : vector<2x8xf32> to vector<1x2x8xf32>
    tpu.vector_store %arg18[%488, %c0_263, %c0_264], %491 {strides = array<i32>} : memref<6x2x8xf32, #tpu.memory_space<vmem>>, vector<1x2x8xf32>,
    %c4_i32 = arith.constant 4 : i32
    %492 = arith.index_cast %c4_i32 : i32 to index
    %c0_265 = arith.constant 0 : index
    %c0_266 = arith.constant 0 : index
    %493 = vector.load %arg0[%492, %c0_265, %c0_266] : memref<6x2x32xf32, #tpu.memory_space<vmem>>, vector<1x2x32xf32>
    %494 = vector.shape_cast %493 : vector<1x2x32xf32> to vector<2x32xf32>
    %495 = arith.index_cast %c4_i32 : i32 to index
    %c0_267 = arith.constant 0 : index
    %c0_268 = arith.constant 0 : index
    %496 = vector.load %arg1[%495, %c0_267, %c0_268] : memref<6x2x32xf32, #tpu.memory_space<vmem>>, vector<1x2x32xf32>
    %497 = vector.shape_cast %496 : vector<1x2x32xf32> to vector<2x32xf32>
    %498 = arith.index_cast %c4_i32 : i32 to index
    %c0_269 = arith.constant 0 : index
    %c0_270 = arith.constant 0 : index
    %499 = vector.load %arg2[%498, %c0_269, %c0_270] : memref<6x2x32xf32, #tpu.memory_space<vmem>>, vector<1x2x32xf32>
    %500 = vector.shape_cast %499 : vector<1x2x32xf32> to vector<2x32xf32>
    %c0_271 = arith.constant 0 : index
    %c0_272 = arith.constant 0 : index
    %501 = vector.load %arg6[%c0_271, %c0_272] : memref<96x128xf32, #tpu.memory_space<vmem>>, vector<32x128xf32>
    %cst_273 = arith.constant dense<0.000000e+00> : vector<2x128xf32>
    %502 = tpu.matmul %494, %501, %cst_273 {dimension_numbers = #tpu.dot_dimension_numbers<[1], [0], [0], [1], [0, 0, 1, 1], [], []>} : vector<2x32xf32>, vector<32x128xf32>, vector<2x128xf32> -> vector<2x128xf32>
    %c32_274 = arith.constant 32 : index
    %c0_275 = arith.constant 0 : index
    %503 = vector.load %arg6[%c32_274, %c0_275] : memref<96x128xf32, #tpu.memory_space<vmem>>, vector<32x128xf32>
    %cst_276 = arith.constant dense<0.000000e+00> : vector<2x128xf32>
    %504 = tpu.matmul %442, %503, %cst_276 {dimension_numbers = #tpu.dot_dimension_numbers<[1], [0], [0], [1], [0, 0, 1, 1], [], []>} : vector<2x32xf32>, vector<32x128xf32>, vector<2x128xf32> -> vector<2x128xf32>
    %505 = arith.addf %502, %504 : vector<2x128xf32>
    %c64_277 = arith.constant 64 : index
    %c0_278 = arith.constant 0 : index
    %506 = vector.load %arg6[%c64_277, %c0_278] : memref<96x128xf32, #tpu.memory_space<vmem>>, vector<32x128xf32>
    %cst_279 = arith.constant dense<0.000000e+00> : vector<2x128xf32>
    %507 = tpu.matmul %408, %506, %cst_279 {dimension_numbers = #tpu.dot_dimension_numbers<[1], [0], [0], [1], [0, 0, 1, 1], [], []>} : vector<2x32xf32>, vector<32x128xf32>, vector<2x128xf32> -> vector<2x128xf32>
    %508 = arith.addf %505, %507 : vector<2x128xf32>
    %c0_280 = arith.constant 0 : index
    %c0_281 = arith.constant 0 : index
    %509 = vector.load %arg7[%c0_280, %c0_281] : memref<1x128xf32, #tpu.memory_space<vmem>>, vector<1x128xf32>
    %510 = vector.broadcast %509 : vector<1x128xf32> to vector<2x128xf32>
    %511 = arith.addf %508, %510 : vector<2x128xf32>
    %512 = arith.negf %511 : vector<2x128xf32>
    %513 = math.exp %512 : vector<2x128xf32>
    %cst_282 = arith.constant 1.000000e+00 : f32
    %514 = vector.broadcast %cst_282 : f32 to vector<2x128xf32>
    %515 = arith.addf %514, %513 : vector<2x128xf32>
    %516 = arith.divf %514, %515 : vector<2x128xf32>
    %517 = vector.extract_strided_slice %516 {offsets = [0, 32], sizes = [2, 32], strides = [1, 1]} : vector<2x128xf32> to vector<2x32xf32>
    %518 = arith.mulf %517, %404 : vector<2x32xf32>
    %519 = vector.extract_strided_slice %516 {offsets = [0, 0], sizes = [2, 32], strides = [1, 1]} : vector<2x128xf32> to vector<2x32xf32>
    %520 = vector.extract_strided_slice %511 {offsets = [0, 64], sizes = [2, 32], strides = [1, 1]} : vector<2x128xf32> to vector<2x32xf32>
    %521 = math.tanh %520 : vector<2x32xf32>
    %522 = arith.mulf %519, %521 : vector<2x32xf32>
    %523 = arith.addf %518, %522 : vector<2x32xf32>
    %524 = vector.extract_strided_slice %516 {offsets = [0, 96], sizes = [2, 32], strides = [1, 1]} : vector<2x128xf32> to vector<2x32xf32>
    %525 = math.tanh %523 : vector<2x32xf32>
    %526 = arith.mulf %524, %525 : vector<2x32xf32>
    %527 = arith.mulf %526, %497 : vector<2x32xf32>
    %c0_283 = arith.constant 0 : index
    %c0_284 = arith.constant 0 : index
    %528 = vector.load %arg8[%c0_283, %c0_284] : memref<32x256xf32, #tpu.memory_space<vmem>>, vector<32x256xf32>
    %cst_285 = arith.constant dense<0.000000e+00> : vector<2x256xf32>
    %529 = tpu.matmul %527, %528, %cst_285 {dimension_numbers = #tpu.dot_dimension_numbers<[1], [0], [0], [1], [0, 0, 1, 1], [], []>} : vector<2x32xf32>, vector<32x256xf32>, vector<2x256xf32> -> vector<2x256xf32>
    %c0_286 = arith.constant 0 : index
    %c0_287 = arith.constant 0 : index
    %530 = vector.load %arg9[%c0_286, %c0_287] : memref<8x256xf32, #tpu.memory_space<vmem>>, vector<8x256xf32>
    %cst_288 = arith.constant dense<0.000000e+00> : vector<2x256xf32>
    %531 = tpu.matmul %432, %530, %cst_288 {dimension_numbers = #tpu.dot_dimension_numbers<[1], [0], [0], [1], [0, 0, 1, 1], [], []>} : vector<2x8xf32>, vector<8x256xf32>, vector<2x256xf32> -> vector<2x256xf32>
    %532 = arith.addf %529, %531 : vector<2x256xf32>
    %c0_289 = arith.constant 0 : index
    %c0_290 = arith.constant 0 : index
    %533 = vector.load %arg10[%c0_289, %c0_290] : memref<8x256xf32, #tpu.memory_space<vmem>>, vector<8x256xf32>
    %cst_291 = arith.constant dense<0.000000e+00> : vector<2x256xf32>
    %534 = tpu.matmul %433, %533, %cst_291 {dimension_numbers = #tpu.dot_dimension_numbers<[1], [0], [0], [1], [0, 0, 1, 1], [], []>} : vector<2x8xf32>, vector<8x256xf32>, vector<2x256xf32> -> vector<2x256xf32>
    %535 = arith.addf %532, %534 : vector<2x256xf32>
    %c0_292 = arith.constant 0 : index
    %c0_293 = arith.constant 0 : index
    %536 = vector.load %arg4[%c0_292, %c0_293] : memref<2x256xf32, #tpu.memory_space<vmem>>, vector<2x256xf32>
    %537 = arith.addf %535, %536 : vector<2x256xf32>
    %538 = math.tanh %537 : vector<2x256xf32>
    %c0_294 = arith.constant 0 : index
    %c0_295 = arith.constant 0 : index
    %539 = vector.load %arg11[%c0_294, %c0_295] : memref<256x8xf32, #tpu.memory_space<vmem>>, vector<256x8xf32>
    %cst_296 = arith.constant dense<0.000000e+00> : vector<2x8xf32>
    %540 = tpu.matmul %538, %539, %cst_296 {dimension_numbers = #tpu.dot_dimension_numbers<[1], [0], [0], [1], [0, 0, 1, 1], [], []>} : vector<2x256xf32>, vector<256x8xf32>, vector<2x8xf32> -> vector<2x8xf32>
    %c0_297 = arith.constant 0 : index
    %c0_298 = arith.constant 0 : index
    %541 = vector.load %arg5[%c0_297, %c0_298] : memref<2x8xf32, #tpu.memory_space<vmem>>, vector<2x8xf32>
    %542 = arith.addf %540, %541 : vector<2x8xf32>
    %cst_299 = arith.constant dense<0xFF800000> : vector<2xf32>
    %543 = vector.multi_reduction <maximumf>, %542, %cst_299 [1] : vector<2x8xf32> to vector<2xf32>
    %544 = vector.shape_cast %543 : vector<2xf32> to vector<2x1xf32>
    %545 = vector.broadcast %544 : vector<2x1xf32> to vector<2x8xf32>
    %546 = arith.subf %542, %545 : vector<2x8xf32>
    %547 = math.exp %546 : vector<2x8xf32>
    %cst_300 = arith.constant dense<0.000000e+00> : vector<2xf32>
    %548 = vector.multi_reduction <add>, %547, %cst_300 [1] : vector<2x8xf32> to vector<2xf32>
    %549 = vector.shape_cast %548 : vector<2xf32> to vector<2x1xf32>
    %550 = vector.broadcast %549 : vector<2x1xf32> to vector<2x8xf32>
    %551 = arith.divf %547, %550 : vector<2x8xf32>
    %552 = arith.addf %433, %551 : vector<2x8xf32>
    %c0_301 = arith.constant 0 : index
    %c0_302 = arith.constant 0 : index
    %553 = vector.load %arg3[%c0_301, %c0_302] : memref<8x64xf32, #tpu.memory_space<vmem>>, vector<8x64xf32>
    %cst_303 = arith.constant dense<0.000000e+00> : vector<2x64xf32>
    %554 = tpu.matmul %551, %553, %cst_303 {dimension_numbers = #tpu.dot_dimension_numbers<[1], [0], [0], [1], [0, 0, 1, 1], [], []>} : vector<2x8xf32>, vector<8x64xf32>, vector<2x64xf32> -> vector<2x64xf32>
    %555 = vector.extract_strided_slice %554 {offsets = [0, 0], sizes = [2, 32], strides = [1, 1]} : vector<2x64xf32> to vector<2x32xf32>
    %556 = vector.broadcast %4 : vector<2x1xf32> to vector<2x32xf32>
    %557 = arith.mulf %555, %556 : vector<2x32xf32>
    %558 = vector.extract_strided_slice %554 {offsets = [0, 32], sizes = [2, 32], strides = [1, 1]} : vector<2x64xf32> to vector<2x32xf32>
    %559 = vector.broadcast %8 : vector<2x1xf32> to vector<2x32xf32>
    %560 = arith.mulf %558, %559 : vector<2x32xf32>
    %561 = arith.addf %557, %560 : vector<2x32xf32>
    %c0_304 = arith.constant 0 : index
    %c0_305 = arith.constant 0 : index
    %562 = vector.load %arg12[%c0_304, %c0_305] : memref<96x128xf32, #tpu.memory_space<vmem>>, vector<32x128xf32>
    %cst_306 = arith.constant dense<0.000000e+00> : vector<2x128xf32>
    %563 = tpu.matmul %527, %562, %cst_306 {dimension_numbers = #tpu.dot_dimension_numbers<[1], [0], [0], [1], [0, 0, 1, 1], [], []>} : vector<2x32xf32>, vector<32x128xf32>, vector<2x128xf32> -> vector<2x128xf32>
    %c32_307 = arith.constant 32 : index
    %c0_308 = arith.constant 0 : index
    %564 = vector.load %arg12[%c32_307, %c0_308] : memref<96x128xf32, #tpu.memory_space<vmem>>, vector<32x128xf32>
    %cst_309 = arith.constant dense<0.000000e+00> : vector<2x128xf32>
    %565 = tpu.matmul %561, %564, %cst_309 {dimension_numbers = #tpu.dot_dimension_numbers<[1], [0], [0], [1], [0, 0, 1, 1], [], []>} : vector<2x32xf32>, vector<32x128xf32>, vector<2x128xf32> -> vector<2x128xf32>
    %566 = arith.addf %563, %565 : vector<2x128xf32>
    %c64_310 = arith.constant 64 : index
    %c0_311 = arith.constant 0 : index
    %567 = vector.load %arg12[%c64_310, %c0_311] : memref<96x128xf32, #tpu.memory_space<vmem>>, vector<32x128xf32>
    %cst_312 = arith.constant dense<0.000000e+00> : vector<2x128xf32>
    %568 = tpu.matmul %469, %567, %cst_312 {dimension_numbers = #tpu.dot_dimension_numbers<[1], [0], [0], [1], [0, 0, 1, 1], [], []>} : vector<2x32xf32>, vector<32x128xf32>, vector<2x128xf32> -> vector<2x128xf32>
    %569 = arith.addf %566, %568 : vector<2x128xf32>
    %c0_313 = arith.constant 0 : index
    %c0_314 = arith.constant 0 : index
    %570 = vector.load %arg13[%c0_313, %c0_314] : memref<1x128xf32, #tpu.memory_space<vmem>>, vector<1x128xf32>
    %571 = vector.broadcast %570 : vector<1x128xf32> to vector<2x128xf32>
    %572 = arith.addf %569, %571 : vector<2x128xf32>
    %573 = arith.negf %572 : vector<2x128xf32>
    %574 = math.exp %573 : vector<2x128xf32>
    %cst_315 = arith.constant 1.000000e+00 : f32
    %575 = vector.broadcast %cst_315 : f32 to vector<2x128xf32>
    %576 = arith.addf %575, %574 : vector<2x128xf32>
    %577 = arith.divf %575, %576 : vector<2x128xf32>
    %578 = vector.extract_strided_slice %577 {offsets = [0, 32], sizes = [2, 32], strides = [1, 1]} : vector<2x128xf32> to vector<2x32xf32>
    %579 = arith.mulf %578, %465 : vector<2x32xf32>
    %580 = vector.extract_strided_slice %577 {offsets = [0, 0], sizes = [2, 32], strides = [1, 1]} : vector<2x128xf32> to vector<2x32xf32>
    %581 = vector.extract_strided_slice %572 {offsets = [0, 64], sizes = [2, 32], strides = [1, 1]} : vector<2x128xf32> to vector<2x32xf32>
    %582 = math.tanh %581 : vector<2x32xf32>
    %583 = arith.mulf %580, %582 : vector<2x32xf32>
    %584 = arith.addf %579, %583 : vector<2x32xf32>
    %585 = vector.extract_strided_slice %577 {offsets = [0, 96], sizes = [2, 32], strides = [1, 1]} : vector<2x128xf32> to vector<2x32xf32>
    %586 = math.tanh %584 : vector<2x32xf32>
    %587 = arith.mulf %585, %586 : vector<2x32xf32>
    %588 = arith.mulf %587, %500 : vector<2x32xf32>
    %c0_316 = arith.constant 0 : index
    %c0_317 = arith.constant 0 : index
    %589 = vector.load %arg14[%c0_316, %c0_317] : memref<64x9xf32, #tpu.memory_space<vmem>>, vector<32x9xf32>
    %cst_318 = arith.constant dense<0.000000e+00> : vector<2x9xf32>
    %590 = tpu.matmul %588, %589, %cst_318 {dimension_numbers = #tpu.dot_dimension_numbers<[1], [0], [0], [1], [0, 0, 1, 1], [], []>} : vector<2x32xf32>, vector<32x9xf32>, vector<2x9xf32> -> vector<2x9xf32>
    %c32_319 = arith.constant 32 : index
    %c0_320 = arith.constant 0 : index
    %591 = vector.load %arg14[%c32_319, %c0_320] : memref<64x9xf32, #tpu.memory_space<vmem>>, vector<32x9xf32>
    %cst_321 = arith.constant dense<0.000000e+00> : vector<2x9xf32>
    %592 = tpu.matmul %561, %591, %cst_321 {dimension_numbers = #tpu.dot_dimension_numbers<[1], [0], [0], [1], [0, 0, 1, 1], [], []>} : vector<2x32xf32>, vector<32x9xf32>, vector<2x9xf32> -> vector<2x9xf32>
    %593 = arith.addf %590, %592 : vector<2x9xf32>
    %c0_322 = arith.constant 0 : index
    %c0_323 = arith.constant 0 : index
    %594 = vector.load %arg15[%c0_322, %c0_323] : memref<1x9xf32, #tpu.memory_space<vmem>>, vector<1x9xf32>
    %595 = vector.broadcast %594 : vector<1x9xf32> to vector<2x9xf32>
    %596 = arith.addf %593, %595 : vector<2x9xf32>
    %597 = vector.extract_strided_slice %596 {offsets = [0, 0], sizes = [2, 8], strides = [1, 1]} : vector<2x9xf32> to vector<2x8xf32>
    %598 = arith.index_cast %c4_i32 : i32 to index
    %c0_324 = arith.constant 0 : index
    %c0_325 = arith.constant 0 : index
    %599 = vector.load %arg16[%598, %c0_324, %c0_325] : memref<6x2x8xf32, #tpu.memory_space<vmem>>, vector<1x2x8xf32>
    %600 = vector.shape_cast %599 : vector<1x2x8xf32> to vector<2x8xf32>
    %601 = vector.shape_cast %597 : vector<2x8xf32> to vector<1x2x8xf32>
    tpu.vector_store %arg16[%598, %c0_324, %c0_325], %601 {strides = array<i32>} : memref<6x2x8xf32, #tpu.memory_space<vmem>>, vector<1x2x8xf32>,
    %602 = vector.extract_strided_slice %596 {offsets = [0, 8], sizes = [2, 1], strides = [1, 1]} : vector<2x9xf32> to vector<2x1xf32>
    %603 = arith.index_cast %c4_i32 : i32 to index
    %c0_326 = arith.constant 0 : index
    %c0_327 = arith.constant 0 : index
    %604 = vector.load %arg17[%603, %c0_326, %c0_327] : memref<6x2x1xf32, #tpu.memory_space<vmem>>, vector<1x2x1xf32>
    %605 = vector.shape_cast %604 : vector<1x2x1xf32> to vector<2x1xf32>
    %606 = vector.shape_cast %602 : vector<2x1xf32> to vector<1x2x1xf32>
    tpu.vector_store %arg17[%603, %c0_326, %c0_327], %606 {strides = array<i32>} : memref<6x2x1xf32, #tpu.memory_space<vmem>>, vector<1x2x1xf32>,
    %607 = arith.index_cast %c4_i32 : i32 to index
    %c0_328 = arith.constant 0 : index
    %c0_329 = arith.constant 0 : index
    %608 = vector.load %arg18[%607, %c0_328, %c0_329] : memref<6x2x8xf32, #tpu.memory_space<vmem>>, vector<1x2x8xf32>
    %609 = vector.shape_cast %608 : vector<1x2x8xf32> to vector<2x8xf32>
    %610 = vector.shape_cast %551 : vector<2x8xf32> to vector<1x2x8xf32>
    tpu.vector_store %arg18[%607, %c0_328, %c0_329], %610 {strides = array<i32>} : memref<6x2x8xf32, #tpu.memory_space<vmem>>, vector<1x2x8xf32>,
    %c5_i32 = arith.constant 5 : i32
    %611 = arith.index_cast %c5_i32 : i32 to index
    %c0_330 = arith.constant 0 : index
    %c0_331 = arith.constant 0 : index
    %612 = vector.load %arg0[%611, %c0_330, %c0_331] : memref<6x2x32xf32, #tpu.memory_space<vmem>>, vector<1x2x32xf32>
    %613 = vector.shape_cast %612 : vector<1x2x32xf32> to vector<2x32xf32>
    %614 = arith.index_cast %c5_i32 : i32 to index
    %c0_332 = arith.constant 0 : index
    %c0_333 = arith.constant 0 : index
    %615 = vector.load %arg1[%614, %c0_332, %c0_333] : memref<6x2x32xf32, #tpu.memory_space<vmem>>, vector<1x2x32xf32>
    %616 = vector.shape_cast %615 : vector<1x2x32xf32> to vector<2x32xf32>
    %617 = arith.index_cast %c5_i32 : i32 to index
    %c0_334 = arith.constant 0 : index
    %c0_335 = arith.constant 0 : index
    %618 = vector.load %arg2[%617, %c0_334, %c0_335] : memref<6x2x32xf32, #tpu.memory_space<vmem>>, vector<1x2x32xf32>
    %619 = vector.shape_cast %618 : vector<1x2x32xf32> to vector<2x32xf32>
    %c0_336 = arith.constant 0 : index
    %c0_337 = arith.constant 0 : index
    %620 = vector.load %arg6[%c0_336, %c0_337] : memref<96x128xf32, #tpu.memory_space<vmem>>, vector<32x128xf32>
    %cst_338 = arith.constant dense<0.000000e+00> : vector<2x128xf32>
    %621 = tpu.matmul %613, %620, %cst_338 {dimension_numbers = #tpu.dot_dimension_numbers<[1], [0], [0], [1], [0, 0, 1, 1], [], []>} : vector<2x32xf32>, vector<32x128xf32>, vector<2x128xf32> -> vector<2x128xf32>
    %c32_339 = arith.constant 32 : index
    %c0_340 = arith.constant 0 : index
    %622 = vector.load %arg6[%c32_339, %c0_340] : memref<96x128xf32, #tpu.memory_space<vmem>>, vector<32x128xf32>
    %cst_341 = arith.constant dense<0.000000e+00> : vector<2x128xf32>
    %623 = tpu.matmul %561, %622, %cst_341 {dimension_numbers = #tpu.dot_dimension_numbers<[1], [0], [0], [1], [0, 0, 1, 1], [], []>} : vector<2x32xf32>, vector<32x128xf32>, vector<2x128xf32> -> vector<2x128xf32>
    %624 = arith.addf %621, %623 : vector<2x128xf32>
    %c64_342 = arith.constant 64 : index
    %c0_343 = arith.constant 0 : index
    %625 = vector.load %arg6[%c64_342, %c0_343] : memref<96x128xf32, #tpu.memory_space<vmem>>, vector<32x128xf32>
    %cst_344 = arith.constant dense<0.000000e+00> : vector<2x128xf32>
    %626 = tpu.matmul %527, %625, %cst_344 {dimension_numbers = #tpu.dot_dimension_numbers<[1], [0], [0], [1], [0, 0, 1, 1], [], []>} : vector<2x32xf32>, vector<32x128xf32>, vector<2x128xf32> -> vector<2x128xf32>
    %627 = arith.addf %624, %626 : vector<2x128xf32>
    %c0_345 = arith.constant 0 : index
    %c0_346 = arith.constant 0 : index
    %628 = vector.load %arg7[%c0_345, %c0_346] : memref<1x128xf32, #tpu.memory_space<vmem>>, vector<1x128xf32>
    %629 = vector.broadcast %628 : vector<1x128xf32> to vector<2x128xf32>
    %630 = arith.addf %627, %629 : vector<2x128xf32>
    %631 = arith.negf %630 : vector<2x128xf32>
    %632 = math.exp %631 : vector<2x128xf32>
    %cst_347 = arith.constant 1.000000e+00 : f32
    %633 = vector.broadcast %cst_347 : f32 to vector<2x128xf32>
    %634 = arith.addf %633, %632 : vector<2x128xf32>
    %635 = arith.divf %633, %634 : vector<2x128xf32>
    %636 = vector.extract_strided_slice %635 {offsets = [0, 32], sizes = [2, 32], strides = [1, 1]} : vector<2x128xf32> to vector<2x32xf32>
    %637 = arith.mulf %636, %523 : vector<2x32xf32>
    %638 = vector.extract_strided_slice %635 {offsets = [0, 0], sizes = [2, 32], strides = [1, 1]} : vector<2x128xf32> to vector<2x32xf32>
    %639 = vector.extract_strided_slice %630 {offsets = [0, 64], sizes = [2, 32], strides = [1, 1]} : vector<2x128xf32> to vector<2x32xf32>
    %640 = math.tanh %639 : vector<2x32xf32>
    %641 = arith.mulf %638, %640 : vector<2x32xf32>
    %642 = arith.addf %637, %641 : vector<2x32xf32>
    %643 = vector.extract_strided_slice %635 {offsets = [0, 96], sizes = [2, 32], strides = [1, 1]} : vector<2x128xf32> to vector<2x32xf32>
    %644 = math.tanh %642 : vector<2x32xf32>
    %645 = arith.mulf %643, %644 : vector<2x32xf32>
    %646 = arith.mulf %645, %616 : vector<2x32xf32>
    %c0_348 = arith.constant 0 : index
    %c0_349 = arith.constant 0 : index
    %647 = vector.load %arg8[%c0_348, %c0_349] : memref<32x256xf32, #tpu.memory_space<vmem>>, vector<32x256xf32>
    %cst_350 = arith.constant dense<0.000000e+00> : vector<2x256xf32>
    %648 = tpu.matmul %646, %647, %cst_350 {dimension_numbers = #tpu.dot_dimension_numbers<[1], [0], [0], [1], [0, 0, 1, 1], [], []>} : vector<2x32xf32>, vector<32x256xf32>, vector<2x256xf32> -> vector<2x256xf32>
    %c0_351 = arith.constant 0 : index
    %c0_352 = arith.constant 0 : index
    %649 = vector.load %arg9[%c0_351, %c0_352] : memref<8x256xf32, #tpu.memory_space<vmem>>, vector<8x256xf32>
    %cst_353 = arith.constant dense<0.000000e+00> : vector<2x256xf32>
    %650 = tpu.matmul %551, %649, %cst_353 {dimension_numbers = #tpu.dot_dimension_numbers<[1], [0], [0], [1], [0, 0, 1, 1], [], []>} : vector<2x8xf32>, vector<8x256xf32>, vector<2x256xf32> -> vector<2x256xf32>
    %651 = arith.addf %648, %650 : vector<2x256xf32>
    %c0_354 = arith.constant 0 : index
    %c0_355 = arith.constant 0 : index
    %652 = vector.load %arg10[%c0_354, %c0_355] : memref<8x256xf32, #tpu.memory_space<vmem>>, vector<8x256xf32>
    %cst_356 = arith.constant dense<0.000000e+00> : vector<2x256xf32>
    %653 = tpu.matmul %552, %652, %cst_356 {dimension_numbers = #tpu.dot_dimension_numbers<[1], [0], [0], [1], [0, 0, 1, 1], [], []>} : vector<2x8xf32>, vector<8x256xf32>, vector<2x256xf32> -> vector<2x256xf32>
    %654 = arith.addf %651, %653 : vector<2x256xf32>
    %c0_357 = arith.constant 0 : index
    %c0_358 = arith.constant 0 : index
    %655 = vector.load %arg4[%c0_357, %c0_358] : memref<2x256xf32, #tpu.memory_space<vmem>>, vector<2x256xf32>
    %656 = arith.addf %654, %655 : vector<2x256xf32>
    %657 = math.tanh %656 : vector<2x256xf32>
    %c0_359 = arith.constant 0 : index
    %c0_360 = arith.constant 0 : index
    %658 = vector.load %arg11[%c0_359, %c0_360] : memref<256x8xf32, #tpu.memory_space<vmem>>, vector<256x8xf32>
    %cst_361 = arith.constant dense<0.000000e+00> : vector<2x8xf32>
    %659 = tpu.matmul %657, %658, %cst_361 {dimension_numbers = #tpu.dot_dimension_numbers<[1], [0], [0], [1], [0, 0, 1, 1], [], []>} : vector<2x256xf32>, vector<256x8xf32>, vector<2x8xf32> -> vector<2x8xf32>
    %c0_362 = arith.constant 0 : index
    %c0_363 = arith.constant 0 : index
    %660 = vector.load %arg5[%c0_362, %c0_363] : memref<2x8xf32, #tpu.memory_space<vmem>>, vector<2x8xf32>
    %661 = arith.addf %659, %660 : vector<2x8xf32>
    %cst_364 = arith.constant dense<0xFF800000> : vector<2xf32>
    %662 = vector.multi_reduction <maximumf>, %661, %cst_364 [1] : vector<2x8xf32> to vector<2xf32>
    %663 = vector.shape_cast %662 : vector<2xf32> to vector<2x1xf32>
    %664 = vector.broadcast %663 : vector<2x1xf32> to vector<2x8xf32>
    %665 = arith.subf %661, %664 : vector<2x8xf32>
    %666 = math.exp %665 : vector<2x8xf32>
    %cst_365 = arith.constant dense<0.000000e+00> : vector<2xf32>
    %667 = vector.multi_reduction <add>, %666, %cst_365 [1] : vector<2x8xf32> to vector<2xf32>
    %668 = vector.shape_cast %667 : vector<2xf32> to vector<2x1xf32>
    %669 = vector.broadcast %668 : vector<2x1xf32> to vector<2x8xf32>
    %670 = arith.divf %666, %669 : vector<2x8xf32>
    %671 = arith.addf %552, %670 : vector<2x8xf32>
    %c0_366 = arith.constant 0 : index
    %c0_367 = arith.constant 0 : index
    %672 = vector.load %arg3[%c0_366, %c0_367] : memref<8x64xf32, #tpu.memory_space<vmem>>, vector<8x64xf32>
    %cst_368 = arith.constant dense<0.000000e+00> : vector<2x64xf32>
    %673 = tpu.matmul %670, %672, %cst_368 {dimension_numbers = #tpu.dot_dimension_numbers<[1], [0], [0], [1], [0, 0, 1, 1], [], []>} : vector<2x8xf32>, vector<8x64xf32>, vector<2x64xf32> -> vector<2x64xf32>
    %674 = vector.extract_strided_slice %673 {offsets = [0, 0], sizes = [2, 32], strides = [1, 1]} : vector<2x64xf32> to vector<2x32xf32>
    %675 = vector.broadcast %4 : vector<2x1xf32> to vector<2x32xf32>
    %676 = arith.mulf %674, %675 : vector<2x32xf32>
    %677 = vector.extract_strided_slice %673 {offsets = [0, 32], sizes = [2, 32], strides = [1, 1]} : vector<2x64xf32> to vector<2x32xf32>
    %678 = vector.broadcast %8 : vector<2x1xf32> to vector<2x32xf32>
    %679 = arith.mulf %677, %678 : vector<2x32xf32>
    %680 = arith.addf %676, %679 : vector<2x32xf32>
    %c0_369 = arith.constant 0 : index
    %c0_370 = arith.constant 0 : index
    %681 = vector.load %arg12[%c0_369, %c0_370] : memref<96x128xf32, #tpu.memory_space<vmem>>, vector<32x128xf32>
    %cst_371 = arith.constant dense<0.000000e+00> : vector<2x128xf32>
    %682 = tpu.matmul %646, %681, %cst_371 {dimension_numbers = #tpu.dot_dimension_numbers<[1], [0], [0], [1], [0, 0, 1, 1], [], []>} : vector<2x32xf32>, vector<32x128xf32>, vector<2x128xf32> -> vector<2x128xf32>
    %c32_372 = arith.constant 32 : index
    %c0_373 = arith.constant 0 : index
    %683 = vector.load %arg12[%c32_372, %c0_373] : memref<96x128xf32, #tpu.memory_space<vmem>>, vector<32x128xf32>
    %cst_374 = arith.constant dense<0.000000e+00> : vector<2x128xf32>
    %684 = tpu.matmul %680, %683, %cst_374 {dimension_numbers = #tpu.dot_dimension_numbers<[1], [0], [0], [1], [0, 0, 1, 1], [], []>} : vector<2x32xf32>, vector<32x128xf32>, vector<2x128xf32> -> vector<2x128xf32>
    %685 = arith.addf %682, %684 : vector<2x128xf32>
    %c64_375 = arith.constant 64 : index
    %c0_376 = arith.constant 0 : index
    %686 = vector.load %arg12[%c64_375, %c0_376] : memref<96x128xf32, #tpu.memory_space<vmem>>, vector<32x128xf32>
    %cst_377 = arith.constant dense<0.000000e+00> : vector<2x128xf32>
    %687 = tpu.matmul %588, %686, %cst_377 {dimension_numbers = #tpu.dot_dimension_numbers<[1], [0], [0], [1], [0, 0, 1, 1], [], []>} : vector<2x32xf32>, vector<32x128xf32>, vector<2x128xf32> -> vector<2x128xf32>
    %688 = arith.addf %685, %687 : vector<2x128xf32>
    %c0_378 = arith.constant 0 : index
    %c0_379 = arith.constant 0 : index
    %689 = vector.load %arg13[%c0_378, %c0_379] : memref<1x128xf32, #tpu.memory_space<vmem>>, vector<1x128xf32>
    %690 = vector.broadcast %689 : vector<1x128xf32> to vector<2x128xf32>
    %691 = arith.addf %688, %690 : vector<2x128xf32>
    %692 = arith.negf %691 : vector<2x128xf32>
    %693 = math.exp %692 : vector<2x128xf32>
    %cst_380 = arith.constant 1.000000e+00 : f32
    %694 = vector.broadcast %cst_380 : f32 to vector<2x128xf32>
    %695 = arith.addf %694, %693 : vector<2x128xf32>
    %696 = arith.divf %694, %695 : vector<2x128xf32>
    %697 = vector.extract_strided_slice %696 {offsets = [0, 32], sizes = [2, 32], strides = [1, 1]} : vector<2x128xf32> to vector<2x32xf32>
    %698 = arith.mulf %697, %584 : vector<2x32xf32>
    %699 = vector.extract_strided_slice %696 {offsets = [0, 0], sizes = [2, 32], strides = [1, 1]} : vector<2x128xf32> to vector<2x32xf32>
    %700 = vector.extract_strided_slice %691 {offsets = [0, 64], sizes = [2, 32], strides = [1, 1]} : vector<2x128xf32> to vector<2x32xf32>
    %701 = math.tanh %700 : vector<2x32xf32>
    %702 = arith.mulf %699, %701 : vector<2x32xf32>
    %703 = arith.addf %698, %702 : vector<2x32xf32>
    %704 = vector.extract_strided_slice %696 {offsets = [0, 96], sizes = [2, 32], strides = [1, 1]} : vector<2x128xf32> to vector<2x32xf32>
    %705 = math.tanh %703 : vector<2x32xf32>
    %706 = arith.mulf %704, %705 : vector<2x32xf32>
    %707 = arith.mulf %706, %619 : vector<2x32xf32>
    %c0_381 = arith.constant 0 : index
    %c0_382 = arith.constant 0 : index
    %708 = vector.load %arg14[%c0_381, %c0_382] : memref<64x9xf32, #tpu.memory_space<vmem>>, vector<32x9xf32>
    %cst_383 = arith.constant dense<0.000000e+00> : vector<2x9xf32>
    %709 = tpu.matmul %707, %708, %cst_383 {dimension_numbers = #tpu.dot_dimension_numbers<[1], [0], [0], [1], [0, 0, 1, 1], [], []>} : vector<2x32xf32>, vector<32x9xf32>, vector<2x9xf32> -> vector<2x9xf32>
    %c32_384 = arith.constant 32 : index
    %c0_385 = arith.constant 0 : index
    %710 = vector.load %arg14[%c32_384, %c0_385] : memref<64x9xf32, #tpu.memory_space<vmem>>, vector<32x9xf32>
    %cst_386 = arith.constant dense<0.000000e+00> : vector<2x9xf32>
    %711 = tpu.matmul %680, %710, %cst_386 {dimension_numbers = #tpu.dot_dimension_numbers<[1], [0], [0], [1], [0, 0, 1, 1], [], []>} : vector<2x32xf32>, vector<32x9xf32>, vector<2x9xf32> -> vector<2x9xf32>
    %712 = arith.addf %709, %711 : vector<2x9xf32>
    %c0_387 = arith.constant 0 : index
    %c0_388 = arith.constant 0 : index
    %713 = vector.load %arg15[%c0_387, %c0_388] : memref<1x9xf32, #tpu.memory_space<vmem>>, vector<1x9xf32>
    %714 = vector.broadcast %713 : vector<1x9xf32> to vector<2x9xf32>
    %715 = arith.addf %712, %714 : vector<2x9xf32>
    %716 = vector.extract_strided_slice %715 {offsets = [0, 0], sizes = [2, 8], strides = [1, 1]} : vector<2x9xf32> to vector<2x8xf32>
    %717 = arith.index_cast %c5_i32 : i32 to index
    %c0_389 = arith.constant 0 : index
    %c0_390 = arith.constant 0 : index
    %718 = vector.load %arg16[%717, %c0_389, %c0_390] : memref<6x2x8xf32, #tpu.memory_space<vmem>>, vector<1x2x8xf32>
    %719 = vector.shape_cast %718 : vector<1x2x8xf32> to vector<2x8xf32>
    %720 = vector.shape_cast %716 : vector<2x8xf32> to vector<1x2x8xf32>
    tpu.vector_store %arg16[%717, %c0_389, %c0_390], %720 {strides = array<i32>} : memref<6x2x8xf32, #tpu.memory_space<vmem>>, vector<1x2x8xf32>,
    %721 = vector.extract_strided_slice %715 {offsets = [0, 8], sizes = [2, 1], strides = [1, 1]} : vector<2x9xf32> to vector<2x1xf32>
    %722 = arith.index_cast %c5_i32 : i32 to index
    %c0_391 = arith.constant 0 : index
    %c0_392 = arith.constant 0 : index
    %723 = vector.load %arg17[%722, %c0_391, %c0_392] : memref<6x2x1xf32, #tpu.memory_space<vmem>>, vector<1x2x1xf32>
    %724 = vector.shape_cast %723 : vector<1x2x1xf32> to vector<2x1xf32>
    %725 = vector.shape_cast %721 : vector<2x1xf32> to vector<1x2x1xf32>
    tpu.vector_store %arg17[%722, %c0_391, %c0_392], %725 {strides = array<i32>} : memref<6x2x1xf32, #tpu.memory_space<vmem>>, vector<1x2x1xf32>,
    %726 = arith.index_cast %c5_i32 : i32 to index
    %c0_393 = arith.constant 0 : index
    %c0_394 = arith.constant 0 : index
    %727 = vector.load %arg18[%726, %c0_393, %c0_394] : memref<6x2x8xf32, #tpu.memory_space<vmem>>, vector<1x2x8xf32>
    %728 = vector.shape_cast %727 : vector<1x2x8xf32> to vector<2x8xf32>
    %729 = vector.shape_cast %670 : vector<2x8xf32> to vector<1x2x8xf32>
    tpu.vector_store %arg18[%726, %c0_393, %c0_394], %729 {strides = array<i32>} : memref<6x2x8xf32, #tpu.memory_space<vmem>>, vector<1x2x8xf32>,
    %c6_i32 = arith.constant 6 : i32
    return
  }
}

</mosaic_0001>

<llo_original>
// kernel: tile.9
$region0: #{tile.9}
  %s0 = inlined_call_operand.vmem [shape: f32[32,8,32], index: 0, kind: input, shape index: {}]
  %s1 = inlined_call_operand.vmem [shape: f32[32,256], index: 1, kind: output, shape index: {}]
  %v2 = vld [vmem:[%s0] ss:$4 sm:$0xff]
  %vm3 = vcmask 261120
  %4 = vst.msk [vmem:[%s1] ss:$8 sm:$0x3] %vm3, %v2
  %s5 = scalar_lea.vmem %s1, 4294967281
  %6 = vst.msk [vmem:[%s5] ss:$8 sm:$0xc] %vm3, %v2
  %s7 = scalar_lea.vmem %s1, 4294967266
  %8 = vst.msk [vmem:[%s7] ss:$8 sm:$0x30] %vm3, %v2
  %s9 = scalar_lea.vmem %s1, 4294967251
  %10 = vst.msk [vmem:[%s9] ss:$8 sm:$0xc0] %vm3, %v2
  %s11 = scalar_lea.vmem %s0, 32
  %v12 = vld [vmem:[%s11] ss:$4 sm:$0xff]
  %vm13 = vcmask 261120
  %s14 = scalar_lea.vmem %s1, 4
  %15 = vst.msk [vmem:[%s14] ss:$8 sm:$0x3] %vm13, %v12
  %s16 = scalar_lea.vmem %s1, 4294967285
  %17 = vst.msk [vmem:[%s16] ss:$8 sm:$0xc] %vm13, %v12
  %s18 = scalar_lea.vmem %s1, 4294967270
  %19 = vst.msk [vmem:[%s18] ss:$8 sm:$0x30] %vm13, %v12
  %s20 = scalar_lea.vmem %s1, 4294967255
  %21 = vst.msk [vmem:[%s20] ss:$8 sm:$0xc0] %vm13, %v12
  %s22 = scalar_lea.vmem %s0, 64
  %v23 = vld [vmem:[%s22] ss:$4 sm:$0xff]
  %vm24 = vcmask 261120
  %s25 = scalar_lea.vmem %s1, 16
  %26 = vst.msk [vmem:[%s25] ss:$8 sm:$0x3] %vm24, %v23
  %s27 = scalar_lea.vmem %s1, 1
  %28 = vst.msk [vmem:[%s27] ss:$8 sm:$0xc] %vm24, %v23
  %s29 = scalar_lea.vmem %s1, 4294967282
  %30 = vst.msk [vmem:[%s29] ss:$8 sm:$0x30] %vm24, %v23
  %s31 = scalar_lea.vmem %s1, 4294967267
  %32 = vst.msk [vmem:[%s31] ss:$8 sm:$0xc0] %vm24, %v23
  %s33 = scalar_lea.vmem %s0, 96
  %v34 = vld [vmem:[%s33] ss:$4 sm:$0xff]
  %vm35 = vcmask 261120
  %s36 = scalar_lea.vmem %s1, 20
  %37 = vst.msk [vmem:[%s36] ss:$8 sm:$0x3] %vm35, %v34
  %s38 = scalar_lea.vmem %s1, 5
  %39 = vst.msk [vmem:[%s38] ss:$8 sm:$0xc] %vm35, %v34
  %s40 = scalar_lea.vmem %s1, 4294967286
  %41 = vst.msk [vmem:[%s40] ss:$8 sm:$0x30] %vm35, %v34
  %s42 = scalar_lea.vmem %s1, 4294967271
  %43 = vst.msk [vmem:[%s42] ss:$8 sm:$0xc0] %vm35, %v34
  %s44 = scalar_lea.vmem %s0, 128
  %v45 = vld [vmem:[%s44] ss:$4 sm:$0xff]
  %vm46 = vcmask 261120
  %s47 = scalar_lea.vmem %s1, 32
  %48 = vst.msk [vmem:[%s47] ss:$8 sm:$0x3] %vm46, %v45
  %s49 = scalar_lea.vmem %s1, 17
  %50 = vst.msk [vmem:[%s49] ss:$8 sm:$0xc] %vm46, %v45
  %s51 = scalar_lea.vmem %s1, 2
  %52 = vst.msk [vmem:[%s51] ss:$8 sm:$0x30] %vm46, %v45
  %s53 = scalar_lea.vmem %s1, 4294967283
  %54 = vst.msk [vmem:[%s53] ss:$8 sm:$0xc0] %vm46, %v45
  %s55 = scalar_lea.vmem %s0, 160
  %v56 = vld [vmem:[%s55] ss:$4 sm:$0xff]
  %vm57 = vcmask 261120
  %s58 = scalar_lea.vmem %s1, 36
  %59 = vst.msk [vmem:[%s58] ss:$8 sm:$0x3] %vm57, %v56
  %s60 = scalar_lea.vmem %s1, 21
  %61 = vst.msk [vmem:[%s60] ss:$8 sm:$0xc] %vm57, %v56
  %s62 = scalar_lea.vmem %s1, 6
  %63 = vst.msk [vmem:[%s62] ss:$8 sm:$0x30] %vm57, %v56
  %s64 = scalar_lea.vmem %s1, 4294967287
  %65 = vst.msk [vmem:[%s64] ss:$8 sm:$0xc0] %vm57, %v56
  %s66 = scalar_lea.vmem %s0, 192
  %v67 = vld [vmem:[%s66] ss:$4 sm:$0xff]
  %vm68 = vcmask 261120
  %s69 = scalar_lea.vmem %s1, 48
  %70 = vst.msk [vmem:[%s69] ss:$8 sm:$0x3] %vm68, %v67
  %s71 = scalar_lea.vmem %s1, 33
  %72 = vst.msk [vmem:[%s71] ss:$8 sm:$0xc] %vm68, %v67
  %s73 = scalar_lea.vmem %s1, 18
  %74 = vst.msk [vmem:[%s73] ss:$8 sm:$0x30] %vm68, %v67
  %s75 = scalar_lea.vmem %s1, 3
  %76 = vst.msk [vmem:[%s75] ss:$8 sm:$0xc0] %vm68, %v67
  %s77 = scalar_lea.vmem %s0, 224
  %v78 = vld [vmem:[%s77] ss:$4 sm:$0xff]
  %vm79 = vcmask 261120
  %s80 = scalar_lea.vmem %s1, 52
  %81 = vst.msk [vmem:[%s80] ss:$8 sm:$0x3] %vm79, %v78
  %s82 = scalar_lea.vmem %s1, 37
  %83 = vst.msk [vmem:[%s82] ss:$8 sm:$0xc] %vm79, %v78
  %s84 = scalar_lea.vmem %s1, 22
  %85 = vst.msk [vmem:[%s84] ss:$8 sm:$0x30] %vm79, %v78
  %s86 = scalar_lea.vmem %s1, 7
  %87 = vst.msk [vmem:[%s86] ss:$8 sm:$0xc0] %vm79, %v78
  %s88 = scalar_lea.vmem %s0, 3
  %v89 = vld [vmem:[%s88] ss:$8 sm:$0xf]
  %s90 = scalar_lea.vmem %s0, 3
  %v91 = vld [vmem:[%s90] ss:$8 sm:$0xf0]
  %vm92 = vcmask 1047556
  %v93 = vsel %vm92, %v91, %v89
  %94 = vrot.lane.b32.xlu0 %v93, 96
  %v95 = vpop.permute.xlu0 %94
  %vm96 = vcmask 1048320
  %97 = vst.msk [vmem:[%s1] sm:$0xff] %vm96, %v95
  %s98 = scalar_lea.vmem %s0, 131
  %v99 = vld [vmem:[%s98] ss:$8 sm:$0xf]
  %s100 = scalar_lea.vmem %s0, 131
  %v101 = vld [vmem:[%s100] ss:$8 sm:$0xf0]
  %vm102 = vcmask 1047556
  %v103 = vsel %vm102, %v101, %v99
  %104 = vrot.lane.b32.xlu0 %v103, 96
  %v105 = vpop.permute.xlu0 %104
  %vm106 = vcmask 1048320
  %s107 = scalar_lea.vmem %s1, 32
  %108 = vst.msk [vmem:[%s107] sm:$0xff] %vm106, %v105
  %s109 = scalar_lea.vmem %s0, 7
  %v110 = vld [vmem:[%s109] ss:$8 sm:$0xf]
  %s111 = scalar_lea.vmem %s0, 7
  %v112 = vld [vmem:[%s111] ss:$8 sm:$0xf0]
  %vm113 = vcmask 1047556
  %v114 = vsel %vm113, %v112, %v110
  %115 = vrot.lane.b32.xlu0 %v114, 96
  %v116 = vpop.permute.xlu0 %115
  %vm117 = vcmask 1048320
  %s118 = scalar_lea.vmem %s1, 8
  %119 = vst.msk [vmem:[%s118] sm:$0xff] %vm117, %v116
  %s120 = scalar_lea.vmem %s0, 135
  %v121 = vld [vmem:[%s120] ss:$8 sm:$0xf]
  %s122 = scalar_lea.vmem %s0, 135
  %v123 = vld [vmem:[%s122] ss:$8 sm:$0xf0]
  %vm124 = vcmask 1047556
  %v125 = vsel %vm124, %v123, %v121
  %126 = vrot.lane.b32.xlu0 %v125, 96
  %v127 = vpop.permute.xlu0 %126
  %vm128 = vcmask 1048320
  %s129 = scalar_lea.vmem %s1, 40
  %130 = vst.msk [vmem:[%s129] sm:$0xff] %vm128, %v127
  %s131 = scalar_lea.vmem %s0, 67
  %v132 = vld [vmem:[%s131] ss:$8 sm:$0xf]
  %s133 = scalar_lea.vmem %s0, 67
  %v134 = vld [vmem:[%s133] ss:$8 sm:$0xf0]
  %vm135 = vcmask 1047556
  %v136 = vsel %vm135, %v134, %v132
  %137 = vrot.lane.b32.xlu0 %v136, 96
  %v138 = vpop.permute.xlu0 %137
  %vm139 = vcmask 1048320
  %s140 = scalar_lea.vmem %s1, 16
  %141 = vst.msk [vmem:[%s140] sm:$0xff] %vm139, %v138
  %s142 = scalar_lea.vmem %s0, 195
  %v143 = vld [vmem:[%s142] ss:$8 sm:$0xf]
  %s144 = scalar_lea.vmem %s0, 195
  %v145 = vld [vmem:[%s144] ss:$8 sm:$0xf0]
  %vm146 = vcmask 1047556
  %v147 = vsel %vm146, %v145, %v143
  %148 = vrot.lane.b32.xlu0 %v147, 96
  %v149 = vpop.permute.xlu0 %148
  %vm150 = vcmask 1048320
  %s151 = scalar_lea.vmem %s1, 48
  %152 = vst.msk [vmem:[%s151] sm:$0xff] %vm150, %v149
  %s153 = scalar_lea.vmem %s0, 71
  %v154 = vld [vmem:[%s153] ss:$8 sm:$0xf]
  %s155 = scalar_lea.vmem %s0, 71
  %v156 = vld [vmem:[%s155] ss:$8 sm:$0xf0]
  %vm157 = vcmask 1047556
  %v158 = vsel %vm157, %v156, %v154
  %159 = vrot.lane.b32.xlu0 %v158, 96
  %v160 = vpop.permute.xlu0 %159
  %vm161 = vcmask 1048320
  %s162 = scalar_lea.vmem %s1, 24
  %163 = vst.msk [vmem:[%s162] sm:$0xff] %vm161, %v160
  %s164 = scalar_lea.vmem %s0, 199
  %v165 = vld [vmem:[%s164] ss:$8 sm:$0xf]
  %s166 = scalar_lea.vmem %s0, 199
  %v167 = vld [vmem:[%s166] ss:$8 sm:$0xf0]
  %vm168 = vcmask 1047556
  %v169 = vsel %vm168, %v167, %v165
  %170 = vrot.lane.b32.xlu0 %v169, 96
  %v171 = vpop.permute.xlu0 %170
  %vm172 = vcmask 1048320
  %s173 = scalar_lea.vmem %s1, 56
  %174 = vst.msk [vmem:[%s173] sm:$0xff] %vm172, %v171
  %s175 = scalar_lea.vmem %s0, 2
  %v176 = vld [vmem:[%s175] ss:$8 sm:$0xf]
  %s177 = scalar_lea.vmem %s0, 2
  %v178 = vld [vmem:[%s177] ss:$8 sm:$0xf0]
  %vm179 = vcmask 1047556
  %v180 = vsel %vm179, %v178, %v176
  %181 = vrot.lane.b32.xlu0 %v180, 64
  %v182 = vpop.permute.xlu0 %181
  %vm183 = vcmask 785920
  %184 = vst.msk [vmem:[%s1] sm:$0xff] %vm183, %v182
  %s185 = scalar_lea.vmem %s0, 130
  %v186 = vld [vmem:[%s185] ss:$8 sm:$0xf]
  %s187 = scalar_lea.vmem %s0, 130
  %v188 = vld [vmem:[%s187] ss:$8 sm:$0xf0]
  %vm189 = vcmask 1047556
  %v190 = vsel %vm189, %v188, %v186
  %191 = vrot.lane.b32.xlu0 %v190, 64
  %v192 = vpop.permute.xlu0 %191
  %vm193 = vcmask 785920
  %s194 = scalar_lea.vmem %s1, 32
  %195 = vst.msk [vmem:[%s194] sm:$0xff] %vm193, %v192
  %s196 = scalar_lea.vmem %s0, 6
  %v197 = vld [vmem:[%s196] ss:$8 sm:$0xf]
  %s198 = scalar_lea.vmem %s0, 6
  %v199 = vld [vmem:[%s198] ss:$8 sm:$0xf0]
  %vm200 = vcmask 1047556
  %v201 = vsel %vm200, %v199, %v197
  %202 = vrot.lane.b32.xlu0 %v201, 64
  %v203 = vpop.permute.xlu0 %202
  %vm204 = vcmask 785920
  %s205 = scalar_lea.vmem %s1, 8
  %206 = vst.msk [vmem:[%s205] sm:$0xff] %vm204, %v203
  %s207 = scalar_lea.vmem %s0, 134
  %v208 = vld [vmem:[%s207] ss:$8 sm:$0xf]
  %s209 = scalar_lea.vmem %s0, 134
  %v210 = vld [vmem:[%s209] ss:$8 sm:$0xf0]
  %vm211 = vcmask 1047556
  %v212 = vsel %vm211, %v210, %v208
  %213 = vrot.lane.b32.xlu0 %v212, 64
  %v214 = vpop.permute.xlu0 %213
  %vm215 = vcmask 785920
  %s216 = scalar_lea.vmem %s1, 40
  %217 = vst.msk [vmem:[%s216] sm:$0xff] %vm215, %v214
  %s218 = scalar_lea.vmem %s0, 66
  %v219 = vld [vmem:[%s218] ss:$8 sm:$0xf]
  %s220 = scalar_lea.vmem %s0, 66
  %v221 = vld [vmem:[%s220] ss:$8 sm:$0xf0]
  %vm222 = vcmask 1047556
  %v223 = vsel %vm222, %v221, %v219
  %224 = vrot.lane.b32.xlu0 %v223, 64
  %v225 = vpop.permute.xlu0 %224
  %vm226 = vcmask 785920
  %s227 = scalar_lea.vmem %s1, 16
  %228 = vst.msk [vmem:[%s227] sm:$0xff] %vm226, %v225
  %s229 = scalar_lea.vmem %s0, 194
  %v230 = vld [vmem:[%s229] ss:$8 sm:$0xf]
  %s231 = scalar_lea.vmem %s0, 194
  %v232 = vld [vmem:[%s231] ss:$8 sm:$0xf0]
  %vm233 = vcmask 1047556
  %v234 = vsel %vm233, %v232, %v230
  %235 = vrot.lane.b32.xlu0 %v234, 64
  %v236 = vpop.permute.xlu0 %235
  %vm237 = vcmask 785920
  %s238 = scalar_lea.vmem %s1, 48
  %239 = vst.msk [vmem:[%s238] sm:$0xff] %vm237, %v236
  %s240 = scalar_lea.vmem %s0, 70
  %v241 = vld [vmem:[%s240] ss:$8 sm:$0xf]
  %s242 = scalar_lea.vmem %s0, 70
  %v243 = vld [vmem:[%s242] ss:$8 sm:$0xf0]
  %vm244 = vcmask 1047556
  %v245 = vsel %vm244, %v243, %v241
  %246 = vrot.lane.b32.xlu0 %v245, 64
  %v247 = vpop.permute.xlu0 %246
  %vm248 = vcmask 785920
  %s249 = scalar_lea.vmem %s1, 24
  %250 = vst.msk [vmem:[%s249] sm:$0xff] %vm248, %v247
  %s251 = scalar_lea.vmem %s0, 198
  %v252 = vld [vmem:[%s251] ss:$8 sm:$0xf]
  %s253 = scalar_lea.vmem %s0, 198
  %v254 = vld [vmem:[%s253] ss:$8 sm:$0xf0]
  %vm255 = vcmask 1047556
  %v256 = vsel %vm255, %v254, %v252
  %257 = vrot.lane.b32.xlu0 %v256, 64
  %v258 = vpop.permute.xlu0 %257
  %vm259 = vcmask 785920
  %s260 = scalar_lea.vmem %s1, 56
  %261 = vst.msk [vmem:[%s260] sm:$0xff] %vm259, %v258
  %s262 = scalar_lea.vmem %s0, 1
  %v263 = vld [vmem:[%s262] ss:$8 sm:$0xf]
  %s264 = scalar_lea.vmem %s0, 1
  %v265 = vld [vmem:[%s264] ss:$8 sm:$0xf0]
  %vm266 = vcmask 1047556
  %v267 = vsel %vm266, %v265, %v263
  %268 = vrot.lane.b32.xlu0 %v267, 32
  %v269 = vpop.permute.xlu0 %268
  %vm270 = vcmask 523520
  %271 = vst.msk [vmem:[%s1] sm:$0xff] %vm270, %v269
  %s272 = scalar_lea.vmem %s0, 129
  %v273 = vld [vmem:[%s272] ss:$8 sm:$0xf]
  %s274 = scalar_lea.vmem %s0, 129
  %v275 = vld [vmem:[%s274] ss:$8 sm:$0xf0]
  %vm276 = vcmask 1047556
  %v277 = vsel %vm276, %v275, %v273
  %278 = vrot.lane.b32.xlu0 %v277, 32
  %v279 = vpop.permute.xlu0 %278
  %vm280 = vcmask 523520
  %s281 = scalar_lea.vmem %s1, 32
  %282 = vst.msk [vmem:[%s281] sm:$0xff] %vm280, %v279
  %s283 = scalar_lea.vmem %s0, 5
  %v284 = vld [vmem:[%s283] ss:$8 sm:$0xf]
  %s285 = scalar_lea.vmem %s0, 5
  %v286 = vld [vmem:[%s285] ss:$8 sm:$0xf0]
  %vm287 = vcmask 1047556
  %v288 = vsel %vm287, %v286, %v284
  %289 = vrot.lane.b32.xlu0 %v288, 32
  %v290 = vpop.permute.xlu0 %289
  %vm291 = vcmask 523520
  %s292 = scalar_lea.vmem %s1, 8
  %293 = vst.msk [vmem:[%s292] sm:$0xff] %vm291, %v290
  %s294 = scalar_lea.vmem %s0, 133
  %v295 = vld [vmem:[%s294] ss:$8 sm:$0xf]
  %s296 = scalar_lea.vmem %s0, 133
  %v297 = vld [vmem:[%s296] ss:$8 sm:$0xf0]
  %vm298 = vcmask 1047556
  %v299 = vsel %vm298, %v297, %v295
  %300 = vrot.lane.b32.xlu0 %v299, 32
  %v301 = vpop.permute.xlu0 %300
  %vm302 = vcmask 523520
  %s303 = scalar_lea.vmem %s1, 40
  %304 = vst.msk [vmem:[%s303] sm:$0xff] %vm302, %v301
  %s305 = scalar_lea.vmem %s0, 65
  %v306 = vld [vmem:[%s305] ss:$8 sm:$0xf]
  %s307 = scalar_lea.vmem %s0, 65
  %v308 = vld [vmem:[%s307] ss:$8 sm:$0xf0]
  %vm309 = vcmask 1047556
  %v310 = vsel %vm309, %v308, %v306
  %311 = vrot.lane.b32.xlu0 %v310, 32
  %v312 = vpop.permute.xlu0 %311
  %vm313 = vcmask 523520
  %s314 = scalar_lea.vmem %s1, 16
  %315 = vst.msk [vmem:[%s314] sm:$0xff] %vm313, %v312
  %s316 = scalar_lea.vmem %s0, 193
  %v317 = vld [vmem:[%s316] ss:$8 sm:$0xf]
  %s318 = scalar_lea.vmem %s0, 193
  %v319 = vld [vmem:[%s318] ss:$8 sm:$0xf0]
  %vm320 = vcmask 1047556
  %v321 = vsel %vm320, %v319, %v317
  %322 = vrot.lane.b32.xlu0 %v321, 32
  %v323 = vpop.permute.xlu0 %322
  %vm324 = vcmask 523520
  %s325 = scalar_lea.vmem %s1, 48
  %326 = vst.msk [vmem:[%s325] sm:$0xff] %vm324, %v323
  %s327 = scalar_lea.vmem %s0, 69
  %v328 = vld [vmem:[%s327] ss:$8 sm:$0xf]
  %s329 = scalar_lea.vmem %s0, 69
  %v330 = vld [vmem:[%s329] ss:$8 sm:$0xf0]
  %vm331 = vcmask 1047556
  %v332 = vsel %vm331, %v330, %v328
  %333 = vrot.lane.b32.xlu0 %v332, 32
  %v334 = vpop.permute.xlu0 %333
  %vm335 = vcmask 523520
  %s336 = scalar_lea.vmem %s1, 24
  %337 = vst.msk [vmem:[%s336] sm:$0xff] %vm335, %v334
  %s338 = scalar_lea.vmem %s0, 197
  %v339 = vld [vmem:[%s338] ss:$8 sm:$0xf]
  %s340 = scalar_lea.vmem %s0, 197
  %v341 = vld [vmem:[%s340] ss:$8 sm:$0xf0]
  %vm342 = vcmask 1047556
  %v343 = vsel %vm342, %v341, %v339
  %344 = vrot.lane.b32.xlu0 %v343, 32
  %v345 = vpop.permute.xlu0 %344
  %vm346 = vcmask 523520
  %s347 = scalar_lea.vmem %s1, 56
  %348 = vst.msk [vmem:[%s347] sm:$0xff] %vm346, %v345

// kernel: decoder_forward.3
$region0: #{decoder_forward.3}
  #allocation0 [shape = 'u32[]', space=smem, size = 0x4, offset = 0x4, fixed_abs, tag = 'smem constant byte address 0x4 - core index']
  #allocation1 [shape = 'u32[144,128]{1,0:T(1,128)}', space=vmem, size = 0x12000, scoped, tag = 'internal scratch']
  %s0 = inlined_call_operand.vmem [shape: f32[6,2,32], index: 0, kind: input, shape index: {}]
  %s1 = inlined_call_operand.vmem [shape: f32[6,2,32], index: 1, kind: input, shape index: {}]
  %s2 = inlined_call_operand.vmem [shape: f32[6,2,32], index: 2, kind: input, shape index: {}]
  %s3 = inlined_call_operand.vmem [shape: f32[8,64], index: 3, kind: input, shape index: {}]
  %s4 = inlined_call_operand.vmem [shape: f32[2,256], index: 4, kind: input, shape index: {}]
  %s5 = inlined_call_operand.vmem [shape: f32[2,8], index: 5, kind: input, shape index: {}]
  %s6 = inlined_call_operand.vmem [shape: f32[96,128], index: 6, kind: input, shape index: {}]
  %s7 = inlined_call_operand.vmem [shape: f32[1,128], index: 7, kind: input, shape index: {}]
  %s8 = inlined_call_operand.vmem [shape: f32[32,256], index: 8, kind: input, shape index: {}]
  %s9 = inlined_call_operand.vmem [shape: f32[8,256], index: 9, kind: input, shape index: {}]
  %s10 = inlined_call_operand.vmem [shape: f32[8,256], index: 10, kind: input, shape index: {}]
  %s11 = inlined_call_operand.vmem [shape: f32[256,8], index: 11, kind: input, shape index: {}]
  %s12 = inlined_call_operand.vmem [shape: f32[96,128], index: 12, kind: input, shape index: {}]
  %s13 = inlined_call_operand.vmem [shape: f32[1,128], index: 13, kind: input, shape index: {}]
  %s14 = inlined_call_operand.vmem [shape: f32[64,9], index: 14, kind: input, shape index: {}]
  %s15 = inlined_call_operand.vmem [shape: f32[1,9], index: 15, kind: input, shape index: {}]
  %s16 = inlined_call_operand.hbm [shape: f32[6,2,8], index: 16, kind: output, shape index: {0}]
  %s17 = inlined_call_operand.vmem [shape: f32[6,2,1], index: 17, kind: output, shape index: {1}]
  %s18 = inlined_call_operand.hbm [shape: f32[6,2,8], index: 18, kind: output, shape index: {2}]
  %19 = xla_tuple %s16, %s17, %s18
  %s20 = sld [smem:[#allocation0]]
  $region90: #{decoder_forward.3} parent=0
    _
  %s22 = ssub.s32 1, %s20
  %s23 = scalar_select 0, %s22, %s20
  $region1: #{decoder_forward.3} parent=0
    #allocation2 [shape = 'u8[6144]{0}', space=vmem, size = 0x1800, scoped, tag = 'output window, operand 0, single buffered']
    #allocation3 [shape = 's32[1]{0}', space=sflag, size = 0x4, scoped, tag = 'scoped memory for decoder_forward.3']
    #allocation4 [shape = 'u8[6144]{0}', space=vmem, size = 0x1800, scoped, tag = 'output window, operand 2, single buffered']
    #allocation5 [shape = 's32[1]{0}', space=sflag, size = 0x4, scoped, tag = 'scoped memory for decoder_forward.3']
    %24 = vsyncpa [#allocation3], 0
    %25 = vsyncpa [#allocation5], 0
    // Predicated region
    $region2: #{decoder_forward.3} parent=1 // pred_check
      _
    $region3: #{decoder_forward.3} parent=1 // pred_check_branch
      %27 = sbr.rel (0) target = $region5
    $region4: #{decoder_forward.3} parent=1 // pred_region
      _
    $region5: #{decoder_forward.3} parent=1 // pred_fallthru
      _
    // Predicated region
    $region6: #{decoder_forward.3} parent=1 // pred_check
      _
    $region7: #{decoder_forward.3} parent=1 // pred_check_branch
      %29 = sbr.rel (0) target = $region9
    $region8: #{decoder_forward.3} parent=1 // pred_region
      _
    $region9: #{decoder_forward.3} parent=1 // pred_fallthru
      _
    // Predicated region
    $region10: #{decoder_forward.3} parent=1 // pred_check
      _
    $region11: #{decoder_forward.3} parent=1 // pred_check_branch
      %31 = sbr.rel (0) target = $region13
    $region12: #{decoder_forward.3} parent=1 // pred_region
      _
    $region13: #{decoder_forward.3} parent=1 // pred_fallthru
      _
    // Predicated region
    $region14: #{decoder_forward.3} parent=1 // pred_check
      _
    $region15: #{decoder_forward.3} parent=1 // pred_check_branch
      %33 = sbr.rel (0) target = $region17
    $region16: #{decoder_forward.3} parent=1 // pred_region
      _
    $region17: #{decoder_forward.3} parent=1 // pred_fallthru
      _
    // Predicated region
    $region18: #{decoder_forward.3} parent=1 // pred_check
      _
    $region19: #{decoder_forward.3} parent=1 // pred_check_branch
      %35 = sbr.rel (0) target = $region21
    $region20: #{decoder_forward.3} parent=1 // pred_region
      _
    $region21: #{decoder_forward.3} parent=1 // pred_fallthru
      _
    // Predicated region
    $region22: #{decoder_forward.3} parent=1 // pred_check
      _
    $region23: #{decoder_forward.3} parent=1 // pred_check_branch
      %37 = sbr.rel (0) target = $region25
    $region24: #{decoder_forward.3} parent=1 // pred_region
      _
    $region25: #{decoder_forward.3} parent=1 // pred_fallthru
      _
    // Predicated region
    $region26: #{decoder_forward.3} parent=1 // pred_check
      _
    $region27: #{decoder_forward.3} parent=1 // pred_check_branch
      %39 = sbr.rel (0) target = $region29
    $region28: #{decoder_forward.3} parent=1 // pred_region
      _
    $region29: #{decoder_forward.3} parent=1 // pred_fallthru
      _
    // Predicated region
    $region30: #{decoder_forward.3} parent=1 // pred_check
      _
    $region31: #{decoder_forward.3} parent=1 // pred_check_branch
      %41 = sbr.rel (0) target = $region33
    $region32: #{decoder_forward.3} parent=1 // pred_region
      _
    $region33: #{decoder_forward.3} parent=1 // pred_fallthru
      _
    // Predicated region
    $region34: #{decoder_forward.3} parent=1 // pred_check
      _
    $region35: #{decoder_forward.3} parent=1 // pred_check_branch
      %43 = sbr.rel (0) target = $region37
    $region36: #{decoder_forward.3} parent=1 // pred_region
      _
    $region37: #{decoder_forward.3} parent=1 // pred_fallthru
      _
    // Predicated region
    $region38: #{decoder_forward.3} parent=1 // pred_check
      _
    $region39: #{decoder_forward.3} parent=1 // pred_check_branch
      %45 = sbr.rel (0) target = $region41
    $region40: #{decoder_forward.3} parent=1 // pred_region
      _
    $region41: #{decoder_forward.3} parent=1 // pred_fallthru
      _
    // Predicated region
    $region42: #{decoder_forward.3} parent=1 // pred_check
      _
    $region43: #{decoder_forward.3} parent=1 // pred_check_branch
      %47 = sbr.rel (0) target = $region45
    $region44: #{decoder_forward.3} parent=1 // pred_region
      _
    $region45: #{decoder_forward.3} parent=1 // pred_fallthru
      _
    // Predicated region
    $region46: #{decoder_forward.3} parent=1 // pred_check
      _
    $region47: #{decoder_forward.3} parent=1 // pred_check_branch
      %49 = sbr.rel (0) target = $region49
    $region48: #{decoder_forward.3} parent=1 // pred_region
      _
    $region49: #{decoder_forward.3} parent=1 // pred_fallthru
      _
    // Predicated region
    $region50: #{decoder_forward.3} parent=1 // pred_check
      _
    $region51: #{decoder_forward.3} parent=1 // pred_check_branch
      %51 = sbr.rel (0) target = $region53
    $region52: #{decoder_forward.3} parent=1 // pred_region
      _
    $region53: #{decoder_forward.3} parent=1 // pred_fallthru
      _
    // Predicated region
    $region54: #{decoder_forward.3} parent=1 // pred_check
      _
    $region55: #{decoder_forward.3} parent=1 // pred_check_branch
      %53 = sbr.rel (0) target = $region57
    $region56: #{decoder_forward.3} parent=1 // pred_region
      _
    $region57: #{decoder_forward.3} parent=1 // pred_fallthru
      _
    // Predicated region
    $region58: #{decoder_forward.3} parent=1 // pred_check
      _
    $region59: #{decoder_forward.3} parent=1 // pred_check_branch
      %55 = sbr.rel (0) target = $region61
    $region60: #{decoder_forward.3} parent=1 // pred_region
      _
    $region61: #{decoder_forward.3} parent=1 // pred_fallthru
      _
    // Predicated region
    $region62: #{decoder_forward.3} parent=1 // pred_check
      _
    $region63: #{decoder_forward.3} parent=1 // pred_check_branch
      %57 = sbr.rel (0) target = $region65
    $region64: #{decoder_forward.3} parent=1 // pred_region
      _
    $region65: #{decoder_forward.3} parent=1 // pred_fallthru
      _
    %v58 = vlaneseq
    %v59 = vshrl.u32 %v58, 7
    %vm60 = vcmp.eq.s32.totalorder %v59, 0
    %v61 = vsel %vm60, 1, 0
    %v62 = vcvt.s32.f32 %v61
    %vm63 = vcmp.eq.s32.totalorder %v59, 1
    %v64 = vsel %vm63, 1, 0
    %v65 = vcvt.s32.f32 %v64
    %v66 = vld [vmem:[%s0] sm:$0x3]
    %v67 = vld [vmem:[%s1] sm:$0x3]
    %v68 = vld [vmem:[%s2] sm:$0x3]
    %v69 = vld [vmem:[%s6] sm:$0xff]
    %v70 = vld [vmem:[%s6 + $0x8] sm:$0xff]
    %v71 = vld [vmem:[%s6 + $0x10] sm:$0xff]
    %v72 = vld [vmem:[%s6 + $0x18] sm:$0xff]
    %v73 = vld [vmem:[%s6 + $0x20] sm:$0xff]
    %v74 = vld [vmem:[%s6 + $0x28] sm:$0xff]
    %v75 = vld [vmem:[%s6 + $0x30] sm:$0xff]
    %v76 = vld [vmem:[%s6 + $0x38] sm:$0xff]
    %vm77 = vcmask 261120
    %v79 = vsel %vm77, 0.0, 0
    %81 = vmatprep.subr.mxu0 0.0
    %82 = vmatpush1.msra.mxu0 %v73
    %83 = vmatprep.subr.mxu0 0.0
    %84 = vmatpush1.msra.mxu0 %v74
    %85 = vmatprep.subr.mxu0 0.0
    %86 = vmatpush1.msra.mxu0 %v75
    %87 = vmatprep.subr.mxu0 0.0
    %88 = vmatpush1.msra.mxu0 %v76
    %89 = vmatprep.subr.mxu0 0.0
    %90 = vmatpush1.msra.mxu0 0.0
    %91 = vmatprep.subr.mxu0 0.0
    %92 = vmatpush1.msra.mxu0 0.0
    %93 = vmatprep.subr.mxu0 0.0
    %94 = vmatpush1.msra.mxu0 0.0
    %95 = vmatprep.subr.mxu0 0.0
    %96 = vmatpush1.msra.mxu0 0.0
    %97 = vmatprep.subr.mxu0 0.0
    %98 = vmatpush1.msra.mxu0 0.0
    %99 = vmatprep.subr.mxu0 0.0
    %100 = vmatpush1.msra.mxu0 0.0
    %101 = vmatprep.subr.mxu0 0.0
    %102 = vmatpush1.msra.mxu0 0.0
    %103 = vmatprep.subr.mxu0 0.0
    %104 = vmatpush1.msra.mxu0 0.0
    %105 = vmatprep.subr.mxu0 0.0
    %106 = vmatpush1.msra.mxu0 0.0
    %107 = vmatprep.subr.mxu0 0.0
    %108 = vmatpush1.msra.mxu0 0.0
    %109 = vmatprep.subr.mxu0 0.0
    %110 = vmatpush1.msra.mxu0 0.0
    %111 = vmatprep.subr.mxu0 0.0
    %112 = vmatpush1.msra.mxu0 0.0
    %113 = vmatprep.subr.mxu0 0.0
    %114 = vmatpush1.msra.mxu0 0.0
    %115 = vmatprep.subr.mxu0 0.0
    %116 = vmatpush1.msra.mxu0 0.0
    %117 = vmatprep.subr.mxu0 0.0
    %118 = vmatpush1.msra.mxu0 0.0
    %119 = vmatprep.subr.mxu0 0.0
    %120 = vmatpush1.msra.mxu0 0.0
    %121 = vmatprep.subr.mxu0 0.0
    %122 = vmatpush1.msra.mxu0 0.0
    %123 = vmatprep.subr.mxu0 0.0
    %124 = vmatpush1.msra.mxu0 0.0
    %125 = vmatprep.subr.mxu0 0.0
    %126 = vmatpush1.msra.mxu0 0.0
    %127 = vmatprep.subr.mxu0 0.0
    %128 = vmatpush1.msra.mxu0 0.0
    %129 = vmatprep.subr.mxu0 0.0
    %130 = vmatpush1.msra.mxu0 0.0
    %131 = vmatprep.subr.mxu0 0.0
    %132 = vmatpush1.msra.mxu0 0.0
    %133 = vmatprep.subr.mxu0 0.0
    %134 = vmatpush1.msra.mxu0 0.0
    %135 = vmatprep.subr.mxu0 0.0
    %136 = vmatpush1.msra.mxu0 0.0
    %137 = vmatprep.subr.mxu0 0.0
    %138 = vmatpush1.msra.mxu0 0.0
    %139 = vmatprep.subr.mxu0 0.0
    %140 = vmatpush1.msra.mxu0 0.0
    %141 = vmatprep.subr.mxu0 0.0
    %142 = vmatpush1.msra.mxu0 0.0
    %143 = vmatprep.subr.mxu0 0.0
    %144 = vmatpush1.msra.mxu0 0.0
    %145 = vmatprep.mubr.f32.mxu0 0.0
    %146 = vmatmul.mubr.f32.gmra.mrb[0].mxu0 %v79
    %v147 = vpop.f32.mrb[0].mxu0
    %v148 = vadd.f32 0.0, %v147
    %v149 = vpop.f32.mrb[0].mxu0
    %150 = vdwg.mxu0
    %v152 = vsel %vm77, %v66, 0
    %154 = vmatprep.subr.mxu0 0.0
    %155 = vmatpush1.msra.mxu0 %v69
    %156 = vmatprep.subr.mxu0 0.0
    %157 = vmatpush1.msra.mxu0 %v70
    %158 = vmatprep.subr.mxu0 0.0
    %159 = vmatpush1.msra.mxu0 %v71
    %160 = vmatprep.subr.mxu0 0.0
    %161 = vmatpush1.msra.mxu0 %v72
    %162 = vmatprep.subr.mxu0 0.0
    %163 = vmatpush1.msra.mxu0 0.0
    %164 = vmatprep.subr.mxu0 0.0
    %165 = vmatpush1.msra.mxu0 0.0
    %166 = vmatprep.subr.mxu0 0.0
    %167 = vmatpush1.msra.mxu0 0.0
    %168 = vmatprep.subr.mxu0 0.0
    %169 = vmatpush1.msra.mxu0 0.0
    %170 = vmatprep.subr.mxu0 0.0
    %171 = vmatpush1.msra.mxu0 0.0
    %172 = vmatprep.subr.mxu0 0.0
    %173 = vmatpush1.msra.mxu0 0.0
    %174 = vmatprep.subr.mxu0 0.0
    %175 = vmatpush1.msra.mxu0 0.0
    %176 = vmatprep.subr.mxu0 0.0
    %177 = vmatpush1.msra.mxu0 0.0
    %178 = vmatprep.subr.mxu0 0.0
    %179 = vmatpush1.msra.mxu0 0.0
    %180 = vmatprep.subr.mxu0 0.0
    %181 = vmatpush1.msra.mxu0 0.0
    %182 = vmatprep.subr.mxu0 0.0
    %183 = vmatpush1.msra.mxu0 0.0
    %184 = vmatprep.subr.mxu0 0.0
    %185 = vmatpush1.msra.mxu0 0.0
    %186 = vmatprep.subr.mxu0 0.0
    %187 = vmatpush1.msra.mxu0 0.0
    %188 = vmatprep.subr.mxu0 0.0
    %189 = vmatpush1.msra.mxu0 0.0
    %190 = vmatprep.subr.mxu0 0.0
    %191 = vmatpush1.msra.mxu0 0.0
    %192 = vmatprep.subr.mxu0 0.0
    %193 = vmatpush1.msra.mxu0 0.0
    %194 = vmatprep.subr.mxu0 0.0
    %195 = vmatpush1.msra.mxu0 0.0
    %196 = vmatprep.subr.mxu0 0.0
    %197 = vmatpush1.msra.mxu0 0.0
    %198 = vmatprep.subr.mxu0 0.0
    %199 = vmatpush1.msra.mxu0 0.0
    %200 = vmatprep.subr.mxu0 0.0
    %201 = vmatpush1.msra.mxu0 0.0
    %202 = vmatprep.subr.mxu0 0.0
    %203 = vmatpush1.msra.mxu0 0.0
    %204 = vmatprep.subr.mxu0 0.0
    %205 = vmatpush1.msra.mxu0 0.0
    %206 = vmatprep.subr.mxu0 0.0
    %207 = vmatpush1.msra.mxu0 0.0
    %208 = vmatprep.subr.mxu0 0.0
    %209 = vmatpush1.msra.mxu0 0.0
    %210 = vmatprep.subr.mxu0 0.0
    %211 = vmatpush1.msra.mxu0 0.0
    %212 = vmatprep.subr.mxu0 0.0
    %213 = vmatpush1.msra.mxu0 0.0
    %214 = vmatprep.subr.mxu0 0.0
    %215 = vmatpush1.msra.mxu0 0.0
    %216 = vmatprep.subr.mxu0 0.0
    %217 = vmatpush1.msra.mxu0 0.0
    %218 = vmatprep.mubr.f32.mxu0 0.0
    %219 = vmatmul.mubr.f32.gmra.mrb[0].mxu0 %v152
    %v220 = vpop.f32.mrb[0].mxu0
    %v221 = vadd.f32 %v148, %v220
    %v222 = vpop.f32.mrb[0].mxu0
    %223 = vdwg.mxu0
    %v224 = vld [vmem:[%s6 + $0x40] sm:$0xff]
    %v225 = vld [vmem:[%s6 + $0x48] sm:$0xff]
    %v226 = vld [vmem:[%s6 + $0x50] sm:$0xff]
    %v227 = vld [vmem:[%s6 + $0x58] sm:$0xff]
    %228 = vmatprep.subr.mxu0 0.0
    %229 = vmatpush1.msra.mxu0 %v224
    %230 = vmatprep.subr.mxu0 0.0
    %231 = vmatpush1.msra.mxu0 %v225
    %232 = vmatprep.subr.mxu0 0.0
    %233 = vmatpush1.msra.mxu0 %v226
    %234 = vmatprep.subr.mxu0 0.0
    %235 = vmatpush1.msra.mxu0 %v227
    %236 = vmatprep.subr.mxu0 0.0
    %237 = vmatpush1.msra.mxu0 0.0
    %238 = vmatprep.subr.mxu0 0.0
    %239 = vmatpush1.msra.mxu0 0.0
    %240 = vmatprep.subr.mxu0 0.0
    %241 = vmatpush1.msra.mxu0 0.0
    %242 = vmatprep.subr.mxu0 0.0
    %243 = vmatpush1.msra.mxu0 0.0
    %244 = vmatprep.subr.mxu0 0.0
    %245 = vmatpush1.msra.mxu0 0.0
    %246 = vmatprep.subr.mxu0 0.0
    %247 = vmatpush1.msra.mxu0 0.0
    %248 = vmatprep.subr.mxu0 0.0
    %249 = vmatpush1.msra.mxu0 0.0
    %250 = vmatprep.subr.mxu0 0.0
    %251 = vmatpush1.msra.mxu0 0.0
    %252 = vmatprep.subr.mxu0 0.0
    %253 = vmatpush1.msra.mxu0 0.0
    %254 = vmatprep.subr.mxu0 0.0
    %255 = vmatpush1.msra.mxu0 0.0
    %256 = vmatprep.subr.mxu0 0.0
    %257 = vmatpush1.msra.mxu0 0.0
    %258 = vmatprep.subr.mxu0 0.0
    %259 = vmatpush1.msra.mxu0 0.0
    %260 = vmatprep.subr.mxu0 0.0
    %261 = vmatpush1.msra.mxu0 0.0
    %262 = vmatprep.subr.mxu0 0.0
    %263 = vmatpush1.msra.mxu0 0.0
    %264 = vmatprep.subr.mxu0 0.0
    %265 = vmatpush1.msra.mxu0 0.0
    %266 = vmatprep.subr.mxu0 0.0
    %267 = vmatpush1.msra.mxu0 0.0
    %268 = vmatprep.subr.mxu0 0.0
    %269 = vmatpush1.msra.mxu0 0.0
    %270 = vmatprep.subr.mxu0 0.0
    %271 = vmatpush1.msra.mxu0 0.0
    %272 = vmatprep.subr.mxu0 0.0
    %273 = vmatpush1.msra.mxu0 0.0
    %274 = vmatprep.subr.mxu0 0.0
    %275 = vmatpush1.msra.mxu0 0.0
    %276 = vmatprep.subr.mxu0 0.0
    %277 = vmatpush1.msra.mxu0 0.0
    %278 = vmatprep.subr.mxu0 0.0
    %279 = vmatpush1.msra.mxu0 0.0
    %280 = vmatprep.subr.mxu0 0.0
    %281 = vmatpush1.msra.mxu0 0.0
    %282 = vmatprep.subr.mxu0 0.0
    %283 = vmatpush1.msra.mxu0 0.0
    %284 = vmatprep.subr.mxu0 0.0
    %285 = vmatpush1.msra.mxu0 0.0
    %286 = vmatprep.subr.mxu0 0.0
    %287 = vmatpush1.msra.mxu0 0.0
    %288 = vmatprep.subr.mxu0 0.0
    %289 = vmatpush1.msra.mxu0 0.0
    %290 = vmatprep.subr.mxu0 0.0
    %291 = vmatpush1.msra.mxu0 0.0
    %292 = vmatprep.mubr.f32.mxu0 0.0
    %293 = vmatmul.mubr.f32.gmra.mrb[0].mxu0 %v79
    %v294 = vpop.f32.mrb[0].mxu0
    %v295 = vadd.f32 0.0, %v294
    %v296 = vpop.f32.mrb[0].mxu0
    %297 = vdwg.mxu0
    %v298 = vadd.f32 %v221, %v295
    %v299 = vld [vmem:[%s7] sm:$0x1]
    %v301 = vlaneseq
    %v302 = vshrl.u32 %v301, 7
    %v303 = vsub.s32 0, %v302
    %v304 = vrot.slane %v299, %v303
    %v306 = vadd.f32 %v298, %v304
    %v307 = vxor.u32 %v306, 2147483648
    %v308 = vmul.f32 %v307, 1.442695
    %v309 = vpow.pop %v308
    %v310 = vadd.f32 %v309, 1.0
    %v311 = vrcp.pop %v310
    %v312 = vmul.f32 1.0, %v311
    %v313 = vmul.f32 %v312, 0.0
    %v314 = vtanh.pop %v306
    %316 = vrot.lane.b32.xlu0 %v314, 64
    %v317 = vpop.permute.xlu0 %316
    %v319 = vmul.f32 %v312, %v317
    %321 = vrot.lane.b32.xlu0 %v319, 32
    %v322 = vpop.permute.xlu0 %321
    %v324 = vadd.f32 %v313, %v322
    %v325 = vtanh.pop %v324
    %327 = vrot.lane.b32.xlu0 %v325, 64
    %v328 = vpop.permute.xlu0 %327
    %v330 = vmul.f32 %v312, %v328
    %332 = vrot.lane.b32.xlu0 %v67, 96
    %v333 = vpop.permute.xlu0 %332
    %v335 = vmul.f32 %v330, %v333
    %v336 = vld [vmem:[%s8] sm:$0xff]
    %v337 = vld [vmem:[%s8 + $0x8] sm:$0xff]
    %v338 = vld [vmem:[%s8 + $0x10] sm:$0xff]
    %v339 = vld [vmem:[%s8 + $0x18] sm:$0xff]
    %v340 = vld [vmem:[%s8 + $0x20] sm:$0xff]
    %v341 = vld [vmem:[%s8 + $0x28] sm:$0xff]
    %v342 = vld [vmem:[%s8 + $0x30] sm:$0xff]
    %v343 = vld [vmem:[%s8 + $0x38] sm:$0xff]
    %v344 = vld [vmem:[%s9] sm:$0xff]
    %v345 = vld [vmem:[%s9 + $0x8] sm:$0xff]
    %vm346 = vcmask 64512
    %v347 = vsel %vm346, 0.0, 0
    %349 = vmatprep.subr.mxu0 %v345
    %350 = vmatpush1.msra.mxu0 %v344
    %351 = vmatprep.subr.mxu0 0.0
    %352 = vmatpush1.msra.mxu0 0.0
    %353 = vmatprep.subr.mxu0 0.0
    %354 = vmatpush1.msra.mxu0 0.0
    %355 = vmatprep.subr.mxu0 0.0
    %356 = vmatpush1.msra.mxu0 0.0
    %357 = vmatprep.subr.mxu0 0.0
    %358 = vmatpush1.msra.mxu0 0.0
    %359 = vmatprep.subr.mxu0 0.0
    %360 = vmatpush1.msra.mxu0 0.0
    %361 = vmatprep.subr.mxu0 0.0
    %362 = vmatpush1.msra.mxu0 0.0
    %363 = vmatprep.subr.mxu0 0.0
    %364 = vmatpush1.msra.mxu0 0.0
    %365 = vmatprep.subr.mxu0 0.0
    %366 = vmatpush1.msra.mxu0 0.0
    %367 = vmatprep.subr.mxu0 0.0
    %368 = vmatpush1.msra.mxu0 0.0
    %369 = vmatprep.subr.mxu0 0.0
    %370 = vmatpush1.msra.mxu0 0.0
    %371 = vmatprep.subr.mxu0 0.0
    %372 = vmatpush1.msra.mxu0 0.0
    %373 = vmatprep.subr.mxu0 0.0
    %374 = vmatpush1.msra.mxu0 0.0
    %375 = vmatprep.subr.mxu0 0.0
    %376 = vmatpush1.msra.mxu0 0.0
    %377 = vmatprep.subr.mxu0 0.0
    %378 = vmatpush1.msra.mxu0 0.0
    %379 = vmatprep.subr.mxu0 0.0
    %380 = vmatpush1.msra.mxu0 0.0
    %381 = vmatprep.subr.mxu0 0.0
    %382 = vmatpush1.msra.mxu0 0.0
    %383 = vmatprep.subr.mxu0 0.0
    %384 = vmatpush1.msra.mxu0 0.0
    %385 = vmatprep.subr.mxu0 0.0
    %386 = vmatpush1.msra.mxu0 0.0
    %387 = vmatprep.subr.mxu0 0.0
    %388 = vmatpush1.msra.mxu0 0.0
    %389 = vmatprep.subr.mxu0 0.0
    %390 = vmatpush1.msra.mxu0 0.0
    %391 = vmatprep.subr.mxu0 0.0
    %392 = vmatpush1.msra.mxu0 0.0
    %393 = vmatprep.subr.mxu0 0.0
    %394 = vmatpush1.msra.mxu0 0.0
    %395 = vmatprep.subr.mxu0 0.0
    %396 = vmatpush1.msra.mxu0 0.0
    %397 = vmatprep.subr.mxu0 0.0
    %398 = vmatpush1.msra.mxu0 0.0
    %399 = vmatprep.subr.mxu0 0.0
    %400 = vmatpush1.msra.mxu0 0.0
    %401 = vmatprep.subr.mxu0 0.0
    %402 = vmatpush1.msra.mxu0 0.0
    %403 = vmatprep.subr.mxu0 0.0
    %404 = vmatpush1.msra.mxu0 0.0
    %405 = vmatprep.subr.mxu0 0.0
    %406 = vmatpush1.msra.mxu0 0.0
    %407 = vmatprep.subr.mxu0 0.0
    %408 = vmatpush1.msra.mxu0 0.0
    %409 = vmatprep.subr.mxu0 0.0
    %410 = vmatpush1.msra.mxu0 0.0
    %411 = vmatprep.subr.mxu0 0.0
    %412 = vmatpush1.msra.mxu0 0.0
    %413 = vmatprep.mubr.f32.mxu0 0.0
    %414 = vmatmul.mubr.f32.gmra.mrb[0].mxu0 %v347
    %v415 = vpop.f32.mrb[0].mxu0
    %v416 = vadd.f32 0.0, %v415
    %v417 = vpop.f32.mrb[0].mxu0
    %v418 = vadd.f32 0.0, %v417
    %419 = vdwg.mxu0
    %421 = vrot.lane.b32.xlu0 %v335, 32
    %v422 = vpop.permute.xlu0 %421
    %v423 = vsel %vm77, %v422, 0
    %425 = vmatprep.subr.mxu0 %v337
    %426 = vmatpush1.msra.mxu0 %v336
    %427 = vmatprep.subr.mxu0 %v339
    %428 = vmatpush1.msra.mxu0 %v338
    %429 = vmatprep.subr.mxu0 %v341
    %430 = vmatpush1.msra.mxu0 %v340
    %431 = vmatprep.subr.mxu0 %v343
    %432 = vmatpush1.msra.mxu0 %v342
    %433 = vmatprep.subr.mxu0 0.0
    %434 = vmatpush1.msra.mxu0 0.0
    %435 = vmatprep.subr.mxu0 0.0
    %436 = vmatpush1.msra.mxu0 0.0
    %437 = vmatprep.subr.mxu0 0.0
    %438 = vmatpush1.msra.mxu0 0.0
    %439 = vmatprep.subr.mxu0 0.0
    %440 = vmatpush1.msra.mxu0 0.0
    %441 = vmatprep.subr.mxu0 0.0
    %442 = vmatpush1.msra.mxu0 0.0
    %443 = vmatprep.subr.mxu0 0.0
    %444 = vmatpush1.msra.mxu0 0.0
    %445 = vmatprep.subr.mxu0 0.0
    %446 = vmatpush1.msra.mxu0 0.0
    %447 = vmatprep.subr.mxu0 0.0
    %448 = vmatpush1.msra.mxu0 0.0
    %449 = vmatprep.subr.mxu0 0.0
    %450 = vmatpush1.msra.mxu0 0.0
    %451 = vmatprep.subr.mxu0 0.0
    %452 = vmatpush1.msra.mxu0 0.0
    %453 = vmatprep.subr.mxu0 0.0
    %454 = vmatpush1.msra.mxu0 0.0
    %455 = vmatprep.subr.mxu0 0.0
    %456 = vmatpush1.msra.mxu0 0.0
    %457 = vmatprep.subr.mxu0 0.0
    %458 = vmatpush1.msra.mxu0 0.0
    %459 = vmatprep.subr.mxu0 0.0
    %460 = vmatpush1.msra.mxu0 0.0
    %461 = vmatprep.subr.mxu0 0.0
    %462 = vmatpush1.msra.mxu0 0.0
    %463 = vmatprep.subr.mxu0 0.0
    %464 = vmatpush1.msra.mxu0 0.0
    %465 = vmatprep.subr.mxu0 0.0
    %466 = vmatpush1.msra.mxu0 0.0
    %467 = vmatprep.subr.mxu0 0.0
    %468 = vmatpush1.msra.mxu0 0.0
    %469 = vmatprep.subr.mxu0 0.0
    %470 = vmatpush1.msra.mxu0 0.0
    %471 = vmatprep.subr.mxu0 0.0
    %472 = vmatpush1.msra.mxu0 0.0
    %473 = vmatprep.subr.mxu0 0.0
    %474 = vmatpush1.msra.mxu0 0.0
    %475 = vmatprep.subr.mxu0 0.0
    %476 = vmatpush1.msra.mxu0 0.0
    %477 = vmatprep.subr.mxu0 0.0
    %478 = vmatpush1.msra.mxu0 0.0
    %479 = vmatprep.subr.mxu0 0.0
    %480 = vmatpush1.msra.mxu0 0.0
    %481 = vmatprep.subr.mxu0 0.0
    %482 = vmatpush1.msra.mxu0 0.0
    %483 = vmatprep.subr.mxu0 0.0
    %484 = vmatpush1.msra.mxu0 0.0
    %485 = vmatprep.subr.mxu0 0.0
    %486 = vmatpush1.msra.mxu0 0.0
    %487 = vmatprep.subr.mxu0 0.0
    %488 = vmatpush1.msra.mxu0 0.0
    %489 = vmatprep.mubr.f32.mxu0 0.0
    %490 = vmatmul.mubr.f32.gmra.mrb[0].mxu0 %v423
    %v491 = vpop.f32.mrb[0].mxu0
    %v492 = vadd.f32 %v416, %v491
    %v493 = vpop.f32.mrb[0].mxu0
    %v494 = vadd.f32 %v418, %v493
    %495 = vdwg.mxu0
    %v496 = vld [vmem:[%s10] sm:$0xff]
    %v497 = vld [vmem:[%s10 + $0x8] sm:$0xff]
    %498 = vmatprep.subr.mxu0 %v497
    %499 = vmatpush1.msra.mxu0 %v496
    %500 = vmatprep.subr.mxu0 0.0
    %501 = vmatpush1.msra.mxu0 0.0
    %502 = vmatprep.subr.mxu0 0.0
    %503 = vmatpush1.msra.mxu0 0.0
    %504 = vmatprep.subr.mxu0 0.0
    %505 = vmatpush1.msra.mxu0 0.0
    %506 = vmatprep.subr.mxu0 0.0
    %507 = vmatpush1.msra.mxu0 0.0
    %508 = vmatprep.subr.mxu0 0.0
    %509 = vmatpush1.msra.mxu0 0.0
    %510 = vmatprep.subr.mxu0 0.0
    %511 = vmatpush1.msra.mxu0 0.0
    %512 = vmatprep.subr.mxu0 0.0
    %513 = vmatpush1.msra.mxu0 0.0
    %514 = vmatprep.subr.mxu0 0.0
    %515 = vmatpush1.msra.mxu0 0.0
    %516 = vmatprep.subr.mxu0 0.0
    %517 = vmatpush1.msra.mxu0 0.0
    %518 = vmatprep.subr.mxu0 0.0
    %519 = vmatpush1.msra.mxu0 0.0
    %520 = vmatprep.subr.mxu0 0.0
    %521 = vmatpush1.msra.mxu0 0.0
    %522 = vmatprep.subr.mxu0 0.0
    %523 = vmatpush1.msra.mxu0 0.0
    %524 = vmatprep.subr.mxu0 0.0
    %525 = vmatpush1.msra.mxu0 0.0
    %526 = vmatprep.subr.mxu0 0.0
    %527 = vmatpush1.msra.mxu0 0.0
    %528 = vmatprep.subr.mxu0 0.0
    %529 = vmatpush1.msra.mxu0 0.0
    %530 = vmatprep.subr.mxu0 0.0
    %531 = vmatpush1.msra.mxu0 0.0
    %532 = vmatprep.subr.mxu0 0.0
    %533 = vmatpush1.msra.mxu0 0.0
    %534 = vmatprep.subr.mxu0 0.0
    %535 = vmatpush1.msra.mxu0 0.0
    %536 = vmatprep.subr.mxu0 0.0
    %537 = vmatpush1.msra.mxu0 0.0
    %538 = vmatprep.subr.mxu0 0.0
    %539 = vmatpush1.msra.mxu0 0.0
    %540 = vmatprep.subr.mxu0 0.0
    %541 = vmatpush1.msra.mxu0 0.0
    %542 = vmatprep.subr.mxu0 0.0
    %543 = vmatpush1.msra.mxu0 0.0
    %544 = vmatprep.subr.mxu0 0.0
    %545 = vmatpush1.msra.mxu0 0.0
    %546 = vmatprep.subr.mxu0 0.0
    %547 = vmatpush1.msra.mxu0 0.0
    %548 = vmatprep.subr.mxu0 0.0
    %549 = vmatpush1.msra.mxu0 0.0
    %550 = vmatprep.subr.mxu0 0.0
    %551 = vmatpush1.msra.mxu0 0.0
    %552 = vmatprep.subr.mxu0 0.0
    %553 = vmatpush1.msra.mxu0 0.0
    %554 = vmatprep.subr.mxu0 0.0
    %555 = vmatpush1.msra.mxu0 0.0
    %556 = vmatprep.subr.mxu0 0.0
    %557 = vmatpush1.msra.mxu0 0.0
    %558 = vmatprep.subr.mxu0 0.0
    %559 = vmatpush1.msra.mxu0 0.0
    %560 = vmatprep.subr.mxu0 0.0
    %561 = vmatpush1.msra.mxu0 0.0
    %562 = vmatprep.mubr.f32.mxu0 0.0
    %563 = vmatmul.mubr.f32.gmra.mrb[0].mxu0 %v347
    %v564 = vpop.f32.mrb[0].mxu0
    %v565 = vadd.f32 0.0, %v564
    %v566 = vpop.f32.mrb[0].mxu0
    %v567 = vadd.f32 0.0, %v566
    %568 = vdwg.mxu0
    %v569 = vadd.f32 %v492, %v565
    %v570 = vadd.f32 %v494, %v567
    %v571 = vld [vmem:[%s4] sm:$0xf]
    %v574 = vunpack.c.l.s4 1983009808
    %v575 = vunpack.c.0.s8 %v574
    %v576 = vlaneseq
    %v577 = vshrl.u32 %v576, 7
    %v578 = vsub.s32 %v575, %v577
    %v579 = vrot.slane %v571, %v578
    %v580 = vcombine.high %v579, %v579
    %v583 = vadd.f32 %v569, %v579
    %v584 = vadd.f32 %v570, %v580
    %v585 = vtanh.pop %v583
    %v586 = vtanh.pop %v584
    %v587 = vld [vmem:[%s11] sm:$0xff]
    %v588 = vld [vmem:[%s11 + $0x8] sm:$0xff]
    %v589 = vld [vmem:[%s11 + $0x10] sm:$0xff]
    %v590 = vld [vmem:[%s11 + $0x18] sm:$0xff]
    %v591 = vld [vmem:[%s11 + $0x20] sm:$0xff]
    %v592 = vld [vmem:[%s11 + $0x28] sm:$0xff]
    %v593 = vld [vmem:[%s11 + $0x30] sm:$0xff]
    %v594 = vld [vmem:[%s11 + $0x38] sm:$0xff]
    %v595 = vld [vmem:[%s11 + $0x40] sm:$0xff]
    %v596 = vld [vmem:[%s11 + $0x48] sm:$0xff]
    %v597 = vld [vmem:[%s11 + $0x50] sm:$0xff]
    %v598 = vld [vmem:[%s11 + $0x58] sm:$0xff]
    %v599 = vld [vmem:[%s11 + $0x60] sm:$0xff]
    %v600 = vld [vmem:[%s11 + $0x68] sm:$0xff]
    %v601 = vld [vmem:[%s11 + $0x70] sm:$0xff]
    %v602 = vld [vmem:[%s11 + $0x78] sm:$0xff]
    %v603 = vld [vmem:[%s11 + $0x80] sm:$0xff]
    %v604 = vld [vmem:[%s11 + $0x88] sm:$0xff]
    %v605 = vld [vmem:[%s11 + $0x90] sm:$0xff]
    %v606 = vld [vmem:[%s11 + $0x98] sm:$0xff]
    %v607 = vld [vmem:[%s11 + $0xa0] sm:$0xff]
    %v608 = vld [vmem:[%s11 + $0xa8] sm:$0xff]
    %v609 = vld [vmem:[%s11 + $0xb0] sm:$0xff]
    %v610 = vld [vmem:[%s11 + $0xb8] sm:$0xff]
    %v611 = vld [vmem:[%s11 + $0xc0] sm:$0xff]
    %v612 = vld [vmem:[%s11 + $0xc8] sm:$0xff]
    %v613 = vld [vmem:[%s11 + $0xd0] sm:$0xff]
    %v614 = vld [vmem:[%s11 + $0xd8] sm:$0xff]
    %v615 = vld [vmem:[%s11 + $0xe0] sm:$0xff]
    %v616 = vld [vmem:[%s11 + $0xe8] sm:$0xff]
    %v617 = vld [vmem:[%s11 + $0xf0] sm:$0xff]
    %v618 = vld [vmem:[%s11 + $0xf8] sm:$0xff]
    %v619 = vld [vmem:[%s5] sm:$0x3]
    %620 = vmatprep.subr.mxu0 0.0
    %621 = vmatpush1.msra.mxu0 %v587
    %622 = vmatprep.subr.mxu0 0.0
    %623 = vmatpush1.msra.mxu0 %v588
    %624 = vmatprep.subr.mxu0 0.0
    %625 = vmatpush1.msra.mxu0 %v589
    %626 = vmatprep.subr.mxu0 0.0
    %627 = vmatpush1.msra.mxu0 %v590
    %628 = vmatprep.subr.mxu0 0.0
    %629 = vmatpush1.msra.mxu0 %v591
    %630 = vmatprep.subr.mxu0 0.0
    %631 = vmatpush1.msra.mxu0 %v592
    %632 = vmatprep.subr.mxu0 0.0
    %633 = vmatpush1.msra.mxu0 %v593
    %634 = vmatprep.subr.mxu0 0.0
    %635 = vmatpush1.msra.mxu0 %v594
    %636 = vmatprep.subr.mxu0 0.0
    %637 = vmatpush1.msra.mxu0 %v595
    %638 = vmatprep.subr.mxu0 0.0
    %639 = vmatpush1.msra.mxu0 %v596
    %640 = vmatprep.subr.mxu0 0.0
    %641 = vmatpush1.msra.mxu0 %v597
    %642 = vmatprep.subr.mxu0 0.0
    %643 = vmatpush1.msra.mxu0 %v598
    %644 = vmatprep.subr.mxu0 0.0
    %645 = vmatpush1.msra.mxu0 %v599
    %646 = vmatprep.subr.mxu0 0.0
    %647 = vmatpush1.msra.mxu0 %v600
    %648 = vmatprep.subr.mxu0 0.0
    %649 = vmatpush1.msra.mxu0 %v601
    %650 = vmatprep.subr.mxu0 0.0
    %651 = vmatpush1.msra.mxu0 %v602
    %652 = vmatprep.subr.mxu0 0.0
    %653 = vmatpush1.msra.mxu0 %v603
    %654 = vmatprep.subr.mxu0 0.0
    %655 = vmatpush1.msra.mxu0 %v604
    %656 = vmatprep.subr.mxu0 0.0
    %657 = vmatpush1.msra.mxu0 %v605
    %658 = vmatprep.subr.mxu0 0.0
    %659 = vmatpush1.msra.mxu0 %v606
    %660 = vmatprep.subr.mxu0 0.0
    %661 = vmatpush1.msra.mxu0 %v607
    %662 = vmatprep.subr.mxu0 0.0
    %663 = vmatpush1.msra.mxu0 %v608
    %664 = vmatprep.subr.mxu0 0.0
    %665 = vmatpush1.msra.mxu0 %v609
    %666 = vmatprep.subr.mxu0 0.0
    %667 = vmatpush1.msra.mxu0 %v610
    %668 = vmatprep.subr.mxu0 0.0
    %669 = vmatpush1.msra.mxu0 %v611
    %670 = vmatprep.subr.mxu0 0.0
    %671 = vmatpush1.msra.mxu0 %v612
    %672 = vmatprep.subr.mxu0 0.0
    %673 = vmatpush1.msra.mxu0 %v613
    %674 = vmatprep.subr.mxu0 0.0
    %675 = vmatpush1.msra.mxu0 %v614
    %676 = vmatprep.subr.mxu0 0.0
    %677 = vmatpush1.msra.mxu0 %v615
    %678 = vmatprep.subr.mxu0 0.0
    %679 = vmatpush1.msra.mxu0 %v616
    %680 = vmatprep.subr.mxu0 0.0
    %681 = vmatpush1.msra.mxu0 %v617
    %682 = vmatprep.subr.mxu0 0.0
    %683 = vmatpush1.msra.mxu0 %v618
    %684 = vmatprep.mubr.f32.mxu0 %v586
    %685 = vmatmul.mubr.f32.gmra.mrb[0].mxu0 %v585
    %v686 = vpop.f32.mrb[0].mxu0
    %v687 = vadd.f32 %v619, %v686
    %v688 = vpop.f32.mrb[0].mxu0
    %689 = vdwg.mxu0
    %vm690 = vcmask 58368
    %v691 = vsel %vm690, %v687, -inf
    %692 = vmax.xlane.f32.xlu0 %v691
    %v693 = vpop.xlane.xlu0 %692
    %v694 = vsub.f32 %v687, %v693
    %v695 = vmul.f32 %v694, 1.442695
    %v696 = vpow.pop %v695
    %v697 = vsel %vm690, %v696, 0.0
    %698 = vadd.xlane.f32.xlu0 %v697
    %v699 = vpop.xlane.xlu0 %698
    %v700 = vrcp.pop %v699
    %v701 = vmul.f32 %v696, %v700
    %v702 = vadd.f32 %v701, 0.0
    %v703 = vld [vmem:[%s3] sm:$0xff]
    %v705 = vsel %vm346, %v701, 0
    %707 = vmatprep.subr.mxu0 0.0
    %708 = vmatpush1.msra.mxu0 %v703
    %709 = vmatprep.subr.mxu0 0.0
    %710 = vmatpush1.msra.mxu0 0.0
    %711 = vmatprep.subr.mxu0 0.0
    %712 = vmatpush1.msra.mxu0 0.0
    %713 = vmatprep.subr.mxu0 0.0
    %714 = vmatpush1.msra.mxu0 0.0
    %715 = vmatprep.subr.mxu0 0.0
    %716 = vmatpush1.msra.mxu0 0.0
    %717 = vmatprep.subr.mxu0 0.0
    %718 = vmatpush1.msra.mxu0 0.0
    %719 = vmatprep.subr.mxu0 0.0
    %720 = vmatpush1.msra.mxu0 0.0
    %721 = vmatprep.subr.mxu0 0.0
    %722 = vmatpush1.msra.mxu0 0.0
    %723 = vmatprep.subr.mxu0 0.0
    %724 = vmatpush1.msra.mxu0 0.0
    %725 = vmatprep.subr.mxu0 0.0
    %726 = vmatpush1.msra.mxu0 0.0
    %727 = vmatprep.subr.mxu0 0.0
    %728 = vmatpush1.msra.mxu0 0.0
    %729 = vmatprep.subr.mxu0 0.0
    %730 = vmatpush1.msra.mxu0 0.0
    %731 = vmatprep.subr.mxu0 0.0
    %732 = vmatpush1.msra.mxu0 0.0
    %733 = vmatprep.subr.mxu0 0.0
    %734 = vmatpush1.msra.mxu0 0.0
    %735 = vmatprep.subr.mxu0 0.0
    %736 = vmatpush1.msra.mxu0 0.0
    %737 = vmatprep.subr.mxu0 0.0
    %738 = vmatpush1.msra.mxu0 0.0
    %739 = vmatprep.subr.mxu0 0.0
    %740 = vmatpush1.msra.mxu0 0.0
    %741 = vmatprep.subr.mxu0 0.0
    %742 = vmatpush1.msra.mxu0 0.0
    %743 = vmatprep.subr.mxu0 0.0
    %744 = vmatpush1.msra.mxu0 0.0
    %745 = vmatprep.subr.mxu0 0.0
    %746 = vmatpush1.msra.mxu0 0.0
    %747 = vmatprep.subr.mxu0 0.0
    %748 = vmatpush1.msra.mxu0 0.0
    %749 = vmatprep.subr.mxu0 0.0
    %750 = vmatpush1.msra.mxu0 0.0
    %751 = vmatprep.subr.mxu0 0.0
    %752 = vmatpush1.msra.mxu0 0.0
    %753 = vmatprep.subr.mxu0 0.0
    %754 = vmatpush1.msra.mxu0 0.0
    %755 = vmatprep.subr.mxu0 0.0
    %756 = vmatpush1.msra.mxu0 0.0
    %757 = vmatprep.subr.mxu0 0.0
    %758 = vmatpush1.msra.mxu0 0.0
    %759 = vmatprep.subr.mxu0 0.0
    %760 = vmatpush1.msra.mxu0 0.0
    %761 = vmatprep.subr.mxu0 0.0
    %762 = vmatpush1.msra.mxu0 0.0
    %763 = vmatprep.subr.mxu0 0.0
    %764 = vmatpush1.msra.mxu0 0.0
    %765 = vmatprep.subr.mxu0 0.0
    %766 = vmatpush1.msra.mxu0 0.0
    %767 = vmatprep.subr.mxu0 0.0
    %768 = vmatpush1.msra.mxu0 0.0
    %769 = vmatprep.subr.mxu0 0.0
    %770 = vmatpush1.msra.mxu0 0.0
    %771 = vmatprep.mubr.f32.mxu0 0.0
    %772 = vmatmul.mubr.f32.gmra.mrb[0].mxu0 %v705
    %v773 = vpop.f32.mrb[0].mxu0
    %v774 = vadd.f32 0.0, %v773
    %v775 = vpop.f32.mrb[0].mxu0
    %776 = vdwg.mxu0
    %v777 = vmul.f32 %v774, %v62
    %v778 = vmul.f32 %v774, %v65
    %780 = vrot.lane.b32.xlu0 %v778, 96
    %v781 = vpop.permute.xlu0 %780
    %v783 = vadd.f32 %v777, %v781
    %v784 = vld [vmem:[%s12] sm:$0xff]
    %v785 = vld [vmem:[%s12 + $0x8] sm:$0xff]
    %v786 = vld [vmem:[%s12 + $0x10] sm:$0xff]
    %v787 = vld [vmem:[%s12 + $0x18] sm:$0xff]
    %v788 = vld [vmem:[%s12 + $0x20] sm:$0xff]
    %v789 = vld [vmem:[%s12 + $0x28] sm:$0xff]
    %v790 = vld [vmem:[%s12 + $0x30] sm:$0xff]
    %v791 = vld [vmem:[%s12 + $0x38] sm:$0xff]
    %v793 = vsel %vm77, %v783, 0
    %795 = vmatprep.subr.mxu0 0.0
    %796 = vmatpush1.msra.mxu0 %v788
    %797 = vmatprep.subr.mxu0 0.0
    %798 = vmatpush1.msra.mxu0 %v789
    %799 = vmatprep.subr.mxu0 0.0
    %800 = vmatpush1.msra.mxu0 %v790
    %801 = vmatprep.subr.mxu0 0.0
    %802 = vmatpush1.msra.mxu0 %v791
    %803 = vmatprep.subr.mxu0 0.0
    %804 = vmatpush1.msra.mxu0 0.0
    %805 = vmatprep.subr.mxu0 0.0
    %806 = vmatpush1.msra.mxu0 0.0
    %807 = vmatprep.subr.mxu0 0.0
    %808 = vmatpush1.msra.mxu0 0.0
    %809 = vmatprep.subr.mxu0 0.0
    %810 = vmatpush1.msra.mxu0 0.0
    %811 = vmatprep.subr.mxu0 0.0
    %812 = vmatpush1.msra.mxu0 0.0
    %813 = vmatprep.subr.mxu0 0.0
    %814 = vmatpush1.msra.mxu0 0.0
    %815 = vmatprep.subr.mxu0 0.0
    %816 = vmatpush1.msra.mxu0 0.0
    %817 = vmatprep.subr.mxu0 0.0
    %818 = vmatpush1.msra.mxu0 0.0
    %819 = vmatprep.subr.mxu0 0.0
    %820 = vmatpush1.msra.mxu0 0.0
    %821 = vmatprep.subr.mxu0 0.0
    %822 = vmatpush1.msra.mxu0 0.0
    %823 = vmatprep.subr.mxu0 0.0
    %824 = vmatpush1.msra.mxu0 0.0
    %825 = vmatprep.subr.mxu0 0.0
    %826 = vmatpush1.msra.mxu0 0.0
    %827 = vmatprep.subr.mxu0 0.0
    %828 = vmatpush1.msra.mxu0 0.0
    %829 = vmatprep.subr.mxu0 0.0
    %830 = vmatpush1.msra.mxu0 0.0
    %831 = vmatprep.subr.mxu0 0.0
    %832 = vmatpush1.msra.mxu0 0.0
    %833 = vmatprep.subr.mxu0 0.0
    %834 = vmatpush1.msra.mxu0 0.0
    %835 = vmatprep.subr.mxu0 0.0
    %836 = vmatpush1.msra.mxu0 0.0
    %837 = vmatprep.subr.mxu0 0.0
    %838 = vmatpush1.msra.mxu0 0.0
    %839 = vmatprep.subr.mxu0 0.0
    %840 = vmatpush1.msra.mxu0 0.0
    %841 = vmatprep.subr.mxu0 0.0
    %842 = vmatpush1.msra.mxu0 0.0
    %843 = vmatprep.subr.mxu0 0.0
    %844 = vmatpush1.msra.mxu0 0.0
    %845 = vmatprep.subr.mxu0 0.0
    %846 = vmatpush1.msra.mxu0 0.0
    %847 = vmatprep.subr.mxu0 0.0
    %848 = vmatpush1.msra.mxu0 0.0
    %849 = vmatprep.subr.mxu0 0.0
    %850 = vmatpush1.msra.mxu0 0.0
    %851 = vmatprep.subr.mxu0 0.0
    %852 = vmatpush1.msra.mxu0 0.0
    %853 = vmatprep.subr.mxu0 0.0
    %854 = vmatpush1.msra.mxu0 0.0
    %855 = vmatprep.subr.mxu0 0.0
    %856 = vmatpush1.msra.mxu0 0.0
    %857 = vmatprep.subr.mxu0 0.0
    %858 = vmatpush1.msra.mxu0 0.0
    %859 = vmatprep.mubr.f32.mxu0 0.0
    %860 = vmatmul.mubr.f32.gmra.mrb[0].mxu0 %v793
    %v861 = vpop.f32.mrb[0].mxu0
    %v862 = vadd.f32 0.0, %v861
    %v863 = vpop.f32.mrb[0].mxu0
    %864 = vdwg.mxu0
    %865 = vmatprep.subr.mxu0 0.0
    %866 = vmatpush1.msra.mxu0 %v784
    %867 = vmatprep.subr.mxu0 0.0
    %868 = vmatpush1.msra.mxu0 %v785
    %869 = vmatprep.subr.mxu0 0.0
    %870 = vmatpush1.msra.mxu0 %v786
    %871 = vmatprep.subr.mxu0 0.0
    %872 = vmatpush1.msra.mxu0 %v787
    %873 = vmatprep.subr.mxu0 0.0
    %874 = vmatpush1.msra.mxu0 0.0
    %875 = vmatprep.subr.mxu0 0.0
    %876 = vmatpush1.msra.mxu0 0.0
    %877 = vmatprep.subr.mxu0 0.0
    %878 = vmatpush1.msra.mxu0 0.0
    %879 = vmatprep.subr.mxu0 0.0
    %880 = vmatpush1.msra.mxu0 0.0
    %881 = vmatprep.subr.mxu0 0.0
    %882 = vmatpush1.msra.mxu0 0.0
    %883 = vmatprep.subr.mxu0 0.0
    %884 = vmatpush1.msra.mxu0 0.0
    %885 = vmatprep.subr.mxu0 0.0
    %886 = vmatpush1.msra.mxu0 0.0
    %887 = vmatprep.subr.mxu0 0.0
    %888 = vmatpush1.msra.mxu0 0.0
    %889 = vmatprep.subr.mxu0 0.0
    %890 = vmatpush1.msra.mxu0 0.0
    %891 = vmatprep.subr.mxu0 0.0
    %892 = vmatpush1.msra.mxu0 0.0
    %893 = vmatprep.subr.mxu0 0.0
    %894 = vmatpush1.msra.mxu0 0.0
    %895 = vmatprep.subr.mxu0 0.0
    %896 = vmatpush1.msra.mxu0 0.0
    %897 = vmatprep.subr.mxu0 0.0
    %898 = vmatpush1.msra.mxu0 0.0
    %899 = vmatprep.subr.mxu0 0.0
    %900 = vmatpush1.msra.mxu0 0.0
    %901 = vmatprep.subr.mxu0 0.0
    %902 = vmatpush1.msra.mxu0 0.0
    %903 = vmatprep.subr.mxu0 0.0
    %904 = vmatpush1.msra.mxu0 0.0
    %905 = vmatprep.subr.mxu0 0.0
    %906 = vmatpush1.msra.mxu0 0.0
    %907 = vmatprep.subr.mxu0 0.0
    %908 = vmatpush1.msra.mxu0 0.0
    %909 = vmatprep.subr.mxu0 0.0
    %910 = vmatpush1.msra.mxu0 0.0
    %911 = vmatprep.subr.mxu0 0.0
    %912 = vmatpush1.msra.mxu0 0.0
    %913 = vmatprep.subr.mxu0 0.0
    %914 = vmatpush1.msra.mxu0 0.0
    %915 = vmatprep.subr.mxu0 0.0
    %916 = vmatpush1.msra.mxu0 0.0
    %917 = vmatprep.subr.mxu0 0.0
    %918 = vmatpush1.msra.mxu0 0.0
    %919 = vmatprep.subr.mxu0 0.0
    %920 = vmatpush1.msra.mxu0 0.0
    %921 = vmatprep.subr.mxu0 0.0
    %922 = vmatpush1.msra.mxu0 0.0
    %923 = vmatprep.subr.mxu0 0.0
    %924 = vmatpush1.msra.mxu0 0.0
    %925 = vmatprep.subr.mxu0 0.0
    %926 = vmatpush1.msra.mxu0 0.0
    %927 = vmatprep.subr.mxu0 0.0
    %928 = vmatpush1.msra.mxu0 0.0
    %929 = vmatprep.mubr.f32.mxu0 0.0
    %930 = vmatmul.mubr.f32.gmra.mrb[0].mxu0 %v423
    %v931 = vpop.f32.mrb[0].mxu0
    %v932 = vadd.f32 %v862, %v931
    %v933 = vpop.f32.mrb[0].mxu0
    %934 = vdwg.mxu0
    %v935 = vld [vmem:[%s12 + $0x40] sm:$0xff]
    %v936 = vld [vmem:[%s12 + $0x48] sm:$0xff]
    %v937 = vld [vmem:[%s12 + $0x50] sm:$0xff]
    %v938 = vld [vmem:[%s12 + $0x58] sm:$0xff]
    %939 = vmatprep.subr.mxu0 0.0
    %940 = vmatpush1.msra.mxu0 %v935
    %941 = vmatprep.subr.mxu0 0.0
    %942 = vmatpush1.msra.mxu0 %v936
    %943 = vmatprep.subr.mxu0 0.0
    %944 = vmatpush1.msra.mxu0 %v937
    %945 = vmatprep.subr.mxu0 0.0
    %946 = vmatpush1.msra.mxu0 %v938
    %947 = vmatprep.subr.mxu0 0.0
    %948 = vmatpush1.msra.mxu0 0.0
    %949 = vmatprep.subr.mxu0 0.0
    %950 = vmatpush1.msra.mxu0 0.0
    %951 = vmatprep.subr.mxu0 0.0
    %952 = vmatpush1.msra.mxu0 0.0
    %953 = vmatprep.subr.mxu0 0.0
    %954 = vmatpush1.msra.mxu0 0.0
    %955 = vmatprep.subr.mxu0 0.0
    %956 = vmatpush1.msra.mxu0 0.0
    %957 = vmatprep.subr.mxu0 0.0
    %958 = vmatpush1.msra.mxu0 0.0
    %959 = vmatprep.subr.mxu0 0.0
    %960 = vmatpush1.msra.mxu0 0.0
    %961 = vmatprep.subr.mxu0 0.0
    %962 = vmatpush1.msra.mxu0 0.0
    %963 = vmatprep.subr.mxu0 0.0
    %964 = vmatpush1.msra.mxu0 0.0
    %965 = vmatprep.subr.mxu0 0.0
    %966 = vmatpush1.msra.mxu0 0.0
    %967 = vmatprep.subr.mxu0 0.0
    %968 = vmatpush1.msra.mxu0 0.0
    %969 = vmatprep.subr.mxu0 0.0
    %970 = vmatpush1.msra.mxu0 0.0
    %971 = vmatprep.subr.mxu0 0.0
    %972 = vmatpush1.msra.mxu0 0.0
    %973 = vmatprep.subr.mxu0 0.0
    %974 = vmatpush1.msra.mxu0 0.0
    %975 = vmatprep.subr.mxu0 0.0
    %976 = vmatpush1.msra.mxu0 0.0
    %977 = vmatprep.subr.mxu0 0.0
    %978 = vmatpush1.msra.mxu0 0.0
    %979 = vmatprep.subr.mxu0 0.0
    %980 = vmatpush1.msra.mxu0 0.0
    %981 = vmatprep.subr.mxu0 0.0
    %982 = vmatpush1.msra.mxu0 0.0
    %983 = vmatprep.subr.mxu0 0.0
    %984 = vmatpush1.msra.mxu0 0.0
    %985 = vmatprep.subr.mxu0 0.0
    %986 = vmatpush1.msra.mxu0 0.0
    %987 = vmatprep.subr.mxu0 0.0
    %988 = vmatpush1.msra.mxu0 0.0
    %989 = vmatprep.subr.mxu0 0.0
    %990 = vmatpush1.msra.mxu0 0.0
    %991 = vmatprep.subr.mxu0 0.0
    %992 = vmatpush1.msra.mxu0 0.0
    %993 = vmatprep.subr.mxu0 0.0
    %994 = vmatpush1.msra.mxu0 0.0
    %995 = vmatprep.subr.mxu0 0.0
    %996 = vmatpush1.msra.mxu0 0.0
    %997 = vmatprep.subr.mxu0 0.0
    %998 = vmatpush1.msra.mxu0 0.0
    %999 = vmatprep.subr.mxu0 0.0
    %1000 = vmatpush1.msra.mxu0 0.0
    %1001 = vmatprep.subr.mxu0 0.0
    %1002 = vmatpush1.msra.mxu0 0.0
    %1003 = vmatprep.mubr.f32.mxu0 0.0
    %1004 = vmatmul.mubr.f32.gmra.mrb[0].mxu0 %v79
    %v1005 = vpop.f32.mrb[0].mxu0
    %v1006 = vadd.f32 0.0, %v1005
    %v1007 = vpop.f32.mrb[0].mxu0
    %1008 = vdwg.mxu0
    %v1009 = vadd.f32 %v932, %v1006
    %v1010 = vld [vmem:[%s13] sm:$0x1]
    %v1012 = vlaneseq
    %v1013 = vshrl.u32 %v1012, 7
    %v1014 = vsub.s32 0, %v1013
    %v1015 = vrot.slane %v1010, %v1014
    %v1017 = vadd.f32 %v1009, %v1015
    %v1018 = vxor.u32 %v1017, 2147483648
    %v1019 = vmul.f32 %v1018, 1.442695
    %v1020 = vpow.pop %v1019
    %v1021 = vadd.f32 %v1020, 1.0
    %v1022 = vrcp.pop %v1021
    %v1023 = vmul.f32 1.0, %v1022
    %v1024 = vmul.f32 %v1023, 0.0
    %v1025 = vtanh.pop %v1017
    %1027 = vrot.lane.b32.xlu0 %v1025, 64
    %v1028 = vpop.permute.xlu0 %1027
    %v1030 = vmul.f32 %v1023, %v1028
    %1032 = vrot.lane.b32.xlu0 %v1030, 32
    %v1033 = vpop.permute.xlu0 %1032
    %v1035 = vadd.f32 %v1024, %v1033
    %v1036 = vtanh.pop %v1035
    %1038 = vrot.lane.b32.xlu0 %v1036, 64
    %v1039 = vpop.permute.xlu0 %1038
    %v1041 = vmul.f32 %v1023, %v1039
    %1043 = vrot.lane.b32.xlu0 %v68, 96
    %v1044 = vpop.permute.xlu0 %1043
    %v1046 = vmul.f32 %v1041, %v1044
    %v1047 = vld [vmem:[%s14] sm:$0xff]
    %v1048 = vld [vmem:[%s14 + $0x8] sm:$0xff]
    %v1049 = vld [vmem:[%s14 + $0x10] sm:$0xff]
    %v1050 = vld [vmem:[%s14 + $0x18] sm:$0xff]
    %v1051 = vld [vmem:[%s14 + $0x20] sm:$0xff]
    %v1052 = vld [vmem:[%s14 + $0x28] sm:$0xff]
    %v1053 = vld [vmem:[%s14 + $0x30] sm:$0xff]
    %v1054 = vld [vmem:[%s14 + $0x38] sm:$0xff]
    %1055 = vmatprep.subr.mxu0 0.0
    %1056 = vmatpush1.msra.mxu0 %v1051
    %1057 = vmatprep.subr.mxu0 0.0
    %1058 = vmatpush1.msra.mxu0 %v1052
    %1059 = vmatprep.subr.mxu0 0.0
    %1060 = vmatpush1.msra.mxu0 %v1053
    %1061 = vmatprep.subr.mxu0 0.0
    %1062 = vmatpush1.msra.mxu0 %v1054
    %1063 = vmatprep.subr.mxu0 0.0
    %1064 = vmatpush1.msra.mxu0 0.0
    %1065 = vmatprep.subr.mxu0 0.0
    %1066 = vmatpush1.msra.mxu0 0.0
    %1067 = vmatprep.subr.mxu0 0.0
    %1068 = vmatpush1.msra.mxu0 0.0
    %1069 = vmatprep.subr.mxu0 0.0
    %1070 = vmatpush1.msra.mxu0 0.0
    %1071 = vmatprep.subr.mxu0 0.0
    %1072 = vmatpush1.msra.mxu0 0.0
    %1073 = vmatprep.subr.mxu0 0.0
    %1074 = vmatpush1.msra.mxu0 0.0
    %1075 = vmatprep.subr.mxu0 0.0
    %1076 = vmatpush1.msra.mxu0 0.0
    %1077 = vmatprep.subr.mxu0 0.0
    %1078 = vmatpush1.msra.mxu0 0.0
    %1079 = vmatprep.subr.mxu0 0.0
    %1080 = vmatpush1.msra.mxu0 0.0
    %1081 = vmatprep.subr.mxu0 0.0
    %1082 = vmatpush1.msra.mxu0 0.0
    %1083 = vmatprep.subr.mxu0 0.0
    %1084 = vmatpush1.msra.mxu0 0.0
    %1085 = vmatprep.subr.mxu0 0.0
    %1086 = vmatpush1.msra.mxu0 0.0
    %1087 = vmatprep.subr.mxu0 0.0
    %1088 = vmatpush1.msra.mxu0 0.0
    %1089 = vmatprep.subr.mxu0 0.0
    %1090 = vmatpush1.msra.mxu0 0.0
    %1091 = vmatprep.subr.mxu0 0.0
    %1092 = vmatpush1.msra.mxu0 0.0
    %1093 = vmatprep.subr.mxu0 0.0
    %1094 = vmatpush1.msra.mxu0 0.0
    %1095 = vmatprep.subr.mxu0 0.0
    %1096 = vmatpush1.msra.mxu0 0.0
    %1097 = vmatprep.subr.mxu0 0.0
    %1098 = vmatpush1.msra.mxu0 0.0
    %1099 = vmatprep.subr.mxu0 0.0
    %1100 = vmatpush1.msra.mxu0 0.0
    %1101 = vmatprep.subr.mxu0 0.0
    %1102 = vmatpush1.msra.mxu0 0.0
    %1103 = vmatprep.subr.mxu0 0.0
    %1104 = vmatpush1.msra.mxu0 0.0
    %1105 = vmatprep.subr.mxu0 0.0
    %1106 = vmatpush1.msra.mxu0 0.0
    %1107 = vmatprep.subr.mxu0 0.0
    %1108 = vmatpush1.msra.mxu0 0.0
    %1109 = vmatprep.subr.mxu0 0.0
    %1110 = vmatpush1.msra.mxu0 0.0
    %1111 = vmatprep.subr.mxu0 0.0
    %1112 = vmatpush1.msra.mxu0 0.0
    %1113 = vmatprep.subr.mxu0 0.0
    %1114 = vmatpush1.msra.mxu0 0.0
    %1115 = vmatprep.subr.mxu0 0.0
    %1116 = vmatpush1.msra.mxu0 0.0
    %1117 = vmatprep.subr.mxu0 0.0
    %1118 = vmatpush1.msra.mxu0 0.0
    %1119 = vmatprep.mubr.f32.mxu0 0.0
    %1120 = vmatmul.mubr.f32.gmra.mrb[0].mxu0 %v793
    %v1121 = vpop.f32.mrb[0].mxu0
    %v1122 = vadd.f32 0.0, %v1121
    %v1123 = vpop.f32.mrb[0].mxu0
    %1124 = vdwg.mxu0
    %1126 = vrot.lane.b32.xlu0 %v1046, 32
    %v1127 = vpop.permute.xlu0 %1126
    %v1128 = vsel %vm77, %v1127, 0
    %1130 = vmatprep.subr.mxu0 0.0
    %1131 = vmatpush1.msra.mxu0 %v1047
    %1132 = vmatprep.subr.mxu0 0.0
    %1133 = vmatpush1.msra.mxu0 %v1048
    %1134 = vmatprep.subr.mxu0 0.0
    %1135 = vmatpush1.msra.mxu0 %v1049
    %1136 = vmatprep.subr.mxu0 0.0
    %1137 = vmatpush1.msra.mxu0 %v1050
    %1138 = vmatprep.subr.mxu0 0.0
    %1139 = vmatpush1.msra.mxu0 0.0
    %1140 = vmatprep.subr.mxu0 0.0
    %1141 = vmatpush1.msra.mxu0 0.0
    %1142 = vmatprep.subr.mxu0 0.0
    %1143 = vmatpush1.msra.mxu0 0.0
    %1144 = vmatprep.subr.mxu0 0.0
    %1145 = vmatpush1.msra.mxu0 0.0
    %1146 = vmatprep.subr.mxu0 0.0
    %1147 = vmatpush1.msra.mxu0 0.0
    %1148 = vmatprep.subr.mxu0 0.0
    %1149 = vmatpush1.msra.mxu0 0.0
    %1150 = vmatprep.subr.mxu0 0.0
    %1151 = vmatpush1.msra.mxu0 0.0
    %1152 = vmatprep.subr.mxu0 0.0
    %1153 = vmatpush1.msra.mxu0 0.0
    %1154 = vmatprep.subr.mxu0 0.0
    %1155 = vmatpush1.msra.mxu0 0.0
    %1156 = vmatprep.subr.mxu0 0.0
    %1157 = vmatpush1.msra.mxu0 0.0
    %1158 = vmatprep.subr.mxu0 0.0
    %1159 = vmatpush1.msra.mxu0 0.0
    %1160 = vmatprep.subr.mxu0 0.0
    %1161 = vmatpush1.msra.mxu0 0.0
    %1162 = vmatprep.subr.mxu0 0.0
    %1163 = vmatpush1.msra.mxu0 0.0
    %1164 = vmatprep.subr.mxu0 0.0
    %1165 = vmatpush1.msra.mxu0 0.0
    %1166 = vmatprep.subr.mxu0 0.0
    %1167 = vmatpush1.msra.mxu0 0.0
    %1168 = vmatprep.subr.mxu0 0.0
    %1169 = vmatpush1.msra.mxu0 0.0
    %1170 = vmatprep.subr.mxu0 0.0
    %1171 = vmatpush1.msra.mxu0 0.0
    %1172 = vmatprep.subr.mxu0 0.0
    %1173 = vmatpush1.msra.mxu0 0.0
    %1174 = vmatprep.subr.mxu0 0.0
    %1175 = vmatpush1.msra.mxu0 0.0
    %1176 = vmatprep.subr.mxu0 0.0
    %1177 = vmatpush1.msra.mxu0 0.0
    %1178 = vmatprep.subr.mxu0 0.0
    %1179 = vmatpush1.msra.mxu0 0.0
    %1180 = vmatprep.subr.mxu0 0.0
    %1181 = vmatpush1.msra.mxu0 0.0
    %1182 = vmatprep.subr.mxu0 0.0
    %1183 = vmatpush1.msra.mxu0 0.0
    %1184 = vmatprep.subr.mxu0 0.0
    %1185 = vmatpush1.msra.mxu0 0.0
    %1186 = vmatprep.subr.mxu0 0.0
    %1187 = vmatpush1.msra.mxu0 0.0
    %1188 = vmatprep.subr.mxu0 0.0
    %1189 = vmatpush1.msra.mxu0 0.0
    %1190 = vmatprep.subr.mxu0 0.0
    %1191 = vmatpush1.msra.mxu0 0.0
    %1192 = vmatprep.subr.mxu0 0.0
    %1193 = vmatpush1.msra.mxu0 0.0
    %1194 = vmatprep.mubr.f32.mxu0 0.0
    %1195 = vmatmul.mubr.f32.gmra.mrb[0].mxu0 %v1128
    %v1196 = vpop.f32.mrb[0].mxu0
    %v1197 = vadd.f32 %v1122, %v1196
    %v1198 = vpop.f32.mrb[0].mxu0
    %1199 = vdwg.mxu0
    %v1200 = vld [vmem:[%s15] sm:$0x1]
    %v1202 = vlaneseq
    %v1203 = vshrl.u32 %v1202, 7
    %v1204 = vsub.s32 0, %v1203
    %v1205 = vrot.slane %v1200, %v1204
    %v1207 = vadd.f32 %v1197, %v1205
    %1208 = vst.msk [vmem:[#allocation2] sm:$0x3] %vm690, %v1207
    %1210 = vrot.lane.b32.xlu0 %v1207, 120
    %v1211 = vpop.permute.xlu0 %1210
    %vm1213 = vcmask 1024
    %1214 = vst.msk [vmem:[%s17] sm:$0x3] %vm1213, %v1211
    %1215 = vst.msk [vmem:[#allocation4] sm:$0x3] %vm690, %v701
    %s1216 = scalar_lea.vmem %s0, 2
    %v1217 = vld [vmem:[%s1216] sm:$0x3]
    %s1218 = scalar_lea.vmem %s1, 2
    %v1219 = vld [vmem:[%s1218] sm:$0x3]
    %s1220 = scalar_lea.vmem %s2, 2
    %v1221 = vld [vmem:[%s1220] sm:$0x3]
    %v1222 = vld [vmem:[%s6] sm:$0xff]
    %v1223 = vld [vmem:[%s6 + $0x8] sm:$0xff]
    %v1224 = vld [vmem:[%s6 + $0x10] sm:$0xff]
    %v1225 = vld [vmem:[%s6 + $0x18] sm:$0xff]
    %v1226 = vld [vmem:[%s6 + $0x20] sm:$0xff]
    %v1227 = vld [vmem:[%s6 + $0x28] sm:$0xff]
    %v1228 = vld [vmem:[%s6 + $0x30] sm:$0xff]
    %v1229 = vld [vmem:[%s6 + $0x38] sm:$0xff]
    %1230 = vmatprep.subr.mxu0 0.0
    %1231 = vmatpush1.msra.mxu0 %v1226
    %1232 = vmatprep.subr.mxu0 0.0
    %1233 = vmatpush1.msra.mxu0 %v1227
    %1234 = vmatprep.subr.mxu0 0.0
    %1235 = vmatpush1.msra.mxu0 %v1228
    %1236 = vmatprep.subr.mxu0 0.0
    %1237 = vmatpush1.msra.mxu0 %v1229
    %1238 = vmatprep.subr.mxu0 0.0
    %1239 = vmatpush1.msra.mxu0 0.0
    %1240 = vmatprep.subr.mxu0 0.0
    %1241 = vmatpush1.msra.mxu0 0.0
    %1242 = vmatprep.subr.mxu0 0.0
    %1243 = vmatpush1.msra.mxu0 0.0
    %1244 = vmatprep.subr.mxu0 0.0
    %1245 = vmatpush1.msra.mxu0 0.0
    %1246 = vmatprep.subr.mxu0 0.0
    %1247 = vmatpush1.msra.mxu0 0.0
    %1248 = vmatprep.subr.mxu0 0.0
    %1249 = vmatpush1.msra.mxu0 0.0
    %1250 = vmatprep.subr.mxu0 0.0
    %1251 = vmatpush1.msra.mxu0 0.0
    %1252 = vmatprep.subr.mxu0 0.0
    %1253 = vmatpush1.msra.mxu0 0.0
    %1254 = vmatprep.subr.mxu0 0.0
    %1255 = vmatpush1.msra.mxu0 0.0
    %1256 = vmatprep.subr.mxu0 0.0
    %1257 = vmatpush1.msra.mxu0 0.0
    %1258 = vmatprep.subr.mxu0 0.0
    %1259 = vmatpush1.msra.mxu0 0.0
    %1260 = vmatprep.subr.mxu0 0.0
    %1261 = vmatpush1.msra.mxu0 0.0
    %1262 = vmatprep.subr.mxu0 0.0
    %1263 = vmatpush1.msra.mxu0 0.0
    %1264 = vmatprep.subr.mxu0 0.0
    %1265 = vmatpush1.msra.mxu0 0.0
    %1266 = vmatprep.subr.mxu0 0.0
    %1267 = vmatpush1.msra.mxu0 0.0
    %1268 = vmatprep.subr.mxu0 0.0
    %1269 = vmatpush1.msra.mxu0 0.0
    %1270 = vmatprep.subr.mxu0 0.0
    %1271 = vmatpush1.msra.mxu0 0.0
    %1272 = vmatprep.subr.mxu0 0.0
    %1273 = vmatpush1.msra.mxu0 0.0
    %1274 = vmatprep.subr.mxu0 0.0
    %1275 = vmatpush1.msra.mxu0 0.0
    %1276 = vmatprep.subr.mxu0 0.0
    %1277 = vmatpush1.msra.mxu0 0.0
    %1278 = vmatprep.subr.mxu0 0.0
    %1279 = vmatpush1.msra.mxu0 0.0
    %1280 = vmatprep.subr.mxu0 0.0
    %1281 = vmatpush1.msra.mxu0 0.0
    %1282 = vmatprep.subr.mxu0 0.0
    %1283 = vmatpush1.msra.mxu0 0.0
    %1284 = vmatprep.subr.mxu0 0.0
    %1285 = vmatpush1.msra.mxu0 0.0
    %1286 = vmatprep.subr.mxu0 0.0
    %1287 = vmatpush1.msra.mxu0 0.0
    %1288 = vmatprep.subr.mxu0 0.0
    %1289 = vmatpush1.msra.mxu0 0.0
    %1290 = vmatprep.subr.mxu0 0.0
    %1291 = vmatpush1.msra.mxu0 0.0
    %1292 = vmatprep.subr.mxu0 0.0
    %1293 = vmatpush1.msra.mxu0 0.0
    %1294 = vmatprep.mubr.f32.mxu0 0.0
    %1295 = vmatmul.mubr.f32.gmra.mrb[0].mxu0 %v793
    %v1296 = vpop.f32.mrb[0].mxu0
    %v1297 = vadd.f32 0.0, %v1296
    %v1298 = vpop.f32.mrb[0].mxu0
    %1299 = vdwg.mxu0
    %v1301 = vsel %vm77, %v1217, 0
    %1303 = vmatprep.subr.mxu0 0.0
    %1304 = vmatpush1.msra.mxu0 %v1222
    %1305 = vmatprep.subr.mxu0 0.0
    %1306 = vmatpush1.msra.mxu0 %v1223
    %1307 = vmatprep.subr.mxu0 0.0
    %1308 = vmatpush1.msra.mxu0 %v1224
    %1309 = vmatprep.subr.mxu0 0.0
    %1310 = vmatpush1.msra.mxu0 %v1225
    %1311 = vmatprep.subr.mxu0 0.0
    %1312 = vmatpush1.msra.mxu0 0.0
    %1313 = vmatprep.subr.mxu0 0.0
    %1314 = vmatpush1.msra.mxu0 0.0
    %1315 = vmatprep.subr.mxu0 0.0
    %1316 = vmatpush1.msra.mxu0 0.0
    %1317 = vmatprep.subr.mxu0 0.0
    %1318 = vmatpush1.msra.mxu0 0.0
    %1319 = vmatprep.subr.mxu0 0.0
    %1320 = vmatpush1.msra.mxu0 0.0
    %1321 = vmatprep.subr.mxu0 0.0
    %1322 = vmatpush1.msra.mxu0 0.0
    %1323 = vmatprep.subr.mxu0 0.0
    %1324 = vmatpush1.msra.mxu0 0.0
    %1325 = vmatprep.subr.mxu0 0.0
    %1326 = vmatpush1.msra.mxu0 0.0
    %1327 = vmatprep.subr.mxu0 0.0
    %1328 = vmatpush1.msra.mxu0 0.0
    %1329 = vmatprep.subr.mxu0 0.0
    %1330 = vmatpush1.msra.mxu0 0.0
    %1331 = vmatprep.subr.mxu0 0.0
    %1332 = vmatpush1.msra.mxu0 0.0
    %1333 = vmatprep.subr.mxu0 0.0
    %1334 = vmatpush1.msra.mxu0 0.0
    %1335 = vmatprep.subr.mxu0 0.0
    %1336 = vmatpush1.msra.mxu0 0.0
    %1337 = vmatprep.subr.mxu0 0.0
    %1338 = vmatpush1.msra.mxu0 0.0
    %1339 = vmatprep.subr.mxu0 0.0
    %1340 = vmatpush1.msra.mxu0 0.0
    %1341 = vmatprep.subr.mxu0 0.0
    %1342 = vmatpush1.msra.mxu0 0.0
    %1343 = vmatprep.subr.mxu0 0.0
    %1344 = vmatpush1.msra.mxu0 0.0
    %1345 = vmatprep.subr.mxu0 0.0
    %1346 = vmatpush1.msra.mxu0 0.0
    %1347 = vmatprep.subr.mxu0 0.0
    %1348 = vmatpush1.msra.mxu0 0.0
    %1349 = vmatprep.subr.mxu0 0.0
    %1350 = vmatpush1.msra.mxu0 0.0
    %1351 = vmatprep.subr.mxu0 0.0
    %1352 = vmatpush1.msra.mxu0 0.0
    %1353 = vmatprep.subr.mxu0 0.0
    %1354 = vmatpush1.msra.mxu0 0.0
    %1355 = vmatprep.subr.mxu0 0.0
    %1356 = vmatpush1.msra.mxu0 0.0
    %1357 = vmatprep.subr.mxu0 0.0
    %1358 = vmatpush1.msra.mxu0 0.0
    %1359 = vmatprep.subr.mxu0 0.0
    %1360 = vmatpush1.msra.mxu0 0.0
    %1361 = vmatprep.subr.mxu0 0.0
    %1362 = vmatpush1.msra.mxu0 0.0
    %1363 = vmatprep.subr.mxu0 0.0
    %1364 = vmatpush1.msra.mxu0 0.0
    %1365 = vmatprep.subr.mxu0 0.0
    %1366 = vmatpush1.msra.mxu0 0.0
    %1367 = vmatprep.mubr.f32.mxu0 0.0
    %1368 = vmatmul.mubr.f32.gmra.mrb[0].mxu0 %v1301
    %v1369 = vpop.f32.mrb[0].mxu0
    %v1370 = vadd.f32 %v1297, %v1369
    %v1371 = vpop.f32.mrb[0].mxu0
    %1372 = vdwg.mxu0
    %v1373 = vld [vmem:[%s6 + $0x40] sm:$0xff]
    %v1374 = vld [vmem:[%s6 + $0x48] sm:$0xff]
    %v1375 = vld [vmem:[%s6 + $0x50] sm:$0xff]
    %v1376 = vld [vmem:[%s6 + $0x58] sm:$0xff]
    %1377 = vmatprep.subr.mxu0 0.0
    %1378 = vmatpush1.msra.mxu0 %v1373
    %1379 = vmatprep.subr.mxu0 0.0
    %1380 = vmatpush1.msra.mxu0 %v1374
    %1381 = vmatprep.subr.mxu0 0.0
    %1382 = vmatpush1.msra.mxu0 %v1375
    %1383 = vmatprep.subr.mxu0 0.0
    %1384 = vmatpush1.msra.mxu0 %v1376
    %1385 = vmatprep.subr.mxu0 0.0
    %1386 = vmatpush1.msra.mxu0 0.0
    %1387 = vmatprep.subr.mxu0 0.0
    %1388 = vmatpush1.msra.mxu0 0.0
    %1389 = vmatprep.subr.mxu0 0.0
    %1390 = vmatpush1.msra.mxu0 0.0
    %1391 = vmatprep.subr.mxu0 0.0
    %1392 = vmatpush1.msra.mxu0 0.0
    %1393 = vmatprep.subr.mxu0 0.0
    %1394 = vmatpush1.msra.mxu0 0.0
    %1395 = vmatprep.subr.mxu0 0.0
    %1396 = vmatpush1.msra.mxu0 0.0
    %1397 = vmatprep.subr.mxu0 0.0
    %1398 = vmatpush1.msra.mxu0 0.0
    %1399 = vmatprep.subr.mxu0 0.0
    %1400 = vmatpush1.msra.mxu0 0.0
    %1401 = vmatprep.subr.mxu0 0.0
    %1402 = vmatpush1.msra.mxu0 0.0
    %1403 = vmatprep.subr.mxu0 0.0
    %1404 = vmatpush1.msra.mxu0 0.0
    %1405 = vmatprep.subr.mxu0 0.0
    %1406 = vmatpush1.msra.mxu0 0.0
    %1407 = vmatprep.subr.mxu0 0.0
    %1408 = vmatpush1.msra.mxu0 0.0
    %1409 = vmatprep.subr.mxu0 0.0
    %1410 = vmatpush1.msra.mxu0 0.0
    %1411 = vmatprep.subr.mxu0 0.0
    %1412 = vmatpush1.msra.mxu0 0.0
    %1413 = vmatprep.subr.mxu0 0.0
    %1414 = vmatpush1.msra.mxu0 0.0
    %1415 = vmatprep.subr.mxu0 0.0
    %1416 = vmatpush1.msra.mxu0 0.0
    %1417 = vmatprep.subr.mxu0 0.0
    %1418 = vmatpush1.msra.mxu0 0.0
    %1419 = vmatprep.subr.mxu0 0.0
    %1420 = vmatpush1.msra.mxu0 0.0
    %1421 = vmatprep.subr.mxu0 0.0
    %1422 = vmatpush1.msra.mxu0 0.0
    %1423 = vmatprep.subr.mxu0 0.0
    %1424 = vmatpush1.msra.mxu0 0.0
    %1425 = vmatprep.subr.mxu0 0.0
    %1426 = vmatpush1.msra.mxu0 0.0
    %1427 = vmatprep.subr.mxu0 0.0
    %1428 = vmatpush1.msra.mxu0 0.0
    %1429 = vmatprep.subr.mxu0 0.0
    %1430 = vmatpush1.msra.mxu0 0.0
    %1431 = vmatprep.subr.mxu0 0.0
    %1432 = vmatpush1.msra.mxu0 0.0
    %1433 = vmatprep.subr.mxu0 0.0
    %1434 = vmatpush1.msra.mxu0 0.0
    %1435 = vmatprep.subr.mxu0 0.0
    %1436 = vmatpush1.msra.mxu0 0.0
    %1437 = vmatprep.subr.mxu0 0.0
    %1438 = vmatpush1.msra.mxu0 0.0
    %1439 = vmatprep.subr.mxu0 0.0
    %1440 = vmatpush1.msra.mxu0 0.0
    %1441 = vmatprep.mubr.f32.mxu0 0.0
    %1442 = vmatmul.mubr.f32.gmra.mrb[0].mxu0 %v423
    %v1443 = vpop.f32.mrb[0].mxu0
    %v1444 = vadd.f32 0.0, %v1443
    %v1445 = vpop.f32.mrb[0].mxu0
    %1446 = vdwg.mxu0
    %v1447 = vadd.f32 %v1370, %v1444
    %v1448 = vld [vmem:[%s7] sm:$0x1]
    %v1450 = vlaneseq
    %v1451 = vshrl.u32 %v1450, 7
    %v1452 = vsub.s32 0, %v1451
    %v1453 = vrot.slane %v1448, %v1452
    %v1455 = vadd.f32 %v1447, %v1453
    %v1456 = vxor.u32 %v1455, 2147483648
    %v1457 = vmul.f32 %v1456, 1.442695
    %v1458 = vpow.pop %v1457
    %v1459 = vadd.f32 %v1458, 1.0
    %v1460 = vrcp.pop %v1459
    %v1461 = vmul.f32 1.0, %v1460
    %v1462 = vmul.f32 %v1461, %v324
    %v1463 = vtanh.pop %v1455
    %1465 = vrot.lane.b32.xlu0 %v1463, 64
    %v1466 = vpop.permute.xlu0 %1465
    %v1468 = vmul.f32 %v1461, %v1466
    %1470 = vrot.lane.b32.xlu0 %v1468, 32
    %v1471 = vpop.permute.xlu0 %1470
    %v1473 = vadd.f32 %v1462, %v1471
    %v1474 = vtanh.pop %v1473
    %1476 = vrot.lane.b32.xlu0 %v1474, 64
    %v1477 = vpop.permute.xlu0 %1476
    %v1479 = vmul.f32 %v1461, %v1477
    %1481 = vrot.lane.b32.xlu0 %v1219, 96
    %v1482 = vpop.permute.xlu0 %1481
    %v1484 = vmul.f32 %v1479, %v1482
    %v1485 = vld [vmem:[%s8] sm:$0xff]
    %v1486 = vld [vmem:[%s8 + $0x8] sm:$0xff]
    %v1487 = vld [vmem:[%s8 + $0x10] sm:$0xff]
    %v1488 = vld [vmem:[%s8 + $0x18] sm:$0xff]
    %v1489 = vld [vmem:[%s8 + $0x20] sm:$0xff]
    %v1490 = vld [vmem:[%s8 + $0x28] sm:$0xff]
    %v1491 = vld [vmem:[%s8 + $0x30] sm:$0xff]
    %v1492 = vld [vmem:[%s8 + $0x38] sm:$0xff]
    %v1493 = vld [vmem:[%s9] sm:$0xff]
    %v1494 = vld [vmem:[%s9 + $0x8] sm:$0xff]
    %1495 = vmatprep.subr.mxu0 %v1494
    %1496 = vmatpush1.msra.mxu0 %v1493
    %1497 = vmatprep.subr.mxu0 0.0
    %1498 = vmatpush1.msra.mxu0 0.0
    %1499 = vmatprep.subr.mxu0 0.0
    %1500 = vmatpush1.msra.mxu0 0.0
    %1501 = vmatprep.subr.mxu0 0.0
    %1502 = vmatpush1.msra.mxu0 0.0
    %1503 = vmatprep.subr.mxu0 0.0
    %1504 = vmatpush1.msra.mxu0 0.0
    %1505 = vmatprep.subr.mxu0 0.0
    %1506 = vmatpush1.msra.mxu0 0.0
    %1507 = vmatprep.subr.mxu0 0.0
    %1508 = vmatpush1.msra.mxu0 0.0
    %1509 = vmatprep.subr.mxu0 0.0
    %1510 = vmatpush1.msra.mxu0 0.0
    %1511 = vmatprep.subr.mxu0 0.0
    %1512 = vmatpush1.msra.mxu0 0.0
    %1513 = vmatprep.subr.mxu0 0.0
    %1514 = vmatpush1.msra.mxu0 0.0
    %1515 = vmatprep.subr.mxu0 0.0
    %1516 = vmatpush1.msra.mxu0 0.0
    %1517 = vmatprep.subr.mxu0 0.0
    %1518 = vmatpush1.msra.mxu0 0.0
    %1519 = vmatprep.subr.mxu0 0.0
    %1520 = vmatpush1.msra.mxu0 0.0
    %1521 = vmatprep.subr.mxu0 0.0
    %1522 = vmatpush1.msra.mxu0 0.0
    %1523 = vmatprep.subr.mxu0 0.0
    %1524 = vmatpush1.msra.mxu0 0.0
    %1525 = vmatprep.subr.mxu0 0.0
    %1526 = vmatpush1.msra.mxu0 0.0
    %1527 = vmatprep.subr.mxu0 0.0
    %1528 = vmatpush1.msra.mxu0 0.0
    %1529 = vmatprep.subr.mxu0 0.0
    %1530 = vmatpush1.msra.mxu0 0.0
    %1531 = vmatprep.subr.mxu0 0.0
    %1532 = vmatpush1.msra.mxu0 0.0
    %1533 = vmatprep.subr.mxu0 0.0
    %1534 = vmatpush1.msra.mxu0 0.0
    %1535 = vmatprep.subr.mxu0 0.0
    %1536 = vmatpush1.msra.mxu0 0.0
    %1537 = vmatprep.subr.mxu0 0.0
    %1538 = vmatpush1.msra.mxu0 0.0
    %1539 = vmatprep.subr.mxu0 0.0
    %1540 = vmatpush1.msra.mxu0 0.0
    %1541 = vmatprep.subr.mxu0 0.0
    %1542 = vmatpush1.msra.mxu0 0.0
    %1543 = vmatprep.subr.mxu0 0.0
    %1544 = vmatpush1.msra.mxu0 0.0
    %1545 = vmatprep.subr.mxu0 0.0
    %1546 = vmatpush1.msra.mxu0 0.0
    %1547 = vmatprep.subr.mxu0 0.0
    %1548 = vmatpush1.msra.mxu0 0.0
    %1549 = vmatprep.subr.mxu0 0.0
    %1550 = vmatpush1.msra.mxu0 0.0
    %1551 = vmatprep.subr.mxu0 0.0
    %1552 = vmatpush1.msra.mxu0 0.0
    %1553 = vmatprep.subr.mxu0 0.0
    %1554 = vmatpush1.msra.mxu0 0.0
    %1555 = vmatprep.subr.mxu0 0.0
    %1556 = vmatpush1.msra.mxu0 0.0
    %1557 = vmatprep.subr.mxu0 0.0
    %1558 = vmatpush1.msra.mxu0 0.0
    %1559 = vmatprep.mubr.f32.mxu0 0.0
    %1560 = vmatmul.mubr.f32.gmra.mrb[0].mxu0 %v705
    %v1561 = vpop.f32.mrb[0].mxu0
    %v1562 = vadd.f32 0.0, %v1561
    %v1563 = vpop.f32.mrb[0].mxu0
    %v1564 = vadd.f32 0.0, %v1563
    %1565 = vdwg.mxu0
    %1567 = vrot.lane.b32.xlu0 %v1484, 32
    %v1568 = vpop.permute.xlu0 %1567
    %v1569 = vsel %vm77, %v1568, 0
    %1571 = vmatprep.subr.mxu0 %v1486
    %1572 = vmatpush1.msra.mxu0 %v1485
    %1573 = vmatprep.subr.mxu0 %v1488
    %1574 = vmatpush1.msra.mxu0 %v1487
    %1575 = vmatprep.subr.mxu0 %v1490
    %1576 = vmatpush1.msra.mxu0 %v1489
    %1577 = vmatprep.subr.mxu0 %v1492
    %1578 = vmatpush1.msra.mxu0 %v1491
    %1579 = vmatprep.subr.mxu0 0.0
    %1580 = vmatpush1.msra.mxu0 0.0
    %1581 = vmatprep.subr.mxu0 0.0
    %1582 = vmatpush1.msra.mxu0 0.0
    %1583 = vmatprep.subr.mxu0 0.0
    %1584 = vmatpush1.msra.mxu0 0.0
    %1585 = vmatprep.subr.mxu0 0.0
    %1586 = vmatpush1.msra.mxu0 0.0
    %1587 = vmatprep.subr.mxu0 0.0
    %1588 = vmatpush1.msra.mxu0 0.0
    %1589 = vmatprep.subr.mxu0 0.0
    %1590 = vmatpush1.msra.mxu0 0.0
    %1591 = vmatprep.subr.mxu0 0.0
    %1592 = vmatpush1.msra.mxu0 0.0
    %1593 = vmatprep.subr.mxu0 0.0
    %1594 = vmatpush1.msra.mxu0 0.0
    %1595 = vmatprep.subr.mxu0 0.0
    %1596 = vmatpush1.msra.mxu0 0.0
    %1597 = vmatprep.subr.mxu0 0.0
    %1598 = vmatpush1.msra.mxu0 0.0
    %1599 = vmatprep.subr.mxu0 0.0
    %1600 = vmatpush1.msra.mxu0 0.0
    %1601 = vmatprep.subr.mxu0 0.0
    %1602 = vmatpush1.msra.mxu0 0.0
    %1603 = vmatprep.subr.mxu0 0.0
    %1604 = vmatpush1.msra.mxu0 0.0
    %1605 = vmatprep.subr.mxu0 0.0
    %1606 = vmatpush1.msra.mxu0 0.0
    %1607 = vmatprep.subr.mxu0 0.0
    %1608 = vmatpush1.msra.mxu0 0.0
    %1609 = vmatprep.subr.mxu0 0.0
    %1610 = vmatpush1.msra.mxu0 0.0
    %1611 = vmatprep.subr.mxu0 0.0
    %1612 = vmatpush1.msra.mxu0 0.0
    %1613 = vmatprep.subr.mxu0 0.0
    %1614 = vmatpush1.msra.mxu0 0.0
    %1615 = vmatprep.subr.mxu0 0.0
    %1616 = vmatpush1.msra.mxu0 0.0
    %1617 = vmatprep.subr.mxu0 0.0
    %1618 = vmatpush1.msra.mxu0 0.0
    %1619 = vmatprep.subr.mxu0 0.0
    %1620 = vmatpush1.msra.mxu0 0.0
    %1621 = vmatprep.subr.mxu0 0.0
    %1622 = vmatpush1.msra.mxu0 0.0
    %1623 = vmatprep.subr.mxu0 0.0
    %1624 = vmatpush1.msra.mxu0 0.0
    %1625 = vmatprep.subr.mxu0 0.0
    %1626 = vmatpush1.msra.mxu0 0.0
    %1627 = vmatprep.subr.mxu0 0.0
    %1628 = vmatpush1.msra.mxu0 0.0
    %1629 = vmatprep.subr.mxu0 0.0
    %1630 = vmatpush1.msra.mxu0 0.0
    %1631 = vmatprep.subr.mxu0 0.0
    %1632 = vmatpush1.msra.mxu0 0.0
    %1633 = vmatprep.subr.mxu0 0.0
    %1634 = vmatpush1.msra.mxu0 0.0
    %1635 = vmatprep.mubr.f32.mxu0 0.0
    %1636 = vmatmul.mubr.f32.gmra.mrb[0].mxu0 %v1569
    %v1637 = vpop.f32.mrb[0].mxu0
    %v1638 = vadd.f32 %v1562, %v1637
    %v1639 = vpop.f32.mrb[0].mxu0
    %v1640 = vadd.f32 %v1564, %v1639
    %1641 = vdwg.mxu0
    %v1642 = vld [vmem:[%s10] sm:$0xff]
    %v1643 = vld [vmem:[%s10 + $0x8] sm:$0xff]
    %v1645 = vsel %vm346, %v702, 0
    %1647 = vmatprep.subr.mxu0 %v1643
    %1648 = vmatpush1.msra.mxu0 %v1642
    %1649 = vmatprep.subr.mxu0 0.0
    %1650 = vmatpush1.msra.mxu0 0.0
    %1651 = vmatprep.subr.mxu0 0.0
    %1652 = vmatpush1.msra.mxu0 0.0
    %1653 = vmatprep.subr.mxu0 0.0
    %1654 = vmatpush1.msra.mxu0 0.0
    %1655 = vmatprep.subr.mxu0 0.0
    %1656 = vmatpush1.msra.mxu0 0.0
    %1657 = vmatprep.subr.mxu0 0.0
    %1658 = vmatpush1.msra.mxu0 0.0
    %1659 = vmatprep.subr.mxu0 0.0
    %1660 = vmatpush1.msra.mxu0 0.0
    %1661 = vmatprep.subr.mxu0 0.0
    %1662 = vmatpush1.msra.mxu0 0.0
    %1663 = vmatprep.subr.mxu0 0.0
    %1664 = vmatpush1.msra.mxu0 0.0
    %1665 = vmatprep.subr.mxu0 0.0
    %1666 = vmatpush1.msra.mxu0 0.0
    %1667 = vmatprep.subr.mxu0 0.0
    %1668 = vmatpush1.msra.mxu0 0.0
    %1669 = vmatprep.subr.mxu0 0.0
    %1670 = vmatpush1.msra.mxu0 0.0
    %1671 = vmatprep.subr.mxu0 0.0
    %1672 = vmatpush1.msra.mxu0 0.0
    %1673 = vmatprep.subr.mxu0 0.0
    %1674 = vmatpush1.msra.mxu0 0.0
    %1675 = vmatprep.subr.mxu0 0.0
    %1676 = vmatpush1.msra.mxu0 0.0
    %1677 = vmatprep.subr.mxu0 0.0
    %1678 = vmatpush1.msra.mxu0 0.0
    %1679 = vmatprep.subr.mxu0 0.0
    %1680 = vmatpush1.msra.mxu0 0.0
    %1681 = vmatprep.subr.mxu0 0.0
    %1682 = vmatpush1.msra.mxu0 0.0
    %1683 = vmatprep.subr.mxu0 0.0
    %1684 = vmatpush1.msra.mxu0 0.0
    %1685 = vmatprep.subr.mxu0 0.0
    %1686 = vmatpush1.msra.mxu0 0.0
    %1687 = vmatprep.subr.mxu0 0.0
    %1688 = vmatpush1.msra.mxu0 0.0
    %1689 = vmatprep.subr.mxu0 0.0
    %1690 = vmatpush1.msra.mxu0 0.0
    %1691 = vmatprep.subr.mxu0 0.0
    %1692 = vmatpush1.msra.mxu0 0.0
    %1693 = vmatprep.subr.mxu0 0.0
    %1694 = vmatpush1.msra.mxu0 0.0
    %1695 = vmatprep.subr.mxu0 0.0
    %1696 = vmatpush1.msra.mxu0 0.0
    %1697 = vmatprep.subr.mxu0 0.0
    %1698 = vmatpush1.msra.mxu0 0.0
    %1699 = vmatprep.subr.mxu0 0.0
    %1700 = vmatpush1.msra.mxu0 0.0
    %1701 = vmatprep.subr.mxu0 0.0
    %1702 = vmatpush1.msra.mxu0 0.0
    %1703 = vmatprep.subr.mxu0 0.0
    %1704 = vmatpush1.msra.mxu0 0.0
    %1705 = vmatprep.subr.mxu0 0.0
    %1706 = vmatpush1.msra.mxu0 0.0
    %1707 = vmatprep.subr.mxu0 0.0
    %1708 = vmatpush1.msra.mxu0 0.0
    %1709 = vmatprep.subr.mxu0 0.0
    %1710 = vmatpush1.msra.mxu0 0.0
    %1711 = vmatprep.mubr.f32.mxu0 0.0
    %1712 = vmatmul.mubr.f32.gmra.mrb[0].mxu0 %v1645
    %v1713 = vpop.f32.mrb[0].mxu0
    %v1714 = vadd.f32 0.0, %v1713
    %v1715 = vpop.f32.mrb[0].mxu0
    %v1716 = vadd.f32 0.0, %v1715
    %1717 = vdwg.mxu0
    %v1718 = vadd.f32 %v1638, %v1714
    %v1719 = vadd.f32 %v1640, %v1716
    %v1720 = vld [vmem:[%s4] sm:$0xf]
    %v1723 = vunpack.c.l.s4 1983009808
    %v1724 = vunpack.c.0.s8 %v1723
    %v1725 = vlaneseq
    %v1726 = vshrl.u32 %v1725, 7
    %v1727 = vsub.s32 %v1724, %v1726
    %v1728 = vrot.slane %v1720, %v1727
    %v1729 = vcombine.high %v1728, %v1728
    %v1732 = vadd.f32 %v1718, %v1728
    %v1733 = vadd.f32 %v1719, %v1729
    %v1734 = vtanh.pop %v1732
    %v1735 = vtanh.pop %v1733
    %v1736 = vld [vmem:[%s11] sm:$0xff]
    %v1737 = vld [vmem:[%s11 + $0x8] sm:$0xff]
    %v1738 = vld [vmem:[%s11 + $0x10] sm:$0xff]
    %v1739 = vld [vmem:[%s11 + $0x18] sm:$0xff]
    %v1740 = vld [vmem:[%s11 + $0x20] sm:$0xff]
    %v1741 = vld [vmem:[%s11 + $0x28] sm:$0xff]
    %v1742 = vld [vmem:[%s11 + $0x30] sm:$0xff]
    %v1743 = vld [vmem:[%s11 + $0x38] sm:$0xff]
    %v1744 = vld [vmem:[%s11 + $0x40] sm:$0xff]
    %v1745 = vld [vmem:[%s11 + $0x48] sm:$0xff]
    %v1746 = vld [vmem:[%s11 + $0x50] sm:$0xff]
    %v1747 = vld [vmem:[%s11 + $0x58] sm:$0xff]
    %v1748 = vld [vmem:[%s11 + $0x60] sm:$0xff]
    %v1749 = vld [vmem:[%s11 + $0x68] sm:$0xff]
    %v1750 = vld [vmem:[%s11 + $0x70] sm:$0xff]
    %v1751 = vld [vmem:[%s11 + $0x78] sm:$0xff]
    %v1752 = vld [vmem:[%s11 + $0x80] sm:$0xff]
    %v1753 = vld [vmem:[%s11 + $0x88] sm:$0xff]
    %v1754 = vld [vmem:[%s11 + $0x90] sm:$0xff]
    %v1755 = vld [vmem:[%s11 + $0x98] sm:$0xff]
    %v1756 = vld [vmem:[%s11 + $0xa0] sm:$0xff]
    %v1757 = vld [vmem:[%s11 + $0xa8] sm:$0xff]
    %v1758 = vld [vmem:[%s11 + $0xb0] sm:$0xff]
    %v1759 = vld [vmem:[%s11 + $0xb8] sm:$0xff]
    %v1760 = vld [vmem:[%s11 + $0xc0] sm:$0xff]
    %v1761 = vld [vmem:[%s11 + $0xc8] sm:$0xff]
    %v1762 = vld [vmem:[%s11 + $0xd0] sm:$0xff]
    %v1763 = vld [vmem:[%s11 + $0xd8] sm:$0xff]
    %v1764 = vld [vmem:[%s11 + $0xe0] sm:$0xff]
    %v1765 = vld [vmem:[%s11 + $0xe8] sm:$0xff]
    %v1766 = vld [vmem:[%s11 + $0xf0] sm:$0xff]
    %v1767 = vld [vmem:[%s11 + $0xf8] sm:$0xff]
    %v1768 = vld [vmem:[%s5] sm:$0x3]
    %1769 = vmatprep.subr.mxu0 0.0
    %1770 = vmatpush1.msra.mxu0 %v1736
    %1771 = vmatprep.subr.mxu0 0.0
    %1772 = vmatpush1.msra.mxu0 %v1737
    %1773 = vmatprep.subr.mxu0 0.0
    %1774 = vmatpush1.msra.mxu0 %v1738
    %1775 = vmatprep.subr.mxu0 0.0
    %1776 = vmatpush1.msra.mxu0 %v1739
    %1777 = vmatprep.subr.mxu0 0.0
    %1778 = vmatpush1.msra.mxu0 %v1740
    %1779 = vmatprep.subr.mxu0 0.0
    %1780 = vmatpush1.msra.mxu0 %v1741
    %1781 = vmatprep.subr.mxu0 0.0
    %1782 = vmatpush1.msra.mxu0 %v1742
    %1783 = vmatprep.subr.mxu0 0.0
    %1784 = vmatpush1.msra.mxu0 %v1743
    %1785 = vmatprep.subr.mxu0 0.0
    %1786 = vmatpush1.msra.mxu0 %v1744
    %1787 = vmatprep.subr.mxu0 0.0
    %1788 = vmatpush1.msra.mxu0 %v1745
    %1789 = vmatprep.subr.mxu0 0.0
    %1790 = vmatpush1.msra.mxu0 %v1746
    %1791 = vmatprep.subr.mxu0 0.0
    %1792 = vmatpush1.msra.mxu0 %v1747
    %1793 = vmatprep.subr.mxu0 0.0
    %1794 = vmatpush1.msra.mxu0 %v1748
    %1795 = vmatprep.subr.mxu0 0.0
    %1796 = vmatpush1.msra.mxu0 %v1749
    %1797 = vmatprep.subr.mxu0 0.0
    %1798 = vmatpush1.msra.mxu0 %v1750
    %1799 = vmatprep.subr.mxu0 0.0
    %1800 = vmatpush1.msra.mxu0 %v1751
    %1801 = vmatprep.subr.mxu0 0.0
    %1802 = vmatpush1.msra.mxu0 %v1752
    %1803 = vmatprep.subr.mxu0 0.0
    %1804 = vmatpush1.msra.mxu0 %v1753
    %1805 = vmatprep.subr.mxu0 0.0
    %1806 = vmatpush1.msra.mxu0 %v1754
    %1807 = vmatprep.subr.mxu0 0.0
    %1808 = vmatpush1.msra.mxu0 %v1755
    %1809 = vmatprep.subr.mxu0 0.0
    %1810 = vmatpush1.msra.mxu0 %v1756
    %1811 = vmatprep.subr.mxu0 0.0
    %1812 = vmatpush1.msra.mxu0 %v1757
    %1813 = vmatprep.subr.mxu0 0.0
    %1814 = vmatpush1.msra.mxu0 %v1758
    %1815 = vmatprep.subr.mxu0 0.0
    %1816 = vmatpush1.msra.mxu0 %v1759
    %1817 = vmatprep.subr.mxu0 0.0
    %1818 = vmatpush1.msra.mxu0 %v1760
    %1819 = vmatprep.subr.mxu0 0.0
    %1820 = vmatpush1.msra.mxu0 %v1761
    %1821 = vmatprep.subr.mxu0 0.0
    %1822 = vmatpush1.msra.mxu0 %v1762
    %1823 = vmatprep.subr.mxu0 0.0
    %1824 = vmatpush1.msra.mxu0 %v1763
    %1825 = vmatprep.subr.mxu0 0.0
    %1826 = vmatpush1.msra.mxu0 %v1764
    %1827 = vmatprep.subr.mxu0 0.0
    %1828 = vmatpush1.msra.mxu0 %v1765
    %1829 = vmatprep.subr.mxu0 0.0
    %1830 = vmatpush1.msra.mxu0 %v1766
    %1831 = vmatprep.subr.mxu0 0.0
    %1832 = vmatpush1.msra.mxu0 %v1767
    %1833 = vmatprep.mubr.f32.mxu0 %v1735
    %1834 = vmatmul.mubr.f32.gmra.mrb[0].mxu0 %v1734
    %v1835 = vpop.f32.mrb[0].mxu0
    %v1836 = vadd.f32 %v1768, %v1835
    %v1837 = vpop.f32.mrb[0].mxu0
    %1838 = vdwg.mxu0
    %v1839 = vsel %vm690, %v1836, -inf
    %1840 = vmax.xlane.f32.xlu0 %v1839
    %v1841 = vpop.xlane.xlu0 %1840
    %v1842 = vsub.f32 %v1836, %v1841
    %v1843 = vmul.f32 %v1842, 1.442695
    %v1844 = vpow.pop %v1843
    %v1845 = vsel %vm690, %v1844, 0.0
    %1846 = vadd.xlane.f32.xlu0 %v1845
    %v1847 = vpop.xlane.xlu0 %1846
    %v1848 = vrcp.pop %v1847
    %v1849 = vmul.f32 %v1844, %v1848
    %v1850 = vadd.f32 %v702, %v1849
    %v1851 = vld [vmem:[%s3] sm:$0xff]
    %v1853 = vsel %vm346, %v1849, 0
    %1855 = vmatprep.subr.mxu0 0.0
    %1856 = vmatpush1.msra.mxu0 %v1851
    %1857 = vmatprep.subr.mxu0 0.0
    %1858 = vmatpush1.msra.mxu0 0.0
    %1859 = vmatprep.subr.mxu0 0.0
    %1860 = vmatpush1.msra.mxu0 0.0
    %1861 = vmatprep.subr.mxu0 0.0
    %1862 = vmatpush1.msra.mxu0 0.0
    %1863 = vmatprep.subr.mxu0 0.0
    %1864 = vmatpush1.msra.mxu0 0.0
    %1865 = vmatprep.subr.mxu0 0.0
    %1866 = vmatpush1.msra.mxu0 0.0
    %1867 = vmatprep.subr.mxu0 0.0
    %1868 = vmatpush1.msra.mxu0 0.0
    %1869 = vmatprep.subr.mxu0 0.0
    %1870 = vmatpush1.msra.mxu0 0.0
    %1871 = vmatprep.subr.mxu0 0.0
    %1872 = vmatpush1.msra.mxu0 0.0
    %1873 = vmatprep.subr.mxu0 0.0
    %1874 = vmatpush1.msra.mxu0 0.0
    %1875 = vmatprep.subr.mxu0 0.0
    %1876 = vmatpush1.msra.mxu0 0.0
    %1877 = vmatprep.subr.mxu0 0.0
    %1878 = vmatpush1.msra.mxu0 0.0
    %1879 = vmatprep.subr.mxu0 0.0
    %1880 = vmatpush1.msra.mxu0 0.0
    %1881 = vmatprep.subr.mxu0 0.0
    %1882 = vmatpush1.msra.mxu0 0.0
    %1883 = vmatprep.subr.mxu0 0.0
    %1884 = vmatpush1.msra.mxu0 0.0
    %1885 = vmatprep.subr.mxu0 0.0
    %1886 = vmatpush1.msra.mxu0 0.0
    %1887 = vmatprep.subr.mxu0 0.0
    %1888 = vmatpush1.msra.mxu0 0.0
    %1889 = vmatprep.subr.mxu0 0.0
    %1890 = vmatpush1.msra.mxu0 0.0
    %1891 = vmatprep.subr.mxu0 0.0
    %1892 = vmatpush1.msra.mxu0 0.0
    %1893 = vmatprep.subr.mxu0 0.0
    %1894 = vmatpush1.msra.mxu0 0.0
    %1895 = vmatprep.subr.mxu0 0.0
    %1896 = vmatpush1.msra.mxu0 0.0
    %1897 = vmatprep.subr.mxu0 0.0
    %1898 = vmatpush1.msra.mxu0 0.0
    %1899 = vmatprep.subr.mxu0 0.0
    %1900 = vmatpush1.msra.mxu0 0.0
    %1901 = vmatprep.subr.mxu0 0.0
    %1902 = vmatpush1.msra.mxu0 0.0
    %1903 = vmatprep.subr.mxu0 0.0
    %1904 = vmatpush1.msra.mxu0 0.0
    %1905 = vmatprep.subr.mxu0 0.0
    %1906 = vmatpush1.msra.mxu0 0.0
    %1907 = vmatprep.subr.mxu0 0.0
    %1908 = vmatpush1.msra.mxu0 0.0
    %1909 = vmatprep.subr.mxu0 0.0
    %1910 = vmatpush1.msra.mxu0 0.0
    %1911 = vmatprep.subr.mxu0 0.0
    %1912 = vmatpush1.msra.mxu0 0.0
    %1913 = vmatprep.subr.mxu0 0.0
    %1914 = vmatpush1.msra.mxu0 0.0
    %1915 = vmatprep.subr.mxu0 0.0
    %1916 = vmatpush1.msra.mxu0 0.0
    %1917 = vmatprep.subr.mxu0 0.0
    %1918 = vmatpush1.msra.mxu0 0.0
    %1919 = vmatprep.mubr.f32.mxu0 0.0
    %1920 = vmatmul.mubr.f32.gmra.mrb[0].mxu0 %v1853
    %v1921 = vpop.f32.mrb[0].mxu0
    %v1922 = vadd.f32 0.0, %v1921
    %v1923 = vpop.f32.mrb[0].mxu0
    %1924 = vdwg.mxu0
    %v1925 = vmul.f32 %v1922, %v62
    %v1926 = vmul.f32 %v1922, %v65
    %1928 = vrot.lane.b32.xlu0 %v1926, 96
    %v1929 = vpop.permute.xlu0 %1928
    %v1931 = vadd.f32 %v1925, %v1929
    %v1932 = vld [vmem:[%s12] sm:$0xff]
    %v1933 = vld [vmem:[%s12 + $0x8] sm:$0xff]
    %v1934 = vld [vmem:[%s12 + $0x10] sm:$0xff]
    %v1935 = vld [vmem:[%s12 + $0x18] sm:$0xff]
    %v1936 = vld [vmem:[%s12 + $0x20] sm:$0xff]
    %v1937 = vld [vmem:[%s12 + $0x28] sm:$0xff]
    %v1938 = vld [vmem:[%s12 + $0x30] sm:$0xff]
    %v1939 = vld [vmem:[%s12 + $0x38] sm:$0xff]
    %v1941 = vsel %vm77, %v1931, 0
    %1943 = vmatprep.subr.mxu0 0.0
    %1944 = vmatpush1.msra.mxu0 %v1936
    %1945 = vmatprep.subr.mxu0 0.0
    %1946 = vmatpush1.msra.mxu0 %v1937
    %1947 = vmatprep.subr.mxu0 0.0
    %1948 = vmatpush1.msra.mxu0 %v1938
    %1949 = vmatprep.subr.mxu0 0.0
    %1950 = vmatpush1.msra.mxu0 %v1939
    %1951 = vmatprep.subr.mxu0 0.0
    %1952 = vmatpush1.msra.mxu0 0.0
    %1953 = vmatprep.subr.mxu0 0.0
    %1954 = vmatpush1.msra.mxu0 0.0
    %1955 = vmatprep.subr.mxu0 0.0
    %1956 = vmatpush1.msra.mxu0 0.0
    %1957 = vmatprep.subr.mxu0 0.0
    %1958 = vmatpush1.msra.mxu0 0.0
    %1959 = vmatprep.subr.mxu0 0.0
    %1960 = vmatpush1.msra.mxu0 0.0
    %1961 = vmatprep.subr.mxu0 0.0
    %1962 = vmatpush1.msra.mxu0 0.0
    %1963 = vmatprep.subr.mxu0 0.0
    %1964 = vmatpush1.msra.mxu0 0.0
    %1965 = vmatprep.subr.mxu0 0.0
    %1966 = vmatpush1.msra.mxu0 0.0
    %1967 = vmatprep.subr.mxu0 0.0
    %1968 = vmatpush1.msra.mxu0 0.0
    %1969 = vmatprep.subr.mxu0 0.0
    %1970 = vmatpush1.msra.mxu0 0.0
    %1971 = vmatprep.subr.mxu0 0.0
    %1972 = vmatpush1.msra.mxu0 0.0
    %1973 = vmatprep.subr.mxu0 0.0
    %1974 = vmatpush1.msra.mxu0 0.0
    %1975 = vmatprep.subr.mxu0 0.0
    %1976 = vmatpush1.msra.mxu0 0.0
    %1977 = vmatprep.subr.mxu0 0.0
    %1978 = vmatpush1.msra.mxu0 0.0
    %1979 = vmatprep.subr.mxu0 0.0
    %1980 = vmatpush1.msra.mxu0 0.0
    %1981 = vmatprep.subr.mxu0 0.0
    %1982 = vmatpush1.msra.mxu0 0.0
    %1983 = vmatprep.subr.mxu0 0.0
    %1984 = vmatpush1.msra.mxu0 0.0
    %1985 = vmatprep.subr.mxu0 0.0
    %1986 = vmatpush1.msra.mxu0 0.0
    %1987 = vmatprep.subr.mxu0 0.0
    %1988 = vmatpush1.msra.mxu0 0.0
    %1989 = vmatprep.subr.mxu0 0.0
    %1990 = vmatpush1.msra.mxu0 0.0
    %1991 = vmatprep.subr.mxu0 0.0
    %1992 = vmatpush1.msra.mxu0 0.0
    %1993 = vmatprep.subr.mxu0 0.0
    %1994 = vmatpush1.msra.mxu0 0.0
    %1995 = vmatprep.subr.mxu0 0.0
    %1996 = vmatpush1.msra.mxu0 0.0
    %1997 = vmatprep.subr.mxu0 0.0
    %1998 = vmatpush1.msra.mxu0 0.0
    %1999 = vmatprep.subr.mxu0 0.0
    %2000 = vmatpush1.msra.mxu0 0.0
    %2001 = vmatprep.subr.mxu0 0.0
    %2002 = vmatpush1.msra.mxu0 0.0
    %2003 = vmatprep.subr.mxu0 0.0
    %2004 = vmatpush1.msra.mxu0 0.0
    %2005 = vmatprep.subr.mxu0 0.0
    %2006 = vmatpush1.msra.mxu0 0.0
    %2007 = vmatprep.mubr.f32.mxu0 0.0
    %2008 = vmatmul.mubr.f32.gmra.mrb[0].mxu0 %v1941
    %v2009 = vpop.f32.mrb[0].mxu0
    %v2010 = vadd.f32 0.0, %v2009
    %v2011 = vpop.f32.mrb[0].mxu0
    %2012 = vdwg.mxu0
    %2013 = vmatprep.subr.mxu0 0.0
    %2014 = vmatpush1.msra.mxu0 %v1932
    %2015 = vmatprep.subr.mxu0 0.0
    %2016 = vmatpush1.msra.mxu0 %v1933
    %2017 = vmatprep.subr.mxu0 0.0
    %2018 = vmatpush1.msra.mxu0 %v1934
    %2019 = vmatprep.subr.mxu0 0.0
    %2020 = vmatpush1.msra.mxu0 %v1935
    %2021 = vmatprep.subr.mxu0 0.0
    %2022 = vmatpush1.msra.mxu0 0.0
    %2023 = vmatprep.subr.mxu0 0.0
    %2024 = vmatpush1.msra.mxu0 0.0
    %2025 = vmatprep.subr.mxu0 0.0
    %2026 = vmatpush1.msra.mxu0 0.0
    %2027 = vmatprep.subr.mxu0 0.0
    %2028 = vmatpush1.msra.mxu0 0.0
    %2029 = vmatprep.subr.mxu0 0.0
    %2030 = vmatpush1.msra.mxu0 0.0
    %2031 = vmatprep.subr.mxu0 0.0
    %2032 = vmatpush1.msra.mxu0 0.0
    %2033 = vmatprep.subr.mxu0 0.0
    %2034 = vmatpush1.msra.mxu0 0.0
    %2035 = vmatprep.subr.mxu0 0.0
    %2036 = vmatpush1.msra.mxu0 0.0
    %2037 = vmatprep.subr.mxu0 0.0
    %2038 = vmatpush1.msra.mxu0 0.0
    %2039 = vmatprep.subr.mxu0 0.0
    %2040 = vmatpush1.msra.mxu0 0.0
    %2041 = vmatprep.subr.mxu0 0.0
    %2042 = vmatpush1.msra.mxu0 0.0
    %2043 = vmatprep.subr.mxu0 0.0
    %2044 = vmatpush1.msra.mxu0 0.0
    %2045 = vmatprep.subr.mxu0 0.0
    %2046 = vmatpush1.msra.mxu0 0.0
    %2047 = vmatprep.subr.mxu0 0.0
    %2048 = vmatpush1.msra.mxu0 0.0
    %2049 = vmatprep.subr.mxu0 0.0
    %2050 = vmatpush1.msra.mxu0 0.0
    %2051 = vmatprep.subr.mxu0 0.0
    %2052 = vmatpush1.msra.mxu0 0.0
    %2053 = vmatprep.subr.mxu0 0.0
    %2054 = vmatpush1.msra.mxu0 0.0
    %2055 = vmatprep.subr.mxu0 0.0
    %2056 = vmatpush1.msra.mxu0 0.0
    %2057 = vmatprep.subr.mxu0 0.0
    %2058 = vmatpush1.msra.mxu0 0.0
    %2059 = vmatprep.subr.mxu0 0.0
    %2060 = vmatpush1.msra.mxu0 0.0
    %2061 = vmatprep.subr.mxu0 0.0
    %2062 = vmatpush1.msra.mxu0 0.0
    %2063 = vmatprep.subr.mxu0 0.0
    %2064 = vmatpush1.msra.mxu0 0.0
    %2065 = vmatprep.subr.mxu0 0.0
    %2066 = vmatpush1.msra.mxu0 0.0
    %2067 = vmatprep.subr.mxu0 0.0
    %2068 = vmatpush1.msra.mxu0 0.0
    %2069 = vmatprep.subr.mxu0 0.0
    %2070 = vmatpush1.msra.mxu0 0.0
    %2071 = vmatprep.subr.mxu0 0.0
    %2072 = vmatpush1.msra.mxu0 0.0
    %2073 = vmatprep.subr.mxu0 0.0
    %2074 = vmatpush1.msra.mxu0 0.0
    %2075 = vmatprep.subr.mxu0 0.0
    %2076 = vmatpush1.msra.mxu0 0.0
    %2077 = vmatprep.mubr.f32.mxu0 0.0
    %2078 = vmatmul.mubr.f32.gmra.mrb[0].mxu0 %v1569
    %v2079 = vpop.f32.mrb[0].mxu0
    %v2080 = vadd.f32 %v2010, %v2079
    %v2081 = vpop.f32.mrb[0].mxu0
    %2082 = vdwg.mxu0
    %v2083 = vld [vmem:[%s12 + $0x40] sm:$0xff]
    %v2084 = vld [vmem:[%s12 + $0x48] sm:$0xff]
    %v2085 = vld [vmem:[%s12 + $0x50] sm:$0xff]
    %v2086 = vld [vmem:[%s12 + $0x58] sm:$0xff]
    %2087 = vmatprep.subr.mxu0 0.0
    %2088 = vmatpush1.msra.mxu0 %v2083
    %2089 = vmatprep.subr.mxu0 0.0
    %2090 = vmatpush1.msra.mxu0 %v2084
    %2091 = vmatprep.subr.mxu0 0.0
    %2092 = vmatpush1.msra.mxu0 %v2085
    %2093 = vmatprep.subr.mxu0 0.0
    %2094 = vmatpush1.msra.mxu0 %v2086
    %2095 = vmatprep.subr.mxu0 0.0
    %2096 = vmatpush1.msra.mxu0 0.0
    %2097 = vmatprep.subr.mxu0 0.0
    %2098 = vmatpush1.msra.mxu0 0.0
    %2099 = vmatprep.subr.mxu0 0.0
    %2100 = vmatpush1.msra.mxu0 0.0
    %2101 = vmatprep.subr.mxu0 0.0
    %2102 = vmatpush1.msra.mxu0 0.0
    %2103 = vmatprep.subr.mxu0 0.0
    %2104 = vmatpush1.msra.mxu0 0.0
    %2105 = vmatprep.subr.mxu0 0.0
    %2106 = vmatpush1.msra.mxu0 0.0
    %2107 = vmatprep.subr.mxu0 0.0
    %2108 = vmatpush1.msra.mxu0 0.0
    %2109 = vmatprep.subr.mxu0 0.0
    %2110 = vmatpush1.msra.mxu0 0.0
    %2111 = vmatprep.subr.mxu0 0.0
    %2112 = vmatpush1.msra.mxu0 0.0
    %2113 = vmatprep.subr.mxu0 0.0
    %2114 = vmatpush1.msra.mxu0 0.0
    %2115 = vmatprep.subr.mxu0 0.0
    %2116 = vmatpush1.msra.mxu0 0.0
    %2117 = vmatprep.subr.mxu0 0.0
    %2118 = vmatpush1.msra.mxu0 0.0
    %2119 = vmatprep.subr.mxu0 0.0
    %2120 = vmatpush1.msra.mxu0 0.0
    %2121 = vmatprep.subr.mxu0 0.0
    %2122 = vmatpush1.msra.mxu0 0.0
    %2123 = vmatprep.subr.mxu0 0.0
    %2124 = vmatpush1.msra.mxu0 0.0
    %2125 = vmatprep.subr.mxu0 0.0
    %2126 = vmatpush1.msra.mxu0 0.0
    %2127 = vmatprep.subr.mxu0 0.0
    %2128 = vmatpush1.msra.mxu0 0.0
    %2129 = vmatprep.subr.mxu0 0.0
    %2130 = vmatpush1.msra.mxu0 0.0
    %2131 = vmatprep.subr.mxu0 0.0
    %2132 = vmatpush1.msra.mxu0 0.0
    %2133 = vmatprep.subr.mxu0 0.0
    %2134 = vmatpush1.msra.mxu0 0.0
    %2135 = vmatprep.subr.mxu0 0.0
    %2136 = vmatpush1.msra.mxu0 0.0
    %2137 = vmatprep.subr.mxu0 0.0
    %2138 = vmatpush1.msra.mxu0 0.0
    %2139 = vmatprep.subr.mxu0 0.0
    %2140 = vmatpush1.msra.mxu0 0.0
    %2141 = vmatprep.subr.mxu0 0.0
    %2142 = vmatpush1.msra.mxu0 0.0
    %2143 = vmatprep.subr.mxu0 0.0
    %2144 = vmatpush1.msra.mxu0 0.0
    %2145 = vmatprep.subr.mxu0 0.0
    %2146 = vmatpush1.msra.mxu0 0.0
    %2147 = vmatprep.subr.mxu0 0.0
    %2148 = vmatpush1.msra.mxu0 0.0
    %2149 = vmatprep.subr.mxu0 0.0
    %2150 = vmatpush1.msra.mxu0 0.0
    %2151 = vmatprep.mubr.f32.mxu0 0.0
    %2152 = vmatmul.mubr.f32.gmra.mrb[0].mxu0 %v1128
    %v2153 = vpop.f32.mrb[0].mxu0
    %v2154 = vadd.f32 0.0, %v2153
    %v2155 = vpop.f32.mrb[0].mxu0
    %2156 = vdwg.mxu0
    %v2157 = vadd.f32 %v2080, %v2154
    %v2158 = vld [vmem:[%s13] sm:$0x1]
    %v2160 = vlaneseq
    %v2161 = vshrl.u32 %v2160, 7
    %v2162 = vsub.s32 0, %v2161
    %v2163 = vrot.slane %v2158, %v2162
    %v2165 = vadd.f32 %v2157, %v2163
    %v2166 = vxor.u32 %v2165, 2147483648
    %v2167 = vmul.f32 %v2166, 1.442695
    %v2168 = vpow.pop %v2167
    %v2169 = vadd.f32 %v2168, 1.0
    %v2170 = vrcp.pop %v2169
    %v2171 = vmul.f32 1.0, %v2170
    %v2172 = vmul.f32 %v2171, %v1035
    %v2173 = vtanh.pop %v2165
    %2175 = vrot.lane.b32.xlu0 %v2173, 64
    %v2176 = vpop.permute.xlu0 %2175
    %v2178 = vmul.f32 %v2171, %v2176
    %2180 = vrot.lane.b32.xlu0 %v2178, 32
    %v2181 = vpop.permute.xlu0 %2180
    %v2183 = vadd.f32 %v2172, %v2181
    %v2184 = vtanh.pop %v2183
    %2186 = vrot.lane.b32.xlu0 %v2184, 64
    %v2187 = vpop.permute.xlu0 %2186
    %v2189 = vmul.f32 %v2171, %v2187
    %2191 = vrot.lane.b32.xlu0 %v1221, 96
    %v2192 = vpop.permute.xlu0 %2191
    %v2194 = vmul.f32 %v2189, %v2192
    %v2195 = vld [vmem:[%s14] sm:$0xff]
    %v2196 = vld [vmem:[%s14 + $0x8] sm:$0xff]
    %v2197 = vld [vmem:[%s14 + $0x10] sm:$0xff]
    %v2198 = vld [vmem:[%s14 + $0x18] sm:$0xff]
    %v2199 = vld [vmem:[%s14 + $0x20] sm:$0xff]
    %v2200 = vld [vmem:[%s14 + $0x28] sm:$0xff]
    %v2201 = vld [vmem:[%s14 + $0x30] sm:$0xff]
    %v2202 = vld [vmem:[%s14 + $0x38] sm:$0xff]
    %2203 = vmatprep.subr.mxu0 0.0
    %2204 = vmatpush1.msra.mxu0 %v2199
    %2205 = vmatprep.subr.mxu0 0.0
    %2206 = vmatpush1.msra.mxu0 %v2200
    %2207 = vmatprep.subr.mxu0 0.0
    %2208 = vmatpush1.msra.mxu0 %v2201
    %2209 = vmatprep.subr.mxu0 0.0
    %2210 = vmatpush1.msra.mxu0 %v2202
    %2211 = vmatprep.subr.mxu0 0.0
    %2212 = vmatpush1.msra.mxu0 0.0
    %2213 = vmatprep.subr.mxu0 0.0
    %2214 = vmatpush1.msra.mxu0 0.0
    %2215 = vmatprep.subr.mxu0 0.0
    %2216 = vmatpush1.msra.mxu0 0.0
    %2217 = vmatprep.subr.mxu0 0.0
    %2218 = vmatpush1.msra.mxu0 0.0
    %2219 = vmatprep.subr.mxu0 0.0
    %2220 = vmatpush1.msra.mxu0 0.0
    %2221 = vmatprep.subr.mxu0 0.0
    %2222 = vmatpush1.msra.mxu0 0.0
    %2223 = vmatprep.subr.mxu0 0.0
    %2224 = vmatpush1.msra.mxu0 0.0
    %2225 = vmatprep.subr.mxu0 0.0
    %2226 = vmatpush1.msra.mxu0 0.0
    %2227 = vmatprep.subr.mxu0 0.0
    %2228 = vmatpush1.msra.mxu0 0.0
    %2229 = vmatprep.subr.mxu0 0.0
    %2230 = vmatpush1.msra.mxu0 0.0
    %2231 = vmatprep.subr.mxu0 0.0
    %2232 = vmatpush1.msra.mxu0 0.0
    %2233 = vmatprep.subr.mxu0 0.0
    %2234 = vmatpush1.msra.mxu0 0.0
    %2235 = vmatprep.subr.mxu0 0.0
    %2236 = vmatpush1.msra.mxu0 0.0
    %2237 = vmatprep.subr.mxu0 0.0
    %2238 = vmatpush1.msra.mxu0 0.0
    %2239 = vmatprep.subr.mxu0 0.0
    %2240 = vmatpush1.msra.mxu0 0.0
    %2241 = vmatprep.subr.mxu0 0.0
    %2242 = vmatpush1.msra.mxu0 0.0
    %2243 = vmatprep.subr.mxu0 0.0
    %2244 = vmatpush1.msra.mxu0 0.0
    %2245 = vmatprep.subr.mxu0 0.0
    %2246 = vmatpush1.msra.mxu0 0.0
    %2247 = vmatprep.subr.mxu0 0.0
    %2248 = vmatpush1.msra.mxu0 0.0
    %2249 = vmatprep.subr.mxu0 0.0
    %2250 = vmatpush1.msra.mxu0 0.0
    %2251 = vmatprep.subr.mxu0 0.0
    %2252 = vmatpush1.msra.mxu0 0.0
    %2253 = vmatprep.subr.mxu0 0.0
    %2254 = vmatpush1.msra.mxu0 0.0
    %2255 = vmatprep.subr.mxu0 0.0
    %2256 = vmatpush1.msra.mxu0 0.0
    %2257 = vmatprep.subr.mxu0 0.0
    %2258 = vmatpush1.msra.mxu0 0.0
    %2259 = vmatprep.subr.mxu0 0.0
    %2260 = vmatpush1.msra.mxu0 0.0
    %2261 = vmatprep.subr.mxu0 0.0
    %2262 = vmatpush1.msra.mxu0 0.0
    %2263 = vmatprep.subr.mxu0 0.0
    %2264 = vmatpush1.msra.mxu0 0.0
    %2265 = vmatprep.subr.mxu0 0.0
    %2266 = vmatpush1.msra.mxu0 0.0
    %2267 = vmatprep.mubr.f32.mxu0 0.0
    %2268 = vmatmul.mubr.f32.gmra.mrb[0].mxu0 %v1941
    %v2269 = vpop.f32.mrb[0].mxu0
    %v2270 = vadd.f32 0.0, %v2269
    %v2271 = vpop.f32.mrb[0].mxu0
    %2272 = vdwg.mxu0
    %2274 = vrot.lane.b32.xlu0 %v2194, 32
    %v2275 = vpop.permute.xlu0 %2274
    %v2276 = vsel %vm77, %v2275, 0
    %2278 = vmatprep.subr.mxu0 0.0
    %2279 = vmatpush1.msra.mxu0 %v2195
    %2280 = vmatprep.subr.mxu0 0.0
    %2281 = vmatpush1.msra.mxu0 %v2196
    %2282 = vmatprep.subr.mxu0 0.0
    %2283 = vmatpush1.msra.mxu0 %v2197
    %2284 = vmatprep.subr.mxu0 0.0
    %2285 = vmatpush1.msra.mxu0 %v2198
    %2286 = vmatprep.subr.mxu0 0.0
    %2287 = vmatpush1.msra.mxu0 0.0
    %2288 = vmatprep.subr.mxu0 0.0
    %2289 = vmatpush1.msra.mxu0 0.0
    %2290 = vmatprep.subr.mxu0 0.0
    %2291 = vmatpush1.msra.mxu0 0.0
    %2292 = vmatprep.subr.mxu0 0.0
    %2293 = vmatpush1.msra.mxu0 0.0
    %2294 = vmatprep.subr.mxu0 0.0
    %2295 = vmatpush1.msra.mxu0 0.0
    %2296 = vmatprep.subr.mxu0 0.0
    %2297 = vmatpush1.msra.mxu0 0.0
    %2298 = vmatprep.subr.mxu0 0.0
    %2299 = vmatpush1.msra.mxu0 0.0
    %2300 = vmatprep.subr.mxu0 0.0
    %2301 = vmatpush1.msra.mxu0 0.0
    %2302 = vmatprep.subr.mxu0 0.0
    %2303 = vmatpush1.msra.mxu0 0.0
    %2304 = vmatprep.subr.mxu0 0.0
    %2305 = vmatpush1.msra.mxu0 0.0
    %2306 = vmatprep.subr.mxu0 0.0
    %2307 = vmatpush1.msra.mxu0 0.0
    %2308 = vmatprep.subr.mxu0 0.0
    %2309 = vmatpush1.msra.mxu0 0.0
    %2310 = vmatprep.subr.mxu0 0.0
    %2311 = vmatpush1.msra.mxu0 0.0
    %2312 = vmatprep.subr.mxu0 0.0
    %2313 = vmatpush1.msra.mxu0 0.0
    %2314 = vmatprep.subr.mxu0 0.0
    %2315 = vmatpush1.msra.mxu0 0.0
    %2316 = vmatprep.subr.mxu0 0.0
    %2317 = vmatpush1.msra.mxu0 0.0
    %2318 = vmatprep.subr.mxu0 0.0
    %2319 = vmatpush1.msra.mxu0 0.0
    %2320 = vmatprep.subr.mxu0 0.0
    %2321 = vmatpush1.msra.mxu0 0.0
    %2322 = vmatprep.subr.mxu0 0.0
    %2323 = vmatpush1.msra.mxu0 0.0
    %2324 = vmatprep.subr.mxu0 0.0
    %2325 = vmatpush1.msra.mxu0 0.0
    %2326 = vmatprep.subr.mxu0 0.0
    %2327 = vmatpush1.msra.mxu0 0.0
    %2328 = vmatprep.subr.mxu0 0.0
    %2329 = vmatpush1.msra.mxu0 0.0
    %2330 = vmatprep.subr.mxu0 0.0
    %2331 = vmatpush1.msra.mxu0 0.0
    %2332 = vmatprep.subr.mxu0 0.0
    %2333 = vmatpush1.msra.mxu0 0.0
    %2334 = vmatprep.subr.mxu0 0.0
    %2335 = vmatpush1.msra.mxu0 0.0
    %2336 = vmatprep.subr.mxu0 0.0
    %2337 = vmatpush1.msra.mxu0 0.0
    %2338 = vmatprep.subr.mxu0 0.0
    %2339 = vmatpush1.msra.mxu0 0.0
    %2340 = vmatprep.subr.mxu0 0.0
    %2341 = vmatpush1.msra.mxu0 0.0
    %2342 = vmatprep.mubr.f32.mxu0 0.0
    %2343 = vmatmul.mubr.f32.gmra.mrb[0].mxu0 %v2276
    %v2344 = vpop.f32.mrb[0].mxu0
    %v2345 = vadd.f32 %v2270, %v2344
    %v2346 = vpop.f32.mrb[0].mxu0
    %2347 = vdwg.mxu0
    %v2348 = vld [vmem:[%s15] sm:$0x1]
    %v2350 = vlaneseq
    %v2351 = vshrl.u32 %v2350, 7
    %v2352 = vsub.s32 0, %v2351
    %v2353 = vrot.slane %v2348, %v2352
    %v2355 = vadd.f32 %v2345, %v2353
    %s2356 = scalar_lea.vmem [#allocation2], 2
    %2357 = vst.msk [vmem:[%s2356] sm:$0x3] %vm690, %v2355
    %2359 = vrot.lane.b32.xlu0 %v2355, 120
    %v2360 = vpop.permute.xlu0 %2359
    %s2362 = scalar_lea.vmem %s17, 2
    %2363 = vst.msk [vmem:[%s2362] sm:$0x3] %vm1213, %v2360
    %s2364 = scalar_lea.vmem [#allocation4], 2
    %2365 = vst.msk [vmem:[%s2364] sm:$0x3] %vm690, %v1849
    %s2366 = scalar_lea.vmem %s0, 4
    %v2367 = vld [vmem:[%s2366] sm:$0x3]
    %s2368 = scalar_lea.vmem %s1, 4
    %v2369 = vld [vmem:[%s2368] sm:$0x3]
    %s2370 = scalar_lea.vmem %s2, 4
    %v2371 = vld [vmem:[%s2370] sm:$0x3]
    %v2372 = vld [vmem:[%s6] sm:$0xff]
    %v2373 = vld [vmem:[%s6 + $0x8] sm:$0xff]
    %v2374 = vld [vmem:[%s6 + $0x10] sm:$0xff]
    %v2375 = vld [vmem:[%s6 + $0x18] sm:$0xff]
    %v2376 = vld [vmem:[%s6 + $0x20] sm:$0xff]
    %v2377 = vld [vmem:[%s6 + $0x28] sm:$0xff]
    %v2378 = vld [vmem:[%s6 + $0x30] sm:$0xff]
    %v2379 = vld [vmem:[%s6 + $0x38] sm:$0xff]
    %2380 = vmatprep.subr.mxu0 0.0
    %2381 = vmatpush1.msra.mxu0 %v2376
    %2382 = vmatprep.subr.mxu0 0.0
    %2383 = vmatpush1.msra.mxu0 %v2377
    %2384 = vmatprep.subr.mxu0 0.0
    %2385 = vmatpush1.msra.mxu0 %v2378
    %2386 = vmatprep.subr.mxu0 0.0
    %2387 = vmatpush1.msra.mxu0 %v2379
    %2388 = vmatprep.subr.mxu0 0.0
    %2389 = vmatpush1.msra.mxu0 0.0
    %2390 = vmatprep.subr.mxu0 0.0
    %2391 = vmatpush1.msra.mxu0 0.0
    %2392 = vmatprep.subr.mxu0 0.0
    %2393 = vmatpush1.msra.mxu0 0.0
    %2394 = vmatprep.subr.mxu0 0.0
    %2395 = vmatpush1.msra.mxu0 0.0
    %2396 = vmatprep.subr.mxu0 0.0
    %2397 = vmatpush1.msra.mxu0 0.0
    %2398 = vmatprep.subr.mxu0 0.0
    %2399 = vmatpush1.msra.mxu0 0.0
    %2400 = vmatprep.subr.mxu0 0.0
    %2401 = vmatpush1.msra.mxu0 0.0
    %2402 = vmatprep.subr.mxu0 0.0
    %2403 = vmatpush1.msra.mxu0 0.0
    %2404 = vmatprep.subr.mxu0 0.0
    %2405 = vmatpush1.msra.mxu0 0.0
    %2406 = vmatprep.subr.mxu0 0.0
    %2407 = vmatpush1.msra.mxu0 0.0
    %2408 = vmatprep.subr.mxu0 0.0
    %2409 = vmatpush1.msra.mxu0 0.0
    %2410 = vmatprep.subr.mxu0 0.0
    %2411 = vmatpush1.msra.mxu0 0.0
    %2412 = vmatprep.subr.mxu0 0.0
    %2413 = vmatpush1.msra.mxu0 0.0
    %2414 = vmatprep.subr.mxu0 0.0
    %2415 = vmatpush1.msra.mxu0 0.0
    %2416 = vmatprep.subr.mxu0 0.0
    %2417 = vmatpush1.msra.mxu0 0.0
    %2418 = vmatprep.subr.mxu0 0.0
    %2419 = vmatpush1.msra.mxu0 0.0
    %2420 = vmatprep.subr.mxu0 0.0
    %2421 = vmatpush1.msra.mxu0 0.0
    %2422 = vmatprep.subr.mxu0 0.0
    %2423 = vmatpush1.msra.mxu0 0.0
    %2424 = vmatprep.subr.mxu0 0.0
    %2425 = vmatpush1.msra.mxu0 0.0
    %2426 = vmatprep.subr.mxu0 0.0
    %2427 = vmatpush1.msra.mxu0 0.0
    %2428 = vmatprep.subr.mxu0 0.0
    %2429 = vmatpush1.msra.mxu0 0.0
    %2430 = vmatprep.subr.mxu0 0.0
    %2431 = vmatpush1.msra.mxu0 0.0
    %2432 = vmatprep.subr.mxu0 0.0
    %2433 = vmatpush1.msra.mxu0 0.0
    %2434 = vmatprep.subr.mxu0 0.0
    %2435 = vmatpush1.msra.mxu0 0.0
    %2436 = vmatprep.subr.mxu0 0.0
    %2437 = vmatpush1.msra.mxu0 0.0
    %2438 = vmatprep.subr.mxu0 0.0
    %2439 = vmatpush1.msra.mxu0 0.0
    %2440 = vmatprep.subr.mxu0 0.0
    %2441 = vmatpush1.msra.mxu0 0.0
    %2442 = vmatprep.subr.mxu0 0.0
    %2443 = vmatpush1.msra.mxu0 0.0
    %2444 = vmatprep.mubr.f32.mxu0 0.0
    %2445 = vmatmul.mubr.f32.gmra.mrb[0].mxu0 %v1941
    %v2446 = vpop.f32.mrb[0].mxu0
    %v2447 = vadd.f32 0.0, %v2446
    %v2448 = vpop.f32.mrb[0].mxu0
    %2449 = vdwg.mxu0
    %v2451 = vsel %vm77, %v2367, 0
    %2453 = vmatprep.subr.mxu0 0.0
    %2454 = vmatpush1.msra.mxu0 %v2372
    %2455 = vmatprep.subr.mxu0 0.0
    %2456 = vmatpush1.msra.mxu0 %v2373
    %2457 = vmatprep.subr.mxu0 0.0
    %2458 = vmatpush1.msra.mxu0 %v2374
    %2459 = vmatprep.subr.mxu0 0.0
    %2460 = vmatpush1.msra.mxu0 %v2375
    %2461 = vmatprep.subr.mxu0 0.0
    %2462 = vmatpush1.msra.mxu0 0.0
    %2463 = vmatprep.subr.mxu0 0.0
    %2464 = vmatpush1.msra.mxu0 0.0
    %2465 = vmatprep.subr.mxu0 0.0
    %2466 = vmatpush1.msra.mxu0 0.0
    %2467 = vmatprep.subr.mxu0 0.0
    %2468 = vmatpush1.msra.mxu0 0.0
    %2469 = vmatprep.subr.mxu0 0.0
    %2470 = vmatpush1.msra.mxu0 0.0
    %2471 = vmatprep.subr.mxu0 0.0
    %2472 = vmatpush1.msra.mxu0 0.0
    %2473 = vmatprep.subr.mxu0 0.0
    %2474 = vmatpush1.msra.mxu0 0.0
    %2475 = vmatprep.subr.mxu0 0.0
    %2476 = vmatpush1.msra.mxu0 0.0
    %2477 = vmatprep.subr.mxu0 0.0
    %2478 = vmatpush1.msra.mxu0 0.0
    %2479 = vmatprep.subr.mxu0 0.0
    %2480 = vmatpush1.msra.mxu0 0.0
    %2481 = vmatprep.subr.mxu0 0.0
    %2482 = vmatpush1.msra.mxu0 0.0
    %2483 = vmatprep.subr.mxu0 0.0
    %2484 = vmatpush1.msra.mxu0 0.0
    %2485 = vmatprep.subr.mxu0 0.0
    %2486 = vmatpush1.msra.mxu0 0.0
    %2487 = vmatprep.subr.mxu0 0.0
    %2488 = vmatpush1.msra.mxu0 0.0
    %2489 = vmatprep.subr.mxu0 0.0
    %2490 = vmatpush1.msra.mxu0 0.0
    %2491 = vmatprep.subr.mxu0 0.0
    %2492 = vmatpush1.msra.mxu0 0.0
    %2493 = vmatprep.subr.mxu0 0.0
    %2494 = vmatpush1.msra.mxu0 0.0
    %2495 = vmatprep.subr.mxu0 0.0
    %2496 = vmatpush1.msra.mxu0 0.0
    %2497 = vmatprep.subr.mxu0 0.0
    %2498 = vmatpush1.msra.mxu0 0.0
    %2499 = vmatprep.subr.mxu0 0.0
    %2500 = vmatpush1.msra.mxu0 0.0
    %2501 = vmatprep.subr.mxu0 0.0
    %2502 = vmatpush1.msra.mxu0 0.0
    %2503 = vmatprep.subr.mxu0 0.0
    %2504 = vmatpush1.msra.mxu0 0.0
    %2505 = vmatprep.subr.mxu0 0.0
    %2506 = vmatpush1.msra.mxu0 0.0
    %2507 = vmatprep.subr.mxu0 0.0
    %2508 = vmatpush1.msra.mxu0 0.0
    %2509 = vmatprep.subr.mxu0 0.0
    %2510 = vmatpush1.msra.mxu0 0.0
    %2511 = vmatprep.subr.mxu0 0.0
    %2512 = vmatpush1.msra.mxu0 0.0
    %2513 = vmatprep.subr.mxu0 0.0
    %2514 = vmatpush1.msra.mxu0 0.0
    %2515 = vmatprep.subr.mxu0 0.0
    %2516 = vmatpush1.msra.mxu0 0.0
    %2517 = vmatprep.mubr.f32.mxu0 0.0
    %2518 = vmatmul.mubr.f32.gmra.mrb[0].mxu0 %v2451
    %v2519 = vpop.f32.mrb[0].mxu0
    %v2520 = vadd.f32 %v2447, %v2519
    %v2521 = vpop.f32.mrb[0].mxu0
    %2522 = vdwg.mxu0
    %v2523 = vld [vmem:[%s6 + $0x40] sm:$0xff]
    %v2524 = vld [vmem:[%s6 + $0x48] sm:$0xff]
    %v2525 = vld [vmem:[%s6 + $0x50] sm:$0xff]
    %v2526 = vld [vmem:[%s6 + $0x58] sm:$0xff]
    %2527 = vmatprep.subr.mxu0 0.0
    %2528 = vmatpush1.msra.mxu0 %v2523
    %2529 = vmatprep.subr.mxu0 0.0
    %2530 = vmatpush1.msra.mxu0 %v2524
    %2531 = vmatprep.subr.mxu0 0.0
    %2532 = vmatpush1.msra.mxu0 %v2525
    %2533 = vmatprep.subr.mxu0 0.0
    %2534 = vmatpush1.msra.mxu0 %v2526
    %2535 = vmatprep.subr.mxu0 0.0
    %2536 = vmatpush1.msra.mxu0 0.0
    %2537 = vmatprep.subr.mxu0 0.0
    %2538 = vmatpush1.msra.mxu0 0.0
    %2539 = vmatprep.subr.mxu0 0.0
    %2540 = vmatpush1.msra.mxu0 0.0
    %2541 = vmatprep.subr.mxu0 0.0
    %2542 = vmatpush1.msra.mxu0 0.0
    %2543 = vmatprep.subr.mxu0 0.0
    %2544 = vmatpush1.msra.mxu0 0.0
    %2545 = vmatprep.subr.mxu0 0.0
    %2546 = vmatpush1.msra.mxu0 0.0
    %2547 = vmatprep.subr.mxu0 0.0
    %2548 = vmatpush1.msra.mxu0 0.0
    %2549 = vmatprep.subr.mxu0 0.0
    %2550 = vmatpush1.msra.mxu0 0.0
    %2551 = vmatprep.subr.mxu0 0.0
    %2552 = vmatpush1.msra.mxu0 0.0
    %2553 = vmatprep.subr.mxu0 0.0
    %2554 = vmatpush1.msra.mxu0 0.0
    %2555 = vmatprep.subr.mxu0 0.0
    %2556 = vmatpush1.msra.mxu0 0.0
    %2557 = vmatprep.subr.mxu0 0.0
    %2558 = vmatpush1.msra.mxu0 0.0
    %2559 = vmatprep.subr.mxu0 0.0
    %2560 = vmatpush1.msra.mxu0 0.0
    %2561 = vmatprep.subr.mxu0 0.0
    %2562 = vmatpush1.msra.mxu0 0.0
    %2563 = vmatprep.subr.mxu0 0.0
    %2564 = vmatpush1.msra.mxu0 0.0
    %2565 = vmatprep.subr.mxu0 0.0
    %2566 = vmatpush1.msra.mxu0 0.0
    %2567 = vmatprep.subr.mxu0 0.0
    %2568 = vmatpush1.msra.mxu0 0.0
    %2569 = vmatprep.subr.mxu0 0.0
    %2570 = vmatpush1.msra.mxu0 0.0
    %2571 = vmatprep.subr.mxu0 0.0
    %2572 = vmatpush1.msra.mxu0 0.0
    %2573 = vmatprep.subr.mxu0 0.0
    %2574 = vmatpush1.msra.mxu0 0.0
    %2575 = vmatprep.subr.mxu0 0.0
    %2576 = vmatpush1.msra.mxu0 0.0
    %2577 = vmatprep.subr.mxu0 0.0
    %2578 = vmatpush1.msra.mxu0 0.0
    %2579 = vmatprep.subr.mxu0 0.0
    %2580 = vmatpush1.msra.mxu0 0.0
    %2581 = vmatprep.subr.mxu0 0.0
    %2582 = vmatpush1.msra.mxu0 0.0
    %2583 = vmatprep.subr.mxu0 0.0
    %2584 = vmatpush1.msra.mxu0 0.0
    %2585 = vmatprep.subr.mxu0 0.0
    %2586 = vmatpush1.msra.mxu0 0.0
    %2587 = vmatprep.subr.mxu0 0.0
    %2588 = vmatpush1.msra.mxu0 0.0
    %2589 = vmatprep.subr.mxu0 0.0
    %2590 = vmatpush1.msra.mxu0 0.0
    %2591 = vmatprep.mubr.f32.mxu0 0.0
    %2592 = vmatmul.mubr.f32.gmra.mrb[0].mxu0 %v1569
    %v2593 = vpop.f32.mrb[0].mxu0
    %v2594 = vadd.f32 0.0, %v2593
    %v2595 = vpop.f32.mrb[0].mxu0
    %2596 = vdwg.mxu0
    %v2597 = vadd.f32 %v2520, %v2594
    %v2598 = vld [vmem:[%s7] sm:$0x1]
    %v2600 = vlaneseq
    %v2601 = vshrl.u32 %v2600, 7
    %v2602 = vsub.s32 0, %v2601
    %v2603 = vrot.slane %v2598, %v2602
    %v2605 = vadd.f32 %v2597, %v2603
    %v2606 = vxor.u32 %v2605, 2147483648
    %v2607 = vmul.f32 %v2606, 1.442695
    %v2608 = vpow.pop %v2607
    %v2609 = vadd.f32 %v2608, 1.0
    %v2610 = vrcp.pop %v2609
    %v2611 = vmul.f32 1.0, %v2610
    %v2612 = vmul.f32 %v2611, %v1473
    %v2613 = vtanh.pop %v2605
    %2615 = vrot.lane.b32.xlu0 %v2613, 64
    %v2616 = vpop.permute.xlu0 %2615
    %v2618 = vmul.f32 %v2611, %v2616
    %2620 = vrot.lane.b32.xlu0 %v2618, 32
    %v2621 = vpop.permute.xlu0 %2620
    %v2623 = vadd.f32 %v2612, %v2621
    %v2624 = vtanh.pop %v2623
    %2626 = vrot.lane.b32.xlu0 %v2624, 64
    %v2627 = vpop.permute.xlu0 %2626
    %v2629 = vmul.f32 %v2611, %v2627
    %2631 = vrot.lane.b32.xlu0 %v2369, 96
    %v2632 = vpop.permute.xlu0 %2631
    %v2634 = vmul.f32 %v2629, %v2632
    %v2635 = vld [vmem:[%s8] sm:$0xff]
    %v2636 = vld [vmem:[%s8 + $0x8] sm:$0xff]
    %v2637 = vld [vmem:[%s8 + $0x10] sm:$0xff]
    %v2638 = vld [vmem:[%s8 + $0x18] sm:$0xff]
    %v2639 = vld [vmem:[%s8 + $0x20] sm:$0xff]
    %v2640 = vld [vmem:[%s8 + $0x28] sm:$0xff]
    %v2641 = vld [vmem:[%s8 + $0x30] sm:$0xff]
    %v2642 = vld [vmem:[%s8 + $0x38] sm:$0xff]
    %v2643 = vld [vmem:[%s9] sm:$0xff]
    %v2644 = vld [vmem:[%s9 + $0x8] sm:$0xff]
    %2645 = vmatprep.subr.mxu0 %v2644
    %2646 = vmatpush1.msra.mxu0 %v2643
    %2647 = vmatprep.subr.mxu0 0.0
    %2648 = vmatpush1.msra.mxu0 0.0
    %2649 = vmatprep.subr.mxu0 0.0
    %2650 = vmatpush1.msra.mxu0 0.0
    %2651 = vmatprep.subr.mxu0 0.0
    %2652 = vmatpush1.msra.mxu0 0.0
    %2653 = vmatprep.subr.mxu0 0.0
    %2654 = vmatpush1.msra.mxu0 0.0
    %2655 = vmatprep.subr.mxu0 0.0
    %2656 = vmatpush1.msra.mxu0 0.0
    %2657 = vmatprep.subr.mxu0 0.0
    %2658 = vmatpush1.msra.mxu0 0.0
    %2659 = vmatprep.subr.mxu0 0.0
    %2660 = vmatpush1.msra.mxu0 0.0
    %2661 = vmatprep.subr.mxu0 0.0
    %2662 = vmatpush1.msra.mxu0 0.0
    %2663 = vmatprep.subr.mxu0 0.0
    %2664 = vmatpush1.msra.mxu0 0.0
    %2665 = vmatprep.subr.mxu0 0.0
    %2666 = vmatpush1.msra.mxu0 0.0
    %2667 = vmatprep.subr.mxu0 0.0
    %2668 = vmatpush1.msra.mxu0 0.0
    %2669 = vmatprep.subr.mxu0 0.0
    %2670 = vmatpush1.msra.mxu0 0.0
    %2671 = vmatprep.subr.mxu0 0.0
    %2672 = vmatpush1.msra.mxu0 0.0
    %2673 = vmatprep.subr.mxu0 0.0
    %2674 = vmatpush1.msra.mxu0 0.0
    %2675 = vmatprep.subr.mxu0 0.0
    %2676 = vmatpush1.msra.mxu0 0.0
    %2677 = vmatprep.subr.mxu0 0.0
    %2678 = vmatpush1.msra.mxu0 0.0
    %2679 = vmatprep.subr.mxu0 0.0
    %2680 = vmatpush1.msra.mxu0 0.0
    %2681 = vmatprep.subr.mxu0 0.0
    %2682 = vmatpush1.msra.mxu0 0.0
    %2683 = vmatprep.subr.mxu0 0.0
    %2684 = vmatpush1.msra.mxu0 0.0
    %2685 = vmatprep.subr.mxu0 0.0
    %2686 = vmatpush1.msra.mxu0 0.0
    %2687 = vmatprep.subr.mxu0 0.0
    %2688 = vmatpush1.msra.mxu0 0.0
    %2689 = vmatprep.subr.mxu0 0.0
    %2690 = vmatpush1.msra.mxu0 0.0
    %2691 = vmatprep.subr.mxu0 0.0
    %2692 = vmatpush1.msra.mxu0 0.0
    %2693 = vmatprep.subr.mxu0 0.0
    %2694 = vmatpush1.msra.mxu0 0.0
    %2695 = vmatprep.subr.mxu0 0.0
    %2696 = vmatpush1.msra.mxu0 0.0
    %2697 = vmatprep.subr.mxu0 0.0
    %2698 = vmatpush1.msra.mxu0 0.0
    %2699 = vmatprep.subr.mxu0 0.0
    %2700 = vmatpush1.msra.mxu0 0.0
    %2701 = vmatprep.subr.mxu0 0.0
    %2702 = vmatpush1.msra.mxu0 0.0
    %2703 = vmatprep.subr.mxu0 0.0
    %2704 = vmatpush1.msra.mxu0 0.0
    %2705 = vmatprep.subr.mxu0 0.0
    %2706 = vmatpush1.msra.mxu0 0.0
    %2707 = vmatprep.subr.mxu0 0.0
    %2708 = vmatpush1.msra.mxu0 0.0
    %2709 = vmatprep.mubr.f32.mxu0 0.0
    %2710 = vmatmul.mubr.f32.gmra.mrb[0].mxu0 %v1853
    %v2711 = vpop.f32.mrb[0].mxu0
    %v2712 = vadd.f32 0.0, %v2711
    %v2713 = vpop.f32.mrb[0].mxu0
    %v2714 = vadd.f32 0.0, %v2713
    %2715 = vdwg.mxu0
    %2717 = vrot.lane.b32.xlu0 %v2634, 32
    %v2718 = vpop.permute.xlu0 %2717
    %v2719 = vsel %vm77, %v2718, 0
    %2721 = vmatprep.subr.mxu0 %v2636
    %2722 = vmatpush1.msra.mxu0 %v2635
    %2723 = vmatprep.subr.mxu0 %v2638
    %2724 = vmatpush1.msra.mxu0 %v2637
    %2725 = vmatprep.subr.mxu0 %v2640
    %2726 = vmatpush1.msra.mxu0 %v2639
    %2727 = vmatprep.subr.mxu0 %v2642
    %2728 = vmatpush1.msra.mxu0 %v2641
    %2729 = vmatprep.subr.mxu0 0.0
    %2730 = vmatpush1.msra.mxu0 0.0
    %2731 = vmatprep.subr.mxu0 0.0
    %2732 = vmatpush1.msra.mxu0 0.0
    %2733 = vmatprep.subr.mxu0 0.0
    %2734 = vmatpush1.msra.mxu0 0.0
    %2735 = vmatprep.subr.mxu0 0.0
    %2736 = vmatpush1.msra.mxu0 0.0
    %2737 = vmatprep.subr.mxu0 0.0
    %2738 = vmatpush1.msra.mxu0 0.0
    %2739 = vmatprep.subr.mxu0 0.0
    %2740 = vmatpush1.msra.mxu0 0.0
    %2741 = vmatprep.subr.mxu0 0.0
    %2742 = vmatpush1.msra.mxu0 0.0
    %2743 = vmatprep.subr.mxu0 0.0
    %2744 = vmatpush1.msra.mxu0 0.0
    %2745 = vmatprep.subr.mxu0 0.0
    %2746 = vmatpush1.msra.mxu0 0.0
    %2747 = vmatprep.subr.mxu0 0.0
    %2748 = vmatpush1.msra.mxu0 0.0
    %2749 = vmatprep.subr.mxu0 0.0
    %2750 = vmatpush1.msra.mxu0 0.0
    %2751 = vmatprep.subr.mxu0 0.0
    %2752 = vmatpush1.msra.mxu0 0.0
    %2753 = vmatprep.subr.mxu0 0.0
    %2754 = vmatpush1.msra.mxu0 0.0
    %2755 = vmatprep.subr.mxu0 0.0
    %2756 = vmatpush1.msra.mxu0 0.0
    %2757 = vmatprep.subr.mxu0 0.0
    %2758 = vmatpush1.msra.mxu0 0.0
    %2759 = vmatprep.subr.mxu0 0.0
    %2760 = vmatpush1.msra.mxu0 0.0
    %2761 = vmatprep.subr.mxu0 0.0
    %2762 = vmatpush1.msra.mxu0 0.0
    %2763 = vmatprep.subr.mxu0 0.0
    %2764 = vmatpush1.msra.mxu0 0.0
    %2765 = vmatprep.subr.mxu0 0.0
    %2766 = vmatpush1.msra.mxu0 0.0
    %2767 = vmatprep.subr.mxu0 0.0
    %2768 = vmatpush1.msra.mxu0 0.0
    %2769 = vmatprep.subr.mxu0 0.0
    %2770 = vmatpush1.msra.mxu0 0.0
    %2771 = vmatprep.subr.mxu0 0.0
    %2772 = vmatpush1.msra.mxu0 0.0
    %2773 = vmatprep.subr.mxu0 0.0
    %2774 = vmatpush1.msra.mxu0 0.0
    %2775 = vmatprep.subr.mxu0 0.0
    %2776 = vmatpush1.msra.mxu0 0.0
    %2777 = vmatprep.subr.mxu0 0.0
    %2778 = vmatpush1.msra.mxu0 0.0
    %2779 = vmatprep.subr.mxu0 0.0
    %2780 = vmatpush1.msra.mxu0 0.0
    %2781 = vmatprep.subr.mxu0 0.0
    %2782 = vmatpush1.msra.mxu0 0.0
    %2783 = vmatprep.subr.mxu0 0.0
    %2784 = vmatpush1.msra.mxu0 0.0
    %2785 = vmatprep.mubr.f32.mxu0 0.0
    %2786 = vmatmul.mubr.f32.gmra.mrb[0].mxu0 %v2719
    %v2787 = vpop.f32.mrb[0].mxu0
    %v2788 = vadd.f32 %v2712, %v2787
    %v2789 = vpop.f32.mrb[0].mxu0
    %v2790 = vadd.f32 %v2714, %v2789
    %2791 = vdwg.mxu0
    %v2792 = vld [vmem:[%s10] sm:$0xff]
    %v2793 = vld [vmem:[%s10 + $0x8] sm:$0xff]
    %v2795 = vsel %vm346, %v1850, 0
    %2797 = vmatprep.subr.mxu0 %v2793
    %2798 = vmatpush1.msra.mxu0 %v2792
    %2799 = vmatprep.subr.mxu0 0.0
    %2800 = vmatpush1.msra.mxu0 0.0
    %2801 = vmatprep.subr.mxu0 0.0
    %2802 = vmatpush1.msra.mxu0 0.0
    %2803 = vmatprep.subr.mxu0 0.0
    %2804 = vmatpush1.msra.mxu0 0.0
    %2805 = vmatprep.subr.mxu0 0.0
    %2806 = vmatpush1.msra.mxu0 0.0
    %2807 = vmatprep.subr.mxu0 0.0
    %2808 = vmatpush1.msra.mxu0 0.0
    %2809 = vmatprep.subr.mxu0 0.0
    %2810 = vmatpush1.msra.mxu0 0.0
    %2811 = vmatprep.subr.mxu0 0.0
    %2812 = vmatpush1.msra.mxu0 0.0
    %2813 = vmatprep.subr.mxu0 0.0
    %2814 = vmatpush1.msra.mxu0 0.0
    %2815 = vmatprep.subr.mxu0 0.0
    %2816 = vmatpush1.msra.mxu0 0.0
    %2817 = vmatprep.subr.mxu0 0.0
    %2818 = vmatpush1.msra.mxu0 0.0
    %2819 = vmatprep.subr.mxu0 0.0
    %2820 = vmatpush1.msra.mxu0 0.0
    %2821 = vmatprep.subr.mxu0 0.0
    %2822 = vmatpush1.msra.mxu0 0.0
    %2823 = vmatprep.subr.mxu0 0.0
    %2824 = vmatpush1.msra.mxu0 0.0
    %2825 = vmatprep.subr.mxu0 0.0
    %2826 = vmatpush1.msra.mxu0 0.0
    %2827 = vmatprep.subr.mxu0 0.0
    %2828 = vmatpush1.msra.mxu0 0.0
    %2829 = vmatprep.subr.mxu0 0.0
    %2830 = vmatpush1.msra.mxu0 0.0
    %2831 = vmatprep.subr.mxu0 0.0
    %2832 = vmatpush1.msra.mxu0 0.0
    %2833 = vmatprep.subr.mxu0 0.0
    %2834 = vmatpush1.msra.mxu0 0.0
    %2835 = vmatprep.subr.mxu0 0.0
    %2836 = vmatpush1.msra.mxu0 0.0
    %2837 = vmatprep.subr.mxu0 0.0
    %2838 = vmatpush1.msra.mxu0 0.0
    %2839 = vmatprep.subr.mxu0 0.0
    %2840 = vmatpush1.msra.mxu0 0.0
    %2841 = vmatprep.subr.mxu0 0.0
    %2842 = vmatpush1.msra.mxu0 0.0
    %2843 = vmatprep.subr.mxu0 0.0
    %2844 = vmatpush1.msra.mxu0 0.0
    %2845 = vmatprep.subr.mxu0 0.0
    %2846 = vmatpush1.msra.mxu0 0.0
    %2847 = vmatprep.subr.mxu0 0.0
    %2848 = vmatpush1.msra.mxu0 0.0
    %2849 = vmatprep.subr.mxu0 0.0
    %2850 = vmatpush1.msra.mxu0 0.0
    %2851 = vmatprep.subr.mxu0 0.0
    %2852 = vmatpush1.msra.mxu0 0.0
    %2853 = vmatprep.subr.mxu0 0.0
    %2854 = vmatpush1.msra.mxu0 0.0
    %2855 = vmatprep.subr.mxu0 0.0
    %2856 = vmatpush1.msra.mxu0 0.0
    %2857 = vmatprep.subr.mxu0 0.0
    %2858 = vmatpush1.msra.mxu0 0.0
    %2859 = vmatprep.subr.mxu0 0.0
    %2860 = vmatpush1.msra.mxu0 0.0
    %2861 = vmatprep.mubr.f32.mxu0 0.0
    %2862 = vmatmul.mubr.f32.gmra.mrb[0].mxu0 %v2795
    %v2863 = vpop.f32.mrb[0].mxu0
    %v2864 = vadd.f32 0.0, %v2863
    %v2865 = vpop.f32.mrb[0].mxu0
    %v2866 = vadd.f32 0.0, %v2865
    %2867 = vdwg.mxu0
    %v2868 = vadd.f32 %v2788, %v2864
    %v2869 = vadd.f32 %v2790, %v2866
    %v2870 = vld [vmem:[%s4] sm:$0xf]
    %v2873 = vunpack.c.l.s4 1983009808
    %v2874 = vunpack.c.0.s8 %v2873
    %v2875 = vlaneseq
    %v2876 = vshrl.u32 %v2875, 7
    %v2877 = vsub.s32 %v2874, %v2876
    %v2878 = vrot.slane %v2870, %v2877
    %v2879 = vcombine.high %v2878, %v2878
    %v2882 = vadd.f32 %v2868, %v2878
    %v2883 = vadd.f32 %v2869, %v2879
    %v2884 = vtanh.pop %v2882
    %v2885 = vtanh.pop %v2883
    %v2886 = vld [vmem:[%s11] sm:$0xff]
    %v2887 = vld [vmem:[%s11 + $0x8] sm:$0xff]
    %v2888 = vld [vmem:[%s11 + $0x10] sm:$0xff]
    %v2889 = vld [vmem:[%s11 + $0x18] sm:$0xff]
    %v2890 = vld [vmem:[%s11 + $0x20] sm:$0xff]
    %v2891 = vld [vmem:[%s11 + $0x28] sm:$0xff]
    %v2892 = vld [vmem:[%s11 + $0x30] sm:$0xff]
    %v2893 = vld [vmem:[%s11 + $0x38] sm:$0xff]
    %v2894 = vld [vmem:[%s11 + $0x40] sm:$0xff]
    %v2895 = vld [vmem:[%s11 + $0x48] sm:$0xff]
    %v2896 = vld [vmem:[%s11 + $0x50] sm:$0xff]
    %v2897 = vld [vmem:[%s11 + $0x58] sm:$0xff]
    %v2898 = vld [vmem:[%s11 + $0x60] sm:$0xff]
    %v2899 = vld [vmem:[%s11 + $0x68] sm:$0xff]
    %v2900 = vld [vmem:[%s11 + $0x70] sm:$0xff]
    %v2901 = vld [vmem:[%s11 + $0x78] sm:$0xff]
    %v2902 = vld [vmem:[%s11 + $0x80] sm:$0xff]
    %v2903 = vld [vmem:[%s11 + $0x88] sm:$0xff]
    %v2904 = vld [vmem:[%s11 + $0x90] sm:$0xff]
    %v2905 = vld [vmem:[%s11 + $0x98] sm:$0xff]
    %v2906 = vld [vmem:[%s11 + $0xa0] sm:$0xff]
    %v2907 = vld [vmem:[%s11 + $0xa8] sm:$0xff]
    %v2908 = vld [vmem:[%s11 + $0xb0] sm:$0xff]
    %v2909 = vld [vmem:[%s11 + $0xb8] sm:$0xff]
    %v2910 = vld [vmem:[%s11 + $0xc0] sm:$0xff]
    %v2911 = vld [vmem:[%s11 + $0xc8] sm:$0xff]
    %v2912 = vld [vmem:[%s11 + $0xd0] sm:$0xff]
    %v2913 = vld [vmem:[%s11 + $0xd8] sm:$0xff]
    %v2914 = vld [vmem:[%s11 + $0xe0] sm:$0xff]
    %v2915 = vld [vmem:[%s11 + $0xe8] sm:$0xff]
    %v2916 = vld [vmem:[%s11 + $0xf0] sm:$0xff]
    %v2917 = vld [vmem:[%s11 + $0xf8] sm:$0xff]
    %v2918 = vld [vmem:[%s5] sm:$0x3]
    %2919 = vmatprep.subr.mxu0 0.0
    %2920 = vmatpush1.msra.mxu0 %v2886
    %2921 = vmatprep.subr.mxu0 0.0
    %2922 = vmatpush1.msra.mxu0 %v2887
    %2923 = vmatprep.subr.mxu0 0.0
    %2924 = vmatpush1.msra.mxu0 %v2888
    %2925 = vmatprep.subr.mxu0 0.0
    %2926 = vmatpush1.msra.mxu0 %v2889
    %2927 = vmatprep.subr.mxu0 0.0
    %2928 = vmatpush1.msra.mxu0 %v2890
    %2929 = vmatprep.subr.mxu0 0.0
    %2930 = vmatpush1.msra.mxu0 %v2891
    %2931 = vmatprep.subr.mxu0 0.0
    %2932 = vmatpush1.msra.mxu0 %v2892
    %2933 = vmatprep.subr.mxu0 0.0
    %2934 = vmatpush1.msra.mxu0 %v2893
    %2935 = vmatprep.subr.mxu0 0.0
    %2936 = vmatpush1.msra.mxu0 %v2894
    %2937 = vmatprep.subr.mxu0 0.0
    %2938 = vmatpush1.msra.mxu0 %v2895
    %2939 = vmatprep.subr.mxu0 0.0
    %2940 = vmatpush1.msra.mxu0 %v2896
    %2941 = vmatprep.subr.mxu0 0.0
    %2942 = vmatpush1.msra.mxu0 %v2897
    %2943 = vmatprep.subr.mxu0 0.0
    %2944 = vmatpush1.msra.mxu0 %v2898
    %2945 = vmatprep.subr.mxu0 0.0
    %2946 = vmatpush1.msra.mxu0 %v2899
    %2947 = vmatprep.subr.mxu0 0.0
    %2948 = vmatpush1.msra.mxu0 %v2900
    %2949 = vmatprep.subr.mxu0 0.0
    %2950 = vmatpush1.msra.mxu0 %v2901
    %2951 = vmatprep.subr.mxu0 0.0
    %2952 = vmatpush1.msra.mxu0 %v2902
    %2953 = vmatprep.subr.mxu0 0.0
    %2954 = vmatpush1.msra.mxu0 %v2903
    %2955 = vmatprep.subr.mxu0 0.0
    %2956 = vmatpush1.msra.mxu0 %v2904
    %2957 = vmatprep.subr.mxu0 0.0
    %2958 = vmatpush1.msra.mxu0 %v2905
    %2959 = vmatprep.subr.mxu0 0.0
    %2960 = vmatpush1.msra.mxu0 %v2906
    %2961 = vmatprep.subr.mxu0 0.0
    %2962 = vmatpush1.msra.mxu0 %v2907
    %2963 = vmatprep.subr.mxu0 0.0
    %2964 = vmatpush1.msra.mxu0 %v2908
    %2965 = vmatprep.subr.mxu0 0.0
    %2966 = vmatpush1.msra.mxu0 %v2909
    %2967 = vmatprep.subr.mxu0 0.0
    %2968 = vmatpush1.msra.mxu0 %v2910
    %2969 = vmatprep.subr.mxu0 0.0
    %2970 = vmatpush1.msra.mxu0 %v2911
    %2971 = vmatprep.subr.mxu0 0.0
    %2972 = vmatpush1.msra.mxu0 %v2912
    %2973 = vmatprep.subr.mxu0 0.0
    %2974 = vmatpush1.msra.mxu0 %v2913
    %2975 = vmatprep.subr.mxu0 0.0
    %2976 = vmatpush1.msra.mxu0 %v2914
    %2977 = vmatprep.subr.mxu0 0.0
    %2978 = vmatpush1.msra.mxu0 %v2915
    %2979 = vmatprep.subr.mxu0 0.0
    %2980 = vmatpush1.msra.mxu0 %v2916
    %2981 = vmatprep.subr.mxu0 0.0
    %2982 = vmatpush1.msra.mxu0 %v2917
    %2983 = vmatprep.mubr.f32.mxu0 %v2885
    %2984 = vmatmul.mubr.f32.gmra.mrb[0].mxu0 %v2884
    %v2985 = vpop.f32.mrb[0].mxu0
    %v2986 = vadd.f32 %v2918, %v2985
    %v2987 = vpop.f32.mrb[0].mxu0
    %2988 = vdwg.mxu0
    %v2989 = vsel %vm690, %v2986, -inf
    %2990 = vmax.xlane.f32.xlu0 %v2989
    %v2991 = vpop.xlane.xlu0 %2990
    %v2992 = vsub.f32 %v2986, %v2991
    %v2993 = vmul.f32 %v2992, 1.442695
    %v2994 = vpow.pop %v2993
    %v2995 = vsel %vm690, %v2994, 0.0
    %2996 = vadd.xlane.f32.xlu0 %v2995
    %v2997 = vpop.xlane.xlu0 %2996
    %v2998 = vrcp.pop %v2997
    %v2999 = vmul.f32 %v2994, %v2998
    %v3000 = vadd.f32 %v1850, %v2999
    %v3001 = vld [vmem:[%s3] sm:$0xff]
    %v3003 = vsel %vm346, %v2999, 0
    %3005 = vmatprep.subr.mxu0 0.0
    %3006 = vmatpush1.msra.mxu0 %v3001
    %3007 = vmatprep.subr.mxu0 0.0
    %3008 = vmatpush1.msra.mxu0 0.0
    %3009 = vmatprep.subr.mxu0 0.0
    %3010 = vmatpush1.msra.mxu0 0.0
    %3011 = vmatprep.subr.mxu0 0.0
    %3012 = vmatpush1.msra.mxu0 0.0
    %3013 = vmatprep.subr.mxu0 0.0
    %3014 = vmatpush1.msra.mxu0 0.0
    %3015 = vmatprep.subr.mxu0 0.0
    %3016 = vmatpush1.msra.mxu0 0.0
    %3017 = vmatprep.subr.mxu0 0.0
    %3018 = vmatpush1.msra.mxu0 0.0
    %3019 = vmatprep.subr.mxu0 0.0
    %3020 = vmatpush1.msra.mxu0 0.0
    %3021 = vmatprep.subr.mxu0 0.0
    %3022 = vmatpush1.msra.mxu0 0.0
    %3023 = vmatprep.subr.mxu0 0.0
    %3024 = vmatpush1.msra.mxu0 0.0
    %3025 = vmatprep.subr.mxu0 0.0
    %3026 = vmatpush1.msra.mxu0 0.0
    %3027 = vmatprep.subr.mxu0 0.0
    %3028 = vmatpush1.msra.mxu0 0.0
    %3029 = vmatprep.subr.mxu0 0.0
    %3030 = vmatpush1.msra.mxu0 0.0
    %3031 = vmatprep.subr.mxu0 0.0
    %3032 = vmatpush1.msra.mxu0 0.0
    %3033 = vmatprep.subr.mxu0 0.0
    %3034 = vmatpush1.msra.mxu0 0.0
    %3035 = vmatprep.subr.mxu0 0.0
    %3036 = vmatpush1.msra.mxu0 0.0
    %3037 = vmatprep.subr.mxu0 0.0
    %3038 = vmatpush1.msra.mxu0 0.0
    %3039 = vmatprep.subr.mxu0 0.0
    %3040 = vmatpush1.msra.mxu0 0.0
    %3041 = vmatprep.subr.mxu0 0.0
    %3042 = vmatpush1.msra.mxu0 0.0
    %3043 = vmatprep.subr.mxu0 0.0
    %3044 = vmatpush1.msra.mxu0 0.0
    %3045 = vmatprep.subr.mxu0 0.0
    %3046 = vmatpush1.msra.mxu0 0.0
    %3047 = vmatprep.subr.mxu0 0.0
    %3048 = vmatpush1.msra.mxu0 0.0
    %3049 = vmatprep.subr.mxu0 0.0
    %3050 = vmatpush1.msra.mxu0 0.0
    %3051 = vmatprep.subr.mxu0 0.0
    %3052 = vmatpush1.msra.mxu0 0.0
    %3053 = vmatprep.subr.mxu0 0.0
    %3054 = vmatpush1.msra.mxu0 0.0
    %3055 = vmatprep.subr.mxu0 0.0
    %3056 = vmatpush1.msra.mxu0 0.0
    %3057 = vmatprep.subr.mxu0 0.0
    %3058 = vmatpush1.msra.mxu0 0.0
    %3059 = vmatprep.subr.mxu0 0.0
    %3060 = vmatpush1.msra.mxu0 0.0
    %3061 = vmatprep.subr.mxu0 0.0
    %3062 = vmatpush1.msra.mxu0 0.0
    %3063 = vmatprep.subr.mxu0 0.0
    %3064 = vmatpush1.msra.mxu0 0.0
    %3065 = vmatprep.subr.mxu0 0.0
    %3066 = vmatpush1.msra.mxu0 0.0
    %3067 = vmatprep.subr.mxu0 0.0
    %3068 = vmatpush1.msra.mxu0 0.0
    %3069 = vmatprep.mubr.f32.mxu0 0.0
    %3070 = vmatmul.mubr.f32.gmra.mrb[0].mxu0 %v3003
    %v3071 = vpop.f32.mrb[0].mxu0
    %v3072 = vadd.f32 0.0, %v3071
    %v3073 = vpop.f32.mrb[0].mxu0
    %3074 = vdwg.mxu0
    %v3075 = vmul.f32 %v3072, %v62
    %v3076 = vmul.f32 %v3072, %v65
    %3078 = vrot.lane.b32.xlu0 %v3076, 96
    %v3079 = vpop.permute.xlu0 %3078
    %v3081 = vadd.f32 %v3075, %v3079
    %v3082 = vld [vmem:[%s12] sm:$0xff]
    %v3083 = vld [vmem:[%s12 + $0x8] sm:$0xff]
    %v3084 = vld [vmem:[%s12 + $0x10] sm:$0xff]
    %v3085 = vld [vmem:[%s12 + $0x18] sm:$0xff]
    %v3086 = vld [vmem:[%s12 + $0x20] sm:$0xff]
    %v3087 = vld [vmem:[%s12 + $0x28] sm:$0xff]
    %v3088 = vld [vmem:[%s12 + $0x30] sm:$0xff]
    %v3089 = vld [vmem:[%s12 + $0x38] sm:$0xff]
    %v3091 = vsel %vm77, %v3081, 0
    %3093 = vmatprep.subr.mxu0 0.0
    %3094 = vmatpush1.msra.mxu0 %v3086
    %3095 = vmatprep.subr.mxu0 0.0
    %3096 = vmatpush1.msra.mxu0 %v3087
    %3097 = vmatprep.subr.mxu0 0.0
    %3098 = vmatpush1.msra.mxu0 %v3088
    %3099 = vmatprep.subr.mxu0 0.0
    %3100 = vmatpush1.msra.mxu0 %v3089
    %3101 = vmatprep.subr.mxu0 0.0
    %3102 = vmatpush1.msra.mxu0 0.0
    %3103 = vmatprep.subr.mxu0 0.0
    %3104 = vmatpush1.msra.mxu0 0.0
    %3105 = vmatprep.subr.mxu0 0.0
    %3106 = vmatpush1.msra.mxu0 0.0
    %3107 = vmatprep.subr.mxu0 0.0
    %3108 = vmatpush1.msra.mxu0 0.0
    %3109 = vmatprep.subr.mxu0 0.0
    %3110 = vmatpush1.msra.mxu0 0.0
    %3111 = vmatprep.subr.mxu0 0.0
    %3112 = vmatpush1.msra.mxu0 0.0
    %3113 = vmatprep.subr.mxu0 0.0
    %3114 = vmatpush1.msra.mxu0 0.0
    %3115 = vmatprep.subr.mxu0 0.0
    %3116 = vmatpush1.msra.mxu0 0.0
    %3117 = vmatprep.subr.mxu0 0.0
    %3118 = vmatpush1.msra.mxu0 0.0
    %3119 = vmatprep.subr.mxu0 0.0
    %3120 = vmatpush1.msra.mxu0 0.0
    %3121 = vmatprep.subr.mxu0 0.0
    %3122 = vmatpush1.msra.mxu0 0.0
    %3123 = vmatprep.subr.mxu0 0.0
    %3124 = vmatpush1.msra.mxu0 0.0
    %3125 = vmatprep.subr.mxu0 0.0
    %3126 = vmatpush1.msra.mxu0 0.0
    %3127 = vmatprep.subr.mxu0 0.0
    %3128 = vmatpush1.msra.mxu0 0.0
    %3129 = vmatprep.subr.mxu0 0.0
    %3130 = vmatpush1.msra.mxu0 0.0
    %3131 = vmatprep.subr.mxu0 0.0
    %3132 = vmatpush1.msra.mxu0 0.0
    %3133 = vmatprep.subr.mxu0 0.0
    %3134 = vmatpush1.msra.mxu0 0.0
    %3135 = vmatprep.subr.mxu0 0.0
    %3136 = vmatpush1.msra.mxu0 0.0
    %3137 = vmatprep.subr.mxu0 0.0
    %3138 = vmatpush1.msra.mxu0 0.0
    %3139 = vmatprep.subr.mxu0 0.0
    %3140 = vmatpush1.msra.mxu0 0.0
    %3141 = vmatprep.subr.mxu0 0.0
    %3142 = vmatpush1.msra.mxu0 0.0
    %3143 = vmatprep.subr.mxu0 0.0
    %3144 = vmatpush1.msra.mxu0 0.0
    %3145 = vmatprep.subr.mxu0 0.0
    %3146 = vmatpush1.msra.mxu0 0.0
    %3147 = vmatprep.subr.mxu0 0.0
    %3148 = vmatpush1.msra.mxu0 0.0
    %3149 = vmatprep.subr.mxu0 0.0
    %3150 = vmatpush1.msra.mxu0 0.0
    %3151 = vmatprep.subr.mxu0 0.0
    %3152 = vmatpush1.msra.mxu0 0.0
    %3153 = vmatprep.subr.mxu0 0.0
    %3154 = vmatpush1.msra.mxu0 0.0
    %3155 = vmatprep.subr.mxu0 0.0
    %3156 = vmatpush1.msra.mxu0 0.0
    %3157 = vmatprep.mubr.f32.mxu0 0.0
    %3158 = vmatmul.mubr.f32.gmra.mrb[0].mxu0 %v3091
    %v3159 = vpop.f32.mrb[0].mxu0
    %v3160 = vadd.f32 0.0, %v3159
    %v3161 = vpop.f32.mrb[0].mxu0
    %3162 = vdwg.mxu0
    %3163 = vmatprep.subr.mxu0 0.0
    %3164 = vmatpush1.msra.mxu0 %v3082
    %3165 = vmatprep.subr.mxu0 0.0
    %3166 = vmatpush1.msra.mxu0 %v3083
    %3167 = vmatprep.subr.mxu0 0.0
    %3168 = vmatpush1.msra.mxu0 %v3084
    %3169 = vmatprep.subr.mxu0 0.0
    %3170 = vmatpush1.msra.mxu0 %v3085
    %3171 = vmatprep.subr.mxu0 0.0
    %3172 = vmatpush1.msra.mxu0 0.0
    %3173 = vmatprep.subr.mxu0 0.0
    %3174 = vmatpush1.msra.mxu0 0.0
    %3175 = vmatprep.subr.mxu0 0.0
    %3176 = vmatpush1.msra.mxu0 0.0
    %3177 = vmatprep.subr.mxu0 0.0
    %3178 = vmatpush1.msra.mxu0 0.0
    %3179 = vmatprep.subr.mxu0 0.0
    %3180 = vmatpush1.msra.mxu0 0.0
    %3181 = vmatprep.subr.mxu0 0.0
    %3182 = vmatpush1.msra.mxu0 0.0
    %3183 = vmatprep.subr.mxu0 0.0
    %3184 = vmatpush1.msra.mxu0 0.0
    %3185 = vmatprep.subr.mxu0 0.0
    %3186 = vmatpush1.msra.mxu0 0.0
    %3187 = vmatprep.subr.mxu0 0.0
    %3188 = vmatpush1.msra.mxu0 0.0
    %3189 = vmatprep.subr.mxu0 0.0
    %3190 = vmatpush1.msra.mxu0 0.0
    %3191 = vmatprep.subr.mxu0 0.0
    %3192 = vmatpush1.msra.mxu0 0.0
    %3193 = vmatprep.subr.mxu0 0.0
    %3194 = vmatpush1.msra.mxu0 0.0
    %3195 = vmatprep.subr.mxu0 0.0
    %3196 = vmatpush1.msra.mxu0 0.0
    %3197 = vmatprep.subr.mxu0 0.0
    %3198 = vmatpush1.msra.mxu0 0.0
    %3199 = vmatprep.subr.mxu0 0.0
    %3200 = vmatpush1.msra.mxu0 0.0
    %3201 = vmatprep.subr.mxu0 0.0
    %3202 = vmatpush1.msra.mxu0 0.0
    %3203 = vmatprep.subr.mxu0 0.0
    %3204 = vmatpush1.msra.mxu0 0.0
    %3205 = vmatprep.subr.mxu0 0.0
    %3206 = vmatpush1.msra.mxu0 0.0
    %3207 = vmatprep.subr.mxu0 0.0
    %3208 = vmatpush1.msra.mxu0 0.0
    %3209 = vmatprep.subr.mxu0 0.0
    %3210 = vmatpush1.msra.mxu0 0.0
    %3211 = vmatprep.subr.mxu0 0.0
    %3212 = vmatpush1.msra.mxu0 0.0
    %3213 = vmatprep.subr.mxu0 0.0
    %3214 = vmatpush1.msra.mxu0 0.0
    %3215 = vmatprep.subr.mxu0 0.0
    %3216 = vmatpush1.msra.mxu0 0.0
    %3217 = vmatprep.subr.mxu0 0.0
    %3218 = vmatpush1.msra.mxu0 0.0
    %3219 = vmatprep.subr.mxu0 0.0
    %3220 = vmatpush1.msra.mxu0 0.0
    %3221 = vmatprep.subr.mxu0 0.0
    %3222 = vmatpush1.msra.mxu0 0.0
    %3223 = vmatprep.subr.mxu0 0.0
    %3224 = vmatpush1.msra.mxu0 0.0
    %3225 = vmatprep.subr.mxu0 0.0
    %3226 = vmatpush1.msra.mxu0 0.0
    %3227 = vmatprep.mubr.f32.mxu0 0.0
    %3228 = vmatmul.mubr.f32.gmra.mrb[0].mxu0 %v2719
    %v3229 = vpop.f32.mrb[0].mxu0
    %v3230 = vadd.f32 %v3160, %v3229
    %v3231 = vpop.f32.mrb[0].mxu0
    %3232 = vdwg.mxu0
    %v3233 = vld [vmem:[%s12 + $0x40] sm:$0xff]
    %v3234 = vld [vmem:[%s12 + $0x48] sm:$0xff]
    %v3235 = vld [vmem:[%s12 + $0x50] sm:$0xff]
    %v3236 = vld [vmem:[%s12 + $0x58] sm:$0xff]
    %3237 = vmatprep.subr.mxu0 0.0
    %3238 = vmatpush1.msra.mxu0 %v3233
    %3239 = vmatprep.subr.mxu0 0.0
    %3240 = vmatpush1.msra.mxu0 %v3234
    %3241 = vmatprep.subr.mxu0 0.0
    %3242 = vmatpush1.msra.mxu0 %v3235
    %3243 = vmatprep.subr.mxu0 0.0
    %3244 = vmatpush1.msra.mxu0 %v3236
    %3245 = vmatprep.subr.mxu0 0.0
    %3246 = vmatpush1.msra.mxu0 0.0
    %3247 = vmatprep.subr.mxu0 0.0
    %3248 = vmatpush1.msra.mxu0 0.0
    %3249 = vmatprep.subr.mxu0 0.0
    %3250 = vmatpush1.msra.mxu0 0.0
    %3251 = vmatprep.subr.mxu0 0.0
    %3252 = vmatpush1.msra.mxu0 0.0
    %3253 = vmatprep.subr.mxu0 0.0
    %3254 = vmatpush1.msra.mxu0 0.0
    %3255 = vmatprep.subr.mxu0 0.0
    %3256 = vmatpush1.msra.mxu0 0.0
    %3257 = vmatprep.subr.mxu0 0.0
    %3258 = vmatpush1.msra.mxu0 0.0
    %3259 = vmatprep.subr.mxu0 0.0
    %3260 = vmatpush1.msra.mxu0 0.0
    %3261 = vmatprep.subr.mxu0 0.0
    %3262 = vmatpush1.msra.mxu0 0.0
    %3263 = vmatprep.subr.mxu0 0.0
    %3264 = vmatpush1.msra.mxu0 0.0
    %3265 = vmatprep.subr.mxu0 0.0
    %3266 = vmatpush1.msra.mxu0 0.0
    %3267 = vmatprep.subr.mxu0 0.0
    %3268 = vmatpush1.msra.mxu0 0.0
    %3269 = vmatprep.subr.mxu0 0.0
    %3270 = vmatpush1.msra.mxu0 0.0
    %3271 = vmatprep.subr.mxu0 0.0
    %3272 = vmatpush1.msra.mxu0 0.0
    %3273 = vmatprep.subr.mxu0 0.0
    %3274 = vmatpush1.msra.mxu0 0.0
    %3275 = vmatprep.subr.mxu0 0.0
    %3276 = vmatpush1.msra.mxu0 0.0
    %3277 = vmatprep.subr.mxu0 0.0
    %3278 = vmatpush1.msra.mxu0 0.0
    %3279 = vmatprep.subr.mxu0 0.0
    %3280 = vmatpush1.msra.mxu0 0.0
    %3281 = vmatprep.subr.mxu0 0.0
    %3282 = vmatpush1.msra.mxu0 0.0
    %3283 = vmatprep.subr.mxu0 0.0
    %3284 = vmatpush1.msra.mxu0 0.0
    %3285 = vmatprep.subr.mxu0 0.0
    %3286 = vmatpush1.msra.mxu0 0.0
    %3287 = vmatprep.subr.mxu0 0.0
    %3288 = vmatpush1.msra.mxu0 0.0
    %3289 = vmatprep.subr.mxu0 0.0
    %3290 = vmatpush1.msra.mxu0 0.0
    %3291 = vmatprep.subr.mxu0 0.0
    %3292 = vmatpush1.msra.mxu0 0.0
    %3293 = vmatprep.subr.mxu0 0.0
    %3294 = vmatpush1.msra.mxu0 0.0
    %3295 = vmatprep.subr.mxu0 0.0
    %3296 = vmatpush1.msra.mxu0 0.0
    %3297 = vmatprep.subr.mxu0 0.0
    %3298 = vmatpush1.msra.mxu0 0.0
    %3299 = vmatprep.subr.mxu0 0.0
    %3300 = vmatpush1.msra.mxu0 0.0
    %3301 = vmatprep.mubr.f32.mxu0 0.0
    %3302 = vmatmul.mubr.f32.gmra.mrb[0].mxu0 %v2276
    %v3303 = vpop.f32.mrb[0].mxu0
    %v3304 = vadd.f32 0.0, %v3303
    %v3305 = vpop.f32.mrb[0].mxu0
    %3306 = vdwg.mxu0
    %v3307 = vadd.f32 %v3230, %v3304
    %v3308 = vld [vmem:[%s13] sm:$0x1]
    %v3310 = vlaneseq
    %v3311 = vshrl.u32 %v3310, 7
    %v3312 = vsub.s32 0, %v3311
    %v3313 = vrot.slane %v3308, %v3312
    %v3315 = vadd.f32 %v3307, %v3313
    %v3316 = vxor.u32 %v3315, 2147483648
    %v3317 = vmul.f32 %v3316, 1.442695
    %v3318 = vpow.pop %v3317
    %v3319 = vadd.f32 %v3318, 1.0
    %v3320 = vrcp.pop %v3319
    %v3321 = vmul.f32 1.0, %v3320
    %v3322 = vmul.f32 %v3321, %v2183
    %v3323 = vtanh.pop %v3315
    %3325 = vrot.lane.b32.xlu0 %v3323, 64
    %v3326 = vpop.permute.xlu0 %3325
    %v3328 = vmul.f32 %v3321, %v3326
    %3330 = vrot.lane.b32.xlu0 %v3328, 32
    %v3331 = vpop.permute.xlu0 %3330
    %v3333 = vadd.f32 %v3322, %v3331
    %v3334 = vtanh.pop %v3333
    %3336 = vrot.lane.b32.xlu0 %v3334, 64
    %v3337 = vpop.permute.xlu0 %3336
    %v3339 = vmul.f32 %v3321, %v3337
    %3341 = vrot.lane.b32.xlu0 %v2371, 96
    %v3342 = vpop.permute.xlu0 %3341
    %v3344 = vmul.f32 %v3339, %v3342
    %v3345 = vld [vmem:[%s14] sm:$0xff]
    %v3346 = vld [vmem:[%s14 + $0x8] sm:$0xff]
    %v3347 = vld [vmem:[%s14 + $0x10] sm:$0xff]
    %v3348 = vld [vmem:[%s14 + $0x18] sm:$0xff]
    %v3349 = vld [vmem:[%s14 + $0x20] sm:$0xff]
    %v3350 = vld [vmem:[%s14 + $0x28] sm:$0xff]
    %v3351 = vld [vmem:[%s14 + $0x30] sm:$0xff]
    %v3352 = vld [vmem:[%s14 + $0x38] sm:$0xff]
    %3353 = vmatprep.subr.mxu0 0.0
    %3354 = vmatpush1.msra.mxu0 %v3349
    %3355 = vmatprep.subr.mxu0 0.0
    %3356 = vmatpush1.msra.mxu0 %v3350
    %3357 = vmatprep.subr.mxu0 0.0
    %3358 = vmatpush1.msra.mxu0 %v3351
    %3359 = vmatprep.subr.mxu0 0.0
    %3360 = vmatpush1.msra.mxu0 %v3352
    %3361 = vmatprep.subr.mxu0 0.0
    %3362 = vmatpush1.msra.mxu0 0.0
    %3363 = vmatprep.subr.mxu0 0.0
    %3364 = vmatpush1.msra.mxu0 0.0
    %3365 = vmatprep.subr.mxu0 0.0
    %3366 = vmatpush1.msra.mxu0 0.0
    %3367 = vmatprep.subr.mxu0 0.0
    %3368 = vmatpush1.msra.mxu0 0.0
    %3369 = vmatprep.subr.mxu0 0.0
    %3370 = vmatpush1.msra.mxu0 0.0
    %3371 = vmatprep.subr.mxu0 0.0
    %3372 = vmatpush1.msra.mxu0 0.0
    %3373 = vmatprep.subr.mxu0 0.0
    %3374 = vmatpush1.msra.mxu0 0.0
    %3375 = vmatprep.subr.mxu0 0.0
    %3376 = vmatpush1.msra.mxu0 0.0
    %3377 = vmatprep.subr.mxu0 0.0
    %3378 = vmatpush1.msra.mxu0 0.0
    %3379 = vmatprep.subr.mxu0 0.0
    %3380 = vmatpush1.msra.mxu0 0.0
    %3381 = vmatprep.subr.mxu0 0.0
    %3382 = vmatpush1.msra.mxu0 0.0
    %3383 = vmatprep.subr.mxu0 0.0
    %3384 = vmatpush1.msra.mxu0 0.0
    %3385 = vmatprep.subr.mxu0 0.0
    %3386 = vmatpush1.msra.mxu0 0.0
    %3387 = vmatprep.subr.mxu0 0.0
    %3388 = vmatpush1.msra.mxu0 0.0
    %3389 = vmatprep.subr.mxu0 0.0
    %3390 = vmatpush1.msra.mxu0 0.0
    %3391 = vmatprep.subr.mxu0 0.0
    %3392 = vmatpush1.msra.mxu0 0.0
    %3393 = vmatprep.subr.mxu0 0.0
    %3394 = vmatpush1.msra.mxu0 0.0
    %3395 = vmatprep.subr.mxu0 0.0
    %3396 = vmatpush1.msra.mxu0 0.0
    %3397 = vmatprep.subr.mxu0 0.0
    %3398 = vmatpush1.msra.mxu0 0.0
    %3399 = vmatprep.subr.mxu0 0.0
    %3400 = vmatpush1.msra.mxu0 0.0
    %3401 = vmatprep.subr.mxu0 0.0
    %3402 = vmatpush1.msra.mxu0 0.0
    %3403 = vmatprep.subr.mxu0 0.0
    %3404 = vmatpush1.msra.mxu0 0.0
    %3405 = vmatprep.subr.mxu0 0.0
    %3406 = vmatpush1.msra.mxu0 0.0
    %3407 = vmatprep.subr.mxu0 0.0
    %3408 = vmatpush1.msra.mxu0 0.0
    %3409 = vmatprep.subr.mxu0 0.0
    %3410 = vmatpush1.msra.mxu0 0.0
    %3411 = vmatprep.subr.mxu0 0.0
    %3412 = vmatpush1.msra.mxu0 0.0
    %3413 = vmatprep.subr.mxu0 0.0
    %3414 = vmatpush1.msra.mxu0 0.0
    %3415 = vmatprep.subr.mxu0 0.0
    %3416 = vmatpush1.msra.mxu0 0.0
    %3417 = vmatprep.mubr.f32.mxu0 0.0
    %3418 = vmatmul.mubr.f32.gmra.mrb[0].mxu0 %v3091
    %v3419 = vpop.f32.mrb[0].mxu0
    %v3420 = vadd.f32 0.0, %v3419
    %v3421 = vpop.f32.mrb[0].mxu0
    %3422 = vdwg.mxu0
    %3424 = vrot.lane.b32.xlu0 %v3344, 32
    %v3425 = vpop.permute.xlu0 %3424
    %v3426 = vsel %vm77, %v3425, 0
    %3428 = vmatprep.subr.mxu0 0.0
    %3429 = vmatpush1.msra.mxu0 %v3345
    %3430 = vmatprep.subr.mxu0 0.0
    %3431 = vmatpush1.msra.mxu0 %v3346
    %3432 = vmatprep.subr.mxu0 0.0
    %3433 = vmatpush1.msra.mxu0 %v3347
    %3434 = vmatprep.subr.mxu0 0.0
    %3435 = vmatpush1.msra.mxu0 %v3348
    %3436 = vmatprep.subr.mxu0 0.0
    %3437 = vmatpush1.msra.mxu0 0.0
    %3438 = vmatprep.subr.mxu0 0.0
    %3439 = vmatpush1.msra.mxu0 0.0
    %3440 = vmatprep.subr.mxu0 0.0
    %3441 = vmatpush1.msra.mxu0 0.0
    %3442 = vmatprep.subr.mxu0 0.0
    %3443 = vmatpush1.msra.mxu0 0.0
    %3444 = vmatprep.subr.mxu0 0.0
    %3445 = vmatpush1.msra.mxu0 0.0
    %3446 = vmatprep.subr.mxu0 0.0
    %3447 = vmatpush1.msra.mxu0 0.0
    %3448 = vmatprep.subr.mxu0 0.0
    %3449 = vmatpush1.msra.mxu0 0.0
    %3450 = vmatprep.subr.mxu0 0.0
    %3451 = vmatpush1.msra.mxu0 0.0
    %3452 = vmatprep.subr.mxu0 0.0
    %3453 = vmatpush1.msra.mxu0 0.0
    %3454 = vmatprep.subr.mxu0 0.0
    %3455 = vmatpush1.msra.mxu0 0.0
    %3456 = vmatprep.subr.mxu0 0.0
    %3457 = vmatpush1.msra.mxu0 0.0
    %3458 = vmatprep.subr.mxu0 0.0
    %3459 = vmatpush1.msra.mxu0 0.0
    %3460 = vmatprep.subr.mxu0 0.0
    %3461 = vmatpush1.msra.mxu0 0.0
    %3462 = vmatprep.subr.mxu0 0.0
    %3463 = vmatpush1.msra.mxu0 0.0
    %3464 = vmatprep.subr.mxu0 0.0
    %3465 = vmatpush1.msra.mxu0 0.0
    %3466 = vmatprep.subr.mxu0 0.0
    %3467 = vmatpush1.msra.mxu0 0.0
    %3468 = vmatprep.subr.mxu0 0.0
    %3469 = vmatpush1.msra.mxu0 0.0
    %3470 = vmatprep.subr.mxu0 0.0
    %3471 = vmatpush1.msra.mxu0 0.0
    %3472 = vmatprep.subr.mxu0 0.0
    %3473 = vmatpush1.msra.mxu0 0.0
    %3474 = vmatprep.subr.mxu0 0.0
    %3475 = vmatpush1.msra.mxu0 0.0
    %3476 = vmatprep.subr.mxu0 0.0
    %3477 = vmatpush1.msra.mxu0 0.0
    %3478 = vmatprep.subr.mxu0 0.0
    %3479 = vmatpush1.msra.mxu0 0.0
    %3480 = vmatprep.subr.mxu0 0.0
    %3481 = vmatpush1.msra.mxu0 0.0
    %3482 = vmatprep.subr.mxu0 0.0
    %3483 = vmatpush1.msra.mxu0 0.0
    %3484 = vmatprep.subr.mxu0 0.0
    %3485 = vmatpush1.msra.mxu0 0.0
    %3486 = vmatprep.subr.mxu0 0.0
    %3487 = vmatpush1.msra.mxu0 0.0
    %3488 = vmatprep.subr.mxu0 0.0
    %3489 = vmatpush1.msra.mxu0 0.0
    %3490 = vmatprep.subr.mxu0 0.0
    %3491 = vmatpush1.msra.mxu0 0.0
    %3492 = vmatprep.mubr.f32.mxu0 0.0
    %3493 = vmatmul.mubr.f32.gmra.mrb[0].mxu0 %v3426
    %v3494 = vpop.f32.mrb[0].mxu0
    %v3495 = vadd.f32 %v3420, %v3494
    %v3496 = vpop.f32.mrb[0].mxu0
    %3497 = vdwg.mxu0
    %v3498 = vld [vmem:[%s15] sm:$0x1]
    %v3500 = vlaneseq
    %v3501 = vshrl.u32 %v3500, 7
    %v3502 = vsub.s32 0, %v3501
    %v3503 = vrot.slane %v3498, %v3502
    %v3505 = vadd.f32 %v3495, %v3503
    %s3506 = scalar_lea.vmem [#allocation2], 4
    %3507 = vst.msk [vmem:[%s3506] sm:$0x3] %vm690, %v3505
    %3509 = vrot.lane.b32.xlu0 %v3505, 120
    %v3510 = vpop.permute.xlu0 %3509
    %s3512 = scalar_lea.vmem %s17, 4
    %3513 = vst.msk [vmem:[%s3512] sm:$0x3] %vm1213, %v3510
    %s3514 = scalar_lea.vmem [#allocation4], 4
    %3515 = vst.msk [vmem:[%s3514] sm:$0x3] %vm690, %v2999
    %s3516 = scalar_lea.vmem %s0, 6
    %v3517 = vld [vmem:[%s3516] sm:$0x3]
    %s3518 = scalar_lea.vmem %s1, 6
    %v3519 = vld [vmem:[%s3518] sm:$0x3]
    %s3520 = scalar_lea.vmem %s2, 6
    %v3521 = vld [vmem:[%s3520] sm:$0x3]
    %v3522 = vld [vmem:[%s6] sm:$0xff]
    %v3523 = vld [vmem:[%s6 + $0x8] sm:$0xff]
    %v3524 = vld [vmem:[%s6 + $0x10] sm:$0xff]
    %v3525 = vld [vmem:[%s6 + $0x18] sm:$0xff]
    %v3526 = vld [vmem:[%s6 + $0x20] sm:$0xff]
    %v3527 = vld [vmem:[%s6 + $0x28] sm:$0xff]
    %v3528 = vld [vmem:[%s6 + $0x30] sm:$0xff]
    %v3529 = vld [vmem:[%s6 + $0x38] sm:$0xff]
    %3530 = vmatprep.subr.mxu0 0.0
    %3531 = vmatpush1.msra.mxu0 %v3526
    %3532 = vmatprep.subr.mxu0 0.0
    %3533 = vmatpush1.msra.mxu0 %v3527
    %3534 = vmatprep.subr.mxu0 0.0
    %3535 = vmatpush1.msra.mxu0 %v3528
    %3536 = vmatprep.subr.mxu0 0.0
    %3537 = vmatpush1.msra.mxu0 %v3529
    %3538 = vmatprep.subr.mxu0 0.0
    %3539 = vmatpush1.msra.mxu0 0.0
    %3540 = vmatprep.subr.mxu0 0.0
    %3541 = vmatpush1.msra.mxu0 0.0
    %3542 = vmatprep.subr.mxu0 0.0
    %3543 = vmatpush1.msra.mxu0 0.0
    %3544 = vmatprep.subr.mxu0 0.0
    %3545 = vmatpush1.msra.mxu0 0.0
    %3546 = vmatprep.subr.mxu0 0.0
    %3547 = vmatpush1.msra.mxu0 0.0
    %3548 = vmatprep.subr.mxu0 0.0
    %3549 = vmatpush1.msra.mxu0 0.0
    %3550 = vmatprep.subr.mxu0 0.0
    %3551 = vmatpush1.msra.mxu0 0.0
    %3552 = vmatprep.subr.mxu0 0.0
    %3553 = vmatpush1.msra.mxu0 0.0
    %3554 = vmatprep.subr.mxu0 0.0
    %3555 = vmatpush1.msra.mxu0 0.0
    %3556 = vmatprep.subr.mxu0 0.0
    %3557 = vmatpush1.msra.mxu0 0.0
    %3558 = vmatprep.subr.mxu0 0.0
    %3559 = vmatpush1.msra.mxu0 0.0
    %3560 = vmatprep.subr.mxu0 0.0
    %3561 = vmatpush1.msra.mxu0 0.0
    %3562 = vmatprep.subr.mxu0 0.0
    %3563 = vmatpush1.msra.mxu0 0.0
    %3564 = vmatprep.subr.mxu0 0.0
    %3565 = vmatpush1.msra.mxu0 0.0
    %3566 = vmatprep.subr.mxu0 0.0
    %3567 = vmatpush1.msra.mxu0 0.0
    %3568 = vmatprep.subr.mxu0 0.0
    %3569 = vmatpush1.msra.mxu0 0.0
    %3570 = vmatprep.subr.mxu0 0.0
    %3571 = vmatpush1.msra.mxu0 0.0
    %3572 = vmatprep.subr.mxu0 0.0
    %3573 = vmatpush1.msra.mxu0 0.0
    %3574 = vmatprep.subr.mxu0 0.0
    %3575 = vmatpush1.msra.mxu0 0.0
    %3576 = vmatprep.subr.mxu0 0.0
    %3577 = vmatpush1.msra.mxu0 0.0
    %3578 = vmatprep.subr.mxu0 0.0
    %3579 = vmatpush1.msra.mxu0 0.0
    %3580 = vmatprep.subr.mxu0 0.0
    %3581 = vmatpush1.msra.mxu0 0.0
    %3582 = vmatprep.subr.mxu0 0.0
    %3583 = vmatpush1.msra.mxu0 0.0
    %3584 = vmatprep.subr.mxu0 0.0
    %3585 = vmatpush1.msra.mxu0 0.0
    %3586 = vmatprep.subr.mxu0 0.0
    %3587 = vmatpush1.msra.mxu0 0.0
    %3588 = vmatprep.subr.mxu0 0.0
    %3589 = vmatpush1.msra.mxu0 0.0
    %3590 = vmatprep.subr.mxu0 0.0
    %3591 = vmatpush1.msra.mxu0 0.0
    %3592 = vmatprep.subr.mxu0 0.0
    %3593 = vmatpush1.msra.mxu0 0.0
    %3594 = vmatprep.mubr.f32.mxu0 0.0
    %3595 = vmatmul.mubr.f32.gmra.mrb[0].mxu0 %v3091
    %v3596 = vpop.f32.mrb[0].mxu0
    %v3597 = vadd.f32 0.0, %v3596
    %v3598 = vpop.f32.mrb[0].mxu0
    %3599 = vdwg.mxu0
    %v3601 = vsel %vm77, %v3517, 0
    %3603 = vmatprep.subr.mxu0 0.0
    %3604 = vmatpush1.msra.mxu0 %v3522
    %3605 = vmatprep.subr.mxu0 0.0
    %3606 = vmatpush1.msra.mxu0 %v3523
    %3607 = vmatprep.subr.mxu0 0.0
    %3608 = vmatpush1.msra.mxu0 %v3524
    %3609 = vmatprep.subr.mxu0 0.0
    %3610 = vmatpush1.msra.mxu0 %v3525
    %3611 = vmatprep.subr.mxu0 0.0
    %3612 = vmatpush1.msra.mxu0 0.0
    %3613 = vmatprep.subr.mxu0 0.0
    %3614 = vmatpush1.msra.mxu0 0.0
    %3615 = vmatprep.subr.mxu0 0.0
    %3616 = vmatpush1.msra.mxu0 0.0
    %3617 = vmatprep.subr.mxu0 0.0
    %3618 = vmatpush1.msra.mxu0 0.0
    %3619 = vmatprep.subr.mxu0 0.0
    %3620 = vmatpush1.msra.mxu0 0.0
    %3621 = vmatprep.subr.mxu0 0.0
    %3622 = vmatpush1.msra.mxu0 0.0
    %3623 = vmatprep.subr.mxu0 0.0
    %3624 = vmatpush1.msra.mxu0 0.0
    %3625 = vmatprep.subr.mxu0 0.0
    %3626 = vmatpush1.msra.mxu0 0.0
    %3627 = vmatprep.subr.mxu0 0.0
    %3628 = vmatpush1.msra.mxu0 0.0
    %3629 = vmatprep.subr.mxu0 0.0
    %3630 = vmatpush1.msra.mxu0 0.0
    %3631 = vmatprep.subr.mxu0 0.0
    %3632 = vmatpush1.msra.mxu0 0.0
    %3633 = vmatprep.subr.mxu0 0.0
    %3634 = vmatpush1.msra.mxu0 0.0
    %3635 = vmatprep.subr.mxu0 0.0
    %3636 = vmatpush1.msra.mxu0 0.0
    %3637 = vmatprep.subr.mxu0 0.0
    %3638 = vmatpush1.msra.mxu0 0.0
    %3639 = vmatprep.subr.mxu0 0.0
    %3640 = vmatpush1.msra.mxu0 0.0
    %3641 = vmatprep.subr.mxu0 0.0
    %3642 = vmatpush1.msra.mxu0 0.0
    %3643 = vmatprep.subr.mxu0 0.0
    %3644 = vmatpush1.msra.mxu0 0.0
    %3645 = vmatprep.subr.mxu0 0.0
    %3646 = vmatpush1.msra.mxu0 0.0
    %3647 = vmatprep.subr.mxu0 0.0
    %3648 = vmatpush1.msra.mxu0 0.0
    %3649 = vmatprep.subr.mxu0 0.0
    %3650 = vmatpush1.msra.mxu0 0.0
    %3651 = vmatprep.subr.mxu0 0.0
    %3652 = vmatpush1.msra.mxu0 0.0
    %3653 = vmatprep.subr.mxu0 0.0
    %3654 = vmatpush1.msra.mxu0 0.0
    %3655 = vmatprep.subr.mxu0 0.0
    %3656 = vmatpush1.msra.mxu0 0.0
    %3657 = vmatprep.subr.mxu0 0.0
    %3658 = vmatpush1.msra.mxu0 0.0
    %3659 = vmatprep.subr.mxu0 0.0
    %3660 = vmatpush1.msra.mxu0 0.0
    %3661 = vmatprep.subr.mxu0 0.0
    %3662 = vmatpush1.msra.mxu0 0.0
    %3663 = vmatprep.subr.mxu0 0.0
    %3664 = vmatpush1.msra.mxu0 0.0
    %3665 = vmatprep.subr.mxu0 0.0
    %3666 = vmatpush1.msra.mxu0 0.0
    %3667 = vmatprep.mubr.f32.mxu0 0.0
    %3668 = vmatmul.mubr.f32.gmra.mrb[0].mxu0 %v3601
    %v3669 = vpop.f32.mrb[0].mxu0
    %v3670 = vadd.f32 %v3597, %v3669
    %v3671 = vpop.f32.mrb[0].mxu0
    %3672 = vdwg.mxu0
    %v3673 = vld [vmem:[%s6 + $0x40] sm:$0xff]
    %v3674 = vld [vmem:[%s6 + $0x48] sm:$0xff]
    %v3675 = vld [vmem:[%s6 + $0x50] sm:$0xff]
    %v3676 = vld [vmem:[%s6 + $0x58] sm:$0xff]
    %3677 = vmatprep.subr.mxu0 0.0
    %3678 = vmatpush1.msra.mxu0 %v3673
    %3679 = vmatprep.subr.mxu0 0.0
    %3680 = vmatpush1.msra.mxu0 %v3674
    %3681 = vmatprep.subr.mxu0 0.0
    %3682 = vmatpush1.msra.mxu0 %v3675
    %3683 = vmatprep.subr.mxu0 0.0
    %3684 = vmatpush1.msra.mxu0 %v3676
    %3685 = vmatprep.subr.mxu0 0.0
    %3686 = vmatpush1.msra.mxu0 0.0
    %3687 = vmatprep.subr.mxu0 0.0
    %3688 = vmatpush1.msra.mxu0 0.0
    %3689 = vmatprep.subr.mxu0 0.0
    %3690 = vmatpush1.msra.mxu0 0.0
    %3691 = vmatprep.subr.mxu0 0.0
    %3692 = vmatpush1.msra.mxu0 0.0
    %3693 = vmatprep.subr.mxu0 0.0
    %3694 = vmatpush1.msra.mxu0 0.0
    %3695 = vmatprep.subr.mxu0 0.0
    %3696 = vmatpush1.msra.mxu0 0.0
    %3697 = vmatprep.subr.mxu0 0.0
    %3698 = vmatpush1.msra.mxu0 0.0
    %3699 = vmatprep.subr.mxu0 0.0
    %3700 = vmatpush1.msra.mxu0 0.0
    %3701 = vmatprep.subr.mxu0 0.0
    %3702 = vmatpush1.msra.mxu0 0.0
    %3703 = vmatprep.subr.mxu0 0.0
    %3704 = vmatpush1.msra.mxu0 0.0
    %3705 = vmatprep.subr.mxu0 0.0
    %3706 = vmatpush1.msra.mxu0 0.0
    %3707 = vmatprep.subr.mxu0 0.0
    %3708 = vmatpush1.msra.mxu0 0.0
    %3709 = vmatprep.subr.mxu0 0.0
    %3710 = vmatpush1.msra.mxu0 0.0
    %3711 = vmatprep.subr.mxu0 0.0
    %3712 = vmatpush1.msra.mxu0 0.0
    %3713 = vmatprep.subr.mxu0 0.0
    %3714 = vmatpush1.msra.mxu0 0.0
    %3715 = vmatprep.subr.mxu0 0.0
    %3716 = vmatpush1.msra.mxu0 0.0
    %3717 = vmatprep.subr.mxu0 0.0
    %3718 = vmatpush1.msra.mxu0 0.0
    %3719 = vmatprep.subr.mxu0 0.0
    %3720 = vmatpush1.msra.mxu0 0.0
    %3721 = vmatprep.subr.mxu0 0.0
    %3722 = vmatpush1.msra.mxu0 0.0
    %3723 = vmatprep.subr.mxu0 0.0
    %3724 = vmatpush1.msra.mxu0 0.0
    %3725 = vmatprep.subr.mxu0 0.0
    %3726 = vmatpush1.msra.mxu0 0.0
    %3727 = vmatprep.subr.mxu0 0.0
    %3728 = vmatpush1.msra.mxu0 0.0
    %3729 = vmatprep.subr.mxu0 0.0
    %3730 = vmatpush1.msra.mxu0 0.0
    %3731 = vmatprep.subr.mxu0 0.0
    %3732 = vmatpush1.msra.mxu0 0.0
    %3733 = vmatprep.subr.mxu0 0.0
    %3734 = vmatpush1.msra.mxu0 0.0
    %3735 = vmatprep.subr.mxu0 0.0
    %3736 = vmatpush1.msra.mxu0 0.0
    %3737 = vmatprep.subr.mxu0 0.0
    %3738 = vmatpush1.msra.mxu0 0.0
    %3739 = vmatprep.subr.mxu0 0.0
    %3740 = vmatpush1.msra.mxu0 0.0
    %3741 = vmatprep.mubr.f32.mxu0 0.0
    %3742 = vmatmul.mubr.f32.gmra.mrb[0].mxu0 %v2719
    %v3743 = vpop.f32.mrb[0].mxu0
    %v3744 = vadd.f32 0.0, %v3743
    %v3745 = vpop.f32.mrb[0].mxu0
    %3746 = vdwg.mxu0
    %v3747 = vadd.f32 %v3670, %v3744
    %v3748 = vld [vmem:[%s7] sm:$0x1]
    %v3750 = vlaneseq
    %v3751 = vshrl.u32 %v3750, 7
    %v3752 = vsub.s32 0, %v3751
    %v3753 = vrot.slane %v3748, %v3752
    %v3755 = vadd.f32 %v3747, %v3753
    %v3756 = vxor.u32 %v3755, 2147483648
    %v3757 = vmul.f32 %v3756, 1.442695
    %v3758 = vpow.pop %v3757
    %v3759 = vadd.f32 %v3758, 1.0
    %v3760 = vrcp.pop %v3759
    %v3761 = vmul.f32 1.0, %v3760
    %v3762 = vmul.f32 %v3761, %v2623
    %v3763 = vtanh.pop %v3755
    %3765 = vrot.lane.b32.xlu0 %v3763, 64
    %v3766 = vpop.permute.xlu0 %3765
    %v3768 = vmul.f32 %v3761, %v3766
    %3770 = vrot.lane.b32.xlu0 %v3768, 32
    %v3771 = vpop.permute.xlu0 %3770
    %v3773 = vadd.f32 %v3762, %v3771
    %v3774 = vtanh.pop %v3773
    %3776 = vrot.lane.b32.xlu0 %v3774, 64
    %v3777 = vpop.permute.xlu0 %3776
    %v3779 = vmul.f32 %v3761, %v3777
    %3781 = vrot.lane.b32.xlu0 %v3519, 96
    %v3782 = vpop.permute.xlu0 %3781
    %v3784 = vmul.f32 %v3779, %v3782
    %v3785 = vld [vmem:[%s8] sm:$0xff]
    %v3786 = vld [vmem:[%s8 + $0x8] sm:$0xff]
    %v3787 = vld [vmem:[%s8 + $0x10] sm:$0xff]
    %v3788 = vld [vmem:[%s8 + $0x18] sm:$0xff]
    %v3789 = vld [vmem:[%s8 + $0x20] sm:$0xff]
    %v3790 = vld [vmem:[%s8 + $0x28] sm:$0xff]
    %v3791 = vld [vmem:[%s8 + $0x30] sm:$0xff]
    %v3792 = vld [vmem:[%s8 + $0x38] sm:$0xff]
    %v3793 = vld [vmem:[%s9] sm:$0xff]
    %v3794 = vld [vmem:[%s9 + $0x8] sm:$0xff]
    %3795 = vmatprep.subr.mxu0 %v3794
    %3796 = vmatpush1.msra.mxu0 %v3793
    %3797 = vmatprep.subr.mxu0 0.0
    %3798 = vmatpush1.msra.mxu0 0.0
    %3799 = vmatprep.subr.mxu0 0.0
    %3800 = vmatpush1.msra.mxu0 0.0
    %3801 = vmatprep.subr.mxu0 0.0
    %3802 = vmatpush1.msra.mxu0 0.0
    %3803 = vmatprep.subr.mxu0 0.0
    %3804 = vmatpush1.msra.mxu0 0.0
    %3805 = vmatprep.subr.mxu0 0.0
    %3806 = vmatpush1.msra.mxu0 0.0
    %3807 = vmatprep.subr.mxu0 0.0
    %3808 = vmatpush1.msra.mxu0 0.0
    %3809 = vmatprep.subr.mxu0 0.0
    %3810 = vmatpush1.msra.mxu0 0.0
    %3811 = vmatprep.subr.mxu0 0.0
    %3812 = vmatpush1.msra.mxu0 0.0
    %3813 = vmatprep.subr.mxu0 0.0
    %3814 = vmatpush1.msra.mxu0 0.0
    %3815 = vmatprep.subr.mxu0 0.0
    %3816 = vmatpush1.msra.mxu0 0.0
    %3817 = vmatprep.subr.mxu0 0.0
    %3818 = vmatpush1.msra.mxu0 0.0
    %3819 = vmatprep.subr.mxu0 0.0
    %3820 = vmatpush1.msra.mxu0 0.0
    %3821 = vmatprep.subr.mxu0 0.0
    %3822 = vmatpush1.msra.mxu0 0.0
    %3823 = vmatprep.subr.mxu0 0.0
    %3824 = vmatpush1.msra.mxu0 0.0
    %3825 = vmatprep.subr.mxu0 0.0
    %3826 = vmatpush1.msra.mxu0 0.0
    %3827 = vmatprep.subr.mxu0 0.0
    %3828 = vmatpush1.msra.mxu0 0.0
    %3829 = vmatprep.subr.mxu0 0.0
    %3830 = vmatpush1.msra.mxu0 0.0
    %3831 = vmatprep.subr.mxu0 0.0
    %3832 = vmatpush1.msra.mxu0 0.0
    %3833 = vmatprep.subr.mxu0 0.0
    %3834 = vmatpush1.msra.mxu0 0.0
    %3835 = vmatprep.subr.mxu0 0.0
    %3836 = vmatpush1.msra.mxu0 0.0
    %3837 = vmatprep.subr.mxu0 0.0
    %3838 = vmatpush1.msra.mxu0 0.0
    %3839 = vmatprep.subr.mxu0 0.0
    %3840 = vmatpush1.msra.mxu0 0.0
    %3841 = vmatprep.subr.mxu0 0.0
    %3842 = vmatpush1.msra.mxu0 0.0
    %3843 = vmatprep.subr.mxu0 0.0
    %3844 = vmatpush1.msra.mxu0 0.0
    %3845 = vmatprep.subr.mxu0 0.0
    %3846 = vmatpush1.msra.mxu0 0.0
    %3847 = vmatprep.subr.mxu0 0.0
    %3848 = vmatpush1.msra.mxu0 0.0
    %3849 = vmatprep.subr.mxu0 0.0
    %3850 = vmatpush1.msra.mxu0 0.0
    %3851 = vmatprep.subr.mxu0 0.0
    %3852 = vmatpush1.msra.mxu0 0.0
    %3853 = vmatprep.subr.mxu0 0.0
    %3854 = vmatpush1.msra.mxu0 0.0
    %3855 = vmatprep.subr.mxu0 0.0
    %3856 = vmatpush1.msra.mxu0 0.0
    %3857 = vmatprep.subr.mxu0 0.0
    %3858 = vmatpush1.msra.mxu0 0.0
    %3859 = vmatprep.mubr.f32.mxu0 0.0
    %3860 = vmatmul.mubr.f32.gmra.mrb[0].mxu0 %v3003
    %v3861 = vpop.f32.mrb[0].mxu0
    %v3862 = vadd.f32 0.0, %v3861
    %v3863 = vpop.f32.mrb[0].mxu0
    %v3864 = vadd.f32 0.0, %v3863
    %3865 = vdwg.mxu0
    %3867 = vrot.lane.b32.xlu0 %v3784, 32
    %v3868 = vpop.permute.xlu0 %3867
    %v3869 = vsel %vm77, %v3868, 0
    %3871 = vmatprep.subr.mxu0 %v3786
    %3872 = vmatpush1.msra.mxu0 %v3785
    %3873 = vmatprep.subr.mxu0 %v3788
    %3874 = vmatpush1.msra.mxu0 %v3787
    %3875 = vmatprep.subr.mxu0 %v3790
    %3876 = vmatpush1.msra.mxu0 %v3789
    %3877 = vmatprep.subr.mxu0 %v3792
    %3878 = vmatpush1.msra.mxu0 %v3791
    %3879 = vmatprep.subr.mxu0 0.0
    %3880 = vmatpush1.msra.mxu0 0.0
    %3881 = vmatprep.subr.mxu0 0.0
    %3882 = vmatpush1.msra.mxu0 0.0
    %3883 = vmatprep.subr.mxu0 0.0
    %3884 = vmatpush1.msra.mxu0 0.0
    %3885 = vmatprep.subr.mxu0 0.0
    %3886 = vmatpush1.msra.mxu0 0.0
    %3887 = vmatprep.subr.mxu0 0.0
    %3888 = vmatpush1.msra.mxu0 0.0
    %3889 = vmatprep.subr.mxu0 0.0
    %3890 = vmatpush1.msra.mxu0 0.0
    %3891 = vmatprep.subr.mxu0 0.0
    %3892 = vmatpush1.msra.mxu0 0.0
    %3893 = vmatprep.subr.mxu0 0.0
    %3894 = vmatpush1.msra.mxu0 0.0
    %3895 = vmatprep.subr.mxu0 0.0
    %3896 = vmatpush1.msra.mxu0 0.0
    %3897 = vmatprep.subr.mxu0 0.0
    %3898 = vmatpush1.msra.mxu0 0.0
    %3899 = vmatprep.subr.mxu0 0.0
    %3900 = vmatpush1.msra.mxu0 0.0
    %3901 = vmatprep.subr.mxu0 0.0
    %3902 = vmatpush1.msra.mxu0 0.0
    %3903 = vmatprep.subr.mxu0 0.0
    %3904 = vmatpush1.msra.mxu0 0.0
    %3905 = vmatprep.subr.mxu0 0.0
    %3906 = vmatpush1.msra.mxu0 0.0
    %3907 = vmatprep.subr.mxu0 0.0
    %3908 = vmatpush1.msra.mxu0 0.0
    %3909 = vmatprep.subr.mxu0 0.0
    %3910 = vmatpush1.msra.mxu0 0.0
    %3911 = vmatprep.subr.mxu0 0.0
    %3912 = vmatpush1.msra.mxu0 0.0
    %3913 = vmatprep.subr.mxu0 0.0
    %3914 = vmatpush1.msra.mxu0 0.0
    %3915 = vmatprep.subr.mxu0 0.0
    %3916 = vmatpush1.msra.mxu0 0.0
    %3917 = vmatprep.subr.mxu0 0.0
    %3918 = vmatpush1.msra.mxu0 0.0
    %3919 = vmatprep.subr.mxu0 0.0
    %3920 = vmatpush1.msra.mxu0 0.0
    %3921 = vmatprep.subr.mxu0 0.0
    %3922 = vmatpush1.msra.mxu0 0.0
    %3923 = vmatprep.subr.mxu0 0.0
    %3924 = vmatpush1.msra.mxu0 0.0
    %3925 = vmatprep.subr.mxu0 0.0
    %3926 = vmatpush1.msra.mxu0 0.0
    %3927 = vmatprep.subr.mxu0 0.0
    %3928 = vmatpush1.msra.mxu0 0.0
    %3929 = vmatprep.subr.mxu0 0.0
    %3930 = vmatpush1.msra.mxu0 0.0
    %3931 = vmatprep.subr.mxu0 0.0
    %3932 = vmatpush1.msra.mxu0 0.0
    %3933 = vmatprep.subr.mxu0 0.0
    %3934 = vmatpush1.msra.mxu0 0.0
    %3935 = vmatprep.mubr.f32.mxu0 0.0
    %3936 = vmatmul.mubr.f32.gmra.mrb[0].mxu0 %v3869
    %v3937 = vpop.f32.mrb[0].mxu0
    %v3938 = vadd.f32 %v3862, %v3937
    %v3939 = vpop.f32.mrb[0].mxu0
    %v3940 = vadd.f32 %v3864, %v3939
    %3941 = vdwg.mxu0
    %v3942 = vld [vmem:[%s10] sm:$0xff]
    %v3943 = vld [vmem:[%s10 + $0x8] sm:$0xff]
    %v3945 = vsel %vm346, %v3000, 0
    %3947 = vmatprep.subr.mxu0 %v3943
    %3948 = vmatpush1.msra.mxu0 %v3942
    %3949 = vmatprep.subr.mxu0 0.0
    %3950 = vmatpush1.msra.mxu0 0.0
    %3951 = vmatprep.subr.mxu0 0.0
    %3952 = vmatpush1.msra.mxu0 0.0
    %3953 = vmatprep.subr.mxu0 0.0
    %3954 = vmatpush1.msra.mxu0 0.0
    %3955 = vmatprep.subr.mxu0 0.0
    %3956 = vmatpush1.msra.mxu0 0.0
    %3957 = vmatprep.subr.mxu0 0.0
    %3958 = vmatpush1.msra.mxu0 0.0
    %3959 = vmatprep.subr.mxu0 0.0
    %3960 = vmatpush1.msra.mxu0 0.0
    %3961 = vmatprep.subr.mxu0 0.0
    %3962 = vmatpush1.msra.mxu0 0.0
    %3963 = vmatprep.subr.mxu0 0.0
    %3964 = vmatpush1.msra.mxu0 0.0
    %3965 = vmatprep.subr.mxu0 0.0
    %3966 = vmatpush1.msra.mxu0 0.0
    %3967 = vmatprep.subr.mxu0 0.0
    %3968 = vmatpush1.msra.mxu0 0.0
    %3969 = vmatprep.subr.mxu0 0.0
    %3970 = vmatpush1.msra.mxu0 0.0
    %3971 = vmatprep.subr.mxu0 0.0
    %3972 = vmatpush1.msra.mxu0 0.0
    %3973 = vmatprep.subr.mxu0 0.0
    %3974 = vmatpush1.msra.mxu0 0.0
    %3975 = vmatprep.subr.mxu0 0.0
    %3976 = vmatpush1.msra.mxu0 0.0
    %3977 = vmatprep.subr.mxu0 0.0
    %3978 = vmatpush1.msra.mxu0 0.0
    %3979 = vmatprep.subr.mxu0 0.0
    %3980 = vmatpush1.msra.mxu0 0.0
    %3981 = vmatprep.subr.mxu0 0.0
    %3982 = vmatpush1.msra.mxu0 0.0
    %3983 = vmatprep.subr.mxu0 0.0
    %3984 = vmatpush1.msra.mxu0 0.0
    %3985 = vmatprep.subr.mxu0 0.0
    %3986 = vmatpush1.msra.mxu0 0.0
    %3987 = vmatprep.subr.mxu0 0.0
    %3988 = vmatpush1.msra.mxu0 0.0
    %3989 = vmatprep.subr.mxu0 0.0
    %3990 = vmatpush1.msra.mxu0 0.0
    %3991 = vmatprep.subr.mxu0 0.0
    %3992 = vmatpush1.msra.mxu0 0.0
    %3993 = vmatprep.subr.mxu0 0.0
    %3994 = vmatpush1.msra.mxu0 0.0
    %3995 = vmatprep.subr.mxu0 0.0
    %3996 = vmatpush1.msra.mxu0 0.0
    %3997 = vmatprep.subr.mxu0 0.0
    %3998 = vmatpush1.msra.mxu0 0.0
    %3999 = vmatprep.subr.mxu0 0.0
    %4000 = vmatpush1.msra.mxu0 0.0
    %4001 = vmatprep.subr.mxu0 0.0
    %4002 = vmatpush1.msra.mxu0 0.0
    %4003 = vmatprep.subr.mxu0 0.0
    %4004 = vmatpush1.msra.mxu0 0.0
    %4005 = vmatprep.subr.mxu0 0.0
    %4006 = vmatpush1.msra.mxu0 0.0
    %4007 = vmatprep.subr.mxu0 0.0
    %4008 = vmatpush1.msra.mxu0 0.0
    %4009 = vmatprep.subr.mxu0 0.0
    %4010 = vmatpush1.msra.mxu0 0.0
    %4011 = vmatprep.mubr.f32.mxu0 0.0
    %4012 = vmatmul.mubr.f32.gmra.mrb[0].mxu0 %v3945
    %v4013 = vpop.f32.mrb[0].mxu0
    %v4014 = vadd.f32 0.0, %v4013
    %v4015 = vpop.f32.mrb[0].mxu0
    %v4016 = vadd.f32 0.0, %v4015
    %4017 = vdwg.mxu0
    %v4018 = vadd.f32 %v3938, %v4014
    %v4019 = vadd.f32 %v3940, %v4016
    %v4020 = vld [vmem:[%s4] sm:$0xf]
    %v4023 = vunpack.c.l.s4 1983009808
    %v4024 = vunpack.c.0.s8 %v4023
    %v4025 = vlaneseq
    %v4026 = vshrl.u32 %v4025, 7
    %v4027 = vsub.s32 %v4024, %v4026
    %v4028 = vrot.slane %v4020, %v4027
    %v4029 = vcombine.high %v4028, %v4028
    %v4032 = vadd.f32 %v4018, %v4028
    %v4033 = vadd.f32 %v4019, %v4029
    %v4034 = vtanh.pop %v4032
    %v4035 = vtanh.pop %v4033
    %v4036 = vld [vmem:[%s11] sm:$0xff]
    %v4037 = vld [vmem:[%s11 + $0x8] sm:$0xff]
    %v4038 = vld [vmem:[%s11 + $0x10] sm:$0xff]
    %v4039 = vld [vmem:[%s11 + $0x18] sm:$0xff]
    %v4040 = vld [vmem:[%s11 + $0x20] sm:$0xff]
    %v4041 = vld [vmem:[%s11 + $0x28] sm:$0xff]
    %v4042 = vld [vmem:[%s11 + $0x30] sm:$0xff]
    %v4043 = vld [vmem:[%s11 + $0x38] sm:$0xff]
    %v4044 = vld [vmem:[%s11 + $0x40] sm:$0xff]
    %v4045 = vld [vmem:[%s11 + $0x48] sm:$0xff]
    %v4046 = vld [vmem:[%s11 + $0x50] sm:$0xff]
    %v4047 = vld [vmem:[%s11 + $0x58] sm:$0xff]
    %v4048 = vld [vmem:[%s11 + $0x60] sm:$0xff]
    %v4049 = vld [vmem:[%s11 + $0x68] sm:$0xff]
    %v4050 = vld [vmem:[%s11 + $0x70] sm:$0xff]
    %v4051 = vld [vmem:[%s11 + $0x78] sm:$0xff]
    %v4052 = vld [vmem:[%s11 + $0x80] sm:$0xff]
    %v4053 = vld [vmem:[%s11 + $0x88] sm:$0xff]
    %v4054 = vld [vmem:[%s11 + $0x90] sm:$0xff]
    %v4055 = vld [vmem:[%s11 + $0x98] sm:$0xff]
    %v4056 = vld [vmem:[%s11 + $0xa0] sm:$0xff]
    %v4057 = vld [vmem:[%s11 + $0xa8] sm:$0xff]
    %v4058 = vld [vmem:[%s11 + $0xb0] sm:$0xff]
    %v4059 = vld [vmem:[%s11 + $0xb8] sm:$0xff]
    %v4060 = vld [vmem:[%s11 + $0xc0] sm:$0xff]
    %v4061 = vld [vmem:[%s11 + $0xc8] sm:$0xff]
    %v4062 = vld [vmem:[%s11 + $0xd0] sm:$0xff]
    %v4063 = vld [vmem:[%s11 + $0xd8] sm:$0xff]
    %v4064 = vld [vmem:[%s11 + $0xe0] sm:$0xff]
    %v4065 = vld [vmem:[%s11 + $0xe8] sm:$0xff]
    %v4066 = vld [vmem:[%s11 + $0xf0] sm:$0xff]
    %v4067 = vld [vmem:[%s11 + $0xf8] sm:$0xff]
    %v4068 = vld [vmem:[%s5] sm:$0x3]
    %4069 = vmatprep.subr.mxu0 0.0
    %4070 = vmatpush1.msra.mxu0 %v4036
    %4071 = vmatprep.subr.mxu0 0.0
    %4072 = vmatpush1.msra.mxu0 %v4037
    %4073 = vmatprep.subr.mxu0 0.0
    %4074 = vmatpush1.msra.mxu0 %v4038
    %4075 = vmatprep.subr.mxu0 0.0
    %4076 = vmatpush1.msra.mxu0 %v4039
    %4077 = vmatprep.subr.mxu0 0.0
    %4078 = vmatpush1.msra.mxu0 %v4040
    %4079 = vmatprep.subr.mxu0 0.0
    %4080 = vmatpush1.msra.mxu0 %v4041
    %4081 = vmatprep.subr.mxu0 0.0
    %4082 = vmatpush1.msra.mxu0 %v4042
    %4083 = vmatprep.subr.mxu0 0.0
    %4084 = vmatpush1.msra.mxu0 %v4043
    %4085 = vmatprep.subr.mxu0 0.0
    %4086 = vmatpush1.msra.mxu0 %v4044
    %4087 = vmatprep.subr.mxu0 0.0
    %4088 = vmatpush1.msra.mxu0 %v4045
    %4089 = vmatprep.subr.mxu0 0.0
    %4090 = vmatpush1.msra.mxu0 %v4046
    %4091 = vmatprep.subr.mxu0 0.0
    %4092 = vmatpush1.msra.mxu0 %v4047
    %4093 = vmatprep.subr.mxu0 0.0
    %4094 = vmatpush1.msra.mxu0 %v4048
    %4095 = vmatprep.subr.mxu0 0.0
    %4096 = vmatpush1.msra.mxu0 %v4049
    %4097 = vmatprep.subr.mxu0 0.0
    %4098 = vmatpush1.msra.mxu0 %v4050
    %4099 = vmatprep.subr.mxu0 0.0
    %4100 = vmatpush1.msra.mxu0 %v4051
    %4101 = vmatprep.subr.mxu0 0.0
    %4102 = vmatpush1.msra.mxu0 %v4052
    %4103 = vmatprep.subr.mxu0 0.0
    %4104 = vmatpush1.msra.mxu0 %v4053
    %4105 = vmatprep.subr.mxu0 0.0
    %4106 = vmatpush1.msra.mxu0 %v4054
    %4107 = vmatprep.subr.mxu0 0.0
    %4108 = vmatpush1.msra.mxu0 %v4055
    %4109 = vmatprep.subr.mxu0 0.0
    %4110 = vmatpush1.msra.mxu0 %v4056
    %4111 = vmatprep.subr.mxu0 0.0
    %4112 = vmatpush1.msra.mxu0 %v4057
    %4113 = vmatprep.subr.mxu0 0.0
    %4114 = vmatpush1.msra.mxu0 %v4058
    %4115 = vmatprep.subr.mxu0 0.0
    %4116 = vmatpush1.msra.mxu0 %v4059
    %4117 = vmatprep.subr.mxu0 0.0
    %4118 = vmatpush1.msra.mxu0 %v4060
    %4119 = vmatprep.subr.mxu0 0.0
    %4120 = vmatpush1.msra.mxu0 %v4061
    %4121 = vmatprep.subr.mxu0 0.0
    %4122 = vmatpush1.msra.mxu0 %v4062
    %4123 = vmatprep.subr.mxu0 0.0
    %4124 = vmatpush1.msra.mxu0 %v4063
    %4125 = vmatprep.subr.mxu0 0.0
    %4126 = vmatpush1.msra.mxu0 %v4064
    %4127 = vmatprep.subr.mxu0 0.0
    %4128 = vmatpush1.msra.mxu0 %v4065
    %4129 = vmatprep.subr.mxu0 0.0
    %4130 = vmatpush1.msra.mxu0 %v4066
    %4131 = vmatprep.subr.mxu0 0.0
    %4132 = vmatpush1.msra.mxu0 %v4067
    %4133 = vmatprep.mubr.f32.mxu0 %v4035
    %4134 = vmatmul.mubr.f32.gmra.mrb[0].mxu0 %v4034
    %v4135 = vpop.f32.mrb[0].mxu0
    %v4136 = vadd.f32 %v4068, %v4135
    %v4137 = vpop.f32.mrb[0].mxu0
    %4138 = vdwg.mxu0
    %v4139 = vsel %vm690, %v4136, -inf
    %4140 = vmax.xlane.f32.xlu0 %v4139
    %v4141 = vpop.xlane.xlu0 %4140
    %v4142 = vsub.f32 %v4136, %v4141
    %v4143 = vmul.f32 %v4142, 1.442695
    %v4144 = vpow.pop %v4143
    %v4145 = vsel %vm690, %v4144, 0.0
    %4146 = vadd.xlane.f32.xlu0 %v4145
    %v4147 = vpop.xlane.xlu0 %4146
    %v4148 = vrcp.pop %v4147
    %v4149 = vmul.f32 %v4144, %v4148
    %v4150 = vadd.f32 %v3000, %v4149
    %v4151 = vld [vmem:[%s3] sm:$0xff]
    %v4153 = vsel %vm346, %v4149, 0
    %4155 = vmatprep.subr.mxu0 0.0
    %4156 = vmatpush1.msra.mxu0 %v4151
    %4157 = vmatprep.subr.mxu0 0.0
    %4158 = vmatpush1.msra.mxu0 0.0
    %4159 = vmatprep.subr.mxu0 0.0
    %4160 = vmatpush1.msra.mxu0 0.0
    %4161 = vmatprep.subr.mxu0 0.0
    %4162 = vmatpush1.msra.mxu0 0.0
    %4163 = vmatprep.subr.mxu0 0.0
    %4164 = vmatpush1.msra.mxu0 0.0
    %4165 = vmatprep.subr.mxu0 0.0
    %4166 = vmatpush1.msra.mxu0 0.0
    %4167 = vmatprep.subr.mxu0 0.0
    %4168 = vmatpush1.msra.mxu0 0.0
    %4169 = vmatprep.subr.mxu0 0.0
    %4170 = vmatpush1.msra.mxu0 0.0
    %4171 = vmatprep.subr.mxu0 0.0
    %4172 = vmatpush1.msra.mxu0 0.0
    %4173 = vmatprep.subr.mxu0 0.0
    %4174 = vmatpush1.msra.mxu0 0.0
    %4175 = vmatprep.subr.mxu0 0.0
    %4176 = vmatpush1.msra.mxu0 0.0
    %4177 = vmatprep.subr.mxu0 0.0
    %4178 = vmatpush1.msra.mxu0 0.0
    %4179 = vmatprep.subr.mxu0 0.0
    %4180 = vmatpush1.msra.mxu0 0.0
    %4181 = vmatprep.subr.mxu0 0.0
    %4182 = vmatpush1.msra.mxu0 0.0
    %4183 = vmatprep.subr.mxu0 0.0
    %4184 = vmatpush1.msra.mxu0 0.0
    %4185 = vmatprep.subr.mxu0 0.0
    %4186 = vmatpush1.msra.mxu0 0.0
    %4187 = vmatprep.subr.mxu0 0.0
    %4188 = vmatpush1.msra.mxu0 0.0
    %4189 = vmatprep.subr.mxu0 0.0
    %4190 = vmatpush1.msra.mxu0 0.0
    %4191 = vmatprep.subr.mxu0 0.0
    %4192 = vmatpush1.msra.mxu0 0.0
    %4193 = vmatprep.subr.mxu0 0.0
    %4194 = vmatpush1.msra.mxu0 0.0
    %4195 = vmatprep.subr.mxu0 0.0
    %4196 = vmatpush1.msra.mxu0 0.0
    %4197 = vmatprep.subr.mxu0 0.0
    %4198 = vmatpush1.msra.mxu0 0.0
    %4199 = vmatprep.subr.mxu0 0.0
    %4200 = vmatpush1.msra.mxu0 0.0
    %4201 = vmatprep.subr.mxu0 0.0
    %4202 = vmatpush1.msra.mxu0 0.0
    %4203 = vmatprep.subr.mxu0 0.0
    %4204 = vmatpush1.msra.mxu0 0.0
    %4205 = vmatprep.subr.mxu0 0.0
    %4206 = vmatpush1.msra.mxu0 0.0
    %4207 = vmatprep.subr.mxu0 0.0
    %4208 = vmatpush1.msra.mxu0 0.0
    %4209 = vmatprep.subr.mxu0 0.0
    %4210 = vmatpush1.msra.mxu0 0.0
    %4211 = vmatprep.subr.mxu0 0.0
    %4212 = vmatpush1.msra.mxu0 0.0
    %4213 = vmatprep.subr.mxu0 0.0
    %4214 = vmatpush1.msra.mxu0 0.0
    %4215 = vmatprep.subr.mxu0 0.0
    %4216 = vmatpush1.msra.mxu0 0.0
    %4217 = vmatprep.subr.mxu0 0.0
    %4218 = vmatpush1.msra.mxu0 0.0
    %4219 = vmatprep.mubr.f32.mxu0 0.0
    %4220 = vmatmul.mubr.f32.gmra.mrb[0].mxu0 %v4153
    %v4221 = vpop.f32.mrb[0].mxu0
    %v4222 = vadd.f32 0.0, %v4221
    %v4223 = vpop.f32.mrb[0].mxu0
    %4224 = vdwg.mxu0
    %v4225 = vmul.f32 %v4222, %v62
    %v4226 = vmul.f32 %v4222, %v65
    %4228 = vrot.lane.b32.xlu0 %v4226, 96
    %v4229 = vpop.permute.xlu0 %4228
    %v4231 = vadd.f32 %v4225, %v4229
    %v4232 = vld [vmem:[%s12] sm:$0xff]
    %v4233 = vld [vmem:[%s12 + $0x8] sm:$0xff]
    %v4234 = vld [vmem:[%s12 + $0x10] sm:$0xff]
    %v4235 = vld [vmem:[%s12 + $0x18] sm:$0xff]
    %v4236 = vld [vmem:[%s12 + $0x20] sm:$0xff]
    %v4237 = vld [vmem:[%s12 + $0x28] sm:$0xff]
    %v4238 = vld [vmem:[%s12 + $0x30] sm:$0xff]
    %v4239 = vld [vmem:[%s12 + $0x38] sm:$0xff]
    %v4241 = vsel %vm77, %v4231, 0
    %4243 = vmatprep.subr.mxu0 0.0
    %4244 = vmatpush1.msra.mxu0 %v4236
    %4245 = vmatprep.subr.mxu0 0.0
    %4246 = vmatpush1.msra.mxu0 %v4237
    %4247 = vmatprep.subr.mxu0 0.0
    %4248 = vmatpush1.msra.mxu0 %v4238
    %4249 = vmatprep.subr.mxu0 0.0
    %4250 = vmatpush1.msra.mxu0 %v4239
    %4251 = vmatprep.subr.mxu0 0.0
    %4252 = vmatpush1.msra.mxu0 0.0
    %4253 = vmatprep.subr.mxu0 0.0
    %4254 = vmatpush1.msra.mxu0 0.0
    %4255 = vmatprep.subr.mxu0 0.0
    %4256 = vmatpush1.msra.mxu0 0.0
    %4257 = vmatprep.subr.mxu0 0.0
    %4258 = vmatpush1.msra.mxu0 0.0
    %4259 = vmatprep.subr.mxu0 0.0
    %4260 = vmatpush1.msra.mxu0 0.0
    %4261 = vmatprep.subr.mxu0 0.0
    %4262 = vmatpush1.msra.mxu0 0.0
    %4263 = vmatprep.subr.mxu0 0.0
    %4264 = vmatpush1.msra.mxu0 0.0
    %4265 = vmatprep.subr.mxu0 0.0
    %4266 = vmatpush1.msra.mxu0 0.0
    %4267 = vmatprep.subr.mxu0 0.0
    %4268 = vmatpush1.msra.mxu0 0.0
    %4269 = vmatprep.subr.mxu0 0.0
    %4270 = vmatpush1.msra.mxu0 0.0
    %4271 = vmatprep.subr.mxu0 0.0
    %4272 = vmatpush1.msra.mxu0 0.0
    %4273 = vmatprep.subr.mxu0 0.0
    %4274 = vmatpush1.msra.mxu0 0.0
    %4275 = vmatprep.subr.mxu0 0.0
    %4276 = vmatpush1.msra.mxu0 0.0
    %4277 = vmatprep.subr.mxu0 0.0
    %4278 = vmatpush1.msra.mxu0 0.0
    %4279 = vmatprep.subr.mxu0 0.0
    %4280 = vmatpush1.msra.mxu0 0.0
    %4281 = vmatprep.subr.mxu0 0.0
    %4282 = vmatpush1.msra.mxu0 0.0
    %4283 = vmatprep.subr.mxu0 0.0
    %4284 = vmatpush1.msra.mxu0 0.0
    %4285 = vmatprep.subr.mxu0 0.0
    %4286 = vmatpush1.msra.mxu0 0.0
    %4287 = vmatprep.subr.mxu0 0.0
    %4288 = vmatpush1.msra.mxu0 0.0
    %4289 = vmatprep.subr.mxu0 0.0
    %4290 = vmatpush1.msra.mxu0 0.0
    %4291 = vmatprep.subr.mxu0 0.0
    %4292 = vmatpush1.msra.mxu0 0.0
    %4293 = vmatprep.subr.mxu0 0.0
    %4294 = vmatpush1.msra.mxu0 0.0
    %4295 = vmatprep.subr.mxu0 0.0
    %4296 = vmatpush1.msra.mxu0 0.0
    %4297 = vmatprep.subr.mxu0 0.0
    %4298 = vmatpush1.msra.mxu0 0.0
    %4299 = vmatprep.subr.mxu0 0.0
    %4300 = vmatpush1.msra.mxu0 0.0
    %4301 = vmatprep.subr.mxu0 0.0
    %4302 = vmatpush1.msra.mxu0 0.0
    %4303 = vmatprep.subr.mxu0 0.0
    %4304 = vmatpush1.msra.mxu0 0.0
    %4305 = vmatprep.subr.mxu0 0.0
    %4306 = vmatpush1.msra.mxu0 0.0
    %4307 = vmatprep.mubr.f32.mxu0 0.0
    %4308 = vmatmul.mubr.f32.gmra.mrb[0].mxu0 %v4241
    %v4309 = vpop.f32.mrb[0].mxu0
    %v4310 = vadd.f32 0.0, %v4309
    %v4311 = vpop.f32.mrb[0].mxu0
    %4312 = vdwg.mxu0
    %4313 = vmatprep.subr.mxu0 0.0
    %4314 = vmatpush1.msra.mxu0 %v4232
    %4315 = vmatprep.subr.mxu0 0.0
    %4316 = vmatpush1.msra.mxu0 %v4233
    %4317 = vmatprep.subr.mxu0 0.0
    %4318 = vmatpush1.msra.mxu0 %v4234
    %4319 = vmatprep.subr.mxu0 0.0
    %4320 = vmatpush1.msra.mxu0 %v4235
    %4321 = vmatprep.subr.mxu0 0.0
    %4322 = vmatpush1.msra.mxu0 0.0
    %4323 = vmatprep.subr.mxu0 0.0
    %4324 = vmatpush1.msra.mxu0 0.0
    %4325 = vmatprep.subr.mxu0 0.0
    %4326 = vmatpush1.msra.mxu0 0.0
    %4327 = vmatprep.subr.mxu0 0.0
    %4328 = vmatpush1.msra.mxu0 0.0
    %4329 = vmatprep.subr.mxu0 0.0
    %4330 = vmatpush1.msra.mxu0 0.0
    %4331 = vmatprep.subr.mxu0 0.0
    %4332 = vmatpush1.msra.mxu0 0.0
    %4333 = vmatprep.subr.mxu0 0.0
    %4334 = vmatpush1.msra.mxu0 0.0
    %4335 = vmatprep.subr.mxu0 0.0
    %4336 = vmatpush1.msra.mxu0 0.0
    %4337 = vmatprep.subr.mxu0 0.0
    %4338 = vmatpush1.msra.mxu0 0.0
    %4339 = vmatprep.subr.mxu0 0.0
    %4340 = vmatpush1.msra.mxu0 0.0
    %4341 = vmatprep.subr.mxu0 0.0
    %4342 = vmatpush1.msra.mxu0 0.0
    %4343 = vmatprep.subr.mxu0 0.0
    %4344 = vmatpush1.msra.mxu0 0.0
    %4345 = vmatprep.subr.mxu0 0.0
    %4346 = vmatpush1.msra.mxu0 0.0
    %4347 = vmatprep.subr.mxu0 0.0
    %4348 = vmatpush1.msra.mxu0 0.0
    %4349 = vmatprep.subr.mxu0 0.0
    %4350 = vmatpush1.msra.mxu0 0.0
    %4351 = vmatprep.subr.mxu0 0.0
    %4352 = vmatpush1.msra.mxu0 0.0
    %4353 = vmatprep.subr.mxu0 0.0
    %4354 = vmatpush1.msra.mxu0 0.0
    %4355 = vmatprep.subr.mxu0 0.0
    %4356 = vmatpush1.msra.mxu0 0.0
    %4357 = vmatprep.subr.mxu0 0.0
    %4358 = vmatpush1.msra.mxu0 0.0
    %4359 = vmatprep.subr.mxu0 0.0
    %4360 = vmatpush1.msra.mxu0 0.0
    %4361 = vmatprep.subr.mxu0 0.0
    %4362 = vmatpush1.msra.mxu0 0.0
    %4363 = vmatprep.subr.mxu0 0.0
    %4364 = vmatpush1.msra.mxu0 0.0
    %4365 = vmatprep.subr.mxu0 0.0
    %4366 = vmatpush1.msra.mxu0 0.0
    %4367 = vmatprep.subr.mxu0 0.0
    %4368 = vmatpush1.msra.mxu0 0.0
    %4369 = vmatprep.subr.mxu0 0.0
    %4370 = vmatpush1.msra.mxu0 0.0
    %4371 = vmatprep.subr.mxu0 0.0
    %4372 = vmatpush1.msra.mxu0 0.0
    %4373 = vmatprep.subr.mxu0 0.0
    %4374 = vmatpush1.msra.mxu0 0.0
    %4375 = vmatprep.subr.mxu0 0.0
    %4376 = vmatpush1.msra.mxu0 0.0
    %4377 = vmatprep.mubr.f32.mxu0 0.0
    %4378 = vmatmul.mubr.f32.gmra.mrb[0].mxu0 %v3869
    %v4379 = vpop.f32.mrb[0].mxu0
    %v4380 = vadd.f32 %v4310, %v4379
    %v4381 = vpop.f32.mrb[0].mxu0
    %4382 = vdwg.mxu0
    %v4383 = vld [vmem:[%s12 + $0x40] sm:$0xff]
    %v4384 = vld [vmem:[%s12 + $0x48] sm:$0xff]
    %v4385 = vld [vmem:[%s12 + $0x50] sm:$0xff]
    %v4386 = vld [vmem:[%s12 + $0x58] sm:$0xff]
    %4387 = vmatprep.subr.mxu0 0.0
    %4388 = vmatpush1.msra.mxu0 %v4383
    %4389 = vmatprep.subr.mxu0 0.0
    %4390 = vmatpush1.msra.mxu0 %v4384
    %4391 = vmatprep.subr.mxu0 0.0
    %4392 = vmatpush1.msra.mxu0 %v4385
    %4393 = vmatprep.subr.mxu0 0.0
    %4394 = vmatpush1.msra.mxu0 %v4386
    %4395 = vmatprep.subr.mxu0 0.0
    %4396 = vmatpush1.msra.mxu0 0.0
    %4397 = vmatprep.subr.mxu0 0.0
    %4398 = vmatpush1.msra.mxu0 0.0
    %4399 = vmatprep.subr.mxu0 0.0
    %4400 = vmatpush1.msra.mxu0 0.0
    %4401 = vmatprep.subr.mxu0 0.0
    %4402 = vmatpush1.msra.mxu0 0.0
    %4403 = vmatprep.subr.mxu0 0.0
    %4404 = vmatpush1.msra.mxu0 0.0
    %4405 = vmatprep.subr.mxu0 0.0
    %4406 = vmatpush1.msra.mxu0 0.0
    %4407 = vmatprep.subr.mxu0 0.0
    %4408 = vmatpush1.msra.mxu0 0.0
    %4409 = vmatprep.subr.mxu0 0.0
    %4410 = vmatpush1.msra.mxu0 0.0
    %4411 = vmatprep.subr.mxu0 0.0
    %4412 = vmatpush1.msra.mxu0 0.0
    %4413 = vmatprep.subr.mxu0 0.0
    %4414 = vmatpush1.msra.mxu0 0.0
    %4415 = vmatprep.subr.mxu0 0.0
    %4416 = vmatpush1.msra.mxu0 0.0
    %4417 = vmatprep.subr.mxu0 0.0
    %4418 = vmatpush1.msra.mxu0 0.0
    %4419 = vmatprep.subr.mxu0 0.0
    %4420 = vmatpush1.msra.mxu0 0.0
    %4421 = vmatprep.subr.mxu0 0.0
    %4422 = vmatpush1.msra.mxu0 0.0
    %4423 = vmatprep.subr.mxu0 0.0
    %4424 = vmatpush1.msra.mxu0 0.0
    %4425 = vmatprep.subr.mxu0 0.0
    %4426 = vmatpush1.msra.mxu0 0.0
    %4427 = vmatprep.subr.mxu0 0.0
    %4428 = vmatpush1.msra.mxu0 0.0
    %4429 = vmatprep.subr.mxu0 0.0
    %4430 = vmatpush1.msra.mxu0 0.0
    %4431 = vmatprep.subr.mxu0 0.0
    %4432 = vmatpush1.msra.mxu0 0.0
    %4433 = vmatprep.subr.mxu0 0.0
    %4434 = vmatpush1.msra.mxu0 0.0
    %4435 = vmatprep.subr.mxu0 0.0
    %4436 = vmatpush1.msra.mxu0 0.0
    %4437 = vmatprep.subr.mxu0 0.0
    %4438 = vmatpush1.msra.mxu0 0.0
    %4439 = vmatprep.subr.mxu0 0.0
    %4440 = vmatpush1.msra.mxu0 0.0
    %4441 = vmatprep.subr.mxu0 0.0
    %4442 = vmatpush1.msra.mxu0 0.0
    %4443 = vmatprep.subr.mxu0 0.0
    %4444 = vmatpush1.msra.mxu0 0.0
    %4445 = vmatprep.subr.mxu0 0.0
    %4446 = vmatpush1.msra.mxu0 0.0
    %4447 = vmatprep.subr.mxu0 0.0
    %4448 = vmatpush1.msra.mxu0 0.0
    %4449 = vmatprep.subr.mxu0 0.0
    %4450 = vmatpush1.msra.mxu0 0.0
    %4451 = vmatprep.mubr.f32.mxu0 0.0
    %4452 = vmatmul.mubr.f32.gmra.mrb[0].mxu0 %v3426
    %v4453 = vpop.f32.mrb[0].mxu0
    %v4454 = vadd.f32 0.0, %v4453
    %v4455 = vpop.f32.mrb[0].mxu0
    %4456 = vdwg.mxu0
    %v4457 = vadd.f32 %v4380, %v4454
    %v4458 = vld [vmem:[%s13] sm:$0x1]
    %v4460 = vlaneseq
    %v4461 = vshrl.u32 %v4460, 7
    %v4462 = vsub.s32 0, %v4461
    %v4463 = vrot.slane %v4458, %v4462
    %v4465 = vadd.f32 %v4457, %v4463
    %v4466 = vxor.u32 %v4465, 2147483648
    %v4467 = vmul.f32 %v4466, 1.442695
    %v4468 = vpow.pop %v4467
    %v4469 = vadd.f32 %v4468, 1.0
    %v4470 = vrcp.pop %v4469
    %v4471 = vmul.f32 1.0, %v4470
    %v4472 = vmul.f32 %v4471, %v3333
    %v4473 = vtanh.pop %v4465
    %4475 = vrot.lane.b32.xlu0 %v4473, 64
    %v4476 = vpop.permute.xlu0 %4475
    %v4478 = vmul.f32 %v4471, %v4476
    %4480 = vrot.lane.b32.xlu0 %v4478, 32
    %v4481 = vpop.permute.xlu0 %4480
    %v4483 = vadd.f32 %v4472, %v4481
    %v4484 = vtanh.pop %v4483
    %4486 = vrot.lane.b32.xlu0 %v4484, 64
    %v4487 = vpop.permute.xlu0 %4486
    %v4489 = vmul.f32 %v4471, %v4487
    %4491 = vrot.lane.b32.xlu0 %v3521, 96
    %v4492 = vpop.permute.xlu0 %4491
    %v4494 = vmul.f32 %v4489, %v4492
    %v4495 = vld [vmem:[%s14] sm:$0xff]
    %v4496 = vld [vmem:[%s14 + $0x8] sm:$0xff]
    %v4497 = vld [vmem:[%s14 + $0x10] sm:$0xff]
    %v4498 = vld [vmem:[%s14 + $0x18] sm:$0xff]
    %v4499 = vld [vmem:[%s14 + $0x20] sm:$0xff]
    %v4500 = vld [vmem:[%s14 + $0x28] sm:$0xff]
    %v4501 = vld [vmem:[%s14 + $0x30] sm:$0xff]
    %v4502 = vld [vmem:[%s14 + $0x38] sm:$0xff]
    %4503 = vmatprep.subr.mxu0 0.0
    %4504 = vmatpush1.msra.mxu0 %v4499
    %4505 = vmatprep.subr.mxu0 0.0
    %4506 = vmatpush1.msra.mxu0 %v4500
    %4507 = vmatprep.subr.mxu0 0.0
    %4508 = vmatpush1.msra.mxu0 %v4501
    %4509 = vmatprep.subr.mxu0 0.0
    %4510 = vmatpush1.msra.mxu0 %v4502
    %4511 = vmatprep.subr.mxu0 0.0
    %4512 = vmatpush1.msra.mxu0 0.0
    %4513 = vmatprep.subr.mxu0 0.0
    %4514 = vmatpush1.msra.mxu0 0.0
    %4515 = vmatprep.subr.mxu0 0.0
    %4516 = vmatpush1.msra.mxu0 0.0
    %4517 = vmatprep.subr.mxu0 0.0
    %4518 = vmatpush1.msra.mxu0 0.0
    %4519 = vmatprep.subr.mxu0 0.0
    %4520 = vmatpush1.msra.mxu0 0.0
    %4521 = vmatprep.subr.mxu0 0.0
    %4522 = vmatpush1.msra.mxu0 0.0
    %4523 = vmatprep.subr.mxu0 0.0
    %4524 = vmatpush1.msra.mxu0 0.0
    %4525 = vmatprep.subr.mxu0 0.0
    %4526 = vmatpush1.msra.mxu0 0.0
    %4527 = vmatprep.subr.mxu0 0.0
    %4528 = vmatpush1.msra.mxu0 0.0
    %4529 = vmatprep.subr.mxu0 0.0
    %4530 = vmatpush1.msra.mxu0 0.0
    %4531 = vmatprep.subr.mxu0 0.0
    %4532 = vmatpush1.msra.mxu0 0.0
    %4533 = vmatprep.subr.mxu0 0.0
    %4534 = vmatpush1.msra.mxu0 0.0
    %4535 = vmatprep.subr.mxu0 0.0
    %4536 = vmatpush1.msra.mxu0 0.0
    %4537 = vmatprep.subr.mxu0 0.0
    %4538 = vmatpush1.msra.mxu0 0.0
    %4539 = vmatprep.subr.mxu0 0.0
    %4540 = vmatpush1.msra.mxu0 0.0
    %4541 = vmatprep.subr.mxu0 0.0
    %4542 = vmatpush1.msra.mxu0 0.0
    %4543 = vmatprep.subr.mxu0 0.0
    %4544 = vmatpush1.msra.mxu0 0.0
    %4545 = vmatprep.subr.mxu0 0.0
    %4546 = vmatpush1.msra.mxu0 0.0
    %4547 = vmatprep.subr.mxu0 0.0
    %4548 = vmatpush1.msra.mxu0 0.0
    %4549 = vmatprep.subr.mxu0 0.0
    %4550 = vmatpush1.msra.mxu0 0.0
    %4551 = vmatprep.subr.mxu0 0.0
    %4552 = vmatpush1.msra.mxu0 0.0
    %4553 = vmatprep.subr.mxu0 0.0
    %4554 = vmatpush1.msra.mxu0 0.0
    %4555 = vmatprep.subr.mxu0 0.0
    %4556 = vmatpush1.msra.mxu0 0.0
    %4557 = vmatprep.subr.mxu0 0.0
    %4558 = vmatpush1.msra.mxu0 0.0
    %4559 = vmatprep.subr.mxu0 0.0
    %4560 = vmatpush1.msra.mxu0 0.0
    %4561 = vmatprep.subr.mxu0 0.0
    %4562 = vmatpush1.msra.mxu0 0.0
    %4563 = vmatprep.subr.mxu0 0.0
    %4564 = vmatpush1.msra.mxu0 0.0
    %4565 = vmatprep.subr.mxu0 0.0
    %4566 = vmatpush1.msra.mxu0 0.0
    %4567 = vmatprep.mubr.f32.mxu0 0.0
    %4568 = vmatmul.mubr.f32.gmra.mrb[0].mxu0 %v4241
    %v4569 = vpop.f32.mrb[0].mxu0
    %v4570 = vadd.f32 0.0, %v4569
    %v4571 = vpop.f32.mrb[0].mxu0
    %4572 = vdwg.mxu0
    %4574 = vrot.lane.b32.xlu0 %v4494, 32
    %v4575 = vpop.permute.xlu0 %4574
    %v4576 = vsel %vm77, %v4575, 0
    %4578 = vmatprep.subr.mxu0 0.0
    %4579 = vmatpush1.msra.mxu0 %v4495
    %4580 = vmatprep.subr.mxu0 0.0
    %4581 = vmatpush1.msra.mxu0 %v4496
    %4582 = vmatprep.subr.mxu0 0.0
    %4583 = vmatpush1.msra.mxu0 %v4497
    %4584 = vmatprep.subr.mxu0 0.0
    %4585 = vmatpush1.msra.mxu0 %v4498
    %4586 = vmatprep.subr.mxu0 0.0
    %4587 = vmatpush1.msra.mxu0 0.0
    %4588 = vmatprep.subr.mxu0 0.0
    %4589 = vmatpush1.msra.mxu0 0.0
    %4590 = vmatprep.subr.mxu0 0.0
    %4591 = vmatpush1.msra.mxu0 0.0
    %4592 = vmatprep.subr.mxu0 0.0
    %4593 = vmatpush1.msra.mxu0 0.0
    %4594 = vmatprep.subr.mxu0 0.0
    %4595 = vmatpush1.msra.mxu0 0.0
    %4596 = vmatprep.subr.mxu0 0.0
    %4597 = vmatpush1.msra.mxu0 0.0
    %4598 = vmatprep.subr.mxu0 0.0
    %4599 = vmatpush1.msra.mxu0 0.0
    %4600 = vmatprep.subr.mxu0 0.0
    %4601 = vmatpush1.msra.mxu0 0.0
    %4602 = vmatprep.subr.mxu0 0.0
    %4603 = vmatpush1.msra.mxu0 0.0
    %4604 = vmatprep.subr.mxu0 0.0
    %4605 = vmatpush1.msra.mxu0 0.0
    %4606 = vmatprep.subr.mxu0 0.0
    %4607 = vmatpush1.msra.mxu0 0.0
    %4608 = vmatprep.subr.mxu0 0.0
    %4609 = vmatpush1.msra.mxu0 0.0
    %4610 = vmatprep.subr.mxu0 0.0
    %4611 = vmatpush1.msra.mxu0 0.0
    %4612 = vmatprep.subr.mxu0 0.0
    %4613 = vmatpush1.msra.mxu0 0.0
    %4614 = vmatprep.subr.mxu0 0.0
    %4615 = vmatpush1.msra.mxu0 0.0
    %4616 = vmatprep.subr.mxu0 0.0
    %4617 = vmatpush1.msra.mxu0 0.0
    %4618 = vmatprep.subr.mxu0 0.0
    %4619 = vmatpush1.msra.mxu0 0.0
    %4620 = vmatprep.subr.mxu0 0.0
    %4621 = vmatpush1.msra.mxu0 0.0
    %4622 = vmatprep.subr.mxu0 0.0
    %4623 = vmatpush1.msra.mxu0 0.0
    %4624 = vmatprep.subr.mxu0 0.0
    %4625 = vmatpush1.msra.mxu0 0.0
    %4626 = vmatprep.subr.mxu0 0.0
    %4627 = vmatpush1.msra.mxu0 0.0
    %4628 = vmatprep.subr.mxu0 0.0
    %4629 = vmatpush1.msra.mxu0 0.0
    %4630 = vmatprep.subr.mxu0 0.0
    %4631 = vmatpush1.msra.mxu0 0.0
    %4632 = vmatprep.subr.mxu0 0.0
    %4633 = vmatpush1.msra.mxu0 0.0
    %4634 = vmatprep.subr.mxu0 0.0
    %4635 = vmatpush1.msra.mxu0 0.0
    %4636 = vmatprep.subr.mxu0 0.0
    %4637 = vmatpush1.msra.mxu0 0.0
    %4638 = vmatprep.subr.mxu0 0.0
    %4639 = vmatpush1.msra.mxu0 0.0
    %4640 = vmatprep.subr.mxu0 0.0
    %4641 = vmatpush1.msra.mxu0 0.0
    %4642 = vmatprep.mubr.f32.mxu0 0.0
    %4643 = vmatmul.mubr.f32.gmra.mrb[0].mxu0 %v4576
    %v4644 = vpop.f32.mrb[0].mxu0
    %v4645 = vadd.f32 %v4570, %v4644
    %v4646 = vpop.f32.mrb[0].mxu0
    %4647 = vdwg.mxu0
    %v4648 = vld [vmem:[%s15] sm:$0x1]
    %v4650 = vlaneseq
    %v4651 = vshrl.u32 %v4650, 7
    %v4652 = vsub.s32 0, %v4651
    %v4653 = vrot.slane %v4648, %v4652
    %v4655 = vadd.f32 %v4645, %v4653
    %s4656 = scalar_lea.vmem [#allocation2], 6
    %4657 = vst.msk [vmem:[%s4656] sm:$0x3] %vm690, %v4655
    %4659 = vrot.lane.b32.xlu0 %v4655, 120
    %v4660 = vpop.permute.xlu0 %4659
    %s4662 = scalar_lea.vmem %s17, 6
    %4663 = vst.msk [vmem:[%s4662] sm:$0x3] %vm1213, %v4660
    %s4664 = scalar_lea.vmem [#allocation4], 6
    %4665 = vst.msk [vmem:[%s4664] sm:$0x3] %vm690, %v4149
    %s4666 = scalar_lea.vmem %s0, 8
    %v4667 = vld [vmem:[%s4666] sm:$0x3]
    %s4668 = scalar_lea.vmem %s1, 8
    %v4669 = vld [vmem:[%s4668] sm:$0x3]
    %s4670 = scalar_lea.vmem %s2, 8
    %v4671 = vld [vmem:[%s4670] sm:$0x3]
    %v4672 = vld [vmem:[%s6] sm:$0xff]
    %v4673 = vld [vmem:[%s6 + $0x8] sm:$0xff]
    %v4674 = vld [vmem:[%s6 + $0x10] sm:$0xff]
    %v4675 = vld [vmem:[%s6 + $0x18] sm:$0xff]
    %v4676 = vld [vmem:[%s6 + $0x20] sm:$0xff]
    %v4677 = vld [vmem:[%s6 + $0x28] sm:$0xff]
    %v4678 = vld [vmem:[%s6 + $0x30] sm:$0xff]
    %v4679 = vld [vmem:[%s6 + $0x38] sm:$0xff]
    %4680 = vmatprep.subr.mxu0 0.0
    %4681 = vmatpush1.msra.mxu0 %v4676
    %4682 = vmatprep.subr.mxu0 0.0
    %4683 = vmatpush1.msra.mxu0 %v4677
    %4684 = vmatprep.subr.mxu0 0.0
    %4685 = vmatpush1.msra.mxu0 %v4678
    %4686 = vmatprep.subr.mxu0 0.0
    %4687 = vmatpush1.msra.mxu0 %v4679
    %4688 = vmatprep.subr.mxu0 0.0
    %4689 = vmatpush1.msra.mxu0 0.0
    %4690 = vmatprep.subr.mxu0 0.0
    %4691 = vmatpush1.msra.mxu0 0.0
    %4692 = vmatprep.subr.mxu0 0.0
    %4693 = vmatpush1.msra.mxu0 0.0
    %4694 = vmatprep.subr.mxu0 0.0
    %4695 = vmatpush1.msra.mxu0 0.0
    %4696 = vmatprep.subr.mxu0 0.0
    %4697 = vmatpush1.msra.mxu0 0.0
    %4698 = vmatprep.subr.mxu0 0.0
    %4699 = vmatpush1.msra.mxu0 0.0
    %4700 = vmatprep.subr.mxu0 0.0
    %4701 = vmatpush1.msra.mxu0 0.0
    %4702 = vmatprep.subr.mxu0 0.0
    %4703 = vmatpush1.msra.mxu0 0.0
    %4704 = vmatprep.subr.mxu0 0.0
    %4705 = vmatpush1.msra.mxu0 0.0
    %4706 = vmatprep.subr.mxu0 0.0
    %4707 = vmatpush1.msra.mxu0 0.0
    %4708 = vmatprep.subr.mxu0 0.0
    %4709 = vmatpush1.msra.mxu0 0.0
    %4710 = vmatprep.subr.mxu0 0.0
    %4711 = vmatpush1.msra.mxu0 0.0
    %4712 = vmatprep.subr.mxu0 0.0
    %4713 = vmatpush1.msra.mxu0 0.0
    %4714 = vmatprep.subr.mxu0 0.0
    %4715 = vmatpush1.msra.mxu0 0.0
    %4716 = vmatprep.subr.mxu0 0.0
    %4717 = vmatpush1.msra.mxu0 0.0
    %4718 = vmatprep.subr.mxu0 0.0
    %4719 = vmatpush1.msra.mxu0 0.0
    %4720 = vmatprep.subr.mxu0 0.0
    %4721 = vmatpush1.msra.mxu0 0.0
    %4722 = vmatprep.subr.mxu0 0.0
    %4723 = vmatpush1.msra.mxu0 0.0
    %4724 = vmatprep.subr.mxu0 0.0
    %4725 = vmatpush1.msra.mxu0 0.0
    %4726 = vmatprep.subr.mxu0 0.0
    %4727 = vmatpush1.msra.mxu0 0.0
    %4728 = vmatprep.subr.mxu0 0.0
    %4729 = vmatpush1.msra.mxu0 0.0
    %4730 = vmatprep.subr.mxu0 0.0
    %4731 = vmatpush1.msra.mxu0 0.0
    %4732 = vmatprep.subr.mxu0 0.0
    %4733 = vmatpush1.msra.mxu0 0.0
    %4734 = vmatprep.subr.mxu0 0.0
    %4735 = vmatpush1.msra.mxu0 0.0
    %4736 = vmatprep.subr.mxu0 0.0
    %4737 = vmatpush1.msra.mxu0 0.0
    %4738 = vmatprep.subr.mxu0 0.0
    %4739 = vmatpush1.msra.mxu0 0.0
    %4740 = vmatprep.subr.mxu0 0.0
    %4741 = vmatpush1.msra.mxu0 0.0
    %4742 = vmatprep.subr.mxu0 0.0
    %4743 = vmatpush1.msra.mxu0 0.0
    %4744 = vmatprep.mubr.f32.mxu0 0.0
    %4745 = vmatmul.mubr.f32.gmra.mrb[0].mxu0 %v4241
    %v4746 = vpop.f32.mrb[0].mxu0
    %v4747 = vadd.f32 0.0, %v4746
    %v4748 = vpop.f32.mrb[0].mxu0
    %4749 = vdwg.mxu0
    %v4751 = vsel %vm77, %v4667, 0
    %4753 = vmatprep.subr.mxu0 0.0
    %4754 = vmatpush1.msra.mxu0 %v4672
    %4755 = vmatprep.subr.mxu0 0.0
    %4756 = vmatpush1.msra.mxu0 %v4673
    %4757 = vmatprep.subr.mxu0 0.0
    %4758 = vmatpush1.msra.mxu0 %v4674
    %4759 = vmatprep.subr.mxu0 0.0
    %4760 = vmatpush1.msra.mxu0 %v4675
    %4761 = vmatprep.subr.mxu0 0.0
    %4762 = vmatpush1.msra.mxu0 0.0
    %4763 = vmatprep.subr.mxu0 0.0
    %4764 = vmatpush1.msra.mxu0 0.0
    %4765 = vmatprep.subr.mxu0 0.0
    %4766 = vmatpush1.msra.mxu0 0.0
    %4767 = vmatprep.subr.mxu0 0.0
    %4768 = vmatpush1.msra.mxu0 0.0
    %4769 = vmatprep.subr.mxu0 0.0
    %4770 = vmatpush1.msra.mxu0 0.0
    %4771 = vmatprep.subr.mxu0 0.0
    %4772 = vmatpush1.msra.mxu0 0.0
    %4773 = vmatprep.subr.mxu0 0.0
    %4774 = vmatpush1.msra.mxu0 0.0
    %4775 = vmatprep.subr.mxu0 0.0
    %4776 = vmatpush1.msra.mxu0 0.0
    %4777 = vmatprep.subr.mxu0 0.0
    %4778 = vmatpush1.msra.mxu0 0.0
    %4779 = vmatprep.subr.mxu0 0.0
    %4780 = vmatpush1.msra.mxu0 0.0
    %4781 = vmatprep.subr.mxu0 0.0
    %4782 = vmatpush1.msra.mxu0 0.0
    %4783 = vmatprep.subr.mxu0 0.0
    %4784 = vmatpush1.msra.mxu0 0.0
    %4785 = vmatprep.subr.mxu0 0.0
    %4786 = vmatpush1.msra.mxu0 0.0
    %4787 = vmatprep.subr.mxu0 0.0
    %4788 = vmatpush1.msra.mxu0 0.0
    %4789 = vmatprep.subr.mxu0 0.0
    %4790 = vmatpush1.msra.mxu0 0.0
    %4791 = vmatprep.subr.mxu0 0.0
    %4792 = vmatpush1.msra.mxu0 0.0
    %4793 = vmatprep.subr.mxu0 0.0
    %4794 = vmatpush1.msra.mxu0 0.0
    %4795 = vmatprep.subr.mxu0 0.0
    %4796 = vmatpush1.msra.mxu0 0.0
    %4797 = vmatprep.subr.mxu0 0.0
    %4798 = vmatpush1.msra.mxu0 0.0
    %4799 = vmatprep.subr.mxu0 0.0
    %4800 = vmatpush1.msra.mxu0 0.0
    %4801 = vmatprep.subr.mxu0 0.0
    %4802 = vmatpush1.msra.mxu0 0.0
    %4803 = vmatprep.subr.mxu0 0.0
    %4804 = vmatpush1.msra.mxu0 0.0
    %4805 = vmatprep.subr.mxu0 0.0
    %4806 = vmatpush1.msra.mxu0 0.0
    %4807 = vmatprep.subr.mxu0 0.0
    %4808 = vmatpush1.msra.mxu0 0.0
    %4809 = vmatprep.subr.mxu0 0.0
    %4810 = vmatpush1.msra.mxu0 0.0
    %4811 = vmatprep.subr.mxu0 0.0
    %4812 = vmatpush1.msra.mxu0 0.0
    %4813 = vmatprep.subr.mxu0 0.0
    %4814 = vmatpush1.msra.mxu0 0.0
    %4815 = vmatprep.subr.mxu0 0.0
    %4816 = vmatpush1.msra.mxu0 0.0
    %4817 = vmatprep.mubr.f32.mxu0 0.0
    %4818 = vmatmul.mubr.f32.gmra.mrb[0].mxu0 %v4751
    %v4819 = vpop.f32.mrb[0].mxu0
    %v4820 = vadd.f32 %v4747, %v4819
    %v4821 = vpop.f32.mrb[0].mxu0
    %4822 = vdwg.mxu0
    %v4823 = vld [vmem:[%s6 + $0x40] sm:$0xff]
    %v4824 = vld [vmem:[%s6 + $0x48] sm:$0xff]
    %v4825 = vld [vmem:[%s6 + $0x50] sm:$0xff]
    %v4826 = vld [vmem:[%s6 + $0x58] sm:$0xff]
    %4827 = vmatprep.subr.mxu0 0.0
    %4828 = vmatpush1.msra.mxu0 %v4823
    %4829 = vmatprep.subr.mxu0 0.0
    %4830 = vmatpush1.msra.mxu0 %v4824
    %4831 = vmatprep.subr.mxu0 0.0
    %4832 = vmatpush1.msra.mxu0 %v4825
    %4833 = vmatprep.subr.mxu0 0.0
    %4834 = vmatpush1.msra.mxu0 %v4826
    %4835 = vmatprep.subr.mxu0 0.0
    %4836 = vmatpush1.msra.mxu0 0.0
    %4837 = vmatprep.subr.mxu0 0.0
    %4838 = vmatpush1.msra.mxu0 0.0
    %4839 = vmatprep.subr.mxu0 0.0
    %4840 = vmatpush1.msra.mxu0 0.0
    %4841 = vmatprep.subr.mxu0 0.0
    %4842 = vmatpush1.msra.mxu0 0.0
    %4843 = vmatprep.subr.mxu0 0.0
    %4844 = vmatpush1.msra.mxu0 0.0
    %4845 = vmatprep.subr.mxu0 0.0
    %4846 = vmatpush1.msra.mxu0 0.0
    %4847 = vmatprep.subr.mxu0 0.0
    %4848 = vmatpush1.msra.mxu0 0.0
    %4849 = vmatprep.subr.mxu0 0.0
    %4850 = vmatpush1.msra.mxu0 0.0
    %4851 = vmatprep.subr.mxu0 0.0
    %4852 = vmatpush1.msra.mxu0 0.0
    %4853 = vmatprep.subr.mxu0 0.0
    %4854 = vmatpush1.msra.mxu0 0.0
    %4855 = vmatprep.subr.mxu0 0.0
    %4856 = vmatpush1.msra.mxu0 0.0
    %4857 = vmatprep.subr.mxu0 0.0
    %4858 = vmatpush1.msra.mxu0 0.0
    %4859 = vmatprep.subr.mxu0 0.0
    %4860 = vmatpush1.msra.mxu0 0.0
    %4861 = vmatprep.subr.mxu0 0.0
    %4862 = vmatpush1.msra.mxu0 0.0
    %4863 = vmatprep.subr.mxu0 0.0
    %4864 = vmatpush1.msra.mxu0 0.0
    %4865 = vmatprep.subr.mxu0 0.0
    %4866 = vmatpush1.msra.mxu0 0.0
    %4867 = vmatprep.subr.mxu0 0.0
    %4868 = vmatpush1.msra.mxu0 0.0
    %4869 = vmatprep.subr.mxu0 0.0
    %4870 = vmatpush1.msra.mxu0 0.0
    %4871 = vmatprep.subr.mxu0 0.0
    %4872 = vmatpush1.msra.mxu0 0.0
    %4873 = vmatprep.subr.mxu0 0.0
    %4874 = vmatpush1.msra.mxu0 0.0
    %4875 = vmatprep.subr.mxu0 0.0
    %4876 = vmatpush1.msra.mxu0 0.0
    %4877 = vmatprep.subr.mxu0 0.0
    %4878 = vmatpush1.msra.mxu0 0.0
    %4879 = vmatprep.subr.mxu0 0.0
    %4880 = vmatpush1.msra.mxu0 0.0
    %4881 = vmatprep.subr.mxu0 0.0
    %4882 = vmatpush1.msra.mxu0 0.0
    %4883 = vmatprep.subr.mxu0 0.0
    %4884 = vmatpush1.msra.mxu0 0.0
    %4885 = vmatprep.subr.mxu0 0.0
    %4886 = vmatpush1.msra.mxu0 0.0
    %4887 = vmatprep.subr.mxu0 0.0
    %4888 = vmatpush1.msra.mxu0 0.0
    %4889 = vmatprep.subr.mxu0 0.0
    %4890 = vmatpush1.msra.mxu0 0.0
    %4891 = vmatprep.mubr.f32.mxu0 0.0
    %4892 = vmatmul.mubr.f32.gmra.mrb[0].mxu0 %v3869
    %v4893 = vpop.f32.mrb[0].mxu0
    %v4894 = vadd.f32 0.0, %v4893
    %v4895 = vpop.f32.mrb[0].mxu0
    %4896 = vdwg.mxu0
    %v4897 = vadd.f32 %v4820, %v4894
    %v4898 = vld [vmem:[%s7] sm:$0x1]
    %v4900 = vlaneseq
    %v4901 = vshrl.u32 %v4900, 7
    %v4902 = vsub.s32 0, %v4901
    %v4903 = vrot.slane %v4898, %v4902
    %v4905 = vadd.f32 %v4897, %v4903
    %v4906 = vxor.u32 %v4905, 2147483648
    %v4907 = vmul.f32 %v4906, 1.442695
    %v4908 = vpow.pop %v4907
    %v4909 = vadd.f32 %v4908, 1.0
    %v4910 = vrcp.pop %v4909
    %v4911 = vmul.f32 1.0, %v4910
    %v4912 = vmul.f32 %v4911, %v3773
    %v4913 = vtanh.pop %v4905
    %4915 = vrot.lane.b32.xlu0 %v4913, 64
    %v4916 = vpop.permute.xlu0 %4915
    %v4918 = vmul.f32 %v4911, %v4916
    %4920 = vrot.lane.b32.xlu0 %v4918, 32
    %v4921 = vpop.permute.xlu0 %4920
    %v4923 = vadd.f32 %v4912, %v4921
    %v4924 = vtanh.pop %v4923
    %4926 = vrot.lane.b32.xlu0 %v4924, 64
    %v4927 = vpop.permute.xlu0 %4926
    %v4929 = vmul.f32 %v4911, %v4927
    %4931 = vrot.lane.b32.xlu0 %v4669, 96
    %v4932 = vpop.permute.xlu0 %4931
    %v4934 = vmul.f32 %v4929, %v4932
    %v4935 = vld [vmem:[%s8] sm:$0xff]
    %v4936 = vld [vmem:[%s8 + $0x8] sm:$0xff]
    %v4937 = vld [vmem:[%s8 + $0x10] sm:$0xff]
    %v4938 = vld [vmem:[%s8 + $0x18] sm:$0xff]
    %v4939 = vld [vmem:[%s8 + $0x20] sm:$0xff]
    %v4940 = vld [vmem:[%s8 + $0x28] sm:$0xff]
    %v4941 = vld [vmem:[%s8 + $0x30] sm:$0xff]
    %v4942 = vld [vmem:[%s8 + $0x38] sm:$0xff]
    %v4943 = vld [vmem:[%s9] sm:$0xff]
    %v4944 = vld [vmem:[%s9 + $0x8] sm:$0xff]
    %4945 = vmatprep.subr.mxu0 %v4944
    %4946 = vmatpush1.msra.mxu0 %v4943
    %4947 = vmatprep.subr.mxu0 0.0
    %4948 = vmatpush1.msra.mxu0 0.0
    %4949 = vmatprep.subr.mxu0 0.0
    %4950 = vmatpush1.msra.mxu0 0.0
    %4951 = vmatprep.subr.mxu0 0.0
    %4952 = vmatpush1.msra.mxu0 0.0
    %4953 = vmatprep.subr.mxu0 0.0
    %4954 = vmatpush1.msra.mxu0 0.0
    %4955 = vmatprep.subr.mxu0 0.0
    %4956 = vmatpush1.msra.mxu0 0.0
    %4957 = vmatprep.subr.mxu0 0.0
    %4958 = vmatpush1.msra.mxu0 0.0
    %4959 = vmatprep.subr.mxu0 0.0
    %4960 = vmatpush1.msra.mxu0 0.0
    %4961 = vmatprep.subr.mxu0 0.0
    %4962 = vmatpush1.msra.mxu0 0.0
    %4963 = vmatprep.subr.mxu0 0.0
    %4964 = vmatpush1.msra.mxu0 0.0
    %4965 = vmatprep.subr.mxu0 0.0
    %4966 = vmatpush1.msra.mxu0 0.0
    %4967 = vmatprep.subr.mxu0 0.0
    %4968 = vmatpush1.msra.mxu0 0.0
    %4969 = vmatprep.subr.mxu0 0.0
    %4970 = vmatpush1.msra.mxu0 0.0
    %4971 = vmatprep.subr.mxu0 0.0
    %4972 = vmatpush1.msra.mxu0 0.0
    %4973 = vmatprep.subr.mxu0 0.0
    %4974 = vmatpush1.msra.mxu0 0.0
    %4975 = vmatprep.subr.mxu0 0.0
    %4976 = vmatpush1.msra.mxu0 0.0
    %4977 = vmatprep.subr.mxu0 0.0
    %4978 = vmatpush1.msra.mxu0 0.0
    %4979 = vmatprep.subr.mxu0 0.0
    %4980 = vmatpush1.msra.mxu0 0.0
    %4981 = vmatprep.subr.mxu0 0.0
    %4982 = vmatpush1.msra.mxu0 0.0
    %4983 = vmatprep.subr.mxu0 0.0
    %4984 = vmatpush1.msra.mxu0 0.0
    %4985 = vmatprep.subr.mxu0 0.0
    %4986 = vmatpush1.msra.mxu0 0.0
    %4987 = vmatprep.subr.mxu0 0.0
    %4988 = vmatpush1.msra.mxu0 0.0
    %4989 = vmatprep.subr.mxu0 0.0
    %4990 = vmatpush1.msra.mxu0 0.0
    %4991 = vmatprep.subr.mxu0 0.0
    %4992 = vmatpush1.msra.mxu0 0.0
    %4993 = vmatprep.subr.mxu0 0.0
    %4994 = vmatpush1.msra.mxu0 0.0
    %4995 = vmatprep.subr.mxu0 0.0
    %4996 = vmatpush1.msra.mxu0 0.0
    %4997 = vmatprep.subr.mxu0 0.0
    %4998 = vmatpush1.msra.mxu0 0.0
    %4999 = vmatprep.subr.mxu0 0.0
    %5000 = vmatpush1.msra.mxu0 0.0
    %5001 = vmatprep.subr.mxu0 0.0
    %5002 = vmatpush1.msra.mxu0 0.0
    %5003 = vmatprep.subr.mxu0 0.0
    %5004 = vmatpush1.msra.mxu0 0.0
    %5005 = vmatprep.subr.mxu0 0.0
    %5006 = vmatpush1.msra.mxu0 0.0
    %5007 = vmatprep.subr.mxu0 0.0
    %5008 = vmatpush1.msra.mxu0 0.0
    %5009 = vmatprep.mubr.f32.mxu0 0.0
    %5010 = vmatmul.mubr.f32.gmra.mrb[0].mxu0 %v4153
    %v5011 = vpop.f32.mrb[0].mxu0
    %v5012 = vadd.f32 0.0, %v5011
    %v5013 = vpop.f32.mrb[0].mxu0
    %v5014 = vadd.f32 0.0, %v5013
    %5015 = vdwg.mxu0
    %5017 = vrot.lane.b32.xlu0 %v4934, 32
    %v5018 = vpop.permute.xlu0 %5017
    %v5019 = vsel %vm77, %v5018, 0
    %5021 = vmatprep.subr.mxu0 %v4936
    %5022 = vmatpush1.msra.mxu0 %v4935
    %5023 = vmatprep.subr.mxu0 %v4938
    %5024 = vmatpush1.msra.mxu0 %v4937
    %5025 = vmatprep.subr.mxu0 %v4940
    %5026 = vmatpush1.msra.mxu0 %v4939
    %5027 = vmatprep.subr.mxu0 %v4942
    %5028 = vmatpush1.msra.mxu0 %v4941
    %5029 = vmatprep.subr.mxu0 0.0
    %5030 = vmatpush1.msra.mxu0 0.0
    %5031 = vmatprep.subr.mxu0 0.0
    %5032 = vmatpush1.msra.mxu0 0.0
    %5033 = vmatprep.subr.mxu0 0.0
    %5034 = vmatpush1.msra.mxu0 0.0
    %5035 = vmatprep.subr.mxu0 0.0
    %5036 = vmatpush1.msra.mxu0 0.0
    %5037 = vmatprep.subr.mxu0 0.0
    %5038 = vmatpush1.msra.mxu0 0.0
    %5039 = vmatprep.subr.mxu0 0.0
    %5040 = vmatpush1.msra.mxu0 0.0
    %5041 = vmatprep.subr.mxu0 0.0
    %5042 = vmatpush1.msra.mxu0 0.0
    %5043 = vmatprep.subr.mxu0 0.0
    %5044 = vmatpush1.msra.mxu0 0.0
    %5045 = vmatprep.subr.mxu0 0.0
    %5046 = vmatpush1.msra.mxu0 0.0
    %5047 = vmatprep.subr.mxu0 0.0
    %5048 = vmatpush1.msra.mxu0 0.0
    %5049 = vmatprep.subr.mxu0 0.0
    %5050 = vmatpush1.msra.mxu0 0.0
    %5051 = vmatprep.subr.mxu0 0.0
    %5052 = vmatpush1.msra.mxu0 0.0
    %5053 = vmatprep.subr.mxu0 0.0
    %5054 = vmatpush1.msra.mxu0 0.0
    %5055 = vmatprep.subr.mxu0 0.0
    %5056 = vmatpush1.msra.mxu0 0.0
    %5057 = vmatprep.subr.mxu0 0.0
    %5058 = vmatpush1.msra.mxu0 0.0
    %5059 = vmatprep.subr.mxu0 0.0
    %5060 = vmatpush1.msra.mxu0 0.0
    %5061 = vmatprep.subr.mxu0 0.0
    %5062 = vmatpush1.msra.mxu0 0.0
    %5063 = vmatprep.subr.mxu0 0.0
    %5064 = vmatpush1.msra.mxu0 0.0
    %5065 = vmatprep.subr.mxu0 0.0
    %5066 = vmatpush1.msra.mxu0 0.0
    %5067 = vmatprep.subr.mxu0 0.0
    %5068 = vmatpush1.msra.mxu0 0.0
    %5069 = vmatprep.subr.mxu0 0.0
    %5070 = vmatpush1.msra.mxu0 0.0
    %5071 = vmatprep.subr.mxu0 0.0
    %5072 = vmatpush1.msra.mxu0 0.0
    %5073 = vmatprep.subr.mxu0 0.0
    %5074 = vmatpush1.msra.mxu0 0.0
    %5075 = vmatprep.subr.mxu0 0.0
    %5076 = vmatpush1.msra.mxu0 0.0
    %5077 = vmatprep.subr.mxu0 0.0
    %5078 = vmatpush1.msra.mxu0 0.0
    %5079 = vmatprep.subr.mxu0 0.0
    %5080 = vmatpush1.msra.mxu0 0.0
    %5081 = vmatprep.subr.mxu0 0.0
    %5082 = vmatpush1.msra.mxu0 0.0
    %5083 = vmatprep.subr.mxu0 0.0
    %5084 = vmatpush1.msra.mxu0 0.0
    %5085 = vmatprep.mubr.f32.mxu0 0.0
    %5086 = vmatmul.mubr.f32.gmra.mrb[0].mxu0 %v5019
    %v5087 = vpop.f32.mrb[0].mxu0
    %v5088 = vadd.f32 %v5012, %v5087
    %v5089 = vpop.f32.mrb[0].mxu0
    %v5090 = vadd.f32 %v5014, %v5089
    %5091 = vdwg.mxu0
    %v5092 = vld [vmem:[%s10] sm:$0xff]
    %v5093 = vld [vmem:[%s10 + $0x8] sm:$0xff]
    %v5095 = vsel %vm346, %v4150, 0
    %5097 = vmatprep.subr.mxu0 %v5093
    %5098 = vmatpush1.msra.mxu0 %v5092
    %5099 = vmatprep.subr.mxu0 0.0
    %5100 = vmatpush1.msra.mxu0 0.0
    %5101 = vmatprep.subr.mxu0 0.0
    %5102 = vmatpush1.msra.mxu0 0.0
    %5103 = vmatprep.subr.mxu0 0.0
    %5104 = vmatpush1.msra.mxu0 0.0
    %5105 = vmatprep.subr.mxu0 0.0
    %5106 = vmatpush1.msra.mxu0 0.0
    %5107 = vmatprep.subr.mxu0 0.0
    %5108 = vmatpush1.msra.mxu0 0.0
    %5109 = vmatprep.subr.mxu0 0.0
    %5110 = vmatpush1.msra.mxu0 0.0
    %5111 = vmatprep.subr.mxu0 0.0
    %5112 = vmatpush1.msra.mxu0 0.0
    %5113 = vmatprep.subr.mxu0 0.0
    %5114 = vmatpush1.msra.mxu0 0.0
    %5115 = vmatprep.subr.mxu0 0.0
    %5116 = vmatpush1.msra.mxu0 0.0
    %5117 = vmatprep.subr.mxu0 0.0
    %5118 = vmatpush1.msra.mxu0 0.0
    %5119 = vmatprep.subr.mxu0 0.0
    %5120 = vmatpush1.msra.mxu0 0.0
    %5121 = vmatprep.subr.mxu0 0.0
    %5122 = vmatpush1.msra.mxu0 0.0
    %5123 = vmatprep.subr.mxu0 0.0
    %5124 = vmatpush1.msra.mxu0 0.0
    %5125 = vmatprep.subr.mxu0 0.0
    %5126 = vmatpush1.msra.mxu0 0.0
    %5127 = vmatprep.subr.mxu0 0.0
    %5128 = vmatpush1.msra.mxu0 0.0
    %5129 = vmatprep.subr.mxu0 0.0
    %5130 = vmatpush1.msra.mxu0 0.0
    %5131 = vmatprep.subr.mxu0 0.0
    %5132 = vmatpush1.msra.mxu0 0.0
    %5133 = vmatprep.subr.mxu0 0.0
    %5134 = vmatpush1.msra.mxu0 0.0
    %5135 = vmatprep.subr.mxu0 0.0
    %5136 = vmatpush1.msra.mxu0 0.0
    %5137 = vmatprep.subr.mxu0 0.0
    %5138 = vmatpush1.msra.mxu0 0.0
    %5139 = vmatprep.subr.mxu0 0.0
    %5140 = vmatpush1.msra.mxu0 0.0
    %5141 = vmatprep.subr.mxu0 0.0
    %5142 = vmatpush1.msra.mxu0 0.0
    %5143 = vmatprep.subr.mxu0 0.0
    %5144 = vmatpush1.msra.mxu0 0.0
    %5145 = vmatprep.subr.mxu0 0.0
    %5146 = vmatpush1.msra.mxu0 0.0
    %5147 = vmatprep.subr.mxu0 0.0
    %5148 = vmatpush1.msra.mxu0 0.0
    %5149 = vmatprep.subr.mxu0 0.0
    %5150 = vmatpush1.msra.mxu0 0.0
    %5151 = vmatprep.subr.mxu0 0.0
    %5152 = vmatpush1.msra.mxu0 0.0
    %5153 = vmatprep.subr.mxu0 0.0
    %5154 = vmatpush1.msra.mxu0 0.0
    %5155 = vmatprep.subr.mxu0 0.0
    %5156 = vmatpush1.msra.mxu0 0.0
    %5157 = vmatprep.subr.mxu0 0.0
    %5158 = vmatpush1.msra.mxu0 0.0
    %5159 = vmatprep.subr.mxu0 0.0
    %5160 = vmatpush1.msra.mxu0 0.0
    %5161 = vmatprep.mubr.f32.mxu0 0.0
    %5162 = vmatmul.mubr.f32.gmra.mrb[0].mxu0 %v5095
    %v5163 = vpop.f32.mrb[0].mxu0
    %v5164 = vadd.f32 0.0, %v5163
    %v5165 = vpop.f32.mrb[0].mxu0
    %v5166 = vadd.f32 0.0, %v5165
    %5167 = vdwg.mxu0
    %v5168 = vadd.f32 %v5088, %v5164
    %v5169 = vadd.f32 %v5090, %v5166
    %v5170 = vld [vmem:[%s4] sm:$0xf]
    %v5173 = vunpack.c.l.s4 1983009808
    %v5174 = vunpack.c.0.s8 %v5173
    %v5175 = vlaneseq
    %v5176 = vshrl.u32 %v5175, 7
    %v5177 = vsub.s32 %v5174, %v5176
    %v5178 = vrot.slane %v5170, %v5177
    %v5179 = vcombine.high %v5178, %v5178
    %v5182 = vadd.f32 %v5168, %v5178
    %v5183 = vadd.f32 %v5169, %v5179
    %v5184 = vtanh.pop %v5182
    %v5185 = vtanh.pop %v5183
    %v5186 = vld [vmem:[%s11] sm:$0xff]
    %v5187 = vld [vmem:[%s11 + $0x8] sm:$0xff]
    %v5188 = vld [vmem:[%s11 + $0x10] sm:$0xff]
    %v5189 = vld [vmem:[%s11 + $0x18] sm:$0xff]
    %v5190 = vld [vmem:[%s11 + $0x20] sm:$0xff]
    %v5191 = vld [vmem:[%s11 + $0x28] sm:$0xff]
    %v5192 = vld [vmem:[%s11 + $0x30] sm:$0xff]
    %v5193 = vld [vmem:[%s11 + $0x38] sm:$0xff]
    %v5194 = vld [vmem:[%s11 + $0x40] sm:$0xff]
    %v5195 = vld [vmem:[%s11 + $0x48] sm:$0xff]
    %v5196 = vld [vmem:[%s11 + $0x50] sm:$0xff]
    %v5197 = vld [vmem:[%s11 + $0x58] sm:$0xff]
    %v5198 = vld [vmem:[%s11 + $0x60] sm:$0xff]
    %v5199 = vld [vmem:[%s11 + $0x68] sm:$0xff]
    %v5200 = vld [vmem:[%s11 + $0x70] sm:$0xff]
    %v5201 = vld [vmem:[%s11 + $0x78] sm:$0xff]
    %v5202 = vld [vmem:[%s11 + $0x80] sm:$0xff]
    %v5203 = vld [vmem:[%s11 + $0x88] sm:$0xff]
    %v5204 = vld [vmem:[%s11 + $0x90] sm:$0xff]
    %v5205 = vld [vmem:[%s11 + $0x98] sm:$0xff]
    %v5206 = vld [vmem:[%s11 + $0xa0] sm:$0xff]
    %v5207 = vld [vmem:[%s11 + $0xa8] sm:$0xff]
    %v5208 = vld [vmem:[%s11 + $0xb0] sm:$0xff]
    %v5209 = vld [vmem:[%s11 + $0xb8] sm:$0xff]
    %v5210 = vld [vmem:[%s11 + $0xc0] sm:$0xff]
    %v5211 = vld [vmem:[%s11 + $0xc8] sm:$0xff]
    %v5212 = vld [vmem:[%s11 + $0xd0] sm:$0xff]
    %v5213 = vld [vmem:[%s11 + $0xd8] sm:$0xff]
    %v5214 = vld [vmem:[%s11 + $0xe0] sm:$0xff]
    %v5215 = vld [vmem:[%s11 + $0xe8] sm:$0xff]
    %v5216 = vld [vmem:[%s11 + $0xf0] sm:$0xff]
    %v5217 = vld [vmem:[%s11 + $0xf8] sm:$0xff]
    %v5218 = vld [vmem:[%s5] sm:$0x3]
    %5219 = vmatprep.subr.mxu0 0.0
    %5220 = vmatpush1.msra.mxu0 %v5186
    %5221 = vmatprep.subr.mxu0 0.0
    %5222 = vmatpush1.msra.mxu0 %v5187
    %5223 = vmatprep.subr.mxu0 0.0
    %5224 = vmatpush1.msra.mxu0 %v5188
    %5225 = vmatprep.subr.mxu0 0.0
    %5226 = vmatpush1.msra.mxu0 %v5189
    %5227 = vmatprep.subr.mxu0 0.0
    %5228 = vmatpush1.msra.mxu0 %v5190
    %5229 = vmatprep.subr.mxu0 0.0
    %5230 = vmatpush1.msra.mxu0 %v5191
    %5231 = vmatprep.subr.mxu0 0.0
    %5232 = vmatpush1.msra.mxu0 %v5192
    %5233 = vmatprep.subr.mxu0 0.0
    %5234 = vmatpush1.msra.mxu0 %v5193
    %5235 = vmatprep.subr.mxu0 0.0
    %5236 = vmatpush1.msra.mxu0 %v5194
    %5237 = vmatprep.subr.mxu0 0.0
    %5238 = vmatpush1.msra.mxu0 %v5195
    %5239 = vmatprep.subr.mxu0 0.0
    %5240 = vmatpush1.msra.mxu0 %v5196
    %5241 = vmatprep.subr.mxu0 0.0
    %5242 = vmatpush1.msra.mxu0 %v5197
    %5243 = vmatprep.subr.mxu0 0.0
    %5244 = vmatpush1.msra.mxu0 %v5198
    %5245 = vmatprep.subr.mxu0 0.0
    %5246 = vmatpush1.msra.mxu0 %v5199
    %5247 = vmatprep.subr.mxu0 0.0
    %5248 = vmatpush1.msra.mxu0 %v5200
    %5249 = vmatprep.subr.mxu0 0.0
    %5250 = vmatpush1.msra.mxu0 %v5201
    %5251 = vmatprep.subr.mxu0 0.0
    %5252 = vmatpush1.msra.mxu0 %v5202
    %5253 = vmatprep.subr.mxu0 0.0
    %5254 = vmatpush1.msra.mxu0 %v5203
    %5255 = vmatprep.subr.mxu0 0.0
    %5256 = vmatpush1.msra.mxu0 %v5204
    %5257 = vmatprep.subr.mxu0 0.0
    %5258 = vmatpush1.msra.mxu0 %v5205
    %5259 = vmatprep.subr.mxu0 0.0
    %5260 = vmatpush1.msra.mxu0 %v5206
    %5261 = vmatprep.subr.mxu0 0.0
    %5262 = vmatpush1.msra.mxu0 %v5207
    %5263 = vmatprep.subr.mxu0 0.0
    %5264 = vmatpush1.msra.mxu0 %v5208
    %5265 = vmatprep.subr.mxu0 0.0
    %5266 = vmatpush1.msra.mxu0 %v5209
    %5267 = vmatprep.subr.mxu0 0.0
    %5268 = vmatpush1.msra.mxu0 %v5210
    %5269 = vmatprep.subr.mxu0 0.0
    %5270 = vmatpush1.msra.mxu0 %v5211
    %5271 = vmatprep.subr.mxu0 0.0
    %5272 = vmatpush1.msra.mxu0 %v5212
    %5273 = vmatprep.subr.mxu0 0.0
    %5274 = vmatpush1.msra.mxu0 %v5213
    %5275 = vmatprep.subr.mxu0 0.0
    %5276 = vmatpush1.msra.mxu0 %v5214
    %5277 = vmatprep.subr.mxu0 0.0
    %5278 = vmatpush1.msra.mxu0 %v5215
    %5279 = vmatprep.subr.mxu0 0.0
    %5280 = vmatpush1.msra.mxu0 %v5216
    %5281 = vmatprep.subr.mxu0 0.0
    %5282 = vmatpush1.msra.mxu0 %v5217
    %5283 = vmatprep.mubr.f32.mxu0 %v5185
    %5284 = vmatmul.mubr.f32.gmra.mrb[0].mxu0 %v5184
    %v5285 = vpop.f32.mrb[0].mxu0
    %v5286 = vadd.f32 %v5218, %v5285
    %v5287 = vpop.f32.mrb[0].mxu0
    %5288 = vdwg.mxu0
    %v5289 = vsel %vm690, %v5286, -inf
    %5290 = vmax.xlane.f32.xlu0 %v5289
    %v5291 = vpop.xlane.xlu0 %5290
    %v5292 = vsub.f32 %v5286, %v5291
    %v5293 = vmul.f32 %v5292, 1.442695
    %v5294 = vpow.pop %v5293
    %v5295 = vsel %vm690, %v5294, 0.0
    %5296 = vadd.xlane.f32.xlu0 %v5295
    %v5297 = vpop.xlane.xlu0 %5296
    %v5298 = vrcp.pop %v5297
    %v5299 = vmul.f32 %v5294, %v5298
    %v5300 = vadd.f32 %v4150, %v5299
    %v5301 = vld [vmem:[%s3] sm:$0xff]
    %v5303 = vsel %vm346, %v5299, 0
    %5305 = vmatprep.subr.mxu0 0.0
    %5306 = vmatpush1.msra.mxu0 %v5301
    %5307 = vmatprep.subr.mxu0 0.0
    %5308 = vmatpush1.msra.mxu0 0.0
    %5309 = vmatprep.subr.mxu0 0.0
    %5310 = vmatpush1.msra.mxu0 0.0
    %5311 = vmatprep.subr.mxu0 0.0
    %5312 = vmatpush1.msra.mxu0 0.0
    %5313 = vmatprep.subr.mxu0 0.0
    %5314 = vmatpush1.msra.mxu0 0.0
    %5315 = vmatprep.subr.mxu0 0.0
    %5316 = vmatpush1.msra.mxu0 0.0
    %5317 = vmatprep.subr.mxu0 0.0
    %5318 = vmatpush1.msra.mxu0 0.0
    %5319 = vmatprep.subr.mxu0 0.0
    %5320 = vmatpush1.msra.mxu0 0.0
    %5321 = vmatprep.subr.mxu0 0.0
    %5322 = vmatpush1.msra.mxu0 0.0
    %5323 = vmatprep.subr.mxu0 0.0
    %5324 = vmatpush1.msra.mxu0 0.0
    %5325 = vmatprep.subr.mxu0 0.0
    %5326 = vmatpush1.msra.mxu0 0.0
    %5327 = vmatprep.subr.mxu0 0.0
    %5328 = vmatpush1.msra.mxu0 0.0
    %5329 = vmatprep.subr.mxu0 0.0
    %5330 = vmatpush1.msra.mxu0 0.0
    %5331 = vmatprep.subr.mxu0 0.0
    %5332 = vmatpush1.msra.mxu0 0.0
    %5333 = vmatprep.subr.mxu0 0.0
    %5334 = vmatpush1.msra.mxu0 0.0
    %5335 = vmatprep.subr.mxu0 0.0
    %5336 = vmatpush1.msra.mxu0 0.0
    %5337 = vmatprep.subr.mxu0 0.0
    %5338 = vmatpush1.msra.mxu0 0.0
    %5339 = vmatprep.subr.mxu0 0.0
    %5340 = vmatpush1.msra.mxu0 0.0
    %5341 = vmatprep.subr.mxu0 0.0
    %5342 = vmatpush1.msra.mxu0 0.0
    %5343 = vmatprep.subr.mxu0 0.0
    %5344 = vmatpush1.msra.mxu0 0.0
    %5345 = vmatprep.subr.mxu0 0.0
    %5346 = vmatpush1.msra.mxu0 0.0
    %5347 = vmatprep.subr.mxu0 0.0
    %5348 = vmatpush1.msra.mxu0 0.0
    %5349 = vmatprep.subr.mxu0 0.0
    %5350 = vmatpush1.msra.mxu0 0.0
    %5351 = vmatprep.subr.mxu0 0.0
    %5352 = vmatpush1.msra.mxu0 0.0
    %5353 = vmatprep.subr.mxu0 0.0
    %5354 = vmatpush1.msra.mxu0 0.0
    %5355 = vmatprep.subr.mxu0 0.0
    %5356 = vmatpush1.msra.mxu0 0.0
    %5357 = vmatprep.subr.mxu0 0.0
    %5358 = vmatpush1.msra.mxu0 0.0
    %5359 = vmatprep.subr.mxu0 0.0
    %5360 = vmatpush1.msra.mxu0 0.0
    %5361 = vmatprep.subr.mxu0 0.0
    %5362 = vmatpush1.msra.mxu0 0.0
    %5363 = vmatprep.subr.mxu0 0.0
    %5364 = vmatpush1.msra.mxu0 0.0
    %5365 = vmatprep.subr.mxu0 0.0
    %5366 = vmatpush1.msra.mxu0 0.0
    %5367 = vmatprep.subr.mxu0 0.0
    %5368 = vmatpush1.msra.mxu0 0.0
    %5369 = vmatprep.mubr.f32.mxu0 0.0
    %5370 = vmatmul.mubr.f32.gmra.mrb[0].mxu0 %v5303
    %v5371 = vpop.f32.mrb[0].mxu0
    %v5372 = vadd.f32 0.0, %v5371
    %v5373 = vpop.f32.mrb[0].mxu0
    %5374 = vdwg.mxu0
    %v5375 = vmul.f32 %v5372, %v62
    %v5376 = vmul.f32 %v5372, %v65
    %5378 = vrot.lane.b32.xlu0 %v5376, 96
    %v5379 = vpop.permute.xlu0 %5378
    %v5381 = vadd.f32 %v5375, %v5379
    %v5382 = vld [vmem:[%s12] sm:$0xff]
    %v5383 = vld [vmem:[%s12 + $0x8] sm:$0xff]
    %v5384 = vld [vmem:[%s12 + $0x10] sm:$0xff]
    %v5385 = vld [vmem:[%s12 + $0x18] sm:$0xff]
    %v5386 = vld [vmem:[%s12 + $0x20] sm:$0xff]
    %v5387 = vld [vmem:[%s12 + $0x28] sm:$0xff]
    %v5388 = vld [vmem:[%s12 + $0x30] sm:$0xff]
    %v5389 = vld [vmem:[%s12 + $0x38] sm:$0xff]
    %v5391 = vsel %vm77, %v5381, 0
    %5393 = vmatprep.subr.mxu0 0.0
    %5394 = vmatpush1.msra.mxu0 %v5386
    %5395 = vmatprep.subr.mxu0 0.0
    %5396 = vmatpush1.msra.mxu0 %v5387
    %5397 = vmatprep.subr.mxu0 0.0
    %5398 = vmatpush1.msra.mxu0 %v5388
    %5399 = vmatprep.subr.mxu0 0.0
    %5400 = vmatpush1.msra.mxu0 %v5389
    %5401 = vmatprep.subr.mxu0 0.0
    %5402 = vmatpush1.msra.mxu0 0.0
    %5403 = vmatprep.subr.mxu0 0.0
    %5404 = vmatpush1.msra.mxu0 0.0
    %5405 = vmatprep.subr.mxu0 0.0
    %5406 = vmatpush1.msra.mxu0 0.0
    %5407 = vmatprep.subr.mxu0 0.0
    %5408 = vmatpush1.msra.mxu0 0.0
    %5409 = vmatprep.subr.mxu0 0.0
    %5410 = vmatpush1.msra.mxu0 0.0
    %5411 = vmatprep.subr.mxu0 0.0
    %5412 = vmatpush1.msra.mxu0 0.0
    %5413 = vmatprep.subr.mxu0 0.0
    %5414 = vmatpush1.msra.mxu0 0.0
    %5415 = vmatprep.subr.mxu0 0.0
    %5416 = vmatpush1.msra.mxu0 0.0
    %5417 = vmatprep.subr.mxu0 0.0
    %5418 = vmatpush1.msra.mxu0 0.0
    %5419 = vmatprep.subr.mxu0 0.0
    %5420 = vmatpush1.msra.mxu0 0.0
    %5421 = vmatprep.subr.mxu0 0.0
    %5422 = vmatpush1.msra.mxu0 0.0
    %5423 = vmatprep.subr.mxu0 0.0
    %5424 = vmatpush1.msra.mxu0 0.0
    %5425 = vmatprep.subr.mxu0 0.0
    %5426 = vmatpush1.msra.mxu0 0.0
    %5427 = vmatprep.subr.mxu0 0.0
    %5428 = vmatpush1.msra.mxu0 0.0
    %5429 = vmatprep.subr.mxu0 0.0
    %5430 = vmatpush1.msra.mxu0 0.0
    %5431 = vmatprep.subr.mxu0 0.0
    %5432 = vmatpush1.msra.mxu0 0.0
    %5433 = vmatprep.subr.mxu0 0.0
    %5434 = vmatpush1.msra.mxu0 0.0
    %5435 = vmatprep.subr.mxu0 0.0
    %5436 = vmatpush1.msra.mxu0 0.0
    %5437 = vmatprep.subr.mxu0 0.0
    %5438 = vmatpush1.msra.mxu0 0.0
    %5439 = vmatprep.subr.mxu0 0.0
    %5440 = vmatpush1.msra.mxu0 0.0
    %5441 = vmatprep.subr.mxu0 0.0
    %5442 = vmatpush1.msra.mxu0 0.0
    %5443 = vmatprep.subr.mxu0 0.0
    %5444 = vmatpush1.msra.mxu0 0.0
    %5445 = vmatprep.subr.mxu0 0.0
    %5446 = vmatpush1.msra.mxu0 0.0
    %5447 = vmatprep.subr.mxu0 0.0
    %5448 = vmatpush1.msra.mxu0 0.0
    %5449 = vmatprep.subr.mxu0 0.0
    %5450 = vmatpush1.msra.mxu0 0.0
    %5451 = vmatprep.subr.mxu0 0.0
    %5452 = vmatpush1.msra.mxu0 0.0
    %5453 = vmatprep.subr.mxu0 0.0
    %5454 = vmatpush1.msra.mxu0 0.0
    %5455 = vmatprep.subr.mxu0 0.0
    %5456 = vmatpush1.msra.mxu0 0.0
    %5457 = vmatprep.mubr.f32.mxu0 0.0
    %5458 = vmatmul.mubr.f32.gmra.mrb[0].mxu0 %v5391
    %v5459 = vpop.f32.mrb[0].mxu0
    %v5460 = vadd.f32 0.0, %v5459
    %v5461 = vpop.f32.mrb[0].mxu0
    %5462 = vdwg.mxu0
    %5463 = vmatprep.subr.mxu0 0.0
    %5464 = vmatpush1.msra.mxu0 %v5382
    %5465 = vmatprep.subr.mxu0 0.0
    %5466 = vmatpush1.msra.mxu0 %v5383
    %5467 = vmatprep.subr.mxu0 0.0
    %5468 = vmatpush1.msra.mxu0 %v5384
    %5469 = vmatprep.subr.mxu0 0.0
    %5470 = vmatpush1.msra.mxu0 %v5385
    %5471 = vmatprep.subr.mxu0 0.0
    %5472 = vmatpush1.msra.mxu0 0.0
    %5473 = vmatprep.subr.mxu0 0.0
    %5474 = vmatpush1.msra.mxu0 0.0
    %5475 = vmatprep.subr.mxu0 0.0
    %5476 = vmatpush1.msra.mxu0 0.0
    %5477 = vmatprep.subr.mxu0 0.0
    %5478 = vmatpush1.msra.mxu0 0.0
    %5479 = vmatprep.subr.mxu0 0.0
    %5480 = vmatpush1.msra.mxu0 0.0
    %5481 = vmatprep.subr.mxu0 0.0
    %5482 = vmatpush1.msra.mxu0 0.0
    %5483 = vmatprep.subr.mxu0 0.0
    %5484 = vmatpush1.msra.mxu0 0.0
    %5485 = vmatprep.subr.mxu0 0.0
    %5486 = vmatpush1.msra.mxu0 0.0
    %5487 = vmatprep.subr.mxu0 0.0
    %5488 = vmatpush1.msra.mxu0 0.0
    %5489 = vmatprep.subr.mxu0 0.0
    %5490 = vmatpush1.msra.mxu0 0.0
    %5491 = vmatprep.subr.mxu0 0.0
    %5492 = vmatpush1.msra.mxu0 0.0
    %5493 = vmatprep.subr.mxu0 0.0
    %5494 = vmatpush1.msra.mxu0 0.0
    %5495 = vmatprep.subr.mxu0 0.0
    %5496 = vmatpush1.msra.mxu0 0.0
    %5497 = vmatprep.subr.mxu0 0.0
    %5498 = vmatpush1.msra.mxu0 0.0
    %5499 = vmatprep.subr.mxu0 0.0
    %5500 = vmatpush1.msra.mxu0 0.0
    %5501 = vmatprep.subr.mxu0 0.0
    %5502 = vmatpush1.msra.mxu0 0.0
    %5503 = vmatprep.subr.mxu0 0.0
    %5504 = vmatpush1.msra.mxu0 0.0
    %5505 = vmatprep.subr.mxu0 0.0
    %5506 = vmatpush1.msra.mxu0 0.0
    %5507 = vmatprep.subr.mxu0 0.0
    %5508 = vmatpush1.msra.mxu0 0.0
    %5509 = vmatprep.subr.mxu0 0.0
    %5510 = vmatpush1.msra.mxu0 0.0
    %5511 = vmatprep.subr.mxu0 0.0
    %5512 = vmatpush1.msra.mxu0 0.0
    %5513 = vmatprep.subr.mxu0 0.0
    %5514 = vmatpush1.msra.mxu0 0.0
    %5515 = vmatprep.subr.mxu0 0.0
    %5516 = vmatpush1.msra.mxu0 0.0
    %5517 = vmatprep.subr.mxu0 0.0
    %5518 = vmatpush1.msra.mxu0 0.0
    %5519 = vmatprep.subr.mxu0 0.0
    %5520 = vmatpush1.msra.mxu0 0.0
    %5521 = vmatprep.subr.mxu0 0.0
    %5522 = vmatpush1.msra.mxu0 0.0
    %5523 = vmatprep.subr.mxu0 0.0
    %5524 = vmatpush1.msra.mxu0 0.0
    %5525 = vmatprep.subr.mxu0 0.0
    %5526 = vmatpush1.msra.mxu0 0.0
    %5527 = vmatprep.mubr.f32.mxu0 0.0
    %5528 = vmatmul.mubr.f32.gmra.mrb[0].mxu0 %v5019
    %v5529 = vpop.f32.mrb[0].mxu0
    %v5530 = vadd.f32 %v5460, %v5529
    %v5531 = vpop.f32.mrb[0].mxu0
    %5532 = vdwg.mxu0
    %v5533 = vld [vmem:[%s12 + $0x40] sm:$0xff]
    %v5534 = vld [vmem:[%s12 + $0x48] sm:$0xff]
    %v5535 = vld [vmem:[%s12 + $0x50] sm:$0xff]
    %v5536 = vld [vmem:[%s12 + $0x58] sm:$0xff]
    %5537 = vmatprep.subr.mxu0 0.0
    %5538 = vmatpush1.msra.mxu0 %v5533
    %5539 = vmatprep.subr.mxu0 0.0
    %5540 = vmatpush1.msra.mxu0 %v5534
    %5541 = vmatprep.subr.mxu0 0.0
    %5542 = vmatpush1.msra.mxu0 %v5535
    %5543 = vmatprep.subr.mxu0 0.0
    %5544 = vmatpush1.msra.mxu0 %v5536
    %5545 = vmatprep.subr.mxu0 0.0
    %5546 = vmatpush1.msra.mxu0 0.0
    %5547 = vmatprep.subr.mxu0 0.0
    %5548 = vmatpush1.msra.mxu0 0.0
    %5549 = vmatprep.subr.mxu0 0.0
    %5550 = vmatpush1.msra.mxu0 0.0
    %5551 = vmatprep.subr.mxu0 0.0
    %5552 = vmatpush1.msra.mxu0 0.0
    %5553 = vmatprep.subr.mxu0 0.0
    %5554 = vmatpush1.msra.mxu0 0.0
    %5555 = vmatprep.subr.mxu0 0.0
    %5556 = vmatpush1.msra.mxu0 0.0
    %5557 = vmatprep.subr.mxu0 0.0
    %5558 = vmatpush1.msra.mxu0 0.0
    %5559 = vmatprep.subr.mxu0 0.0
    %5560 = vmatpush1.msra.mxu0 0.0
    %5561 = vmatprep.subr.mxu0 0.0
    %5562 = vmatpush1.msra.mxu0 0.0
    %5563 = vmatprep.subr.mxu0 0.0
    %5564 = vmatpush1.msra.mxu0 0.0
    %5565 = vmatprep.subr.mxu0 0.0
    %5566 = vmatpush1.msra.mxu0 0.0
    %5567 = vmatprep.subr.mxu0 0.0
    %5568 = vmatpush1.msra.mxu0 0.0
    %5569 = vmatprep.subr.mxu0 0.0
    %5570 = vmatpush1.msra.mxu0 0.0
    %5571 = vmatprep.subr.mxu0 0.0
    %5572 = vmatpush1.msra.mxu0 0.0
    %5573 = vmatprep.subr.mxu0 0.0
    %5574 = vmatpush1.msra.mxu0 0.0
    %5575 = vmatprep.subr.mxu0 0.0
    %5576 = vmatpush1.msra.mxu0 0.0
    %5577 = vmatprep.subr.mxu0 0.0
    %5578 = vmatpush1.msra.mxu0 0.0
    %5579 = vmatprep.subr.mxu0 0.0
    %5580 = vmatpush1.msra.mxu0 0.0
    %5581 = vmatprep.subr.mxu0 0.0
    %5582 = vmatpush1.msra.mxu0 0.0
    %5583 = vmatprep.subr.mxu0 0.0
    %5584 = vmatpush1.msra.mxu0 0.0
    %5585 = vmatprep.subr.mxu0 0.0
    %5586 = vmatpush1.msra.mxu0 0.0
    %5587 = vmatprep.subr.mxu0 0.0
    %5588 = vmatpush1.msra.mxu0 0.0
    %5589 = vmatprep.subr.mxu0 0.0
    %5590 = vmatpush1.msra.mxu0 0.0
    %5591 = vmatprep.subr.mxu0 0.0
    %5592 = vmatpush1.msra.mxu0 0.0
    %5593 = vmatprep.subr.mxu0 0.0
    %5594 = vmatpush1.msra.mxu0 0.0
    %5595 = vmatprep.subr.mxu0 0.0
    %5596 = vmatpush1.msra.mxu0 0.0
    %5597 = vmatprep.subr.mxu0 0.0
    %5598 = vmatpush1.msra.mxu0 0.0
    %5599 = vmatprep.subr.mxu0 0.0
    %5600 = vmatpush1.msra.mxu0 0.0
    %5601 = vmatprep.mubr.f32.mxu0 0.0
    %5602 = vmatmul.mubr.f32.gmra.mrb[0].mxu0 %v4576
    %v5603 = vpop.f32.mrb[0].mxu0
    %v5604 = vadd.f32 0.0, %v5603
    %v5605 = vpop.f32.mrb[0].mxu0
    %5606 = vdwg.mxu0
    %v5607 = vadd.f32 %v5530, %v5604
    %v5608 = vld [vmem:[%s13] sm:$0x1]
    %v5610 = vlaneseq
    %v5611 = vshrl.u32 %v5610, 7
    %v5612 = vsub.s32 0, %v5611
    %v5613 = vrot.slane %v5608, %v5612
    %v5615 = vadd.f32 %v5607, %v5613
    %v5616 = vxor.u32 %v5615, 2147483648
    %v5617 = vmul.f32 %v5616, 1.442695
    %v5618 = vpow.pop %v5617
    %v5619 = vadd.f32 %v5618, 1.0
    %v5620 = vrcp.pop %v5619
    %v5621 = vmul.f32 1.0, %v5620
    %v5622 = vmul.f32 %v5621, %v4483
    %v5623 = vtanh.pop %v5615
    %5625 = vrot.lane.b32.xlu0 %v5623, 64
    %v5626 = vpop.permute.xlu0 %5625
    %v5628 = vmul.f32 %v5621, %v5626
    %5630 = vrot.lane.b32.xlu0 %v5628, 32
    %v5631 = vpop.permute.xlu0 %5630
    %v5633 = vadd.f32 %v5622, %v5631
    %v5634 = vtanh.pop %v5633
    %5636 = vrot.lane.b32.xlu0 %v5634, 64
    %v5637 = vpop.permute.xlu0 %5636
    %v5639 = vmul.f32 %v5621, %v5637
    %5641 = vrot.lane.b32.xlu0 %v4671, 96
    %v5642 = vpop.permute.xlu0 %5641
    %v5644 = vmul.f32 %v5639, %v5642
    %v5645 = vld [vmem:[%s14] sm:$0xff]
    %v5646 = vld [vmem:[%s14 + $0x8] sm:$0xff]
    %v5647 = vld [vmem:[%s14 + $0x10] sm:$0xff]
    %v5648 = vld [vmem:[%s14 + $0x18] sm:$0xff]
    %v5649 = vld [vmem:[%s14 + $0x20] sm:$0xff]
    %v5650 = vld [vmem:[%s14 + $0x28] sm:$0xff]
    %v5651 = vld [vmem:[%s14 + $0x30] sm:$0xff]
    %v5652 = vld [vmem:[%s14 + $0x38] sm:$0xff]
    %5653 = vmatprep.subr.mxu0 0.0
    %5654 = vmatpush1.msra.mxu0 %v5649
    %5655 = vmatprep.subr.mxu0 0.0
    %5656 = vmatpush1.msra.mxu0 %v5650
    %5657 = vmatprep.subr.mxu0 0.0
    %5658 = vmatpush1.msra.mxu0 %v5651
    %5659 = vmatprep.subr.mxu0 0.0
    %5660 = vmatpush1.msra.mxu0 %v5652
    %5661 = vmatprep.subr.mxu0 0.0
    %5662 = vmatpush1.msra.mxu0 0.0
    %5663 = vmatprep.subr.mxu0 0.0
    %5664 = vmatpush1.msra.mxu0 0.0
    %5665 = vmatprep.subr.mxu0 0.0
    %5666 = vmatpush1.msra.mxu0 0.0
    %5667 = vmatprep.subr.mxu0 0.0
    %5668 = vmatpush1.msra.mxu0 0.0
    %5669 = vmatprep.subr.mxu0 0.0
    %5670 = vmatpush1.msra.mxu0 0.0
    %5671 = vmatprep.subr.mxu0 0.0
    %5672 = vmatpush1.msra.mxu0 0.0
    %5673 = vmatprep.subr.mxu0 0.0
    %5674 = vmatpush1.msra.mxu0 0.0
    %5675 = vmatprep.subr.mxu0 0.0
    %5676 = vmatpush1.msra.mxu0 0.0
    %5677 = vmatprep.subr.mxu0 0.0
    %5678 = vmatpush1.msra.mxu0 0.0
    %5679 = vmatprep.subr.mxu0 0.0
    %5680 = vmatpush1.msra.mxu0 0.0
    %5681 = vmatprep.subr.mxu0 0.0
    %5682 = vmatpush1.msra.mxu0 0.0
    %5683 = vmatprep.subr.mxu0 0.0
    %5684 = vmatpush1.msra.mxu0 0.0
    %5685 = vmatprep.subr.mxu0 0.0
    %5686 = vmatpush1.msra.mxu0 0.0
    %5687 = vmatprep.subr.mxu0 0.0
    %5688 = vmatpush1.msra.mxu0 0.0
    %5689 = vmatprep.subr.mxu0 0.0
    %5690 = vmatpush1.msra.mxu0 0.0
    %5691 = vmatprep.subr.mxu0 0.0
    %5692 = vmatpush1.msra.mxu0 0.0
    %5693 = vmatprep.subr.mxu0 0.0
    %5694 = vmatpush1.msra.mxu0 0.0
    %5695 = vmatprep.subr.mxu0 0.0
    %5696 = vmatpush1.msra.mxu0 0.0
    %5697 = vmatprep.subr.mxu0 0.0
    %5698 = vmatpush1.msra.mxu0 0.0
    %5699 = vmatprep.subr.mxu0 0.0
    %5700 = vmatpush1.msra.mxu0 0.0
    %5701 = vmatprep.subr.mxu0 0.0
    %5702 = vmatpush1.msra.mxu0 0.0
    %5703 = vmatprep.subr.mxu0 0.0
    %5704 = vmatpush1.msra.mxu0 0.0
    %5705 = vmatprep.subr.mxu0 0.0
    %5706 = vmatpush1.msra.mxu0 0.0
    %5707 = vmatprep.subr.mxu0 0.0
    %5708 = vmatpush1.msra.mxu0 0.0
    %5709 = vmatprep.subr.mxu0 0.0
    %5710 = vmatpush1.msra.mxu0 0.0
    %5711 = vmatprep.subr.mxu0 0.0
    %5712 = vmatpush1.msra.mxu0 0.0
    %5713 = vmatprep.subr.mxu0 0.0
    %5714 = vmatpush1.msra.mxu0 0.0
    %5715 = vmatprep.subr.mxu0 0.0
    %5716 = vmatpush1.msra.mxu0 0.0
    %5717 = vmatprep.mubr.f32.mxu0 0.0
    %5718 = vmatmul.mubr.f32.gmra.mrb[0].mxu0 %v5391
    %v5719 = vpop.f32.mrb[0].mxu0
    %v5720 = vadd.f32 0.0, %v5719
    %v5721 = vpop.f32.mrb[0].mxu0
    %5722 = vdwg.mxu0
    %5724 = vrot.lane.b32.xlu0 %v5644, 32
    %v5725 = vpop.permute.xlu0 %5724
    %v5726 = vsel %vm77, %v5725, 0
    %5728 = vmatprep.subr.mxu0 0.0
    %5729 = vmatpush1.msra.mxu0 %v5645
    %5730 = vmatprep.subr.mxu0 0.0
    %5731 = vmatpush1.msra.mxu0 %v5646
    %5732 = vmatprep.subr.mxu0 0.0
    %5733 = vmatpush1.msra.mxu0 %v5647
    %5734 = vmatprep.subr.mxu0 0.0
    %5735 = vmatpush1.msra.mxu0 %v5648
    %5736 = vmatprep.subr.mxu0 0.0
    %5737 = vmatpush1.msra.mxu0 0.0
    %5738 = vmatprep.subr.mxu0 0.0
    %5739 = vmatpush1.msra.mxu0 0.0
    %5740 = vmatprep.subr.mxu0 0.0
    %5741 = vmatpush1.msra.mxu0 0.0
    %5742 = vmatprep.subr.mxu0 0.0
    %5743 = vmatpush1.msra.mxu0 0.0
    %5744 = vmatprep.subr.mxu0 0.0
    %5745 = vmatpush1.msra.mxu0 0.0
    %5746 = vmatprep.subr.mxu0 0.0
    %5747 = vmatpush1.msra.mxu0 0.0
    %5748 = vmatprep.subr.mxu0 0.0
    %5749 = vmatpush1.msra.mxu0 0.0
    %5750 = vmatprep.subr.mxu0 0.0
    %5751 = vmatpush1.msra.mxu0 0.0
    %5752 = vmatprep.subr.mxu0 0.0
    %5753 = vmatpush1.msra.mxu0 0.0
    %5754 = vmatprep.subr.mxu0 0.0
    %5755 = vmatpush1.msra.mxu0 0.0
    %5756 = vmatprep.subr.mxu0 0.0
    %5757 = vmatpush1.msra.mxu0 0.0
    %5758 = vmatprep.subr.mxu0 0.0
    %5759 = vmatpush1.msra.mxu0 0.0
    %5760 = vmatprep.subr.mxu0 0.0
    %5761 = vmatpush1.msra.mxu0 0.0
    %5762 = vmatprep.subr.mxu0 0.0
    %5763 = vmatpush1.msra.mxu0 0.0
    %5764 = vmatprep.subr.mxu0 0.0
    %5765 = vmatpush1.msra.mxu0 0.0
    %5766 = vmatprep.subr.mxu0 0.0
    %5767 = vmatpush1.msra.mxu0 0.0
    %5768 = vmatprep.subr.mxu0 0.0
    %5769 = vmatpush1.msra.mxu0 0.0
    %5770 = vmatprep.subr.mxu0 0.0
    %5771 = vmatpush1.msra.mxu0 0.0
    %5772 = vmatprep.subr.mxu0 0.0
    %5773 = vmatpush1.msra.mxu0 0.0
    %5774 = vmatprep.subr.mxu0 0.0
    %5775 = vmatpush1.msra.mxu0 0.0
    %5776 = vmatprep.subr.mxu0 0.0
    %5777 = vmatpush1.msra.mxu0 0.0
    %5778 = vmatprep.subr.mxu0 0.0
    %5779 = vmatpush1.msra.mxu0 0.0
    %5780 = vmatprep.subr.mxu0 0.0
    %5781 = vmatpush1.msra.mxu0 0.0
    %5782 = vmatprep.subr.mxu0 0.0
    %5783 = vmatpush1.msra.mxu0 0.0
    %5784 = vmatprep.subr.mxu0 0.0
    %5785 = vmatpush1.msra.mxu0 0.0
    %5786 = vmatprep.subr.mxu0 0.0
    %5787 = vmatpush1.msra.mxu0 0.0
    %5788 = vmatprep.subr.mxu0 0.0
    %5789 = vmatpush1.msra.mxu0 0.0
    %5790 = vmatprep.subr.mxu0 0.0
    %5791 = vmatpush1.msra.mxu0 0.0
    %5792 = vmatprep.mubr.f32.mxu0 0.0
    %5793 = vmatmul.mubr.f32.gmra.mrb[0].mxu0 %v5726
    %v5794 = vpop.f32.mrb[0].mxu0
    %v5795 = vadd.f32 %v5720, %v5794
    %v5796 = vpop.f32.mrb[0].mxu0
    %5797 = vdwg.mxu0
    %v5798 = vld [vmem:[%s15] sm:$0x1]
    %v5800 = vlaneseq
    %v5801 = vshrl.u32 %v5800, 7
    %v5802 = vsub.s32 0, %v5801
    %v5803 = vrot.slane %v5798, %v5802
    %v5805 = vadd.f32 %v5795, %v5803
    %s5806 = scalar_lea.vmem [#allocation2], 8
    %5807 = vst.msk [vmem:[%s5806] sm:$0x3] %vm690, %v5805
    %5809 = vrot.lane.b32.xlu0 %v5805, 120
    %v5810 = vpop.permute.xlu0 %5809
    %s5812 = scalar_lea.vmem %s17, 8
    %5813 = vst.msk [vmem:[%s5812] sm:$0x3] %vm1213, %v5810
    %s5814 = scalar_lea.vmem [#allocation4], 8
    %5815 = vst.msk [vmem:[%s5814] sm:$0x3] %vm690, %v5299
    %s5816 = scalar_lea.vmem %s0, 10
    %v5817 = vld [vmem:[%s5816] sm:$0x3]
    %s5818 = scalar_lea.vmem %s1, 10
    %v5819 = vld [vmem:[%s5818] sm:$0x3]
    %s5820 = scalar_lea.vmem %s2, 10
    %v5821 = vld [vmem:[%s5820] sm:$0x3]
    %v5822 = vld [vmem:[%s6] sm:$0xff]
    %v5823 = vld [vmem:[%s6 + $0x8] sm:$0xff]
    %v5824 = vld [vmem:[%s6 + $0x10] sm:$0xff]
    %v5825 = vld [vmem:[%s6 + $0x18] sm:$0xff]
    %v5826 = vld [vmem:[%s6 + $0x20] sm:$0xff]
    %v5827 = vld [vmem:[%s6 + $0x28] sm:$0xff]
    %v5828 = vld [vmem:[%s6 + $0x30] sm:$0xff]
    %v5829 = vld [vmem:[%s6 + $0x38] sm:$0xff]
    %5830 = vmatprep.subr.mxu0 0.0
    %5831 = vmatpush1.msra.mxu0 %v5826
    %5832 = vmatprep.subr.mxu0 0.0
    %5833 = vmatpush1.msra.mxu0 %v5827
    %5834 = vmatprep.subr.mxu0 0.0
    %5835 = vmatpush1.msra.mxu0 %v5828
    %5836 = vmatprep.subr.mxu0 0.0
    %5837 = vmatpush1.msra.mxu0 %v5829
    %5838 = vmatprep.subr.mxu0 0.0
    %5839 = vmatpush1.msra.mxu0 0.0
    %5840 = vmatprep.subr.mxu0 0.0
    %5841 = vmatpush1.msra.mxu0 0.0
    %5842 = vmatprep.subr.mxu0 0.0
    %5843 = vmatpush1.msra.mxu0 0.0
    %5844 = vmatprep.subr.mxu0 0.0
    %5845 = vmatpush1.msra.mxu0 0.0
    %5846 = vmatprep.subr.mxu0 0.0
    %5847 = vmatpush1.msra.mxu0 0.0
    %5848 = vmatprep.subr.mxu0 0.0
    %5849 = vmatpush1.msra.mxu0 0.0
    %5850 = vmatprep.subr.mxu0 0.0
    %5851 = vmatpush1.msra.mxu0 0.0
    %5852 = vmatprep.subr.mxu0 0.0
    %5853 = vmatpush1.msra.mxu0 0.0
    %5854 = vmatprep.subr.mxu0 0.0
    %5855 = vmatpush1.msra.mxu0 0.0
    %5856 = vmatprep.subr.mxu0 0.0
    %5857 = vmatpush1.msra.mxu0 0.0
    %5858 = vmatprep.subr.mxu0 0.0
    %5859 = vmatpush1.msra.mxu0 0.0
    %5860 = vmatprep.subr.mxu0 0.0
    %5861 = vmatpush1.msra.mxu0 0.0
    %5862 = vmatprep.subr.mxu0 0.0
    %5863 = vmatpush1.msra.mxu0 0.0
    %5864 = vmatprep.subr.mxu0 0.0
    %5865 = vmatpush1.msra.mxu0 0.0
    %5866 = vmatprep.subr.mxu0 0.0
    %5867 = vmatpush1.msra.mxu0 0.0
    %5868 = vmatprep.subr.mxu0 0.0
    %5869 = vmatpush1.msra.mxu0 0.0
    %5870 = vmatprep.subr.mxu0 0.0
    %5871 = vmatpush1.msra.mxu0 0.0
    %5872 = vmatprep.subr.mxu0 0.0
    %5873 = vmatpush1.msra.mxu0 0.0
    %5874 = vmatprep.subr.mxu0 0.0
    %5875 = vmatpush1.msra.mxu0 0.0
    %5876 = vmatprep.subr.mxu0 0.0
    %5877 = vmatpush1.msra.mxu0 0.0
    %5878 = vmatprep.subr.mxu0 0.0
    %5879 = vmatpush1.msra.mxu0 0.0
    %5880 = vmatprep.subr.mxu0 0.0
    %5881 = vmatpush1.msra.mxu0 0.0
    %5882 = vmatprep.subr.mxu0 0.0
    %5883 = vmatpush1.msra.mxu0 0.0
    %5884 = vmatprep.subr.mxu0 0.0
    %5885 = vmatpush1.msra.mxu0 0.0
    %5886 = vmatprep.subr.mxu0 0.0
    %5887 = vmatpush1.msra.mxu0 0.0
    %5888 = vmatprep.subr.mxu0 0.0
    %5889 = vmatpush1.msra.mxu0 0.0
    %5890 = vmatprep.subr.mxu0 0.0
    %5891 = vmatpush1.msra.mxu0 0.0
    %5892 = vmatprep.subr.mxu0 0.0
    %5893 = vmatpush1.msra.mxu0 0.0
    %5894 = vmatprep.mubr.f32.mxu0 0.0
    %5895 = vmatmul.mubr.f32.gmra.mrb[0].mxu0 %v5391
    %v5896 = vpop.f32.mrb[0].mxu0
    %v5897 = vadd.f32 0.0, %v5896
    %v5898 = vpop.f32.mrb[0].mxu0
    %5899 = vdwg.mxu0
    %v5901 = vsel %vm77, %v5817, 0
    %5903 = vmatprep.subr.mxu0 0.0
    %5904 = vmatpush1.msra.mxu0 %v5822
    %5905 = vmatprep.subr.mxu0 0.0
    %5906 = vmatpush1.msra.mxu0 %v5823
    %5907 = vmatprep.subr.mxu0 0.0
    %5908 = vmatpush1.msra.mxu0 %v5824
    %5909 = vmatprep.subr.mxu0 0.0
    %5910 = vmatpush1.msra.mxu0 %v5825
    %5911 = vmatprep.subr.mxu0 0.0
    %5912 = vmatpush1.msra.mxu0 0.0
    %5913 = vmatprep.subr.mxu0 0.0
    %5914 = vmatpush1.msra.mxu0 0.0
    %5915 = vmatprep.subr.mxu0 0.0
    %5916 = vmatpush1.msra.mxu0 0.0
    %5917 = vmatprep.subr.mxu0 0.0
    %5918 = vmatpush1.msra.mxu0 0.0
    %5919 = vmatprep.subr.mxu0 0.0
    %5920 = vmatpush1.msra.mxu0 0.0
    %5921 = vmatprep.subr.mxu0 0.0
    %5922 = vmatpush1.msra.mxu0 0.0
    %5923 = vmatprep.subr.mxu0 0.0
    %5924 = vmatpush1.msra.mxu0 0.0
    %5925 = vmatprep.subr.mxu0 0.0
    %5926 = vmatpush1.msra.mxu0 0.0
    %5927 = vmatprep.subr.mxu0 0.0
    %5928 = vmatpush1.msra.mxu0 0.0
    %5929 = vmatprep.subr.mxu0 0.0
    %5930 = vmatpush1.msra.mxu0 0.0
    %5931 = vmatprep.subr.mxu0 0.0
    %5932 = vmatpush1.msra.mxu0 0.0
    %5933 = vmatprep.subr.mxu0 0.0
    %5934 = vmatpush1.msra.mxu0 0.0
    %5935 = vmatprep.subr.mxu0 0.0
    %5936 = vmatpush1.msra.mxu0 0.0
    %5937 = vmatprep.subr.mxu0 0.0
    %5938 = vmatpush1.msra.mxu0 0.0
    %5939 = vmatprep.subr.mxu0 0.0
    %5940 = vmatpush1.msra.mxu0 0.0
    %5941 = vmatprep.subr.mxu0 0.0
    %5942 = vmatpush1.msra.mxu0 0.0
    %5943 = vmatprep.subr.mxu0 0.0
    %5944 = vmatpush1.msra.mxu0 0.0
    %5945 = vmatprep.subr.mxu0 0.0
    %5946 = vmatpush1.msra.mxu0 0.0
    %5947 = vmatprep.subr.mxu0 0.0
    %5948 = vmatpush1.msra.mxu0 0.0
    %5949 = vmatprep.subr.mxu0 0.0
    %5950 = vmatpush1.msra.mxu0 0.0
    %5951 = vmatprep.subr.mxu0 0.0
    %5952 = vmatpush1.msra.mxu0 0.0
    %5953 = vmatprep.subr.mxu0 0.0
    %5954 = vmatpush1.msra.mxu0 0.0
    %5955 = vmatprep.subr.mxu0 0.0
    %5956 = vmatpush1.msra.mxu0 0.0
    %5957 = vmatprep.subr.mxu0 0.0
    %5958 = vmatpush1.msra.mxu0 0.0
    %5959 = vmatprep.subr.mxu0 0.0
    %5960 = vmatpush1.msra.mxu0 0.0
    %5961 = vmatprep.subr.mxu0 0.0
    %5962 = vmatpush1.msra.mxu0 0.0
    %5963 = vmatprep.subr.mxu0 0.0
    %5964 = vmatpush1.msra.mxu0 0.0
    %5965 = vmatprep.subr.mxu0 0.0
    %5966 = vmatpush1.msra.mxu0 0.0
    %5967 = vmatprep.mubr.f32.mxu0 0.0
    %5968 = vmatmul.mubr.f32.gmra.mrb[0].mxu0 %v5901
    %v5969 = vpop.f32.mrb[0].mxu0
    %v5970 = vadd.f32 %v5897, %v5969
    %v5971 = vpop.f32.mrb[0].mxu0
    %5972 = vdwg.mxu0
    %v5973 = vld [vmem:[%s6 + $0x40] sm:$0xff]
    %v5974 = vld [vmem:[%s6 + $0x48] sm:$0xff]
    %v5975 = vld [vmem:[%s6 + $0x50] sm:$0xff]
    %v5976 = vld [vmem:[%s6 + $0x58] sm:$0xff]
    %5977 = vmatprep.subr.mxu0 0.0
    %5978 = vmatpush1.msra.mxu0 %v5973
    %5979 = vmatprep.subr.mxu0 0.0
    %5980 = vmatpush1.msra.mxu0 %v5974
    %5981 = vmatprep.subr.mxu0 0.0
    %5982 = vmatpush1.msra.mxu0 %v5975
    %5983 = vmatprep.subr.mxu0 0.0
    %5984 = vmatpush1.msra.mxu0 %v5976
    %5985 = vmatprep.subr.mxu0 0.0
    %5986 = vmatpush1.msra.mxu0 0.0
    %5987 = vmatprep.subr.mxu0 0.0
    %5988 = vmatpush1.msra.mxu0 0.0
    %5989 = vmatprep.subr.mxu0 0.0
    %5990 = vmatpush1.msra.mxu0 0.0
    %5991 = vmatprep.subr.mxu0 0.0
    %5992 = vmatpush1.msra.mxu0 0.0
    %5993 = vmatprep.subr.mxu0 0.0
    %5994 = vmatpush1.msra.mxu0 0.0
    %5995 = vmatprep.subr.mxu0 0.0
    %5996 = vmatpush1.msra.mxu0 0.0
    %5997 = vmatprep.subr.mxu0 0.0
    %5998 = vmatpush1.msra.mxu0 0.0
    %5999 = vmatprep.subr.mxu0 0.0
    %6000 = vmatpush1.msra.mxu0 0.0
    %6001 = vmatprep.subr.mxu0 0.0
    %6002 = vmatpush1.msra.mxu0 0.0
    %6003 = vmatprep.subr.mxu0 0.0
    %6004 = vmatpush1.msra.mxu0 0.0
    %6005 = vmatprep.subr.mxu0 0.0
    %6006 = vmatpush1.msra.mxu0 0.0
    %6007 = vmatprep.subr.mxu0 0.0
    %6008 = vmatpush1.msra.mxu0 0.0
    %6009 = vmatprep.subr.mxu0 0.0
    %6010 = vmatpush1.msra.mxu0 0.0
    %6011 = vmatprep.subr.mxu0 0.0
    %6012 = vmatpush1.msra.mxu0 0.0
    %6013 = vmatprep.subr.mxu0 0.0
    %6014 = vmatpush1.msra.mxu0 0.0
    %6015 = vmatprep.subr.mxu0 0.0
    %6016 = vmatpush1.msra.mxu0 0.0
    %6017 = vmatprep.subr.mxu0 0.0
    %6018 = vmatpush1.msra.mxu0 0.0
    %6019 = vmatprep.subr.mxu0 0.0
    %6020 = vmatpush1.msra.mxu0 0.0
    %6021 = vmatprep.subr.mxu0 0.0
    %6022 = vmatpush1.msra.mxu0 0.0
    %6023 = vmatprep.subr.mxu0 0.0
    %6024 = vmatpush1.msra.mxu0 0.0
    %6025 = vmatprep.subr.mxu0 0.0
    %6026 = vmatpush1.msra.mxu0 0.0
    %6027 = vmatprep.subr.mxu0 0.0
    %6028 = vmatpush1.msra.mxu0 0.0
    %6029 = vmatprep.subr.mxu0 0.0
    %6030 = vmatpush1.msra.mxu0 0.0
    %6031 = vmatprep.subr.mxu0 0.0
    %6032 = vmatpush1.msra.mxu0 0.0
    %6033 = vmatprep.subr.mxu0 0.0
    %6034 = vmatpush1.msra.mxu0 0.0
    %6035 = vmatprep.subr.mxu0 0.0
    %6036 = vmatpush1.msra.mxu0 0.0
    %6037 = vmatprep.subr.mxu0 0.0
    %6038 = vmatpush1.msra.mxu0 0.0
    %6039 = vmatprep.subr.mxu0 0.0
    %6040 = vmatpush1.msra.mxu0 0.0
    %6041 = vmatprep.mubr.f32.mxu0 0.0
    %6042 = vmatmul.mubr.f32.gmra.mrb[0].mxu0 %v5019
    %v6043 = vpop.f32.mrb[0].mxu0
    %v6044 = vadd.f32 0.0, %v6043
    %v6045 = vpop.f32.mrb[0].mxu0
    %6046 = vdwg.mxu0
    %v6047 = vadd.f32 %v5970, %v6044
    %v6048 = vld [vmem:[%s7] sm:$0x1]
    %v6050 = vlaneseq
    %v6051 = vshrl.u32 %v6050, 7
    %v6052 = vsub.s32 0, %v6051
    %v6053 = vrot.slane %v6048, %v6052
    %v6055 = vadd.f32 %v6047, %v6053
    %v6056 = vxor.u32 %v6055, 2147483648
    %v6057 = vmul.f32 %v6056, 1.442695
    %v6058 = vpow.pop %v6057
    %v6059 = vadd.f32 %v6058, 1.0
    %v6060 = vrcp.pop %v6059
    %v6061 = vmul.f32 1.0, %v6060
    %v6062 = vmul.f32 %v6061, %v4923
    %v6063 = vtanh.pop %v6055
    %6065 = vrot.lane.b32.xlu0 %v6063, 64
    %v6066 = vpop.permute.xlu0 %6065
    %v6068 = vmul.f32 %v6061, %v6066
    %6070 = vrot.lane.b32.xlu0 %v6068, 32
    %v6071 = vpop.permute.xlu0 %6070
    %v6073 = vadd.f32 %v6062, %v6071
    %v6074 = vtanh.pop %v6073
    %6076 = vrot.lane.b32.xlu0 %v6074, 64
    %v6077 = vpop.permute.xlu0 %6076
    %v6079 = vmul.f32 %v6061, %v6077
    %6081 = vrot.lane.b32.xlu0 %v5819, 96
    %v6082 = vpop.permute.xlu0 %6081
    %v6084 = vmul.f32 %v6079, %v6082
    %v6085 = vld [vmem:[%s8] sm:$0xff]
    %v6086 = vld [vmem:[%s8 + $0x8] sm:$0xff]
    %v6087 = vld [vmem:[%s8 + $0x10] sm:$0xff]
    %v6088 = vld [vmem:[%s8 + $0x18] sm:$0xff]
    %v6089 = vld [vmem:[%s8 + $0x20] sm:$0xff]
    %v6090 = vld [vmem:[%s8 + $0x28] sm:$0xff]
    %v6091 = vld [vmem:[%s8 + $0x30] sm:$0xff]
    %v6092 = vld [vmem:[%s8 + $0x38] sm:$0xff]
    %v6093 = vld [vmem:[%s9] sm:$0xff]
    %v6094 = vld [vmem:[%s9 + $0x8] sm:$0xff]
    %6095 = vmatprep.subr.mxu0 %v6094
    %6096 = vmatpush1.msra.mxu0 %v6093
    %6097 = vmatprep.subr.mxu0 0.0
    %6098 = vmatpush1.msra.mxu0 0.0
    %6099 = vmatprep.subr.mxu0 0.0
    %6100 = vmatpush1.msra.mxu0 0.0
    %6101 = vmatprep.subr.mxu0 0.0
    %6102 = vmatpush1.msra.mxu0 0.0
    %6103 = vmatprep.subr.mxu0 0.0
    %6104 = vmatpush1.msra.mxu0 0.0
    %6105 = vmatprep.subr.mxu0 0.0
    %6106 = vmatpush1.msra.mxu0 0.0
    %6107 = vmatprep.subr.mxu0 0.0
    %6108 = vmatpush1.msra.mxu0 0.0
    %6109 = vmatprep.subr.mxu0 0.0
    %6110 = vmatpush1.msra.mxu0 0.0
    %6111 = vmatprep.subr.mxu0 0.0
    %6112 = vmatpush1.msra.mxu0 0.0
    %6113 = vmatprep.subr.mxu0 0.0
    %6114 = vmatpush1.msra.mxu0 0.0
    %6115 = vmatprep.subr.mxu0 0.0
    %6116 = vmatpush1.msra.mxu0 0.0
    %6117 = vmatprep.subr.mxu0 0.0
    %6118 = vmatpush1.msra.mxu0 0.0
    %6119 = vmatprep.subr.mxu0 0.0
    %6120 = vmatpush1.msra.mxu0 0.0
    %6121 = vmatprep.subr.mxu0 0.0
    %6122 = vmatpush1.msra.mxu0 0.0
    %6123 = vmatprep.subr.mxu0 0.0
    %6124 = vmatpush1.msra.mxu0 0.0
    %6125 = vmatprep.subr.mxu0 0.0
    %6126 = vmatpush1.msra.mxu0 0.0
    %6127 = vmatprep.subr.mxu0 0.0
    %6128 = vmatpush1.msra.mxu0 0.0
    %6129 = vmatprep.subr.mxu0 0.0
    %6130 = vmatpush1.msra.mxu0 0.0
    %6131 = vmatprep.subr.mxu0 0.0
    %6132 = vmatpush1.msra.mxu0 0.0
    %6133 = vmatprep.subr.mxu0 0.0
    %6134 = vmatpush1.msra.mxu0 0.0
    %6135 = vmatprep.subr.mxu0 0.0
    %6136 = vmatpush1.msra.mxu0 0.0
    %6137 = vmatprep.subr.mxu0 0.0
    %6138 = vmatpush1.msra.mxu0 0.0
    %6139 = vmatprep.subr.mxu0 0.0
    %6140 = vmatpush1.msra.mxu0 0.0
    %6141 = vmatprep.subr.mxu0 0.0
    %6142 = vmatpush1.msra.mxu0 0.0
    %6143 = vmatprep.subr.mxu0 0.0
    %6144 = vmatpush1.msra.mxu0 0.0
    %6145 = vmatprep.subr.mxu0 0.0
    %6146 = vmatpush1.msra.mxu0 0.0
    %6147 = vmatprep.subr.mxu0 0.0
    %6148 = vmatpush1.msra.mxu0 0.0
    %6149 = vmatprep.subr.mxu0 0.0
    %6150 = vmatpush1.msra.mxu0 0.0
    %6151 = vmatprep.subr.mxu0 0.0
    %6152 = vmatpush1.msra.mxu0 0.0
    %6153 = vmatprep.subr.mxu0 0.0
    %6154 = vmatpush1.msra.mxu0 0.0
    %6155 = vmatprep.subr.mxu0 0.0
    %6156 = vmatpush1.msra.mxu0 0.0
    %6157 = vmatprep.subr.mxu0 0.0
    %6158 = vmatpush1.msra.mxu0 0.0
    %6159 = vmatprep.mubr.f32.mxu0 0.0
    %6160 = vmatmul.mubr.f32.gmra.mrb[0].mxu0 %v5303
    %v6161 = vpop.f32.mrb[0].mxu0
    %v6162 = vadd.f32 0.0, %v6161
    %v6163 = vpop.f32.mrb[0].mxu0
    %v6164 = vadd.f32 0.0, %v6163
    %6165 = vdwg.mxu0
    %6167 = vrot.lane.b32.xlu0 %v6084, 32
    %v6168 = vpop.permute.xlu0 %6167
    %v6169 = vsel %vm77, %v6168, 0
    %6171 = vmatprep.subr.mxu0 %v6086
    %6172 = vmatpush1.msra.mxu0 %v6085
    %6173 = vmatprep.subr.mxu0 %v6088
    %6174 = vmatpush1.msra.mxu0 %v6087
    %6175 = vmatprep.subr.mxu0 %v6090
    %6176 = vmatpush1.msra.mxu0 %v6089
    %6177 = vmatprep.subr.mxu0 %v6092
    %6178 = vmatpush1.msra.mxu0 %v6091
    %6179 = vmatprep.subr.mxu0 0.0
    %6180 = vmatpush1.msra.mxu0 0.0
    %6181 = vmatprep.subr.mxu0 0.0
    %6182 = vmatpush1.msra.mxu0 0.0
    %6183 = vmatprep.subr.mxu0 0.0
    %6184 = vmatpush1.msra.mxu0 0.0
    %6185 = vmatprep.subr.mxu0 0.0
    %6186 = vmatpush1.msra.mxu0 0.0
    %6187 = vmatprep.subr.mxu0 0.0
    %6188 = vmatpush1.msra.mxu0 0.0
    %6189 = vmatprep.subr.mxu0 0.0
    %6190 = vmatpush1.msra.mxu0 0.0
    %6191 = vmatprep.subr.mxu0 0.0
    %6192 = vmatpush1.msra.mxu0 0.0
    %6193 = vmatprep.subr.mxu0 0.0
    %6194 = vmatpush1.msra.mxu0 0.0
    %6195 = vmatprep.subr.mxu0 0.0
    %6196 = vmatpush1.msra.mxu0 0.0
    %6197 = vmatprep.subr.mxu0 0.0
    %6198 = vmatpush1.msra.mxu0 0.0
    %6199 = vmatprep.subr.mxu0 0.0
    %6200 = vmatpush1.msra.mxu0 0.0
    %6201 = vmatprep.subr.mxu0 0.0
    %6202 = vmatpush1.msra.mxu0 0.0
    %6203 = vmatprep.subr.mxu0 0.0
    %6204 = vmatpush1.msra.mxu0 0.0
    %6205 = vmatprep.subr.mxu0 0.0
    %6206 = vmatpush1.msra.mxu0 0.0
    %6207 = vmatprep.subr.mxu0 0.0
    %6208 = vmatpush1.msra.mxu0 0.0
    %6209 = vmatprep.subr.mxu0 0.0
    %6210 = vmatpush1.msra.mxu0 0.0
    %6211 = vmatprep.subr.mxu0 0.0
    %6212 = vmatpush1.msra.mxu0 0.0
    %6213 = vmatprep.subr.mxu0 0.0
    %6214 = vmatpush1.msra.mxu0 0.0
    %6215 = vmatprep.subr.mxu0 0.0
    %6216 = vmatpush1.msra.mxu0 0.0
    %6217 = vmatprep.subr.mxu0 0.0
    %6218 = vmatpush1.msra.mxu0 0.0
    %6219 = vmatprep.subr.mxu0 0.0
    %6220 = vmatpush1.msra.mxu0 0.0
    %6221 = vmatprep.subr.mxu0 0.0
    %6222 = vmatpush1.msra.mxu0 0.0
    %6223 = vmatprep.subr.mxu0 0.0
    %6224 = vmatpush1.msra.mxu0 0.0
    %6225 = vmatprep.subr.mxu0 0.0
    %6226 = vmatpush1.msra.mxu0 0.0
    %6227 = vmatprep.subr.mxu0 0.0
    %6228 = vmatpush1.msra.mxu0 0.0
    %6229 = vmatprep.subr.mxu0 0.0
    %6230 = vmatpush1.msra.mxu0 0.0
    %6231 = vmatprep.subr.mxu0 0.0
    %6232 = vmatpush1.msra.mxu0 0.0
    %6233 = vmatprep.subr.mxu0 0.0
    %6234 = vmatpush1.msra.mxu0 0.0
    %6235 = vmatprep.mubr.f32.mxu0 0.0
    %6236 = vmatmul.mubr.f32.gmra.mrb[0].mxu0 %v6169
    %v6237 = vpop.f32.mrb[0].mxu0
    %v6238 = vadd.f32 %v6162, %v6237
    %v6239 = vpop.f32.mrb[0].mxu0
    %v6240 = vadd.f32 %v6164, %v6239
    %6241 = vdwg.mxu0
    %v6242 = vld [vmem:[%s10] sm:$0xff]
    %v6243 = vld [vmem:[%s10 + $0x8] sm:$0xff]
    %v6245 = vsel %vm346, %v5300, 0
    %6247 = vmatprep.subr.mxu0 %v6243
    %6248 = vmatpush1.msra.mxu0 %v6242
    %6249 = vmatprep.subr.mxu0 0.0
    %6250 = vmatpush1.msra.mxu0 0.0
    %6251 = vmatprep.subr.mxu0 0.0
    %6252 = vmatpush1.msra.mxu0 0.0
    %6253 = vmatprep.subr.mxu0 0.0
    %6254 = vmatpush1.msra.mxu0 0.0
    %6255 = vmatprep.subr.mxu0 0.0
    %6256 = vmatpush1.msra.mxu0 0.0
    %6257 = vmatprep.subr.mxu0 0.0
    %6258 = vmatpush1.msra.mxu0 0.0
    %6259 = vmatprep.subr.mxu0 0.0
    %6260 = vmatpush1.msra.mxu0 0.0
    %6261 = vmatprep.subr.mxu0 0.0
    %6262 = vmatpush1.msra.mxu0 0.0
    %6263 = vmatprep.subr.mxu0 0.0
    %6264 = vmatpush1.msra.mxu0 0.0
    %6265 = vmatprep.subr.mxu0 0.0
    %6266 = vmatpush1.msra.mxu0 0.0
    %6267 = vmatprep.subr.mxu0 0.0
    %6268 = vmatpush1.msra.mxu0 0.0
    %6269 = vmatprep.subr.mxu0 0.0
    %6270 = vmatpush1.msra.mxu0 0.0
    %6271 = vmatprep.subr.mxu0 0.0
    %6272 = vmatpush1.msra.mxu0 0.0
    %6273 = vmatprep.subr.mxu0 0.0
    %6274 = vmatpush1.msra.mxu0 0.0
    %6275 = vmatprep.subr.mxu0 0.0
    %6276 = vmatpush1.msra.mxu0 0.0
    %6277 = vmatprep.subr.mxu0 0.0
    %6278 = vmatpush1.msra.mxu0 0.0
    %6279 = vmatprep.subr.mxu0 0.0
    %6280 = vmatpush1.msra.mxu0 0.0
    %6281 = vmatprep.subr.mxu0 0.0
    %6282 = vmatpush1.msra.mxu0 0.0
    %6283 = vmatprep.subr.mxu0 0.0
    %6284 = vmatpush1.msra.mxu0 0.0
    %6285 = vmatprep.subr.mxu0 0.0
    %6286 = vmatpush1.msra.mxu0 0.0
    %6287 = vmatprep.subr.mxu0 0.0
    %6288 = vmatpush1.msra.mxu0 0.0
    %6289 = vmatprep.subr.mxu0 0.0
    %6290 = vmatpush1.msra.mxu0 0.0
    %6291 = vmatprep.subr.mxu0 0.0
    %6292 = vmatpush1.msra.mxu0 0.0
    %6293 = vmatprep.subr.mxu0 0.0
    %6294 = vmatpush1.msra.mxu0 0.0
    %6295 = vmatprep.subr.mxu0 0.0
    %6296 = vmatpush1.msra.mxu0 0.0
    %6297 = vmatprep.subr.mxu0 0.0
    %6298 = vmatpush1.msra.mxu0 0.0
    %6299 = vmatprep.subr.mxu0 0.0
    %6300 = vmatpush1.msra.mxu0 0.0
    %6301 = vmatprep.subr.mxu0 0.0
    %6302 = vmatpush1.msra.mxu0 0.0
    %6303 = vmatprep.subr.mxu0 0.0
    %6304 = vmatpush1.msra.mxu0 0.0
    %6305 = vmatprep.subr.mxu0 0.0
    %6306 = vmatpush1.msra.mxu0 0.0
    %6307 = vmatprep.subr.mxu0 0.0
    %6308 = vmatpush1.msra.mxu0 0.0
    %6309 = vmatprep.subr.mxu0 0.0
    %6310 = vmatpush1.msra.mxu0 0.0
    %6311 = vmatprep.mubr.f32.mxu0 0.0
    %6312 = vmatmul.mubr.f32.gmra.mrb[0].mxu0 %v6245
    %v6313 = vpop.f32.mrb[0].mxu0
    %v6314 = vadd.f32 0.0, %v6313
    %v6315 = vpop.f32.mrb[0].mxu0
    %v6316 = vadd.f32 0.0, %v6315
    %6317 = vdwg.mxu0
    %v6318 = vadd.f32 %v6238, %v6314
    %v6319 = vadd.f32 %v6240, %v6316
    %v6320 = vld [vmem:[%s4] sm:$0xf]
    %v6323 = vunpack.c.l.s4 1983009808
    %v6324 = vunpack.c.0.s8 %v6323
    %v6325 = vlaneseq
    %v6326 = vshrl.u32 %v6325, 7
    %v6327 = vsub.s32 %v6324, %v6326
    %v6328 = vrot.slane %v6320, %v6327
    %v6329 = vcombine.high %v6328, %v6328
    %v6332 = vadd.f32 %v6318, %v6328
    %v6333 = vadd.f32 %v6319, %v6329
    %v6334 = vtanh.pop %v6332
    %v6335 = vtanh.pop %v6333
    %v6336 = vld [vmem:[%s11] sm:$0xff]
    %v6337 = vld [vmem:[%s11 + $0x8] sm:$0xff]
    %v6338 = vld [vmem:[%s11 + $0x10] sm:$0xff]
    %v6339 = vld [vmem:[%s11 + $0x18] sm:$0xff]
    %v6340 = vld [vmem:[%s11 + $0x20] sm:$0xff]
    %v6341 = vld [vmem:[%s11 + $0x28] sm:$0xff]
    %v6342 = vld [vmem:[%s11 + $0x30] sm:$0xff]
    %v6343 = vld [vmem:[%s11 + $0x38] sm:$0xff]
    %v6344 = vld [vmem:[%s11 + $0x40] sm:$0xff]
    %v6345 = vld [vmem:[%s11 + $0x48] sm:$0xff]
    %v6346 = vld [vmem:[%s11 + $0x50] sm:$0xff]
    %v6347 = vld [vmem:[%s11 + $0x58] sm:$0xff]
    %v6348 = vld [vmem:[%s11 + $0x60] sm:$0xff]
    %v6349 = vld [vmem:[%s11 + $0x68] sm:$0xff]
    %v6350 = vld [vmem:[%s11 + $0x70] sm:$0xff]
    %v6351 = vld [vmem:[%s11 + $0x78] sm:$0xff]
    %v6352 = vld [vmem:[%s11 + $0x80] sm:$0xff]
    %v6353 = vld [vmem:[%s11 + $0x88] sm:$0xff]
    %v6354 = vld [vmem:[%s11 + $0x90] sm:$0xff]
    %v6355 = vld [vmem:[%s11 + $0x98] sm:$0xff]
    %v6356 = vld [vmem:[%s11 + $0xa0] sm:$0xff]
    %v6357 = vld [vmem:[%s11 + $0xa8] sm:$0xff]
    %v6358 = vld [vmem:[%s11 + $0xb0] sm:$0xff]
    %v6359 = vld [vmem:[%s11 + $0xb8] sm:$0xff]
    %v6360 = vld [vmem:[%s11 + $0xc0] sm:$0xff]
    %v6361 = vld [vmem:[%s11 + $0xc8] sm:$0xff]
    %v6362 = vld [vmem:[%s11 + $0xd0] sm:$0xff]
    %v6363 = vld [vmem:[%s11 + $0xd8] sm:$0xff]
    %v6364 = vld [vmem:[%s11 + $0xe0] sm:$0xff]
    %v6365 = vld [vmem:[%s11 + $0xe8] sm:$0xff]
    %v6366 = vld [vmem:[%s11 + $0xf0] sm:$0xff]
    %v6367 = vld [vmem:[%s11 + $0xf8] sm:$0xff]
    %v6368 = vld [vmem:[%s5] sm:$0x3]
    %6369 = vmatprep.subr.mxu0 0.0
    %6370 = vmatpush1.msra.mxu0 %v6336
    %6371 = vmatprep.subr.mxu0 0.0
    %6372 = vmatpush1.msra.mxu0 %v6337
    %6373 = vmatprep.subr.mxu0 0.0
    %6374 = vmatpush1.msra.mxu0 %v6338
    %6375 = vmatprep.subr.mxu0 0.0
    %6376 = vmatpush1.msra.mxu0 %v6339
    %6377 = vmatprep.subr.mxu0 0.0
    %6378 = vmatpush1.msra.mxu0 %v6340
    %6379 = vmatprep.subr.mxu0 0.0
    %6380 = vmatpush1.msra.mxu0 %v6341
    %6381 = vmatprep.subr.mxu0 0.0
    %6382 = vmatpush1.msra.mxu0 %v6342
    %6383 = vmatprep.subr.mxu0 0.0
    %6384 = vmatpush1.msra.mxu0 %v6343
    %6385 = vmatprep.subr.mxu0 0.0
    %6386 = vmatpush1.msra.mxu0 %v6344
    %6387 = vmatprep.subr.mxu0 0.0
    %6388 = vmatpush1.msra.mxu0 %v6345
    %6389 = vmatprep.subr.mxu0 0.0
    %6390 = vmatpush1.msra.mxu0 %v6346
    %6391 = vmatprep.subr.mxu0 0.0
    %6392 = vmatpush1.msra.mxu0 %v6347
    %6393 = vmatprep.subr.mxu0 0.0
    %6394 = vmatpush1.msra.mxu0 %v6348
    %6395 = vmatprep.subr.mxu0 0.0
    %6396 = vmatpush1.msra.mxu0 %v6349
    %6397 = vmatprep.subr.mxu0 0.0
    %6398 = vmatpush1.msra.mxu0 %v6350
    %6399 = vmatprep.subr.mxu0 0.0
    %6400 = vmatpush1.msra.mxu0 %v6351
    %6401 = vmatprep.subr.mxu0 0.0
    %6402 = vmatpush1.msra.mxu0 %v6352
    %6403 = vmatprep.subr.mxu0 0.0
    %6404 = vmatpush1.msra.mxu0 %v6353
    %6405 = vmatprep.subr.mxu0 0.0
    %6406 = vmatpush1.msra.mxu0 %v6354
    %6407 = vmatprep.subr.mxu0 0.0
    %6408 = vmatpush1.msra.mxu0 %v6355
    %6409 = vmatprep.subr.mxu0 0.0
    %6410 = vmatpush1.msra.mxu0 %v6356
    %6411 = vmatprep.subr.mxu0 0.0
    %6412 = vmatpush1.msra.mxu0 %v6357
    %6413 = vmatprep.subr.mxu0 0.0
    %6414 = vmatpush1.msra.mxu0 %v6358
    %6415 = vmatprep.subr.mxu0 0.0
    %6416 = vmatpush1.msra.mxu0 %v6359
    %6417 = vmatprep.subr.mxu0 0.0
    %6418 = vmatpush1.msra.mxu0 %v6360
    %6419 = vmatprep.subr.mxu0 0.0
    %6420 = vmatpush1.msra.mxu0 %v6361
    %6421 = vmatprep.subr.mxu0 0.0
    %6422 = vmatpush1.msra.mxu0 %v6362
    %6423 = vmatprep.subr.mxu0 0.0
    %6424 = vmatpush1.msra.mxu0 %v6363
    %6425 = vmatprep.subr.mxu0 0.0
    %6426 = vmatpush1.msra.mxu0 %v6364
    %6427 = vmatprep.subr.mxu0 0.0
    %6428 = vmatpush1.msra.mxu0 %v6365
    %6429 = vmatprep.subr.mxu0 0.0
    %6430 = vmatpush1.msra.mxu0 %v6366
    %6431 = vmatprep.subr.mxu0 0.0
    %6432 = vmatpush1.msra.mxu0 %v6367
    %6433 = vmatprep.mubr.f32.mxu0 %v6335
    %6434 = vmatmul.mubr.f32.gmra.mrb[0].mxu0 %v6334
    %v6435 = vpop.f32.mrb[0].mxu0
    %v6436 = vadd.f32 %v6368, %v6435
    %v6437 = vpop.f32.mrb[0].mxu0
    %6438 = vdwg.mxu0
    %v6439 = vsel %vm690, %v6436, -inf
    %6440 = vmax.xlane.f32.xlu0 %v6439
    %v6441 = vpop.xlane.xlu0 %6440
    %v6442 = vsub.f32 %v6436, %v6441
    %v6443 = vmul.f32 %v6442, 1.442695
    %v6444 = vpow.pop %v6443
    %v6445 = vsel %vm690, %v6444, 0.0
    %6446 = vadd.xlane.f32.xlu0 %v6445
    %v6447 = vpop.xlane.xlu0 %6446
    %v6448 = vrcp.pop %v6447
    %v6449 = vmul.f32 %v6444, %v6448
    %v6450 = vld [vmem:[%s3] sm:$0xff]
    %v6452 = vsel %vm346, %v6449, 0
    %6454 = vmatprep.subr.mxu0 0.0
    %6455 = vmatpush1.msra.mxu0 %v6450
    %6456 = vmatprep.subr.mxu0 0.0
    %6457 = vmatpush1.msra.mxu0 0.0
    %6458 = vmatprep.subr.mxu0 0.0
    %6459 = vmatpush1.msra.mxu0 0.0
    %6460 = vmatprep.subr.mxu0 0.0
    %6461 = vmatpush1.msra.mxu0 0.0
    %6462 = vmatprep.subr.mxu0 0.0
    %6463 = vmatpush1.msra.mxu0 0.0
    %6464 = vmatprep.subr.mxu0 0.0
    %6465 = vmatpush1.msra.mxu0 0.0
    %6466 = vmatprep.subr.mxu0 0.0
    %6467 = vmatpush1.msra.mxu0 0.0
    %6468 = vmatprep.subr.mxu0 0.0
    %6469 = vmatpush1.msra.mxu0 0.0
    %6470 = vmatprep.subr.mxu0 0.0
    %6471 = vmatpush1.msra.mxu0 0.0
    %6472 = vmatprep.subr.mxu0 0.0
    %6473 = vmatpush1.msra.mxu0 0.0
    %6474 = vmatprep.subr.mxu0 0.0
    %6475 = vmatpush1.msra.mxu0 0.0
    %6476 = vmatprep.subr.mxu0 0.0
    %6477 = vmatpush1.msra.mxu0 0.0
    %6478 = vmatprep.subr.mxu0 0.0
    %6479 = vmatpush1.msra.mxu0 0.0
    %6480 = vmatprep.subr.mxu0 0.0
    %6481 = vmatpush1.msra.mxu0 0.0
    %6482 = vmatprep.subr.mxu0 0.0
    %6483 = vmatpush1.msra.mxu0 0.0
    %6484 = vmatprep.subr.mxu0 0.0
    %6485 = vmatpush1.msra.mxu0 0.0
    %6486 = vmatprep.subr.mxu0 0.0
    %6487 = vmatpush1.msra.mxu0 0.0
    %6488 = vmatprep.subr.mxu0 0.0
    %6489 = vmatpush1.msra.mxu0 0.0
    %6490 = vmatprep.subr.mxu0 0.0
    %6491 = vmatpush1.msra.mxu0 0.0
    %6492 = vmatprep.subr.mxu0 0.0
    %6493 = vmatpush1.msra.mxu0 0.0
    %6494 = vmatprep.subr.mxu0 0.0
    %6495 = vmatpush1.msra.mxu0 0.0
    %6496 = vmatprep.subr.mxu0 0.0
    %6497 = vmatpush1.msra.mxu0 0.0
    %6498 = vmatprep.subr.mxu0 0.0
    %6499 = vmatpush1.msra.mxu0 0.0
    %6500 = vmatprep.subr.mxu0 0.0
    %6501 = vmatpush1.msra.mxu0 0.0
    %6502 = vmatprep.subr.mxu0 0.0
    %6503 = vmatpush1.msra.mxu0 0.0
    %6504 = vmatprep.subr.mxu0 0.0
    %6505 = vmatpush1.msra.mxu0 0.0
    %6506 = vmatprep.subr.mxu0 0.0
    %6507 = vmatpush1.msra.mxu0 0.0
    %6508 = vmatprep.subr.mxu0 0.0
    %6509 = vmatpush1.msra.mxu0 0.0
    %6510 = vmatprep.subr.mxu0 0.0
    %6511 = vmatpush1.msra.mxu0 0.0
    %6512 = vmatprep.subr.mxu0 0.0
    %6513 = vmatpush1.msra.mxu0 0.0
    %6514 = vmatprep.subr.mxu0 0.0
    %6515 = vmatpush1.msra.mxu0 0.0
    %6516 = vmatprep.subr.mxu0 0.0
    %6517 = vmatpush1.msra.mxu0 0.0
    %6518 = vmatprep.mubr.f32.mxu0 0.0
    %6519 = vmatmul.mubr.f32.gmra.mrb[0].mxu0 %v6452
    %v6520 = vpop.f32.mrb[0].mxu0
    %v6521 = vadd.f32 0.0, %v6520
    %v6522 = vpop.f32.mrb[0].mxu0
    %6523 = vdwg.mxu0
    %v6524 = vmul.f32 %v6521, %v62
    %v6525 = vmul.f32 %v6521, %v65
    %6527 = vrot.lane.b32.xlu0 %v6525, 96
    %v6528 = vpop.permute.xlu0 %6527
    %v6530 = vadd.f32 %v6524, %v6528
    %v6531 = vld [vmem:[%s12] sm:$0xff]
    %v6532 = vld [vmem:[%s12 + $0x8] sm:$0xff]
    %v6533 = vld [vmem:[%s12 + $0x10] sm:$0xff]
    %v6534 = vld [vmem:[%s12 + $0x18] sm:$0xff]
    %v6535 = vld [vmem:[%s12 + $0x20] sm:$0xff]
    %v6536 = vld [vmem:[%s12 + $0x28] sm:$0xff]
    %v6537 = vld [vmem:[%s12 + $0x30] sm:$0xff]
    %v6538 = vld [vmem:[%s12 + $0x38] sm:$0xff]
    %v6540 = vsel %vm77, %v6530, 0
    %6542 = vmatprep.subr.mxu0 0.0
    %6543 = vmatpush1.msra.mxu0 %v6535
    %6544 = vmatprep.subr.mxu0 0.0
    %6545 = vmatpush1.msra.mxu0 %v6536
    %6546 = vmatprep.subr.mxu0 0.0
    %6547 = vmatpush1.msra.mxu0 %v6537
    %6548 = vmatprep.subr.mxu0 0.0
    %6549 = vmatpush1.msra.mxu0 %v6538
    %6550 = vmatprep.subr.mxu0 0.0
    %6551 = vmatpush1.msra.mxu0 0.0
    %6552 = vmatprep.subr.mxu0 0.0
    %6553 = vmatpush1.msra.mxu0 0.0
    %6554 = vmatprep.subr.mxu0 0.0
    %6555 = vmatpush1.msra.mxu0 0.0
    %6556 = vmatprep.subr.mxu0 0.0
    %6557 = vmatpush1.msra.mxu0 0.0
    %6558 = vmatprep.subr.mxu0 0.0
    %6559 = vmatpush1.msra.mxu0 0.0
    %6560 = vmatprep.subr.mxu0 0.0
    %6561 = vmatpush1.msra.mxu0 0.0
    %6562 = vmatprep.subr.mxu0 0.0
    %6563 = vmatpush1.msra.mxu0 0.0
    %6564 = vmatprep.subr.mxu0 0.0
    %6565 = vmatpush1.msra.mxu0 0.0
    %6566 = vmatprep.subr.mxu0 0.0
    %6567 = vmatpush1.msra.mxu0 0.0
    %6568 = vmatprep.subr.mxu0 0.0
    %6569 = vmatpush1.msra.mxu0 0.0
    %6570 = vmatprep.subr.mxu0 0.0
    %6571 = vmatpush1.msra.mxu0 0.0
    %6572 = vmatprep.subr.mxu0 0.0
    %6573 = vmatpush1.msra.mxu0 0.0
    %6574 = vmatprep.subr.mxu0 0.0
    %6575 = vmatpush1.msra.mxu0 0.0
    %6576 = vmatprep.subr.mxu0 0.0
    %6577 = vmatpush1.msra.mxu0 0.0
    %6578 = vmatprep.subr.mxu0 0.0
    %6579 = vmatpush1.msra.mxu0 0.0
    %6580 = vmatprep.subr.mxu0 0.0
    %6581 = vmatpush1.msra.mxu0 0.0
    %6582 = vmatprep.subr.mxu0 0.0
    %6583 = vmatpush1.msra.mxu0 0.0
    %6584 = vmatprep.subr.mxu0 0.0
    %6585 = vmatpush1.msra.mxu0 0.0
    %6586 = vmatprep.subr.mxu0 0.0
    %6587 = vmatpush1.msra.mxu0 0.0
    %6588 = vmatprep.subr.mxu0 0.0
    %6589 = vmatpush1.msra.mxu0 0.0
    %6590 = vmatprep.subr.mxu0 0.0
    %6591 = vmatpush1.msra.mxu0 0.0
    %6592 = vmatprep.subr.mxu0 0.0
    %6593 = vmatpush1.msra.mxu0 0.0
    %6594 = vmatprep.subr.mxu0 0.0
    %6595 = vmatpush1.msra.mxu0 0.0
    %6596 = vmatprep.subr.mxu0 0.0
    %6597 = vmatpush1.msra.mxu0 0.0
    %6598 = vmatprep.subr.mxu0 0.0
    %6599 = vmatpush1.msra.mxu0 0.0
    %6600 = vmatprep.subr.mxu0 0.0
    %6601 = vmatpush1.msra.mxu0 0.0
    %6602 = vmatprep.subr.mxu0 0.0
    %6603 = vmatpush1.msra.mxu0 0.0
    %6604 = vmatprep.subr.mxu0 0.0
    %6605 = vmatpush1.msra.mxu0 0.0
    %6606 = vmatprep.mubr.f32.mxu0 0.0
    %6607 = vmatmul.mubr.f32.gmra.mrb[0].mxu0 %v6540
    %v6608 = vpop.f32.mrb[0].mxu0
    %v6609 = vadd.f32 0.0, %v6608
    %v6610 = vpop.f32.mrb[0].mxu0
    %6611 = vdwg.mxu0
    %6612 = vmatprep.subr.mxu0 0.0
    %6613 = vmatpush1.msra.mxu0 %v6531
    %6614 = vmatprep.subr.mxu0 0.0
    %6615 = vmatpush1.msra.mxu0 %v6532
    %6616 = vmatprep.subr.mxu0 0.0
    %6617 = vmatpush1.msra.mxu0 %v6533
    %6618 = vmatprep.subr.mxu0 0.0
    %6619 = vmatpush1.msra.mxu0 %v6534
    %6620 = vmatprep.subr.mxu0 0.0
    %6621 = vmatpush1.msra.mxu0 0.0
    %6622 = vmatprep.subr.mxu0 0.0
    %6623 = vmatpush1.msra.mxu0 0.0
    %6624 = vmatprep.subr.mxu0 0.0
    %6625 = vmatpush1.msra.mxu0 0.0
    %6626 = vmatprep.subr.mxu0 0.0
    %6627 = vmatpush1.msra.mxu0 0.0
    %6628 = vmatprep.subr.mxu0 0.0
    %6629 = vmatpush1.msra.mxu0 0.0
    %6630 = vmatprep.subr.mxu0 0.0
    %6631 = vmatpush1.msra.mxu0 0.0
    %6632 = vmatprep.subr.mxu0 0.0
    %6633 = vmatpush1.msra.mxu0 0.0
    %6634 = vmatprep.subr.mxu0 0.0
    %6635 = vmatpush1.msra.mxu0 0.0
    %6636 = vmatprep.subr.mxu0 0.0
    %6637 = vmatpush1.msra.mxu0 0.0
    %6638 = vmatprep.subr.mxu0 0.0
    %6639 = vmatpush1.msra.mxu0 0.0
    %6640 = vmatprep.subr.mxu0 0.0
    %6641 = vmatpush1.msra.mxu0 0.0
    %6642 = vmatprep.subr.mxu0 0.0
    %6643 = vmatpush1.msra.mxu0 0.0
    %6644 = vmatprep.subr.mxu0 0.0
    %6645 = vmatpush1.msra.mxu0 0.0
    %6646 = vmatprep.subr.mxu0 0.0
    %6647 = vmatpush1.msra.mxu0 0.0
    %6648 = vmatprep.subr.mxu0 0.0
    %6649 = vmatpush1.msra.mxu0 0.0
    %6650 = vmatprep.subr.mxu0 0.0
    %6651 = vmatpush1.msra.mxu0 0.0
    %6652 = vmatprep.subr.mxu0 0.0
    %6653 = vmatpush1.msra.mxu0 0.0
    %6654 = vmatprep.subr.mxu0 0.0
    %6655 = vmatpush1.msra.mxu0 0.0
    %6656 = vmatprep.subr.mxu0 0.0
    %6657 = vmatpush1.msra.mxu0 0.0
    %6658 = vmatprep.subr.mxu0 0.0
    %6659 = vmatpush1.msra.mxu0 0.0
    %6660 = vmatprep.subr.mxu0 0.0
    %6661 = vmatpush1.msra.mxu0 0.0
    %6662 = vmatprep.subr.mxu0 0.0
    %6663 = vmatpush1.msra.mxu0 0.0
    %6664 = vmatprep.subr.mxu0 0.0
    %6665 = vmatpush1.msra.mxu0 0.0
    %6666 = vmatprep.subr.mxu0 0.0
    %6667 = vmatpush1.msra.mxu0 0.0
    %6668 = vmatprep.subr.mxu0 0.0
    %6669 = vmatpush1.msra.mxu0 0.0
    %6670 = vmatprep.subr.mxu0 0.0
    %6671 = vmatpush1.msra.mxu0 0.0
    %6672 = vmatprep.subr.mxu0 0.0
    %6673 = vmatpush1.msra.mxu0 0.0
    %6674 = vmatprep.subr.mxu0 0.0
    %6675 = vmatpush1.msra.mxu0 0.0
    %6676 = vmatprep.mubr.f32.mxu0 0.0
    %6677 = vmatmul.mubr.f32.gmra.mrb[0].mxu0 %v6169
    %v6678 = vpop.f32.mrb[0].mxu0
    %v6679 = vadd.f32 %v6609, %v6678
    %v6680 = vpop.f32.mrb[0].mxu0
    %6681 = vdwg.mxu0
    %v6682 = vld [vmem:[%s12 + $0x40] sm:$0xff]
    %v6683 = vld [vmem:[%s12 + $0x48] sm:$0xff]
    %v6684 = vld [vmem:[%s12 + $0x50] sm:$0xff]
    %v6685 = vld [vmem:[%s12 + $0x58] sm:$0xff]
    %6686 = vmatprep.subr.mxu0 0.0
    %6687 = vmatpush1.msra.mxu0 %v6682
    %6688 = vmatprep.subr.mxu0 0.0
    %6689 = vmatpush1.msra.mxu0 %v6683
    %6690 = vmatprep.subr.mxu0 0.0
    %6691 = vmatpush1.msra.mxu0 %v6684
    %6692 = vmatprep.subr.mxu0 0.0
    %6693 = vmatpush1.msra.mxu0 %v6685
    %6694 = vmatprep.subr.mxu0 0.0
    %6695 = vmatpush1.msra.mxu0 0.0
    %6696 = vmatprep.subr.mxu0 0.0
    %6697 = vmatpush1.msra.mxu0 0.0
    %6698 = vmatprep.subr.mxu0 0.0
    %6699 = vmatpush1.msra.mxu0 0.0
    %6700 = vmatprep.subr.mxu0 0.0
    %6701 = vmatpush1.msra.mxu0 0.0
    %6702 = vmatprep.subr.mxu0 0.0
    %6703 = vmatpush1.msra.mxu0 0.0
    %6704 = vmatprep.subr.mxu0 0.0
    %6705 = vmatpush1.msra.mxu0 0.0
    %6706 = vmatprep.subr.mxu0 0.0
    %6707 = vmatpush1.msra.mxu0 0.0
    %6708 = vmatprep.subr.mxu0 0.0
    %6709 = vmatpush1.msra.mxu0 0.0
    %6710 = vmatprep.subr.mxu0 0.0
    %6711 = vmatpush1.msra.mxu0 0.0
    %6712 = vmatprep.subr.mxu0 0.0
    %6713 = vmatpush1.msra.mxu0 0.0
    %6714 = vmatprep.subr.mxu0 0.0
    %6715 = vmatpush1.msra.mxu0 0.0
    %6716 = vmatprep.subr.mxu0 0.0
    %6717 = vmatpush1.msra.mxu0 0.0
    %6718 = vmatprep.subr.mxu0 0.0
    %6719 = vmatpush1.msra.mxu0 0.0
    %6720 = vmatprep.subr.mxu0 0.0
    %6721 = vmatpush1.msra.mxu0 0.0
    %6722 = vmatprep.subr.mxu0 0.0
    %6723 = vmatpush1.msra.mxu0 0.0
    %6724 = vmatprep.subr.mxu0 0.0
    %6725 = vmatpush1.msra.mxu0 0.0
    %6726 = vmatprep.subr.mxu0 0.0
    %6727 = vmatpush1.msra.mxu0 0.0
    %6728 = vmatprep.subr.mxu0 0.0
    %6729 = vmatpush1.msra.mxu0 0.0
    %6730 = vmatprep.subr.mxu0 0.0
    %6731 = vmatpush1.msra.mxu0 0.0
    %6732 = vmatprep.subr.mxu0 0.0
    %6733 = vmatpush1.msra.mxu0 0.0
    %6734 = vmatprep.subr.mxu0 0.0
    %6735 = vmatpush1.msra.mxu0 0.0
    %6736 = vmatprep.subr.mxu0 0.0
    %6737 = vmatpush1.msra.mxu0 0.0
    %6738 = vmatprep.subr.mxu0 0.0
    %6739 = vmatpush1.msra.mxu0 0.0
    %6740 = vmatprep.subr.mxu0 0.0
    %6741 = vmatpush1.msra.mxu0 0.0
    %6742 = vmatprep.subr.mxu0 0.0
    %6743 = vmatpush1.msra.mxu0 0.0
    %6744 = vmatprep.subr.mxu0 0.0
    %6745 = vmatpush1.msra.mxu0 0.0
    %6746 = vmatprep.subr.mxu0 0.0
    %6747 = vmatpush1.msra.mxu0 0.0
    %6748 = vmatprep.subr.mxu0 0.0
    %6749 = vmatpush1.msra.mxu0 0.0
    %6750 = vmatprep.mubr.f32.mxu0 0.0
    %6751 = vmatmul.mubr.f32.gmra.mrb[0].mxu0 %v5726
    %v6752 = vpop.f32.mrb[0].mxu0
    %v6753 = vadd.f32 0.0, %v6752
    %v6754 = vpop.f32.mrb[0].mxu0
    %6755 = vdwg.mxu0
    %v6756 = vadd.f32 %v6679, %v6753
    %v6757 = vld [vmem:[%s13] sm:$0x1]
    %v6759 = vlaneseq
    %v6760 = vshrl.u32 %v6759, 7
    %v6761 = vsub.s32 0, %v6760
    %v6762 = vrot.slane %v6757, %v6761
    %v6764 = vadd.f32 %v6756, %v6762
    %v6765 = vxor.u32 %v6764, 2147483648
    %v6766 = vmul.f32 %v6765, 1.442695
    %v6767 = vpow.pop %v6766
    %v6768 = vadd.f32 %v6767, 1.0
    %v6769 = vrcp.pop %v6768
    %v6770 = vmul.f32 1.0, %v6769
    %v6771 = vmul.f32 %v6770, %v5633
    %v6772 = vtanh.pop %v6764
    %6774 = vrot.lane.b32.xlu0 %v6772, 64
    %v6775 = vpop.permute.xlu0 %6774
    %v6777 = vmul.f32 %v6770, %v6775
    %6779 = vrot.lane.b32.xlu0 %v6777, 32
    %v6780 = vpop.permute.xlu0 %6779
    %v6782 = vadd.f32 %v6771, %v6780
    %v6783 = vtanh.pop %v6782
    %6785 = vrot.lane.b32.xlu0 %v6783, 64
    %v6786 = vpop.permute.xlu0 %6785
    %v6788 = vmul.f32 %v6770, %v6786
    %6790 = vrot.lane.b32.xlu0 %v5821, 96
    %v6791 = vpop.permute.xlu0 %6790
    %v6793 = vmul.f32 %v6788, %v6791
    %v6794 = vld [vmem:[%s14] sm:$0xff]
    %v6795 = vld [vmem:[%s14 + $0x8] sm:$0xff]
    %v6796 = vld [vmem:[%s14 + $0x10] sm:$0xff]
    %v6797 = vld [vmem:[%s14 + $0x18] sm:$0xff]
    %v6798 = vld [vmem:[%s14 + $0x20] sm:$0xff]
    %v6799 = vld [vmem:[%s14 + $0x28] sm:$0xff]
    %v6800 = vld [vmem:[%s14 + $0x30] sm:$0xff]
    %v6801 = vld [vmem:[%s14 + $0x38] sm:$0xff]
    %6802 = vmatprep.subr.mxu0 0.0
    %6803 = vmatpush1.msra.mxu0 %v6798
    %6804 = vmatprep.subr.mxu0 0.0
    %6805 = vmatpush1.msra.mxu0 %v6799
    %6806 = vmatprep.subr.mxu0 0.0
    %6807 = vmatpush1.msra.mxu0 %v6800
    %6808 = vmatprep.subr.mxu0 0.0
    %6809 = vmatpush1.msra.mxu0 %v6801
    %6810 = vmatprep.subr.mxu0 0.0
    %6811 = vmatpush1.msra.mxu0 0.0
    %6812 = vmatprep.subr.mxu0 0.0
    %6813 = vmatpush1.msra.mxu0 0.0
    %6814 = vmatprep.subr.mxu0 0.0
    %6815 = vmatpush1.msra.mxu0 0.0
    %6816 = vmatprep.subr.mxu0 0.0
    %6817 = vmatpush1.msra.mxu0 0.0
    %6818 = vmatprep.subr.mxu0 0.0
    %6819 = vmatpush1.msra.mxu0 0.0
    %6820 = vmatprep.subr.mxu0 0.0
    %6821 = vmatpush1.msra.mxu0 0.0
    %6822 = vmatprep.subr.mxu0 0.0
    %6823 = vmatpush1.msra.mxu0 0.0
    %6824 = vmatprep.subr.mxu0 0.0
    %6825 = vmatpush1.msra.mxu0 0.0
    %6826 = vmatprep.subr.mxu0 0.0
    %6827 = vmatpush1.msra.mxu0 0.0
    %6828 = vmatprep.subr.mxu0 0.0
    %6829 = vmatpush1.msra.mxu0 0.0
    %6830 = vmatprep.subr.mxu0 0.0
    %6831 = vmatpush1.msra.mxu0 0.0
    %6832 = vmatprep.subr.mxu0 0.0
    %6833 = vmatpush1.msra.mxu0 0.0
    %6834 = vmatprep.subr.mxu0 0.0
    %6835 = vmatpush1.msra.mxu0 0.0
    %6836 = vmatprep.subr.mxu0 0.0
    %6837 = vmatpush1.msra.mxu0 0.0
    %6838 = vmatprep.subr.mxu0 0.0
    %6839 = vmatpush1.msra.mxu0 0.0
    %6840 = vmatprep.subr.mxu0 0.0
    %6841 = vmatpush1.msra.mxu0 0.0
    %6842 = vmatprep.subr.mxu0 0.0
    %6843 = vmatpush1.msra.mxu0 0.0
    %6844 = vmatprep.subr.mxu0 0.0
    %6845 = vmatpush1.msra.mxu0 0.0
    %6846 = vmatprep.subr.mxu0 0.0
    %6847 = vmatpush1.msra.mxu0 0.0
    %6848 = vmatprep.subr.mxu0 0.0
    %6849 = vmatpush1.msra.mxu0 0.0
    %6850 = vmatprep.subr.mxu0 0.0
    %6851 = vmatpush1.msra.mxu0 0.0
    %6852 = vmatprep.subr.mxu0 0.0
    %6853 = vmatpush1.msra.mxu0 0.0
    %6854 = vmatprep.subr.mxu0 0.0
    %6855 = vmatpush1.msra.mxu0 0.0
    %6856 = vmatprep.subr.mxu0 0.0
    %6857 = vmatpush1.msra.mxu0 0.0
    %6858 = vmatprep.subr.mxu0 0.0
    %6859 = vmatpush1.msra.mxu0 0.0
    %6860 = vmatprep.subr.mxu0 0.0
    %6861 = vmatpush1.msra.mxu0 0.0
    %6862 = vmatprep.subr.mxu0 0.0
    %6863 = vmatpush1.msra.mxu0 0.0
    %6864 = vmatprep.subr.mxu0 0.0
    %6865 = vmatpush1.msra.mxu0 0.0
    %6866 = vmatprep.mubr.f32.mxu0 0.0
    %6867 = vmatmul.mubr.f32.gmra.mrb[0].mxu0 %v6540
    %v6868 = vpop.f32.mrb[0].mxu0
    %v6869 = vadd.f32 0.0, %v6868
    %v6870 = vpop.f32.mrb[0].mxu0
    %6871 = vdwg.mxu0
    %6873 = vrot.lane.b32.xlu0 %v6793, 32
    %v6874 = vpop.permute.xlu0 %6873
    %v6875 = vsel %vm77, %v6874, 0
    %6877 = vmatprep.subr.mxu0 0.0
    %6878 = vmatpush1.msra.mxu0 %v6794
    %6879 = vmatprep.subr.mxu0 0.0
    %6880 = vmatpush1.msra.mxu0 %v6795
    %6881 = vmatprep.subr.mxu0 0.0
    %6882 = vmatpush1.msra.mxu0 %v6796
    %6883 = vmatprep.subr.mxu0 0.0
    %6884 = vmatpush1.msra.mxu0 %v6797
    %6885 = vmatprep.subr.mxu0 0.0
    %6886 = vmatpush1.msra.mxu0 0.0
    %6887 = vmatprep.subr.mxu0 0.0
    %6888 = vmatpush1.msra.mxu0 0.0
    %6889 = vmatprep.subr.mxu0 0.0
    %6890 = vmatpush1.msra.mxu0 0.0
    %6891 = vmatprep.subr.mxu0 0.0
    %6892 = vmatpush1.msra.mxu0 0.0
    %6893 = vmatprep.subr.mxu0 0.0
    %6894 = vmatpush1.msra.mxu0 0.0
    %6895 = vmatprep.subr.mxu0 0.0
    %6896 = vmatpush1.msra.mxu0 0.0
    %6897 = vmatprep.subr.mxu0 0.0
    %6898 = vmatpush1.msra.mxu0 0.0
    %6899 = vmatprep.subr.mxu0 0.0
    %6900 = vmatpush1.msra.mxu0 0.0
    %6901 = vmatprep.subr.mxu0 0.0
    %6902 = vmatpush1.msra.mxu0 0.0
    %6903 = vmatprep.subr.mxu0 0.0
    %6904 = vmatpush1.msra.mxu0 0.0
    %6905 = vmatprep.subr.mxu0 0.0
    %6906 = vmatpush1.msra.mxu0 0.0
    %6907 = vmatprep.subr.mxu0 0.0
    %6908 = vmatpush1.msra.mxu0 0.0
    %6909 = vmatprep.subr.mxu0 0.0
    %6910 = vmatpush1.msra.mxu0 0.0
    %6911 = vmatprep.subr.mxu0 0.0
    %6912 = vmatpush1.msra.mxu0 0.0
    %6913 = vmatprep.subr.mxu0 0.0
    %6914 = vmatpush1.msra.mxu0 0.0
    %6915 = vmatprep.subr.mxu0 0.0
    %6916 = vmatpush1.msra.mxu0 0.0
    %6917 = vmatprep.subr.mxu0 0.0
    %6918 = vmatpush1.msra.mxu0 0.0
    %6919 = vmatprep.subr.mxu0 0.0
    %6920 = vmatpush1.msra.mxu0 0.0
    %6921 = vmatprep.subr.mxu0 0.0
    %6922 = vmatpush1.msra.mxu0 0.0
    %6923 = vmatprep.subr.mxu0 0.0
    %6924 = vmatpush1.msra.mxu0 0.0
    %6925 = vmatprep.subr.mxu0 0.0
    %6926 = vmatpush1.msra.mxu0 0.0
    %6927 = vmatprep.subr.mxu0 0.0
    %6928 = vmatpush1.msra.mxu0 0.0
    %6929 = vmatprep.subr.mxu0 0.0
    %6930 = vmatpush1.msra.mxu0 0.0
    %6931 = vmatprep.subr.mxu0 0.0
    %6932 = vmatpush1.msra.mxu0 0.0
    %6933 = vmatprep.subr.mxu0 0.0
    %6934 = vmatpush1.msra.mxu0 0.0
    %6935 = vmatprep.subr.mxu0 0.0
    %6936 = vmatpush1.msra.mxu0 0.0
    %6937 = vmatprep.subr.mxu0 0.0
    %6938 = vmatpush1.msra.mxu0 0.0
    %6939 = vmatprep.subr.mxu0 0.0
    %6940 = vmatpush1.msra.mxu0 0.0
    %6941 = vmatprep.mubr.f32.mxu0 0.0
    %6942 = vmatmul.mubr.f32.gmra.mrb[0].mxu0 %v6875
    %v6943 = vpop.f32.mrb[0].mxu0
    %v6944 = vadd.f32 %v6869, %v6943
    %v6945 = vpop.f32.mrb[0].mxu0
    %6946 = vdwg.mxu0
    %v6947 = vld [vmem:[%s15] sm:$0x1]
    %v6949 = vlaneseq
    %v6950 = vshrl.u32 %v6949, 7
    %v6951 = vsub.s32 0, %v6950
    %v6952 = vrot.slane %v6947, %v6951
    %v6954 = vadd.f32 %v6944, %v6952
    %s6955 = scalar_lea.vmem [#allocation2], 10
    %6956 = vst.msk [vmem:[%s6955] sm:$0x3] %vm690, %v6954
    %6958 = vrot.lane.b32.xlu0 %v6954, 120
    %v6959 = vpop.permute.xlu0 %6958
    %s6961 = scalar_lea.vmem %s17, 10
    %6962 = vst.msk [vmem:[%s6961] sm:$0x3] %vm1213, %v6959
    %s6963 = scalar_lea.vmem [#allocation4], 10
    %6964 = vst.msk [vmem:[%s6963] sm:$0x3] %vm690, %v6449
    // Predicated region
    $region66: #{decoder_forward.3} parent=1 // pred_check
      _
    $region67: #{decoder_forward.3} parent=1 // pred_check_branch
      %6966 = sbr.rel (0) target = $region69
    $region68: #{decoder_forward.3} parent=1 // pred_region
      %s6968 = ssub.s32 192, 192
      %6969 = vsyncadd [#allocation3], %s6968
      %s6970 = sshll.u32 [#allocation2], 4
      %s6971 = int_to_ptr.vmem [resolvable:$true] %s6970
      %6976 = dma.vmem_to_hbm [thread:$0]  %s6971, 192, %s16, [#allocation3], 32, 32, 2
    $region69: #{decoder_forward.3} parent=1 // pred_fallthru
      _
    // Predicated region
    $region70: #{decoder_forward.3} parent=1 // pred_check
      _
    $region71: #{decoder_forward.3} parent=1 // pred_check_branch
      %6978 = sbr.rel (0) target = $region73
    $region72: #{decoder_forward.3} parent=1 // pred_region
      _
    $region73: #{decoder_forward.3} parent=1 // pred_fallthru
      _
    // Predicated region
    $region74: #{decoder_forward.3} parent=1 // pred_check
      _
    $region75: #{decoder_forward.3} parent=1 // pred_check_branch
      %6980 = sbr.rel (0) target = $region77
    $region76: #{decoder_forward.3} parent=1 // pred_region
      %s6982 = ssub.s32 192, 192
      %6983 = vsyncadd [#allocation5], %s6982
      %s6984 = sshll.u32 [#allocation4], 4
      %s6985 = int_to_ptr.vmem [resolvable:$true] %s6984
      %6990 = dma.vmem_to_hbm [thread:$0]  %s6985, 192, %s18, [#allocation5], 32, 32, 2
    $region77: #{decoder_forward.3} parent=1 // pred_fallthru
      _
    // Predicated region
    $region78: #{decoder_forward.3} parent=1 // pred_check
      _
    $region79: #{decoder_forward.3} parent=1 // pred_check_branch
      %6992 = sbr.rel (0) target = $region81
    $region80: #{decoder_forward.3} parent=1 // pred_region
      %6993 = dma.done [#allocation3], 192
    $region81: #{decoder_forward.3} parent=1 // pred_fallthru
      _
    // Predicated region
    $region82: #{decoder_forward.3} parent=1 // pred_check
      _
    $region83: #{decoder_forward.3} parent=1 // pred_check_branch
      %6995 = sbr.rel (0) target = $region85
    $region84: #{decoder_forward.3} parent=1 // pred_region
      _
    $region85: #{decoder_forward.3} parent=1 // pred_fallthru
      _
    // Predicated region
    $region86: #{decoder_forward.3} parent=1 // pred_check
      _
    $region87: #{decoder_forward.3} parent=1 // pred_check_branch
      %6997 = sbr.rel (0) target = $region89
    $region88: #{decoder_forward.3} parent=1 // pred_region
      %6998 = dma.done [#allocation5], 192
    $region89: #{decoder_forward.3} parent=1 // pred_fallthru
      _
    %6999 = vsyncpa [#allocation3], 1
    %7000 = vsyncpa [#allocation5], 1

</llo_original>
